<compile_context>
chip_gen: v7x
topology: tpu7x:2x2x1
jax: 0.10.0
libtpu: 0.0.40
codegen_flags: <defaults>
</compile_context>

<pallas_src>
import functools

import jax
import jax.numpy as jnp
from jax import lax
from jax.experimental import pallas as pl
from jax.experimental.pallas import tpu as pltpu

_VMEM_LIMIT = 32 * 1024 * 1024      # valid on every generation (v7x: 64 MiB physical/TC)
_BN_EPS = 1e-5

_CPARAMS_NOGRID = pltpu.CompilerParams(vmem_limit_bytes=_VMEM_LIMIT)


def _relu(x):
    # LeakyReLU with negative_slope=0 == ReLU.
    return jnp.maximum(x, 0.0)


def _assert_fits_vmem(*arrays, extra_f32_elems=0):
    """Guard the single-block (whole-M-resident) kernels against VMEM overflow."""
    est = sum(int(a.size) * a.dtype.itemsize for a in arrays) + 4 * int(extra_f32_elems)
    budget = 24 * 1024 * 1024       # headroom under the 32 MiB scoped limit
    assert est <= budget, (
        f"single-block working set ~{est} B exceeds VMEM budget {budget} B; "
        "switch the fused-BN layers to a tiled two-pass reduction before scaling up")


# ---------------------------------------------------------------------------
# Pallas kernels
# ---------------------------------------------------------------------------
def _conv1_kernel(x_ref, w_ref, b_ref, o_ref):
    """One M-tile of the conv1 im2col GEMM + bias + ReLU (bf16 out, f32 acc)."""
    acc = jnp.dot(x_ref[...], w_ref[...], preferred_element_type=jnp.float32)
    o_ref[...] = _relu(acc + b_ref[...]).astype(o_ref.dtype)


def _conv2_bn_kernel(x_ref, w_ref, b_ref, g_ref, bt_ref, o_ref):
    """conv2 GEMM + bias + ReLU + training-mode BatchNorm, all rows resident."""
    acc = jnp.dot(x_ref[...], w_ref[...], preferred_element_type=jnp.float32)
    y = _relu(acc + b_ref[...])
    m = y.shape[0]                                   # == N*OH*OW exactly (no padded rows)
    mean = jnp.sum(y, axis=0, keepdims=True) * (1.0 / m)
    d = y - mean
    var = jnp.sum(d * d, axis=0, keepdims=True) * (1.0 / m)   # biased, as PyTorch training
    o_ref[...] = (d * lax.rsqrt(var + _BN_EPS) * g_ref[...] + bt_ref[...]).astype(o_ref.dtype)


def _conv3_bn_conv4_kernel(x_ref, w3_ref, b3_ref, g3_ref, bt3_ref,
                           w4_ref, b4_ref, o_ref, *, n_batch):
    """conv3 GEMM + bias + ReLU + BatchNorm + conv4 (Cout=1) + sigmoid, fused."""
    acc = jnp.dot(x_ref[...], w3_ref[...], preferred_element_type=jnp.float32)  # (N*9, 512)
    y = _relu(acc + b3_ref[...])
    m = y.shape[0]
    mean = jnp.sum(y, axis=0, keepdims=True) * (1.0 / m)
    d = y - mean
    var = jnp.sum(d * d, axis=0, keepdims=True) * (1.0 / m)
    y = d * lax.rsqrt(var + _BN_EPS) * g3_ref[...] + bt3_ref[...]

    # conv4: single output channel over the full 3x3x512 window -> VPU reduction
    # on the VMEM-resident conv3 activation (no 128x-padded weight stream).
    w4 = w4_ref[...].astype(jnp.float32)             # (9, 512), rows = kh*3 + kw
    outs = []
    for n in range(n_batch):                         # tiny static loop
        blk = y[n * 9:(n + 1) * 9, :] * w4           # (9, 512)
        s = jnp.sum(jnp.sum(blk, axis=0, keepdims=True), axis=1, keepdims=True)  # (1, 1)
        outs.append(s)
    logits = jnp.concatenate(outs, axis=0) + b4_ref[...]        # (N, 1)
    o_ref[...] = jax.nn.sigmoid(logits)


# ---------------------------------------------------------------------------
# Thin XLA glue: channels-last im2col on bf16 data (tens of KiB per layer)
# ---------------------------------------------------------------------------
def _im2col_nhwc(x, kh, kw, stride, pad):
    """x: (N, H, W, C) -> ((N*OH*OW, KH*KW*C), OH, OW); column order (kh, kw, c)."""
    n, h, w, c = x.shape
    if pad:
        x = jnp.pad(x, ((0, 0), (pad, pad), (pad, pad), (0, 0)))
    oh = (h + 2 * pad - kh) // stride + 1
    ow = (w + 2 * pad - kw) // stride + 1
    taps = []
    for i in range(kh):
        for j in range(kw):
            taps.append(x[:, i:i + stride * oh:stride, j:j + stride * ow:stride, :])
    p = jnp.stack(taps, axis=3)                      # (N, OH, OW, KH*KW, C)
    return p.reshape(n * oh * ow, kh * kw * c), oh, ow


# ---------------------------------------------------------------------------
# pallas_call wrappers
# ---------------------------------------------------------------------------
def _conv1_call(x1, w1, b1):
    M, K = x1.shape
    C = w1.shape[1]
    # Split M into two "parallel" steps (multiple-of-16 tiles for bf16 packing)
    # so v7x can shard across its two TensorCores; negligible cost elsewhere.
    if M % 32 == 0:
        tm, steps = M // 2, 2
    else:
        tm, steps = M, 1
    return pl.pallas_call(
        _conv1_kernel,
        out_shape=jax.ShapeDtypeStruct((M, C), jnp.bfloat16),
        grid=(steps,),
        in_specs=[
            pl.BlockSpec((tm, K), lambda i: (i, 0)),
            pl.BlockSpec((K, C), lambda i: (0, 0)),
            pl.BlockSpec((1, C), lambda i: (0, 0)),
        ],
        out_specs=pl.BlockSpec((tm, C), lambda i: (i, 0)),
        compiler_params=pltpu.CompilerParams(
            dimension_semantics=("parallel",),
            vmem_limit_bytes=_VMEM_LIMIT),
    )(x1, w1, b1)


def _conv2_call(x2, w2, b2, g2, bt2):
    M = x2.shape[0]
    C = w2.shape[1]
    _assert_fits_vmem(x2, w2, extra_f32_elems=4 * M * C)
    return pl.pallas_call(
        _conv2_bn_kernel,
        out_shape=jax.ShapeDtypeStruct((M, C), jnp.bfloat16),
        compiler_params=_CPARAMS_NOGRID,
    )(x2, w2, b2, g2, bt2)


def _conv3_call(x3, w3, b3, g3, bt3, w4, b4, *, n_batch):
    M = x3.shape[0]
    C = w3.shape[1]
    assert M == n_batch * w4.shape[0], "conv3 output window must match conv4 kernel"
    _assert_fits_vmem(x3, w3, w4, extra_f32_elems=4 * M * C)
    kernel = functools.partial(_conv3_bn_conv4_kernel, n_batch=n_batch)
    return pl.pallas_call(
        kernel,
        out_shape=jax.ShapeDtypeStruct((n_batch, 1), jnp.float32),
        compiler_params=_CPARAMS_NOGRID,
    )(x3, w3, b3, g3, bt3, w4, b4)


# ---------------------------------------------------------------------------
# One-time parameter packing (hoisted OUT of the jitted forward)
# ---------------------------------------------------------------------------
def pack_params(p):
    def pack_w(w):                        # (Cout, Cin, KH, KW) -> (KH*KW*Cin, Cout) bf16
        cout = w.shape[0]
        return jnp.transpose(w, (2, 3, 1, 0)).reshape(-1, cout).astype(jnp.bfloat16)

    def row(v):                           # (C,) -> (1, C) f32
        return v.reshape(1, -1).astype(jnp.float32)

    w1 = pack_w(p["w1"])                  # (16, 128): pad K -> 128 for lane-dense loads
    w1 = jnp.pad(w1, ((0, 128 - w1.shape[0]), (0, 0)))
    # conv4 weight as (KH*KW, Cin) = (9, 512), row index = kh*3 + kw.
    w4 = jnp.transpose(p["w4"][0], (1, 2, 0)).reshape(9, -1).astype(jnp.bfloat16)

    return {
        "w1": w1, "b1": row(p["b1"]),
        "w2": pack_w(p["w2"]), "b2": row(p["b2"]),
        "g2": row(p["g2"]), "bt2": row(p["bt2"]),
        "w3": pack_w(p["w3"]), "b3": row(p["b3"]),
        "g3": row(p["g3"]), "bt3": row(p["bt3"]),
        "w4": w4, "b4": p["b4"].reshape(1, 1).astype(jnp.float32),
    }


# ---------------------------------------------------------------------------
# discriminator forward (NCHW at the boundaries, channels-last bf16 inside)
# ---------------------------------------------------------------------------
def discriminator_forward(x, pp):
    n = x.shape[0]
    # NCHW -> NHWC once; cast to bf16 BEFORE any patch extraction.
    h = jnp.transpose(x, (0, 2, 3, 1)).astype(jnp.bfloat16)

    # layer 1: ReLU(conv1)
    x1, oh1, ow1 = _im2col_nhwc(h, 4, 4, 2, 1)                       # (N*16*16, 16)
    x1 = jnp.pad(x1, ((0, 0), (0, pp["w1"].shape[0] - x1.shape[1])))  # K 16 -> 128
    y1 = _conv1_call(x1, pp["w1"], pp["b1"])                          # (N*256, 128) bf16

    # layer 2: bn2d2(ReLU(conv2)) fused in one kernel
    x2, oh2, ow2 = _im2col_nhwc(y1.reshape(n, oh1, ow1, -1), 4, 4, 2, 1)   # (N*64, 2048)
    y2 = _conv2_call(x2, pp["w2"], pp["b2"], pp["g2"], pp["bt2"])          # (N*64, 256) bf16

    # layers 3+4: bn2d3(ReLU(conv3)), conv4, sigmoid fused in one kernel
    x3, _, _ = _im2col_nhwc(y2.reshape(n, oh2, ow2, -1), 3, 3, 2, 0)       # (N*9, 2304)
    out = _conv3_call(x3, pp["w3"], pp["b3"], pp["g3"], pp["bt3"],
                      pp["w4"], pp["b4"], n_batch=n)                       # (N, 1) f32
    return out.reshape(n, 1, 1, 1)


def init_params(key):
    ks = jax.random.split(key, 8)

    def conv_w(k, cout, cin, kh, kw):
        return 0.05 * jax.random.normal(k, (cout, cin, kh, kw), jnp.float32)

    return {
        "w1": conv_w(ks[0], 128, 1, 4, 4),
        "b1": 0.01 * jax.random.normal(ks[1], (128,), jnp.float32),
        "w2": conv_w(ks[2], 256, 128, 4, 4),
        "b2": 0.01 * jax.random.normal(ks[3], (256,), jnp.float32),
        "w3": conv_w(ks[4], 512, 256, 3, 3),
        "b3": 0.01 * jax.random.normal(ks[5], (512,), jnp.float32),
        "w4": conv_w(ks[6], 1, 512, 3, 3),
        "b4": jnp.zeros((1,), jnp.float32),
        "g2": jnp.ones((256,), jnp.float32),
        "bt2": jnp.zeros((256,), jnp.float32),
        "g3": jnp.ones((512,), jnp.float32),
        "bt3": jnp.zeros((512,), jnp.float32),
    }


if __name__ == "__main__":
    key = jax.random.PRNGKey(0)
    pkey, xkey = jax.random.split(key)
    params = init_params(pkey)
    packed = pack_params(params)          # one-time weight packing, outside the forward

    # NCHW input, 1 channel; 32x32 is the smallest spatial size this
    # architecture supports (32 -> 16 -> 8 -> 3 -> 1).
    x = jax.random.normal(xkey, (2, 1, 32, 32), jnp.float32)

    fwd = jax.jit(discriminator_forward)
    y = jax.block_until_ready(fwd(x, packed))

    assert y.shape == (2, 1, 1, 1), y.shape
    assert bool(jnp.all(jnp.isfinite(y)))
    assert bool(jnp.all((y > 0.0) & (y < 1.0)))   # sigmoid output range
    print("KERNEL_OK")
</pallas_src>

<mosaic_0001>
module attributes {stable_mosaic.version = 11 : i64} {
  func.func @_conv1_kernel(%arg0: i32, %arg1: memref<256x128xbf16, #tpu.memory_space<vmem>>, %arg2: memref<128x128xbf16, #tpu.memory_space<vmem>>, %arg3: memref<1x128xf32, #tpu.memory_space<vmem>>, %arg4: memref<256x128xbf16, #tpu.memory_space<vmem>>) attributes {dimension_semantics = [#tpu.dimension_semantics<parallel>], iteration_bounds = array<i64: 2>, scalar_prefetch = 0 : i64, scratch_operands = 0 : i64, tpu.core_type = #tpu.core_type<tc>, window_params = [{transform_indices = @transform_0, window_bounds = array<i64: 256, 128>}, {pipeline_mode = #tpu.pipeline_mode<synchronous>, transform_indices = @transform_1, window_bounds = array<i64: 128, 128>}, {pipeline_mode = #tpu.pipeline_mode<synchronous>, transform_indices = @transform_2, window_bounds = array<i64: 1, 128>}, {transform_indices = @transform_3, window_bounds = array<i64: 256, 128>}]} {
    %c0 = arith.constant 0 : index
    %c0_0 = arith.constant 0 : index
    %0 = vector.load %arg1[%c0, %c0_0] : memref<256x128xbf16, #tpu.memory_space<vmem>>, vector<256x128xbf16>
    %c0_1 = arith.constant 0 : index
    %c0_2 = arith.constant 0 : index
    %1 = vector.load %arg2[%c0_1, %c0_2] : memref<128x128xbf16, #tpu.memory_space<vmem>>, vector<128x128xbf16>
    %cst = arith.constant dense<0.000000e+00> : vector<256x128xf32>
    %2 = tpu.matmul %0, %1, %cst {dimension_numbers = #tpu.dot_dimension_numbers<[1], [0], [0], [1], [0, 0, 1, 1], [], []>} : vector<256x128xbf16>, vector<128x128xbf16>, vector<256x128xf32> -> vector<256x128xf32>
    %c0_3 = arith.constant 0 : index
    %c0_4 = arith.constant 0 : index
    %3 = vector.load %arg3[%c0_3, %c0_4] : memref<1x128xf32, #tpu.memory_space<vmem>>, vector<1x128xf32>
    %4 = vector.broadcast %3 : vector<1x128xf32> to vector<256x128xf32>
    %5 = arith.addf %2, %4 : vector<256x128xf32>
    %cst_5 = arith.constant 0.000000e+00 : f32
    %6 = vector.broadcast %cst_5 : f32 to vector<256x128xf32>
    %7 = arith.maximumf %5, %6 : vector<256x128xf32>
    %8 = arith.truncf %7 : vector<256x128xf32> to vector<256x128xbf16>
    %c0_6 = arith.constant 0 : index
    %c0_7 = arith.constant 0 : index
    %9 = vector.load %arg4[%c0_6, %c0_7] : memref<256x128xbf16, #tpu.memory_space<vmem>>, vector<256x128xbf16>
    tpu.vector_store %arg4[%c0_6, %c0_7], %8 {strides = array<i32>} : memref<256x128xbf16, #tpu.memory_space<vmem>>, vector<256x128xbf16>,
    return
  }
  func.func @transform_0(%arg0: i32) -> (i32, i32) {
    %c0_i32 = arith.constant 0 : i32
    %c0_i32_0 = arith.constant 0 : i32
    return %arg0, %c0_i32 : i32, i32
  }
  func.func @transform_1(%arg0: i32) -> (i32, i32) {
    %c0_i32 = arith.constant 0 : i32
    %c0_i32_0 = arith.constant 0 : i32
    %c0_i32_1 = arith.constant 0 : i32
    return %c0_i32, %c0_i32_0 : i32, i32
  }
  func.func @transform_2(%arg0: i32) -> (i32, i32) {
    %c0_i32 = arith.constant 0 : i32
    %c0_i32_0 = arith.constant 0 : i32
    %c0_i32_1 = arith.constant 0 : i32
    return %c0_i32, %c0_i32_0 : i32, i32
  }
  func.func @transform_3(%arg0: i32) -> (i32, i32) {
    %c0_i32 = arith.constant 0 : i32
    %c0_i32_0 = arith.constant 0 : i32
    return %arg0, %c0_i32 : i32, i32
  }
}

module attributes {stable_mosaic.version = 11 : i64} {
  func.func @_conv2_bn_kernel(%arg0: memref<128x2048xbf16, #tpu.memory_space<vmem>>, %arg1: memref<2048x256xbf16, #tpu.memory_space<vmem>>, %arg2: memref<1x256xf32, #tpu.memory_space<vmem>>, %arg3: memref<1x256xf32, #tpu.memory_space<vmem>>, %arg4: memref<1x256xf32, #tpu.memory_space<vmem>>, %arg5: memref<128x256xbf16, #tpu.memory_space<vmem>>) attributes {dimension_semantics = [], scalar_prefetch = 0 : i64, scratch_operands = 0 : i64, tpu.core_type = #tpu.core_type<tc>} {
    %c0 = arith.constant 0 : index
    %c0_0 = arith.constant 0 : index
    %0 = vector.load %arg0[%c0, %c0_0] : memref<128x2048xbf16, #tpu.memory_space<vmem>>, vector<128x2048xbf16>
    %c0_1 = arith.constant 0 : index
    %c0_2 = arith.constant 0 : index
    %1 = vector.load %arg1[%c0_1, %c0_2] : memref<2048x256xbf16, #tpu.memory_space<vmem>>, vector<2048x256xbf16>
    %cst = arith.constant dense<0.000000e+00> : vector<128x256xf32>
    %2 = tpu.matmul %0, %1, %cst {dimension_numbers = #tpu.dot_dimension_numbers<[1], [0], [0], [1], [0, 0, 1, 1], [], []>} : vector<128x2048xbf16>, vector<2048x256xbf16>, vector<128x256xf32> -> vector<128x256xf32>
    %c0_3 = arith.constant 0 : index
    %c0_4 = arith.constant 0 : index
    %3 = vector.load %arg2[%c0_3, %c0_4] : memref<1x256xf32, #tpu.memory_space<vmem>>, vector<1x256xf32>
    %4 = vector.broadcast %3 : vector<1x256xf32> to vector<128x256xf32>
    %5 = arith.addf %2, %4 : vector<128x256xf32>
    %cst_5 = arith.constant 0.000000e+00 : f32
    %6 = vector.broadcast %cst_5 : f32 to vector<128x256xf32>
    %7 = arith.maximumf %5, %6 : vector<128x256xf32>
    %cst_6 = arith.constant dense<0.000000e+00> : vector<256xf32>
    %8 = vector.multi_reduction <add>, %7, %cst_6 [0] : vector<128x256xf32> to vector<256xf32>
    %9 = vector.shape_cast %8 : vector<256xf32> to vector<1x256xf32>
    %cst_7 = arith.constant 7.812500e-03 : f32
    %10 = vector.broadcast %cst_7 : f32 to vector<1x256xf32>
    %11 = arith.mulf %9, %10 : vector<1x256xf32>
    %12 = vector.broadcast %11 : vector<1x256xf32> to vector<128x256xf32>
    %13 = arith.subf %7, %12 : vector<128x256xf32>
    %14 = arith.mulf %13, %13 : vector<128x256xf32>
    %cst_8 = arith.constant dense<0.000000e+00> : vector<256xf32>
    %15 = vector.multi_reduction <add>, %14, %cst_8 [0] : vector<128x256xf32> to vector<256xf32>
    %16 = vector.shape_cast %15 : vector<256xf32> to vector<1x256xf32>
    %cst_9 = arith.constant 7.812500e-03 : f32
    %17 = vector.broadcast %cst_9 : f32 to vector<1x256xf32>
    %18 = arith.mulf %16, %17 : vector<1x256xf32>
    %cst_10 = arith.constant 9.99999974E-6 : f32
    %19 = vector.broadcast %cst_10 : f32 to vector<1x256xf32>
    %20 = arith.addf %18, %19 : vector<1x256xf32>
    %21 = math.rsqrt %20 : vector<1x256xf32>
    %22 = vector.broadcast %21 : vector<1x256xf32> to vector<128x256xf32>
    %23 = arith.mulf %13, %22 : vector<128x256xf32>
    %c0_11 = arith.constant 0 : index
    %c0_12 = arith.constant 0 : index
    %24 = vector.load %arg3[%c0_11, %c0_12] : memref<1x256xf32, #tpu.memory_space<vmem>>, vector<1x256xf32>
    %25 = vector.broadcast %24 : vector<1x256xf32> to vector<128x256xf32>
    %26 = arith.mulf %23, %25 : vector<128x256xf32>
    %c0_13 = arith.constant 0 : index
    %c0_14 = arith.constant 0 : index
    %27 = vector.load %arg4[%c0_13, %c0_14] : memref<1x256xf32, #tpu.memory_space<vmem>>, vector<1x256xf32>
    %28 = vector.broadcast %27 : vector<1x256xf32> to vector<128x256xf32>
    %29 = arith.addf %26, %28 : vector<128x256xf32>
    %30 = arith.truncf %29 : vector<128x256xf32> to vector<128x256xbf16>
    %c0_15 = arith.constant 0 : index
    %c0_16 = arith.constant 0 : index
    %31 = vector.load %arg5[%c0_15, %c0_16] : memref<128x256xbf16, #tpu.memory_space<vmem>>, vector<128x256xbf16>
    tpu.vector_store %arg5[%c0_15, %c0_16], %30 {strides = array<i32>} : memref<128x256xbf16, #tpu.memory_space<vmem>>, vector<128x256xbf16>,
    return
  }
}

module attributes {stable_mosaic.version = 11 : i64} {
  func.func @_conv3_bn_conv4_kernel(%arg0: memref<18x2304xbf16, #tpu.memory_space<vmem>>, %arg1: memref<2304x512xbf16, #tpu.memory_space<vmem>>, %arg2: memref<1x512xf32, #tpu.memory_space<vmem>>, %arg3: memref<1x512xf32, #tpu.memory_space<vmem>>, %arg4: memref<1x512xf32, #tpu.memory_space<vmem>>, %arg5: memref<9x512xbf16, #tpu.memory_space<vmem>>, %arg6: memref<1x1xf32, #tpu.memory_space<vmem>>, %arg7: memref<2x1xf32, #tpu.memory_space<vmem>>) attributes {dimension_semantics = [], scalar_prefetch = 0 : i64, scratch_operands = 0 : i64, tpu.core_type = #tpu.core_type<tc>} {
    %c0 = arith.constant 0 : index
    %c0_0 = arith.constant 0 : index
    %0 = vector.load %arg0[%c0, %c0_0] : memref<18x2304xbf16, #tpu.memory_space<vmem>>, vector<18x2304xbf16>
    %c0_1 = arith.constant 0 : index
    %c0_2 = arith.constant 0 : index
    %1 = vector.load %arg1[%c0_1, %c0_2] : memref<2304x512xbf16, #tpu.memory_space<vmem>>, vector<2304x512xbf16>
    %cst = arith.constant dense<0.000000e+00> : vector<18x512xf32>
    %2 = tpu.matmul %0, %1, %cst {dimension_numbers = #tpu.dot_dimension_numbers<[1], [0], [0], [1], [0, 0, 1, 1], [], []>} : vector<18x2304xbf16>, vector<2304x512xbf16>, vector<18x512xf32> -> vector<18x512xf32>
    %c0_3 = arith.constant 0 : index
    %c0_4 = arith.constant 0 : index
    %3 = vector.load %arg2[%c0_3, %c0_4] : memref<1x512xf32, #tpu.memory_space<vmem>>, vector<1x512xf32>
    %4 = vector.broadcast %3 : vector<1x512xf32> to vector<18x512xf32>
    %5 = arith.addf %2, %4 : vector<18x512xf32>
    %cst_5 = arith.constant 0.000000e+00 : f32
    %6 = vector.broadcast %cst_5 : f32 to vector<18x512xf32>
    %7 = arith.maximumf %5, %6 : vector<18x512xf32>
    %cst_6 = arith.constant dense<0.000000e+00> : vector<512xf32>
    %8 = vector.multi_reduction <add>, %7, %cst_6 [0] : vector<18x512xf32> to vector<512xf32>
    %9 = vector.shape_cast %8 : vector<512xf32> to vector<1x512xf32>
    %cst_7 = arith.constant 0.055555556 : f32
    %10 = vector.broadcast %cst_7 : f32 to vector<1x512xf32>
    %11 = arith.mulf %9, %10 : vector<1x512xf32>
    %12 = vector.broadcast %11 : vector<1x512xf32> to vector<18x512xf32>
    %13 = arith.subf %7, %12 : vector<18x512xf32>
    %14 = arith.mulf %13, %13 : vector<18x512xf32>
    %cst_8 = arith.constant dense<0.000000e+00> : vector<512xf32>
    %15 = vector.multi_reduction <add>, %14, %cst_8 [0] : vector<18x512xf32> to vector<512xf32>
    %16 = vector.shape_cast %15 : vector<512xf32> to vector<1x512xf32>
    %cst_9 = arith.constant 0.055555556 : f32
    %17 = vector.broadcast %cst_9 : f32 to vector<1x512xf32>
    %18 = arith.mulf %16, %17 : vector<1x512xf32>
    %cst_10 = arith.constant 9.99999974E-6 : f32
    %19 = vector.broadcast %cst_10 : f32 to vector<1x512xf32>
    %20 = arith.addf %18, %19 : vector<1x512xf32>
    %21 = math.rsqrt %20 : vector<1x512xf32>
    %22 = vector.broadcast %21 : vector<1x512xf32> to vector<18x512xf32>
    %23 = arith.mulf %13, %22 : vector<18x512xf32>
    %c0_11 = arith.constant 0 : index
    %c0_12 = arith.constant 0 : index
    %24 = vector.load %arg3[%c0_11, %c0_12] : memref<1x512xf32, #tpu.memory_space<vmem>>, vector<1x512xf32>
    %25 = vector.broadcast %24 : vector<1x512xf32> to vector<18x512xf32>
    %26 = arith.mulf %23, %25 : vector<18x512xf32>
    %c0_13 = arith.constant 0 : index
    %c0_14 = arith.constant 0 : index
    %27 = vector.load %arg4[%c0_13, %c0_14] : memref<1x512xf32, #tpu.memory_space<vmem>>, vector<1x512xf32>
    %28 = vector.broadcast %27 : vector<1x512xf32> to vector<18x512xf32>
    %29 = arith.addf %26, %28 : vector<18x512xf32>
    %c0_15 = arith.constant 0 : index
    %c0_16 = arith.constant 0 : index
    %30 = vector.load %arg5[%c0_15, %c0_16] : memref<9x512xbf16, #tpu.memory_space<vmem>>, vector<9x512xbf16>
    %31 = arith.extf %30 : vector<9x512xbf16> to vector<9x512xf32>
    %32 = vector.extract_strided_slice %29 {offsets = [0, 0], sizes = [9, 512], strides = [1, 1]} : vector<18x512xf32> to vector<9x512xf32>
    %33 = arith.mulf %32, %31 : vector<9x512xf32>
    %cst_17 = arith.constant dense<0.000000e+00> : vector<512xf32>
    %34 = vector.multi_reduction <add>, %33, %cst_17 [0] : vector<9x512xf32> to vector<512xf32>
    %35 = vector.shape_cast %34 : vector<512xf32> to vector<1x512xf32>
    %cst_18 = arith.constant dense<0.000000e+00> : vector<1xf32>
    %36 = vector.multi_reduction <add>, %35, %cst_18 [1] : vector<1x512xf32> to vector<1xf32>
    %37 = vector.shape_cast %36 : vector<1xf32> to vector<1x1xf32>
    %38 = vector.extract_strided_slice %29 {offsets = [9, 0], sizes = [9, 512], strides = [1, 1]} : vector<18x512xf32> to vector<9x512xf32>
    %39 = arith.mulf %38, %31 : vector<9x512xf32>
    %cst_19 = arith.constant dense<0.000000e+00> : vector<512xf32>
    %40 = vector.multi_reduction <add>, %39, %cst_19 [0] : vector<9x512xf32> to vector<512xf32>
    %41 = vector.shape_cast %40 : vector<512xf32> to vector<1x512xf32>
    %cst_20 = arith.constant dense<0.000000e+00> : vector<1xf32>
    %42 = vector.multi_reduction <add>, %41, %cst_20 [1] : vector<1x512xf32> to vector<1xf32>
    %43 = vector.shape_cast %42 : vector<1xf32> to vector<1x1xf32>
    %44 = tpu.concatenate %37, %43 in 0 : vector<1x1xf32>, vector<1x1xf32> -> vector<2x1xf32>
    %c0_21 = arith.constant 0 : index
    %c0_22 = arith.constant 0 : index
    %45 = vector.load %arg6[%c0_21, %c0_22] : memref<1x1xf32, #tpu.memory_space<vmem>>, vector<1x1xf32>
    %46 = vector.broadcast %45 : vector<1x1xf32> to vector<2x1xf32>
    %47 = arith.addf %44, %46 : vector<2x1xf32>
    %48 = arith.negf %47 : vector<2x1xf32>
    %49 = math.exp %48 : vector<2x1xf32>
    %cst_23 = arith.constant 1.000000e+00 : f32
    %50 = vector.broadcast %cst_23 : f32 to vector<2x1xf32>
    %51 = arith.addf %50, %49 : vector<2x1xf32>
    %52 = arith.divf %50, %51 : vector<2x1xf32>
    %c0_24 = arith.constant 0 : index
    %c0_25 = arith.constant 0 : index
    %53 = vector.load %arg7[%c0_24, %c0_25] : memref<2x1xf32, #tpu.memory_space<vmem>>, vector<2x1xf32>
    tpu.vector_store %arg7[%c0_24, %c0_25], %52 {strides = array<i32>} : memref<2x1xf32, #tpu.memory_space<vmem>>, vector<2x1xf32>,
    return
  }
}

</mosaic_0001>

<llo_original>
// kernel: discriminator_forward.3
$region0: #{discriminator_forward.3}
  #allocation0 [shape = 'u32[]', space=smem, size = 0x4, offset = 0x4, fixed_abs, tag = 'smem constant byte address 0x4 - core index']
  #allocation1 [shape = 'u32[144,128]{1,0:T(1,128)}', space=vmem, size = 0x12000, scoped, tag = 'internal scratch']
  %s0 = inlined_call_operand.vmem [shape: bf16[512,128], index: 0, kind: input, shape index: {}]
  %s1 = inlined_call_operand.hbm [shape: bf16[128,128], index: 1, kind: input, shape index: {}]
  %s2 = inlined_call_operand.hbm [shape: f32[1,128], index: 2, kind: input, shape index: {}]
  %s3 = inlined_call_operand.vmem [shape: bf16[512,128], index: 3, kind: output, shape index: {}]
  %s4 = sld [smem:[#allocation0]]
  $region53: #{discriminator_forward.3} parent=0
    _
  %s6 = ssub.s32 1, %s4
  %s7 = scalar_select 0, %s6, %s4
  $region1: #{discriminator_forward.3} parent=0
    #allocation2 [shape = 'u8[32768]{0}', space=vmem, size = 0x8000, scoped, tag = 'input window, operand 1, single buffered']
    #allocation3 [shape = 's32[2]{0}', space=sflag, size = 0x8, scoped, tag = 'scoped memory for discriminator_forward.3']
    #allocation4 [shape = 'u8[512]{0}', space=vmem, size = 0x400, scoped, tag = 'input window, operand 2, single buffered']
    #allocation5 [shape = 's32[1]{0}', space=sflag, size = 0x4, scoped, tag = 'scoped memory for discriminator_forward.3']
    %8 = vsyncpa [#allocation3], 0
    %9 = vsyncpa [#allocation5], 0
    loop: start=0, step=1, limit=4
    $region2: #{discriminator_forward.3} parent=1 // loop_pre_header
      _
    $region3: #{discriminator_forward.3} parent=1 // loop_header
      %s11 = sphi 0, %s15
      %p12 = scmp.ge.s32.totalorder %s11, 4
      %s21 = sphi 0, %s23
      %s24 = sphi 0, %s21
      %s25 = sphi 0, %s24
      %s41 = sphi 0, %s25
      %s45 = sphi 0, %s45
      %s47 = sphi 0, %s45
      %s48 = sphi 0, %s47
      %s62 = sphi 0, %s48
      %s66 = sphi 0, %s66
      %s68 = sphi 0, %s66
      %s69 = sphi 0, %s68
      %s83 = sphi 0, %s69
      %s89 = sphi 0, %s91
      %s92 = sphi 0, %s89
      %s93 = sphi 0, %s92
      %s109 = sphi 0, %s93
    $region4: #{discriminator_forward.3} parent=1 // loop_header_branch
      %14 = sbr.rel (%p12) target = $region8
    $region5: #{discriminator_forward.3} parent=1 // loop_body
      %s16 = ssub.s32 %s11, 1
      %s17 = ssub.s32 %s11, 2
      %s18 = sadd.s32 %s11, 1
      %s19 = ssub.s32 %s11, %s18
      %p20 = scmp.eq.s32.totalorder %s19, 0
      %s22 = sadd.s32 %s21, 1
      %s23 = scalar_select %p20, %s21, %s22
      %p26 = pneg %p20
      %p27 = scmp.eq.s32.totalorder %s11, 1
      %p28 = por %p26, %p27
      %p29 = scmp.ne.s32.totalorder %s21, %s24
      %p30 = scmp.eq.s32.totalorder %s11, 0
      %p31 = por %p29, %p30
      %p32 = scmp.ne.s32.totalorder %s21, %s24
      %p33 = scmp.eq.s32.totalorder %s16, 1
      %p34 = por %p32, %p33
      %p35 = scmp.ne.s32.totalorder %s24, %s25
      %p36 = scmp.eq.s32.totalorder %s16, 0
      %p37 = por %p35, %p36
      %p38 = scmp.ne.s32.totalorder %s24, %s25
      %p39 = scmp.eq.s32.totalorder %s17, 1
      %p40 = por %p38, %p39
      %p42 = scmp.ne.s32.totalorder %s25, %s41
      %p43 = scmp.eq.s32.totalorder %s17, 0
      %p44 = por %p42, %p43
      %s46 = sadd.s32 %s45, 1
      %p49 = scmp.eq.s32.totalorder %s11, 1
      %p50 = scmp.ne.s32.totalorder %s45, %s47
      %p51 = scmp.eq.s32.totalorder %s11, 0
      %p52 = por %p50, %p51
      %p53 = scmp.ne.s32.totalorder %s45, %s47
      %p54 = scmp.eq.s32.totalorder %s16, 1
      %p55 = por %p53, %p54
      %p56 = scmp.ne.s32.totalorder %s47, %s48
      %p57 = scmp.eq.s32.totalorder %s16, 0
      %p58 = por %p56, %p57
      %p59 = scmp.ne.s32.totalorder %s47, %s48
      %p60 = scmp.eq.s32.totalorder %s17, 1
      %p61 = por %p59, %p60
      %p63 = scmp.ne.s32.totalorder %s48, %s62
      %p64 = scmp.eq.s32.totalorder %s17, 0
      %p65 = por %p63, %p64
      %s67 = sadd.s32 %s66, 1
      %p70 = scmp.eq.s32.totalorder %s11, 1
      %p71 = scmp.ne.s32.totalorder %s66, %s68
      %p72 = scmp.eq.s32.totalorder %s11, 0
      %p73 = por %p71, %p72
      %p74 = scmp.ne.s32.totalorder %s66, %s68
      %p75 = scmp.eq.s32.totalorder %s16, 1
      %p76 = por %p74, %p75
      %p77 = scmp.ne.s32.totalorder %s68, %s69
      %p78 = scmp.eq.s32.totalorder %s16, 0
      %p79 = por %p77, %p78
      %p80 = scmp.ne.s32.totalorder %s68, %s69
      %p81 = scmp.eq.s32.totalorder %s17, 1
      %p82 = por %p80, %p81
      %p84 = scmp.ne.s32.totalorder %s69, %s83
      %p85 = scmp.eq.s32.totalorder %s17, 0
      %p86 = por %p84, %p85
      %s87 = ssub.s32 %s11, %s18
      %p88 = scmp.eq.s32.totalorder %s87, 0
      %s90 = sadd.s32 %s89, 1
      %s91 = scalar_select %p88, %s89, %s90
      %p94 = pneg %p88
      %p95 = scmp.eq.s32.totalorder %s11, 1
      %p96 = por %p94, %p95
      %p97 = scmp.ne.s32.totalorder %s89, %s92
      %p98 = scmp.eq.s32.totalorder %s11, 0
      %p99 = por %p97, %p98
      %p100 = scmp.ne.s32.totalorder %s89, %s92
      %p101 = scmp.eq.s32.totalorder %s16, 1
      %p102 = por %p100, %p101
      %p103 = scmp.ne.s32.totalorder %s92, %s93
      %p104 = scmp.eq.s32.totalorder %s16, 0
      %p105 = por %p103, %p104
      %p106 = scmp.ne.s32.totalorder %s92, %s93
      %p107 = scmp.eq.s32.totalorder %s17, 1
      %p108 = por %p106, %p107
      %p110 = scmp.ne.s32.totalorder %s93, %s109
      %p111 = scmp.eq.s32.totalorder %s17, 0
      %p112 = por %p110, %p111
      %p113 = scmp.le.s32.totalorder 1, %s11
      %p114 = scmp.lt.s32.totalorder %s11, 3
      %p115 = pnand %p113, %p114
      %p116 = pneg %p115
      // Predicated region
      $region9: #{discriminator_forward.3} parent=5 // pred_check
        _
      $region10: #{discriminator_forward.3} parent=5 // pred_check_branch
        %118 = sbr.rel (%p115) target = $region12
      $region11: #{discriminator_forward.3} parent=5 // pred_region
        %s119 = ssub.s32 %s11, 1
        // Predicated region
        $region13: #{discriminator_forward.3} parent=11 // pred_check
          %p120 = pneg %p58
        $region14: #{discriminator_forward.3} parent=11 // pred_check_branch
          %122 = sbr.rel (%p120) target = $region16
        $region15: #{discriminator_forward.3} parent=11 // pred_region
          %s124 = ssub.s32 1024, 1024
          %125 = vsyncadd [#allocation3], %s124
          %s126 = sshll.u32 [#allocation2], 4
          %s127 = int_to_ptr.vmem [resolvable:$true] %s126
          %132 = dma.hbm_to_vmem [thread:$0]  %s1, 1024, %s127, [#allocation3], 64, 64, 4
        $region16: #{discriminator_forward.3} parent=11 // pred_fallthru
          _
        // Predicated region
        $region17: #{discriminator_forward.3} parent=11 // pred_check
          %p133 = pneg %p79
        $region18: #{discriminator_forward.3} parent=11 // pred_check_branch
          %135 = sbr.rel (%p133) target = $region20
        $region19: #{discriminator_forward.3} parent=11 // pred_region
          %s137 = ssub.s32 16, 16
          %138 = vsyncadd [#allocation5], %s137
          %s140 = sshll.u32 [#allocation4], 4
          %s141 = int_to_ptr.vmem [resolvable:$true] %s140
          %143 = dma.hbm_to_vmem [thread:$0]  %s2, 16, %s141, [#allocation5]
        $region20: #{discriminator_forward.3} parent=11 // pred_fallthru
          _
      $region12: #{discriminator_forward.3} parent=5 // pred_fallthru
        _
      %p144 = scmp.lt.s32.totalorder %s11, 2
      // Predicated region
      $region21: #{discriminator_forward.3} parent=5 // pred_check
        %p145 = pneg %p144
      $region22: #{discriminator_forward.3} parent=5 // pred_check_branch
        %147 = sbr.rel (%p145) target = $region24
      $region23: #{discriminator_forward.3} parent=5 // pred_region
        // Predicated region
        $region25: #{discriminator_forward.3} parent=23 // pred_check
          %p148 = pneg %p31
        $region26: #{discriminator_forward.3} parent=23 // pred_check_branch
          %150 = sbr.rel (%p148) target = $region28
        $region27: #{discriminator_forward.3} parent=23 // pred_region
          %s151 = smul.u32 32, %s11
          %p152 = scmp.lt.s32.totalorder %s151, 63
          %s153 = scalar_select %p152, %s151, 63
          %s154 = smul.addr %s153, 4
          %s155 = scalar_lea.vmem %s0, %s154
          %s156 = smul.u32 32, %s11
        $region28: #{discriminator_forward.3} parent=23 // pred_fallthru
          _
      $region24: #{discriminator_forward.3} parent=5 // pred_fallthru
        _
      %p157 = scmp.le.s32.totalorder 1, %s11
      %p158 = scmp.lt.s32.totalorder %s11, 3
      %p159 = pnand %p157, %p158
      %p160 = pneg %p159
      // Predicated region
      $region29: #{discriminator_forward.3} parent=5 // pred_check
        _
      $region30: #{discriminator_forward.3} parent=5 // pred_check_branch
        %162 = sbr.rel (%p159) target = $region32
      $region31: #{discriminator_forward.3} parent=5 // pred_region
        %s163 = ssub.s32 %s11, 1
        // Predicated region
        $region33: #{discriminator_forward.3} parent=31 // pred_check
          %p164 = pneg %p58
        $region34: #{discriminator_forward.3} parent=31 // pred_check_branch
          %166 = sbr.rel (%p164) target = $region36
        $region35: #{discriminator_forward.3} parent=31 // pred_region
          %167 = dma.done [#allocation3], 1024
        $region36: #{discriminator_forward.3} parent=31 // pred_fallthru
          _
        // Predicated region
        $region37: #{discriminator_forward.3} parent=31 // pred_check
          %p168 = pneg %p79
        $region38: #{discriminator_forward.3} parent=31 // pred_check_branch
          %170 = sbr.rel (%p168) target = $region40
        $region39: #{discriminator_forward.3} parent=31 // pred_region
          %171 = dma.done [#allocation5], 16
        $region40: #{discriminator_forward.3} parent=31 // pred_fallthru
          _
        %s172 = smul.u32 32, %s16
        %p173 = scmp.lt.s32.totalorder %s172, 63
        %s174 = scalar_select %p173, %s172, 63
        %s175 = smul.addr %s174, 4
        %s176 = scalar_lea.vmem %s0, %s175
        %p177 = pneg %p37
        %p178 = pneg %p34
        %p179 = pneg %p58
        %p180 = pneg %p55
        %p181 = pneg %p79
        %p182 = pneg %p76
        %p183 = pneg %p105
        %p184 = pneg %p102
        %s185 = smul.u32 32, %s16
        %p186 = scmp.lt.s32.totalorder %s185, 63
        %s187 = scalar_select %p186, %s185, 63
        %s188 = smul.addr %s187, 4
        %s189 = scalar_lea.vmem %s3, %s188
        %s190 = smul.u32 32, %s16
        %p191 = scmp.lt.s32.totalorder %s190, 63
        %s192 = scalar_select %p191, %s190, 63
        %s193 = smul.addr %s192, 4
        %s194 = scalar_lea.vmem %s0, %s193
        %s195 = smul.u32 32, %s16
        %s196 = smul.u32 32, %s16
        %p197 = scmp.lt.s32.totalorder %s196, 63
        %s198 = scalar_select %p197, %s196, 63
        %s199 = smul.addr %s198, 4
        %s200 = scalar_lea.vmem %s3, %s199
        %s201 = smul.u32 32, %s16
        %v203 = vld [vmem:[%s194] sm:$0xf]
        %v204 = vld [vmem:[%s194 + $0x4] sm:$0xf]
        %v205 = vld [vmem:[%s194 + $0x8] sm:$0xf]
        %v206 = vld [vmem:[%s194 + $0xc] sm:$0xf]
        %v207 = vld [vmem:[%s194 + $0x10] sm:$0xf]
        %v208 = vld [vmem:[%s194 + $0x14] sm:$0xf]
        %v209 = vld [vmem:[%s194 + $0x18] sm:$0xf]
        %v210 = vld [vmem:[%s194 + $0x1c] sm:$0xf]
        %v211 = vld [vmem:[%s194 + $0x20] sm:$0xf]
        %v212 = vld [vmem:[%s194 + $0x24] sm:$0xf]
        %v213 = vld [vmem:[%s194 + $0x28] sm:$0xf]
        %v214 = vld [vmem:[%s194 + $0x2c] sm:$0xf]
        %v215 = vld [vmem:[%s194 + $0x30] sm:$0xf]
        %v216 = vld [vmem:[%s194 + $0x34] sm:$0xf]
        %v217 = vld [vmem:[%s194 + $0x38] sm:$0xf]
        %v218 = vld [vmem:[%s194 + $0x3c] sm:$0xf]
        %v219 = vld [vmem:[%s194 + $0x40] sm:$0xf]
        %v220 = vld [vmem:[%s194 + $0x44] sm:$0xf]
        %v221 = vld [vmem:[%s194 + $0x48] sm:$0xf]
        %v222 = vld [vmem:[%s194 + $0x4c] sm:$0xf]
        %v223 = vld [vmem:[%s194 + $0x50] sm:$0xf]
        %v224 = vld [vmem:[%s194 + $0x54] sm:$0xf]
        %v225 = vld [vmem:[%s194 + $0x58] sm:$0xf]
        %v226 = vld [vmem:[%s194 + $0x5c] sm:$0xf]
        %v227 = vld [vmem:[%s194 + $0x60] sm:$0xf]
        %v228 = vld [vmem:[%s194 + $0x64] sm:$0xf]
        %v229 = vld [vmem:[%s194 + $0x68] sm:$0xf]
        %v230 = vld [vmem:[%s194 + $0x6c] sm:$0xf]
        %v231 = vld [vmem:[%s194 + $0x70] sm:$0xf]
        %v232 = vld [vmem:[%s194 + $0x74] sm:$0xf]
        %v233 = vld [vmem:[%s194 + $0x78] sm:$0xf]
        %v234 = vld [vmem:[%s194 + $0x7c] sm:$0xf]
        %v235 = vld [vmem:[#allocation2] sm:$0xf]
        %v236 = vld [vmem:[#allocation2 + $0x4] sm:$0xf]
        %v237 = vld [vmem:[#allocation2 + $0x8] sm:$0xf]
        %v238 = vld [vmem:[#allocation2 + $0xc] sm:$0xf]
        %v239 = vld [vmem:[#allocation2 + $0x10] sm:$0xf]
        %v240 = vld [vmem:[#allocation2 + $0x14] sm:$0xf]
        %v241 = vld [vmem:[#allocation2 + $0x18] sm:$0xf]
        %v242 = vld [vmem:[#allocation2 + $0x1c] sm:$0xf]
        %v243 = vld [vmem:[#allocation2 + $0x20] sm:$0xf]
        %v244 = vld [vmem:[#allocation2 + $0x24] sm:$0xf]
        %v245 = vld [vmem:[#allocation2 + $0x28] sm:$0xf]
        %v246 = vld [vmem:[#allocation2 + $0x2c] sm:$0xf]
        %v247 = vld [vmem:[#allocation2 + $0x30] sm:$0xf]
        %v248 = vld [vmem:[#allocation2 + $0x34] sm:$0xf]
        %v249 = vld [vmem:[#allocation2 + $0x38] sm:$0xf]
        %v250 = vld [vmem:[#allocation2 + $0x3c] sm:$0xf]
        %v251 = vld [vmem:[#allocation4] sm:$0x1]
        %v253 = vlaneseq
        %v254 = vshrl.u32 %v253, 7
        %v255 = vsub.s32 0, %v254
        %v256 = vrot.slane %v251, %v255
        %v290 = vunpack.c.l.b16 %v203
        %v291 = vunpack.c.l.b16 %v204
        %v292 = vunpack.c.l.b16 %v205
        %v293 = vunpack.c.l.b16 %v206
        %v294 = vunpack.c.l.b16 %v207
        %v295 = vunpack.c.l.b16 %v208
        %v296 = vunpack.c.l.b16 %v209
        %v297 = vunpack.c.l.b16 %v210
        %v298 = vunpack.c.l.b16 %v211
        %v299 = vunpack.c.l.b16 %v212
        %v300 = vunpack.c.l.b16 %v213
        %v301 = vunpack.c.l.b16 %v214
        %v302 = vunpack.c.l.b16 %v215
        %v303 = vunpack.c.l.b16 %v216
        %v304 = vunpack.c.l.b16 %v217
        %v305 = vunpack.c.l.b16 %v218
        %v306 = vunpack.c.l.b16 %v219
        %v307 = vunpack.c.l.b16 %v220
        %v308 = vunpack.c.l.b16 %v221
        %v309 = vunpack.c.l.b16 %v222
        %v310 = vunpack.c.l.b16 %v223
        %v311 = vunpack.c.l.b16 %v224
        %v312 = vunpack.c.l.b16 %v225
        %v313 = vunpack.c.l.b16 %v226
        %v314 = vunpack.c.l.b16 %v227
        %v315 = vunpack.c.l.b16 %v228
        %v316 = vunpack.c.l.b16 %v229
        %v317 = vunpack.c.l.b16 %v230
        %v318 = vunpack.c.l.b16 %v231
        %v319 = vunpack.c.l.b16 %v232
        %v320 = vunpack.c.l.b16 %v233
        %v321 = vunpack.c.l.b16 %v234
        %v322 = vpack.c.b16 %v291, %v290
        %v323 = vpack.c.b16 %v293, %v292
        %v324 = vpack.c.b16 %v295, %v294
        %v325 = vpack.c.b16 %v297, %v296
        %v326 = vpack.c.b16 %v299, %v298
        %v327 = vpack.c.b16 %v301, %v300
        %v328 = vpack.c.b16 %v303, %v302
        %v329 = vpack.c.b16 %v305, %v304
        %v330 = vpack.c.b16 %v307, %v306
        %v331 = vpack.c.b16 %v309, %v308
        %v332 = vpack.c.b16 %v311, %v310
        %v333 = vpack.c.b16 %v313, %v312
        %v334 = vpack.c.b16 %v315, %v314
        %v335 = vpack.c.b16 %v317, %v316
        %v336 = vpack.c.b16 %v319, %v318
        %v337 = vpack.c.b16 %v321, %v320
        %v370 = vunpack.c.l.b16 %v235
        %v371 = vunpack.c.l.b16 %v236
        %v372 = vunpack.c.l.b16 %v237
        %v373 = vunpack.c.l.b16 %v238
        %v374 = vunpack.c.l.b16 %v239
        %v375 = vunpack.c.l.b16 %v240
        %v376 = vunpack.c.l.b16 %v241
        %v377 = vunpack.c.l.b16 %v242
        %v378 = vunpack.c.l.b16 %v243
        %v379 = vunpack.c.l.b16 %v244
        %v380 = vunpack.c.l.b16 %v245
        %v381 = vunpack.c.l.b16 %v246
        %v382 = vunpack.c.l.b16 %v247
        %v383 = vunpack.c.l.b16 %v248
        %v384 = vunpack.c.l.b16 %v249
        %v385 = vunpack.c.l.b16 %v250
        %v386 = vpack.c.b16 %v371, %v370
        %v387 = vpack.c.b16 %v373, %v372
        %v388 = vpack.c.b16 %v375, %v374
        %v389 = vpack.c.b16 %v377, %v376
        %v390 = vpack.c.b16 %v379, %v378
        %v391 = vpack.c.b16 %v381, %v380
        %v392 = vpack.c.b16 %v383, %v382
        %v393 = vpack.c.b16 %v385, %v384
        %402 = vmatprep.subr.bf16.mxu0 0
        %403 = vmatpush1.bf16.msra.mxu0 %v386
        %404 = vmatprep.subr.bf16.mxu0 0
        %405 = vmatpush1.bf16.msra.mxu0 %v387
        %406 = vmatprep.subr.bf16.mxu0 0
        %407 = vmatpush1.bf16.msra.mxu0 %v388
        %408 = vmatprep.subr.bf16.mxu0 0
        %409 = vmatpush1.bf16.msra.mxu0 %v389
        %410 = vmatprep.subr.bf16.mxu0 0
        %411 = vmatpush1.bf16.msra.mxu0 %v390
        %412 = vmatprep.subr.bf16.mxu0 0
        %413 = vmatpush1.bf16.msra.mxu0 %v391
        %414 = vmatprep.subr.bf16.mxu0 0
        %415 = vmatpush1.bf16.msra.mxu0 %v392
        %416 = vmatprep.subr.bf16.mxu0 0
        %417 = vmatpush1.bf16.msra.mxu0 %v393
        %418 = vmatprep.subr.bf16.mxu0 0
        %419 = vmatpush1.bf16.msra.mxu0 0
        %420 = vmatprep.subr.bf16.mxu0 0
        %421 = vmatpush1.bf16.msra.mxu0 0
        %422 = vmatprep.subr.bf16.mxu0 0
        %423 = vmatpush1.bf16.msra.mxu0 0
        %424 = vmatprep.subr.bf16.mxu0 0
        %425 = vmatpush1.bf16.msra.mxu0 0
        %426 = vmatprep.subr.bf16.mxu0 0
        %427 = vmatpush1.bf16.msra.mxu0 0
        %428 = vmatprep.subr.bf16.mxu0 0
        %429 = vmatpush1.bf16.msra.mxu0 0
        %430 = vmatprep.subr.bf16.mxu0 0
        %431 = vmatpush1.bf16.msra.mxu0 0
        %432 = vmatprep.subr.bf16.mxu0 0
        %433 = vmatpush1.bf16.msra.mxu0 0
        %434 = vmatprep.mubr.bf16.mxu0 0
        %435 = vmatmul.mubr.bf16.gmra.mrb[0].mxu0 %v322
        %v436 = vpop.f32.mrb[0].mxu0
        %v437 = vadd.f32 %v256, %v436
        %v438 = vpop.f32.mrb[0].mxu0
        %v439 = vpop.f32.mrb[0].mxu0
        %v440 = vadd.f32 %v256, %v439
        %v441 = vpop.f32.mrb[0].mxu0
        %442 = vmatprep.mubr.bf16.mxu0 0
        %443 = vmatmul.mubr.bf16.gmra.mrb[0].mxu0 %v323
        %v444 = vpop.f32.mrb[0].mxu0
        %v445 = vadd.f32 %v256, %v444
        %v446 = vpop.f32.mrb[0].mxu0
        %v447 = vpop.f32.mrb[0].mxu0
        %v448 = vadd.f32 %v256, %v447
        %v449 = vpop.f32.mrb[0].mxu0
        %450 = vmatprep.mubr.bf16.mxu0 0
        %451 = vmatmul.mubr.bf16.gmra.mrb[0].mxu0 %v324
        %v452 = vpop.f32.mrb[0].mxu0
        %v453 = vadd.f32 %v256, %v452
        %v454 = vpop.f32.mrb[0].mxu0
        %v455 = vpop.f32.mrb[0].mxu0
        %v456 = vadd.f32 %v256, %v455
        %v457 = vpop.f32.mrb[0].mxu0
        %458 = vmatprep.mubr.bf16.mxu0 0
        %459 = vmatmul.mubr.bf16.gmra.mrb[0].mxu0 %v325
        %v460 = vpop.f32.mrb[0].mxu0
        %v461 = vadd.f32 %v256, %v460
        %v462 = vpop.f32.mrb[0].mxu0
        %v463 = vpop.f32.mrb[0].mxu0
        %v464 = vadd.f32 %v256, %v463
        %v465 = vpop.f32.mrb[0].mxu0
        %466 = vmatprep.mubr.bf16.mxu0 0
        %467 = vmatmul.mubr.bf16.gmra.mrb[0].mxu0 %v326
        %v468 = vpop.f32.mrb[0].mxu0
        %v469 = vadd.f32 %v256, %v468
        %v470 = vpop.f32.mrb[0].mxu0
        %v471 = vpop.f32.mrb[0].mxu0
        %v472 = vadd.f32 %v256, %v471
        %v473 = vpop.f32.mrb[0].mxu0
        %474 = vmatprep.mubr.bf16.mxu0 0
        %475 = vmatmul.mubr.bf16.gmra.mrb[0].mxu0 %v327
        %v476 = vpop.f32.mrb[0].mxu0
        %v477 = vadd.f32 %v256, %v476
        %v478 = vpop.f32.mrb[0].mxu0
        %v479 = vpop.f32.mrb[0].mxu0
        %v480 = vadd.f32 %v256, %v479
        %v481 = vpop.f32.mrb[0].mxu0
        %482 = vmatprep.mubr.bf16.mxu0 0
        %483 = vmatmul.mubr.bf16.gmra.mrb[0].mxu0 %v328
        %v484 = vpop.f32.mrb[0].mxu0
        %v485 = vadd.f32 %v256, %v484
        %v486 = vpop.f32.mrb[0].mxu0
        %v487 = vpop.f32.mrb[0].mxu0
        %v488 = vadd.f32 %v256, %v487
        %v489 = vpop.f32.mrb[0].mxu0
        %490 = vmatprep.mubr.bf16.mxu0 0
        %491 = vmatmul.mubr.bf16.gmra.mrb[0].mxu0 %v329
        %v492 = vpop.f32.mrb[0].mxu0
        %v493 = vadd.f32 %v256, %v492
        %v494 = vpop.f32.mrb[0].mxu0
        %v495 = vpop.f32.mrb[0].mxu0
        %v496 = vadd.f32 %v256, %v495
        %v497 = vpop.f32.mrb[0].mxu0
        %498 = vmatprep.mubr.bf16.mxu0 0
        %499 = vmatmul.mubr.bf16.gmra.mrb[0].mxu0 %v330
        %v500 = vpop.f32.mrb[0].mxu0
        %v501 = vadd.f32 %v256, %v500
        %v502 = vpop.f32.mrb[0].mxu0
        %v503 = vpop.f32.mrb[0].mxu0
        %v504 = vadd.f32 %v256, %v503
        %v505 = vpop.f32.mrb[0].mxu0
        %506 = vmatprep.mubr.bf16.mxu0 0
        %507 = vmatmul.mubr.bf16.gmra.mrb[0].mxu0 %v331
        %v508 = vpop.f32.mrb[0].mxu0
        %v509 = vadd.f32 %v256, %v508
        %v510 = vpop.f32.mrb[0].mxu0
        %v511 = vpop.f32.mrb[0].mxu0
        %v512 = vadd.f32 %v256, %v511
        %v513 = vpop.f32.mrb[0].mxu0
        %514 = vmatprep.mubr.bf16.mxu0 0
        %515 = vmatmul.mubr.bf16.gmra.mrb[0].mxu0 %v332
        %v516 = vpop.f32.mrb[0].mxu0
        %v517 = vadd.f32 %v256, %v516
        %v518 = vpop.f32.mrb[0].mxu0
        %v519 = vpop.f32.mrb[0].mxu0
        %v520 = vadd.f32 %v256, %v519
        %v521 = vpop.f32.mrb[0].mxu0
        %522 = vmatprep.mubr.bf16.mxu0 0
        %523 = vmatmul.mubr.bf16.gmra.mrb[0].mxu0 %v333
        %v524 = vpop.f32.mrb[0].mxu0
        %v525 = vadd.f32 %v256, %v524
        %v526 = vpop.f32.mrb[0].mxu0
        %v527 = vpop.f32.mrb[0].mxu0
        %v528 = vadd.f32 %v256, %v527
        %v529 = vpop.f32.mrb[0].mxu0
        %530 = vmatprep.mubr.bf16.mxu0 0
        %531 = vmatmul.mubr.bf16.gmra.mrb[0].mxu0 %v334
        %v532 = vpop.f32.mrb[0].mxu0
        %v533 = vadd.f32 %v256, %v532
        %v534 = vpop.f32.mrb[0].mxu0
        %v535 = vpop.f32.mrb[0].mxu0
        %v536 = vadd.f32 %v256, %v535
        %v537 = vpop.f32.mrb[0].mxu0
        %538 = vmatprep.mubr.bf16.mxu0 0
        %539 = vmatmul.mubr.bf16.gmra.mrb[0].mxu0 %v335
        %v540 = vpop.f32.mrb[0].mxu0
        %v541 = vadd.f32 %v256, %v540
        %v542 = vpop.f32.mrb[0].mxu0
        %v543 = vpop.f32.mrb[0].mxu0
        %v544 = vadd.f32 %v256, %v543
        %v545 = vpop.f32.mrb[0].mxu0
        %546 = vmatprep.mubr.bf16.mxu0 0
        %547 = vmatmul.mubr.bf16.gmra.mrb[0].mxu0 %v336
        %v548 = vpop.f32.mrb[0].mxu0
        %v549 = vadd.f32 %v256, %v548
        %v550 = vpop.f32.mrb[0].mxu0
        %v551 = vpop.f32.mrb[0].mxu0
        %v552 = vadd.f32 %v256, %v551
        %v553 = vpop.f32.mrb[0].mxu0
        %554 = vmatprep.mubr.bf16.mxu0 0
        %555 = vmatmul.mubr.bf16.gmra.mrb[0].mxu0 %v337
        %v556 = vpop.f32.mrb[0].mxu0
        %v557 = vadd.f32 %v256, %v556
        %v558 = vpop.f32.mrb[0].mxu0
        %v559 = vpop.f32.mrb[0].mxu0
        %v560 = vadd.f32 %v256, %v559
        %v561 = vpop.f32.mrb[0].mxu0
        %562 = vdwg.mxu0
        %v563 = vmax.f32 %v437, 0.0
        %v564 = vmax.f32 %v440, 0.0
        %v565 = vmax.f32 %v445, 0.0
        %v566 = vmax.f32 %v448, 0.0
        %v567 = vmax.f32 %v453, 0.0
        %v568 = vmax.f32 %v456, 0.0
        %v569 = vmax.f32 %v461, 0.0
        %v570 = vmax.f32 %v464, 0.0
        %v571 = vmax.f32 %v469, 0.0
        %v572 = vmax.f32 %v472, 0.0
        %v573 = vmax.f32 %v477, 0.0
        %v574 = vmax.f32 %v480, 0.0
        %v575 = vmax.f32 %v485, 0.0
        %v576 = vmax.f32 %v488, 0.0
        %v577 = vmax.f32 %v493, 0.0
        %v578 = vmax.f32 %v496, 0.0
        %v579 = vmax.f32 %v501, 0.0
        %v580 = vmax.f32 %v504, 0.0
        %v581 = vmax.f32 %v509, 0.0
        %v582 = vmax.f32 %v512, 0.0
        %v583 = vmax.f32 %v517, 0.0
        %v584 = vmax.f32 %v520, 0.0
        %v585 = vmax.f32 %v525, 0.0
        %v586 = vmax.f32 %v528, 0.0
        %v587 = vmax.f32 %v533, 0.0
        %v588 = vmax.f32 %v536, 0.0
        %v589 = vmax.f32 %v541, 0.0
        %v590 = vmax.f32 %v544, 0.0
        %v591 = vmax.f32 %v549, 0.0
        %v592 = vmax.f32 %v552, 0.0
        %v593 = vmax.f32 %v557, 0.0
        %v594 = vmax.f32 %v560, 0.0
        %v595 = vpack.c.bf16 %v564, %v563
        %v596 = vpack.c.bf16 %v566, %v565
        %v597 = vpack.c.bf16 %v568, %v567
        %v598 = vpack.c.bf16 %v570, %v569
        %v599 = vpack.c.bf16 %v572, %v571
        %v600 = vpack.c.bf16 %v574, %v573
        %v601 = vpack.c.bf16 %v576, %v575
        %v602 = vpack.c.bf16 %v578, %v577
        %v603 = vpack.c.bf16 %v580, %v579
        %v604 = vpack.c.bf16 %v582, %v581
        %v605 = vpack.c.bf16 %v584, %v583
        %v606 = vpack.c.bf16 %v586, %v585
        %v607 = vpack.c.bf16 %v588, %v587
        %v608 = vpack.c.bf16 %v590, %v589
        %v609 = vpack.c.bf16 %v592, %v591
        %v610 = vpack.c.bf16 %v594, %v593
        %v627 = vunpack.c.l.b16 %v595
        %v628 = vunpack.c.h.b16 %v595
        %v629 = vunpack.c.l.b16 %v596
        %v630 = vunpack.c.h.b16 %v596
        %v631 = vunpack.c.l.b16 %v597
        %v632 = vunpack.c.h.b16 %v597
        %v633 = vunpack.c.l.b16 %v598
        %v634 = vunpack.c.h.b16 %v598
        %v635 = vunpack.c.l.b16 %v599
        %v636 = vunpack.c.h.b16 %v599
        %v637 = vunpack.c.l.b16 %v600
        %v638 = vunpack.c.h.b16 %v600
        %v639 = vunpack.c.l.b16 %v601
        %v640 = vunpack.c.h.b16 %v601
        %v641 = vunpack.c.l.b16 %v602
        %v642 = vunpack.c.h.b16 %v602
        %v643 = vunpack.c.l.b16 %v603
        %v644 = vunpack.c.h.b16 %v603
        %v645 = vunpack.c.l.b16 %v604
        %v646 = vunpack.c.h.b16 %v604
        %v647 = vunpack.c.l.b16 %v605
        %v648 = vunpack.c.h.b16 %v605
        %v649 = vunpack.c.l.b16 %v606
        %v650 = vunpack.c.h.b16 %v606
        %v651 = vunpack.c.l.b16 %v607
        %v652 = vunpack.c.h.b16 %v607
        %v653 = vunpack.c.l.b16 %v608
        %v654 = vunpack.c.h.b16 %v608
        %v655 = vunpack.c.l.b16 %v609
        %v656 = vunpack.c.h.b16 %v609
        %v657 = vunpack.c.l.b16 %v610
        %v658 = vunpack.c.h.b16 %v610
        %v659 = vpack.c.b16 %v627, %v627
        %v660 = vpack.c.b16 %v628, %v628
        %v661 = vpack.c.b16 %v629, %v629
        %v662 = vpack.c.b16 %v630, %v630
        %v663 = vpack.c.b16 %v631, %v631
        %v664 = vpack.c.b16 %v632, %v632
        %v665 = vpack.c.b16 %v633, %v633
        %v666 = vpack.c.b16 %v634, %v634
        %v667 = vpack.c.b16 %v635, %v635
        %v668 = vpack.c.b16 %v636, %v636
        %v669 = vpack.c.b16 %v637, %v637
        %v670 = vpack.c.b16 %v638, %v638
        %v671 = vpack.c.b16 %v639, %v639
        %v672 = vpack.c.b16 %v640, %v640
        %v673 = vpack.c.b16 %v641, %v641
        %v674 = vpack.c.b16 %v642, %v642
        %v675 = vpack.c.b16 %v643, %v643
        %v676 = vpack.c.b16 %v644, %v644
        %v677 = vpack.c.b16 %v645, %v645
        %v678 = vpack.c.b16 %v646, %v646
        %v679 = vpack.c.b16 %v647, %v647
        %v680 = vpack.c.b16 %v648, %v648
        %v681 = vpack.c.b16 %v649, %v649
        %v682 = vpack.c.b16 %v650, %v650
        %v683 = vpack.c.b16 %v651, %v651
        %v684 = vpack.c.b16 %v652, %v652
        %v685 = vpack.c.b16 %v653, %v653
        %v686 = vpack.c.b16 %v654, %v654
        %v687 = vpack.c.b16 %v655, %v655
        %v688 = vpack.c.b16 %v656, %v656
        %v689 = vpack.c.b16 %v657, %v657
        %v690 = vpack.c.b16 %v658, %v658
        %723 = vst [vmem:[%s200] sm:$0xf] %v659
        %724 = vst [vmem:[%s200 + $0x4] sm:$0xf] %v660
        %725 = vst [vmem:[%s200 + $0x8] sm:$0xf] %v661
        %726 = vst [vmem:[%s200 + $0xc] sm:$0xf] %v662
        %727 = vst [vmem:[%s200 + $0x10] sm:$0xf] %v663
        %728 = vst [vmem:[%s200 + $0x14] sm:$0xf] %v664
        %729 = vst [vmem:[%s200 + $0x18] sm:$0xf] %v665
        %730 = vst [vmem:[%s200 + $0x1c] sm:$0xf] %v666
        %731 = vst [vmem:[%s200 + $0x20] sm:$0xf] %v667
        %732 = vst [vmem:[%s200 + $0x24] sm:$0xf] %v668
        %733 = vst [vmem:[%s200 + $0x28] sm:$0xf] %v669
        %734 = vst [vmem:[%s200 + $0x2c] sm:$0xf] %v670
        %735 = vst [vmem:[%s200 + $0x30] sm:$0xf] %v671
        %736 = vst [vmem:[%s200 + $0x34] sm:$0xf] %v672
        %737 = vst [vmem:[%s200 + $0x38] sm:$0xf] %v673
        %738 = vst [vmem:[%s200 + $0x3c] sm:$0xf] %v674
        %739 = vst [vmem:[%s200 + $0x40] sm:$0xf] %v675
        %740 = vst [vmem:[%s200 + $0x44] sm:$0xf] %v676
        %741 = vst [vmem:[%s200 + $0x48] sm:$0xf] %v677
        %742 = vst [vmem:[%s200 + $0x4c] sm:$0xf] %v678
        %743 = vst [vmem:[%s200 + $0x50] sm:$0xf] %v679
        %744 = vst [vmem:[%s200 + $0x54] sm:$0xf] %v680
        %745 = vst [vmem:[%s200 + $0x58] sm:$0xf] %v681
        %746 = vst [vmem:[%s200 + $0x5c] sm:$0xf] %v682
        %747 = vst [vmem:[%s200 + $0x60] sm:$0xf] %v683
        %748 = vst [vmem:[%s200 + $0x64] sm:$0xf] %v684
        %749 = vst [vmem:[%s200 + $0x68] sm:$0xf] %v685
        %750 = vst [vmem:[%s200 + $0x6c] sm:$0xf] %v686
        %751 = vst [vmem:[%s200 + $0x70] sm:$0xf] %v687
        %752 = vst [vmem:[%s200 + $0x74] sm:$0xf] %v688
        %753 = vst [vmem:[%s200 + $0x78] sm:$0xf] %v689
        %754 = vst [vmem:[%s200 + $0x7c] sm:$0xf] %v690
        %s755 = smul.u32 32, %s16
        %p756 = scmp.lt.s32.totalorder %s755, 63
        %s757 = scalar_select %p756, %s755, 63
        %s758 = smul.addr %s757, 4
        %s759 = scalar_lea.vmem %s3, %s758
        // Predicated region
        $region41: #{discriminator_forward.3} parent=31 // pred_check
          %p760 = pneg %p102
        $region42: #{discriminator_forward.3} parent=31 // pred_check_branch
          %762 = sbr.rel (%p760) target = $region44
        $region43: #{discriminator_forward.3} parent=31 // pred_region
          %s763 = smul.u32 32, %s16
        $region44: #{discriminator_forward.3} parent=31 // pred_fallthru
          _
      $region32: #{discriminator_forward.3} parent=5 // pred_fallthru
        _
      %p764 = scmp.le.s32.totalorder 2, %s11
      // Predicated region
      $region45: #{discriminator_forward.3} parent=5 // pred_check
        %p765 = pneg %p764
      $region46: #{discriminator_forward.3} parent=5 // pred_check_branch
        %767 = sbr.rel (%p765) target = $region48
      $region47: #{discriminator_forward.3} parent=5 // pred_region
        %s768 = ssub.s32 %s11, 2
        // Predicated region
        $region49: #{discriminator_forward.3} parent=47 // pred_check
          %p769 = pneg %p108
        $region50: #{discriminator_forward.3} parent=47 // pred_check_branch
          %771 = sbr.rel (%p769) target = $region52
        $region51: #{discriminator_forward.3} parent=47 // pred_region
          %s772 = smul.u32 32, %s17
          %p773 = scmp.lt.s32.totalorder %s772, 63
          %s774 = scalar_select %p773, %s772, 63
          %s775 = smul.addr %s774, 4
          %s776 = scalar_lea.vmem %s3, %s775
        $region52: #{discriminator_forward.3} parent=47 // pred_fallthru
          _
      $region48: #{discriminator_forward.3} parent=5 // pred_fallthru
        _
    $region6: #{discriminator_forward.3} parent=1 // loop_footer
      %s15 = sadd.s32 1, %s11
    $region7: #{discriminator_forward.3} parent=1 // loop_footer_branch
      %10 = sbr.rel target = $region3
    $region8: #{discriminator_forward.3} parent=1 // loop_exit
      _
    %777 = vsyncpa [#allocation3], 1
    %s778 = scalar_lea.sflag [#allocation3], 1
    %779 = vsyncpa %s778, 1
    %780 = vsyncpa [#allocation5], 1

// kernel: discriminator_forward.4
$region0: #{discriminator_forward.4}
  #allocation0 [shape = 'u32[]', space=smem, size = 0x4, offset = 0x4, fixed_abs, tag = 'smem constant byte address 0x4 - core index']
  #allocation1 [shape = 'u32[144,128]{1,0:T(1,128)}', space=vmem, size = 0x12000, scoped, tag = 'internal scratch']
  %s0 = inlined_call_operand.vmem [shape: bf16[128,2048], index: 0, kind: input, shape index: {}]
  %s1 = inlined_call_operand.vmem [shape: bf16[2048,256], index: 1, kind: input, shape index: {}]
  %s2 = inlined_call_operand.vmem [shape: f32[1,256], index: 2, kind: input, shape index: {}]
  %s3 = inlined_call_operand.vmem [shape: f32[1,256], index: 3, kind: input, shape index: {}]
  %s4 = inlined_call_operand.vmem [shape: f32[1,256], index: 4, kind: input, shape index: {}]
  %s5 = inlined_call_operand.vmem [shape: bf16[128,256], index: 5, kind: output, shape index: {}]
  %s6 = sld [smem:[#allocation0]]
  $region30: #{discriminator_forward.4} parent=0
    _
  %s8 = ssub.s32 1, %s6
  %s9 = scalar_select 0, %s8, %s6
  // Predicated region
  $region2: #{discriminator_forward.4} parent=0 // pred_check
    _
  $region3: #{discriminator_forward.4} parent=0 // pred_check_branch
    %11 = sbr.rel (0) target = $region5
  $region4: #{discriminator_forward.4} parent=0 // pred_region
    _
  $region5: #{discriminator_forward.4} parent=0 // pred_fallthru
    _
  // Predicated region
  $region6: #{discriminator_forward.4} parent=0 // pred_check
    _
  $region7: #{discriminator_forward.4} parent=0 // pred_check_branch
    %13 = sbr.rel (0) target = $region9
  $region8: #{discriminator_forward.4} parent=0 // pred_region
    _
  $region9: #{discriminator_forward.4} parent=0 // pred_fallthru
    _
  // Predicated region
  $region10: #{discriminator_forward.4} parent=0 // pred_check
    _
  $region11: #{discriminator_forward.4} parent=0 // pred_check_branch
    %15 = sbr.rel (0) target = $region13
  $region12: #{discriminator_forward.4} parent=0 // pred_region
    _
  $region13: #{discriminator_forward.4} parent=0 // pred_fallthru
    _
  // Predicated region
  $region14: #{discriminator_forward.4} parent=0 // pred_check
    _
  $region15: #{discriminator_forward.4} parent=0 // pred_check_branch
    %17 = sbr.rel (0) target = $region17
  $region16: #{discriminator_forward.4} parent=0 // pred_region
    _
  $region17: #{discriminator_forward.4} parent=0 // pred_fallthru
    _
  // Predicated region
  $region18: #{discriminator_forward.4} parent=0 // pred_check
    _
  $region19: #{discriminator_forward.4} parent=0 // pred_check_branch
    %19 = sbr.rel (0) target = $region21
  $region20: #{discriminator_forward.4} parent=0 // pred_region
    _
  $region21: #{discriminator_forward.4} parent=0 // pred_fallthru
    _
  %v20 = vld [vmem:[%s0] sm:$0xff]
  %v21 = vld [vmem:[%s0 + $0x8] sm:$0xff]
  %v22 = vld [vmem:[%s0 + $0x10] sm:$0xff]
  %v23 = vld [vmem:[%s0 + $0x18] sm:$0xff]
  %v24 = vld [vmem:[%s0 + $0x20] sm:$0xff]
  %v25 = vld [vmem:[%s0 + $0x28] sm:$0xff]
  %v26 = vld [vmem:[%s0 + $0x30] sm:$0xff]
  %v27 = vld [vmem:[%s0 + $0x38] sm:$0xff]
  %v28 = vld [vmem:[%s0 + $0x40] sm:$0xff]
  %v29 = vld [vmem:[%s0 + $0x48] sm:$0xff]
  %v30 = vld [vmem:[%s0 + $0x50] sm:$0xff]
  %v31 = vld [vmem:[%s0 + $0x58] sm:$0xff]
  %v32 = vld [vmem:[%s0 + $0x60] sm:$0xff]
  %v33 = vld [vmem:[%s0 + $0x68] sm:$0xff]
  %v34 = vld [vmem:[%s0 + $0x70] sm:$0xff]
  %v35 = vld [vmem:[%s0 + $0x78] sm:$0xff]
  %v36 = vld [vmem:[%s0 + $0x80] sm:$0xff]
  %v37 = vld [vmem:[%s0 + $0x88] sm:$0xff]
  %v38 = vld [vmem:[%s0 + $0x90] sm:$0xff]
  %v39 = vld [vmem:[%s0 + $0x98] sm:$0xff]
  %v40 = vld [vmem:[%s0 + $0xa0] sm:$0xff]
  %v41 = vld [vmem:[%s0 + $0xa8] sm:$0xff]
  %v42 = vld [vmem:[%s0 + $0xb0] sm:$0xff]
  %v43 = vld [vmem:[%s0 + $0xb8] sm:$0xff]
  %v44 = vld [vmem:[%s0 + $0xc0] sm:$0xff]
  %v45 = vld [vmem:[%s0 + $0xc8] sm:$0xff]
  %v46 = vld [vmem:[%s0 + $0xd0] sm:$0xff]
  %v47 = vld [vmem:[%s0 + $0xd8] sm:$0xff]
  %v48 = vld [vmem:[%s0 + $0xe0] sm:$0xff]
  %v49 = vld [vmem:[%s0 + $0xe8] sm:$0xff]
  %v50 = vld [vmem:[%s0 + $0xf0] sm:$0xff]
  %v51 = vld [vmem:[%s0 + $0xf8] sm:$0xff]
  %v52 = vld [vmem:[%s0 + $0x100] sm:$0xff]
  %v53 = vld [vmem:[%s0 + $0x108] sm:$0xff]
  %v54 = vld [vmem:[%s0 + $0x110] sm:$0xff]
  %v55 = vld [vmem:[%s0 + $0x118] sm:$0xff]
  %v56 = vld [vmem:[%s0 + $0x120] sm:$0xff]
  %v57 = vld [vmem:[%s0 + $0x128] sm:$0xff]
  %v58 = vld [vmem:[%s0 + $0x130] sm:$0xff]
  %v59 = vld [vmem:[%s0 + $0x138] sm:$0xff]
  %v60 = vld [vmem:[%s0 + $0x140] sm:$0xff]
  %v61 = vld [vmem:[%s0 + $0x148] sm:$0xff]
  %v62 = vld [vmem:[%s0 + $0x150] sm:$0xff]
  %v63 = vld [vmem:[%s0 + $0x158] sm:$0xff]
  %v64 = vld [vmem:[%s0 + $0x160] sm:$0xff]
  %v65 = vld [vmem:[%s0 + $0x168] sm:$0xff]
  %v66 = vld [vmem:[%s0 + $0x170] sm:$0xff]
  %v67 = vld [vmem:[%s0 + $0x178] sm:$0xff]
  %v68 = vld [vmem:[%s0 + $0x180] sm:$0xff]
  %v69 = vld [vmem:[%s0 + $0x188] sm:$0xff]
  %v70 = vld [vmem:[%s0 + $0x190] sm:$0xff]
  %v71 = vld [vmem:[%s0 + $0x198] sm:$0xff]
  %v72 = vld [vmem:[%s0 + $0x1a0] sm:$0xff]
  %v73 = vld [vmem:[%s0 + $0x1a8] sm:$0xff]
  %v74 = vld [vmem:[%s0 + $0x1b0] sm:$0xff]
  %v75 = vld [vmem:[%s0 + $0x1b8] sm:$0xff]
  %v76 = vld [vmem:[%s0 + $0x1c0] sm:$0xff]
  %v77 = vld [vmem:[%s0 + $0x1c8] sm:$0xff]
  %v78 = vld [vmem:[%s0 + $0x1d0] sm:$0xff]
  %v79 = vld [vmem:[%s0 + $0x1d8] sm:$0xff]
  %v80 = vld [vmem:[%s0 + $0x1e0] sm:$0xff]
  %v81 = vld [vmem:[%s0 + $0x1e8] sm:$0xff]
  %v82 = vld [vmem:[%s0 + $0x1f0] sm:$0xff]
  %v83 = vld [vmem:[%s0 + $0x1f8] sm:$0xff]
  %v84 = vld [vmem:[%s0 + $0x200] sm:$0xff]
  %v85 = vld [vmem:[%s0 + $0x208] sm:$0xff]
  %v86 = vld [vmem:[%s0 + $0x210] sm:$0xff]
  %v87 = vld [vmem:[%s0 + $0x218] sm:$0xff]
  %v88 = vld [vmem:[%s0 + $0x220] sm:$0xff]
  %v89 = vld [vmem:[%s0 + $0x228] sm:$0xff]
  %v90 = vld [vmem:[%s0 + $0x230] sm:$0xff]
  %v91 = vld [vmem:[%s0 + $0x238] sm:$0xff]
  %v92 = vld [vmem:[%s0 + $0x240] sm:$0xff]
  %v93 = vld [vmem:[%s0 + $0x248] sm:$0xff]
  %v94 = vld [vmem:[%s0 + $0x250] sm:$0xff]
  %v95 = vld [vmem:[%s0 + $0x258] sm:$0xff]
  %v96 = vld [vmem:[%s0 + $0x260] sm:$0xff]
  %v97 = vld [vmem:[%s0 + $0x268] sm:$0xff]
  %v98 = vld [vmem:[%s0 + $0x270] sm:$0xff]
  %v99 = vld [vmem:[%s0 + $0x278] sm:$0xff]
  %v100 = vld [vmem:[%s0 + $0x280] sm:$0xff]
  %v101 = vld [vmem:[%s0 + $0x288] sm:$0xff]
  %v102 = vld [vmem:[%s0 + $0x290] sm:$0xff]
  %v103 = vld [vmem:[%s0 + $0x298] sm:$0xff]
  %v104 = vld [vmem:[%s0 + $0x2a0] sm:$0xff]
  %v105 = vld [vmem:[%s0 + $0x2a8] sm:$0xff]
  %v106 = vld [vmem:[%s0 + $0x2b0] sm:$0xff]
  %v107 = vld [vmem:[%s0 + $0x2b8] sm:$0xff]
  %v108 = vld [vmem:[%s0 + $0x2c0] sm:$0xff]
  %v109 = vld [vmem:[%s0 + $0x2c8] sm:$0xff]
  %v110 = vld [vmem:[%s0 + $0x2d0] sm:$0xff]
  %v111 = vld [vmem:[%s0 + $0x2d8] sm:$0xff]
  %v112 = vld [vmem:[%s0 + $0x2e0] sm:$0xff]
  %v113 = vld [vmem:[%s0 + $0x2e8] sm:$0xff]
  %v114 = vld [vmem:[%s0 + $0x2f0] sm:$0xff]
  %v115 = vld [vmem:[%s0 + $0x2f8] sm:$0xff]
  %v116 = vld [vmem:[%s0 + $0x300] sm:$0xff]
  %v117 = vld [vmem:[%s0 + $0x308] sm:$0xff]
  %v118 = vld [vmem:[%s0 + $0x310] sm:$0xff]
  %v119 = vld [vmem:[%s0 + $0x318] sm:$0xff]
  %v120 = vld [vmem:[%s0 + $0x320] sm:$0xff]
  %v121 = vld [vmem:[%s0 + $0x328] sm:$0xff]
  %v122 = vld [vmem:[%s0 + $0x330] sm:$0xff]
  %v123 = vld [vmem:[%s0 + $0x338] sm:$0xff]
  %v124 = vld [vmem:[%s0 + $0x340] sm:$0xff]
  %v125 = vld [vmem:[%s0 + $0x348] sm:$0xff]
  %v126 = vld [vmem:[%s0 + $0x350] sm:$0xff]
  %v127 = vld [vmem:[%s0 + $0x358] sm:$0xff]
  %v128 = vld [vmem:[%s0 + $0x360] sm:$0xff]
  %v129 = vld [vmem:[%s0 + $0x368] sm:$0xff]
  %v130 = vld [vmem:[%s0 + $0x370] sm:$0xff]
  %v131 = vld [vmem:[%s0 + $0x378] sm:$0xff]
  %v132 = vld [vmem:[%s0 + $0x380] sm:$0xff]
  %v133 = vld [vmem:[%s0 + $0x388] sm:$0xff]
  %v134 = vld [vmem:[%s0 + $0x390] sm:$0xff]
  %v135 = vld [vmem:[%s0 + $0x398] sm:$0xff]
  %v136 = vld [vmem:[%s0 + $0x3a0] sm:$0xff]
  %v137 = vld [vmem:[%s0 + $0x3a8] sm:$0xff]
  %v138 = vld [vmem:[%s0 + $0x3b0] sm:$0xff]
  %v139 = vld [vmem:[%s0 + $0x3b8] sm:$0xff]
  %v140 = vld [vmem:[%s0 + $0x3c0] sm:$0xff]
  %v141 = vld [vmem:[%s0 + $0x3c8] sm:$0xff]
  %v142 = vld [vmem:[%s0 + $0x3d0] sm:$0xff]
  %v143 = vld [vmem:[%s0 + $0x3d8] sm:$0xff]
  %v144 = vld [vmem:[%s0 + $0x3e0] sm:$0xff]
  %v145 = vld [vmem:[%s0 + $0x3e8] sm:$0xff]
  %v146 = vld [vmem:[%s0 + $0x3f0] sm:$0xff]
  %v147 = vld [vmem:[%s0 + $0x3f8] sm:$0xff]
  %v148 = vld [vmem:[%s1] sm:$0xff]
  %v149 = vld [vmem:[%s1 + $0x8] sm:$0xff]
  %v150 = vld [vmem:[%s1 + $0x10] sm:$0xff]
  %v151 = vld [vmem:[%s1 + $0x18] sm:$0xff]
  %v152 = vld [vmem:[%s1 + $0x20] sm:$0xff]
  %v153 = vld [vmem:[%s1 + $0x28] sm:$0xff]
  %v154 = vld [vmem:[%s1 + $0x30] sm:$0xff]
  %v155 = vld [vmem:[%s1 + $0x38] sm:$0xff]
  %v156 = vld [vmem:[%s1 + $0x40] sm:$0xff]
  %v157 = vld [vmem:[%s1 + $0x48] sm:$0xff]
  %v158 = vld [vmem:[%s1 + $0x50] sm:$0xff]
  %v159 = vld [vmem:[%s1 + $0x58] sm:$0xff]
  %v160 = vld [vmem:[%s1 + $0x60] sm:$0xff]
  %v161 = vld [vmem:[%s1 + $0x68] sm:$0xff]
  %v162 = vld [vmem:[%s1 + $0x70] sm:$0xff]
  %v163 = vld [vmem:[%s1 + $0x78] sm:$0xff]
  %v164 = vld [vmem:[%s1 + $0x80] sm:$0xff]
  %v165 = vld [vmem:[%s1 + $0x88] sm:$0xff]
  %v166 = vld [vmem:[%s1 + $0x90] sm:$0xff]
  %v167 = vld [vmem:[%s1 + $0x98] sm:$0xff]
  %v168 = vld [vmem:[%s1 + $0xa0] sm:$0xff]
  %v169 = vld [vmem:[%s1 + $0xa8] sm:$0xff]
  %v170 = vld [vmem:[%s1 + $0xb0] sm:$0xff]
  %v171 = vld [vmem:[%s1 + $0xb8] sm:$0xff]
  %v172 = vld [vmem:[%s1 + $0xc0] sm:$0xff]
  %v173 = vld [vmem:[%s1 + $0xc8] sm:$0xff]
  %v174 = vld [vmem:[%s1 + $0xd0] sm:$0xff]
  %v175 = vld [vmem:[%s1 + $0xd8] sm:$0xff]
  %v176 = vld [vmem:[%s1 + $0xe0] sm:$0xff]
  %v177 = vld [vmem:[%s1 + $0xe8] sm:$0xff]
  %v178 = vld [vmem:[%s1 + $0xf0] sm:$0xff]
  %v179 = vld [vmem:[%s1 + $0xf8] sm:$0xff]
  %v180 = vld [vmem:[%s1 + $0x100] sm:$0xff]
  %v181 = vld [vmem:[%s1 + $0x108] sm:$0xff]
  %v182 = vld [vmem:[%s1 + $0x110] sm:$0xff]
  %v183 = vld [vmem:[%s1 + $0x118] sm:$0xff]
  %v184 = vld [vmem:[%s1 + $0x120] sm:$0xff]
  %v185 = vld [vmem:[%s1 + $0x128] sm:$0xff]
  %v186 = vld [vmem:[%s1 + $0x130] sm:$0xff]
  %v187 = vld [vmem:[%s1 + $0x138] sm:$0xff]
  %v188 = vld [vmem:[%s1 + $0x140] sm:$0xff]
  %v189 = vld [vmem:[%s1 + $0x148] sm:$0xff]
  %v190 = vld [vmem:[%s1 + $0x150] sm:$0xff]
  %v191 = vld [vmem:[%s1 + $0x158] sm:$0xff]
  %v192 = vld [vmem:[%s1 + $0x160] sm:$0xff]
  %v193 = vld [vmem:[%s1 + $0x168] sm:$0xff]
  %v194 = vld [vmem:[%s1 + $0x170] sm:$0xff]
  %v195 = vld [vmem:[%s1 + $0x178] sm:$0xff]
  %v196 = vld [vmem:[%s1 + $0x180] sm:$0xff]
  %v197 = vld [vmem:[%s1 + $0x188] sm:$0xff]
  %v198 = vld [vmem:[%s1 + $0x190] sm:$0xff]
  %v199 = vld [vmem:[%s1 + $0x198] sm:$0xff]
  %v200 = vld [vmem:[%s1 + $0x1a0] sm:$0xff]
  %v201 = vld [vmem:[%s1 + $0x1a8] sm:$0xff]
  %v202 = vld [vmem:[%s1 + $0x1b0] sm:$0xff]
  %v203 = vld [vmem:[%s1 + $0x1b8] sm:$0xff]
  %v204 = vld [vmem:[%s1 + $0x1c0] sm:$0xff]
  %v205 = vld [vmem:[%s1 + $0x1c8] sm:$0xff]
  %v206 = vld [vmem:[%s1 + $0x1d0] sm:$0xff]
  %v207 = vld [vmem:[%s1 + $0x1d8] sm:$0xff]
  %v208 = vld [vmem:[%s1 + $0x1e0] sm:$0xff]
  %v209 = vld [vmem:[%s1 + $0x1e8] sm:$0xff]
  %v210 = vld [vmem:[%s1 + $0x1f0] sm:$0xff]
  %v211 = vld [vmem:[%s1 + $0x1f8] sm:$0xff]
  %v212 = vld [vmem:[%s1 + $0x200] sm:$0xff]
  %v213 = vld [vmem:[%s1 + $0x208] sm:$0xff]
  %v214 = vld [vmem:[%s1 + $0x210] sm:$0xff]
  %v215 = vld [vmem:[%s1 + $0x218] sm:$0xff]
  %v216 = vld [vmem:[%s1 + $0x220] sm:$0xff]
  %v217 = vld [vmem:[%s1 + $0x228] sm:$0xff]
  %v218 = vld [vmem:[%s1 + $0x230] sm:$0xff]
  %v219 = vld [vmem:[%s1 + $0x238] sm:$0xff]
  %v220 = vld [vmem:[%s1 + $0x240] sm:$0xff]
  %v221 = vld [vmem:[%s1 + $0x248] sm:$0xff]
  %v222 = vld [vmem:[%s1 + $0x250] sm:$0xff]
  %v223 = vld [vmem:[%s1 + $0x258] sm:$0xff]
  %v224 = vld [vmem:[%s1 + $0x260] sm:$0xff]
  %v225 = vld [vmem:[%s1 + $0x268] sm:$0xff]
  %v226 = vld [vmem:[%s1 + $0x270] sm:$0xff]
  %v227 = vld [vmem:[%s1 + $0x278] sm:$0xff]
  %v228 = vld [vmem:[%s1 + $0x280] sm:$0xff]
  %v229 = vld [vmem:[%s1 + $0x288] sm:$0xff]
  %v230 = vld [vmem:[%s1 + $0x290] sm:$0xff]
  %v231 = vld [vmem:[%s1 + $0x298] sm:$0xff]
  %v232 = vld [vmem:[%s1 + $0x2a0] sm:$0xff]
  %v233 = vld [vmem:[%s1 + $0x2a8] sm:$0xff]
  %v234 = vld [vmem:[%s1 + $0x2b0] sm:$0xff]
  %v235 = vld [vmem:[%s1 + $0x2b8] sm:$0xff]
  %v236 = vld [vmem:[%s1 + $0x2c0] sm:$0xff]
  %v237 = vld [vmem:[%s1 + $0x2c8] sm:$0xff]
  %v238 = vld [vmem:[%s1 + $0x2d0] sm:$0xff]
  %v239 = vld [vmem:[%s1 + $0x2d8] sm:$0xff]
  %v240 = vld [vmem:[%s1 + $0x2e0] sm:$0xff]
  %v241 = vld [vmem:[%s1 + $0x2e8] sm:$0xff]
  %v242 = vld [vmem:[%s1 + $0x2f0] sm:$0xff]
  %v243 = vld [vmem:[%s1 + $0x2f8] sm:$0xff]
  %v244 = vld [vmem:[%s1 + $0x300] sm:$0xff]
  %v245 = vld [vmem:[%s1 + $0x308] sm:$0xff]
  %v246 = vld [vmem:[%s1 + $0x310] sm:$0xff]
  %v247 = vld [vmem:[%s1 + $0x318] sm:$0xff]
  %v248 = vld [vmem:[%s1 + $0x320] sm:$0xff]
  %v249 = vld [vmem:[%s1 + $0x328] sm:$0xff]
  %v250 = vld [vmem:[%s1 + $0x330] sm:$0xff]
  %v251 = vld [vmem:[%s1 + $0x338] sm:$0xff]
  %v252 = vld [vmem:[%s1 + $0x340] sm:$0xff]
  %v253 = vld [vmem:[%s1 + $0x348] sm:$0xff]
  %v254 = vld [vmem:[%s1 + $0x350] sm:$0xff]
  %v255 = vld [vmem:[%s1 + $0x358] sm:$0xff]
  %v256 = vld [vmem:[%s1 + $0x360] sm:$0xff]
  %v257 = vld [vmem:[%s1 + $0x368] sm:$0xff]
  %v258 = vld [vmem:[%s1 + $0x370] sm:$0xff]
  %v259 = vld [vmem:[%s1 + $0x378] sm:$0xff]
  %v260 = vld [vmem:[%s1 + $0x380] sm:$0xff]
  %v261 = vld [vmem:[%s1 + $0x388] sm:$0xff]
  %v262 = vld [vmem:[%s1 + $0x390] sm:$0xff]
  %v263 = vld [vmem:[%s1 + $0x398] sm:$0xff]
  %v264 = vld [vmem:[%s1 + $0x3a0] sm:$0xff]
  %v265 = vld [vmem:[%s1 + $0x3a8] sm:$0xff]
  %v266 = vld [vmem:[%s1 + $0x3b0] sm:$0xff]
  %v267 = vld [vmem:[%s1 + $0x3b8] sm:$0xff]
  %v268 = vld [vmem:[%s1 + $0x3c0] sm:$0xff]
  %v269 = vld [vmem:[%s1 + $0x3c8] sm:$0xff]
  %v270 = vld [vmem:[%s1 + $0x3d0] sm:$0xff]
  %v271 = vld [vmem:[%s1 + $0x3d8] sm:$0xff]
  %v272 = vld [vmem:[%s1 + $0x3e0] sm:$0xff]
  %v273 = vld [vmem:[%s1 + $0x3e8] sm:$0xff]
  %v274 = vld [vmem:[%s1 + $0x3f0] sm:$0xff]
  %v275 = vld [vmem:[%s1 + $0x3f8] sm:$0xff]
  %v276 = vld [vmem:[%s1 + $0x400] sm:$0xff]
  %v277 = vld [vmem:[%s1 + $0x408] sm:$0xff]
  %v278 = vld [vmem:[%s1 + $0x410] sm:$0xff]
  %v279 = vld [vmem:[%s1 + $0x418] sm:$0xff]
  %v280 = vld [vmem:[%s1 + $0x420] sm:$0xff]
  %v281 = vld [vmem:[%s1 + $0x428] sm:$0xff]
  %v282 = vld [vmem:[%s1 + $0x430] sm:$0xff]
  %v283 = vld [vmem:[%s1 + $0x438] sm:$0xff]
  %v284 = vld [vmem:[%s1 + $0x440] sm:$0xff]
  %v285 = vld [vmem:[%s1 + $0x448] sm:$0xff]
  %v286 = vld [vmem:[%s1 + $0x450] sm:$0xff]
  %v287 = vld [vmem:[%s1 + $0x458] sm:$0xff]
  %v288 = vld [vmem:[%s1 + $0x460] sm:$0xff]
  %v289 = vld [vmem:[%s1 + $0x468] sm:$0xff]
  %v290 = vld [vmem:[%s1 + $0x470] sm:$0xff]
  %v291 = vld [vmem:[%s1 + $0x478] sm:$0xff]
  %v292 = vld [vmem:[%s1 + $0x480] sm:$0xff]
  %v293 = vld [vmem:[%s1 + $0x488] sm:$0xff]
  %v294 = vld [vmem:[%s1 + $0x490] sm:$0xff]
  %v295 = vld [vmem:[%s1 + $0x498] sm:$0xff]
  %v296 = vld [vmem:[%s1 + $0x4a0] sm:$0xff]
  %v297 = vld [vmem:[%s1 + $0x4a8] sm:$0xff]
  %v298 = vld [vmem:[%s1 + $0x4b0] sm:$0xff]
  %v299 = vld [vmem:[%s1 + $0x4b8] sm:$0xff]
  %v300 = vld [vmem:[%s1 + $0x4c0] sm:$0xff]
  %v301 = vld [vmem:[%s1 + $0x4c8] sm:$0xff]
  %v302 = vld [vmem:[%s1 + $0x4d0] sm:$0xff]
  %v303 = vld [vmem:[%s1 + $0x4d8] sm:$0xff]
  %v304 = vld [vmem:[%s1 + $0x4e0] sm:$0xff]
  %v305 = vld [vmem:[%s1 + $0x4e8] sm:$0xff]
  %v306 = vld [vmem:[%s1 + $0x4f0] sm:$0xff]
  %v307 = vld [vmem:[%s1 + $0x4f8] sm:$0xff]
  %v308 = vld [vmem:[%s1 + $0x500] sm:$0xff]
  %v309 = vld [vmem:[%s1 + $0x508] sm:$0xff]
  %v310 = vld [vmem:[%s1 + $0x510] sm:$0xff]
  %v311 = vld [vmem:[%s1 + $0x518] sm:$0xff]
  %v312 = vld [vmem:[%s1 + $0x520] sm:$0xff]
  %v313 = vld [vmem:[%s1 + $0x528] sm:$0xff]
  %v314 = vld [vmem:[%s1 + $0x530] sm:$0xff]
  %v315 = vld [vmem:[%s1 + $0x538] sm:$0xff]
  %v316 = vld [vmem:[%s1 + $0x540] sm:$0xff]
  %v317 = vld [vmem:[%s1 + $0x548] sm:$0xff]
  %v318 = vld [vmem:[%s1 + $0x550] sm:$0xff]
  %v319 = vld [vmem:[%s1 + $0x558] sm:$0xff]
  %v320 = vld [vmem:[%s1 + $0x560] sm:$0xff]
  %v321 = vld [vmem:[%s1 + $0x568] sm:$0xff]
  %v322 = vld [vmem:[%s1 + $0x570] sm:$0xff]
  %v323 = vld [vmem:[%s1 + $0x578] sm:$0xff]
  %v324 = vld [vmem:[%s1 + $0x580] sm:$0xff]
  %v325 = vld [vmem:[%s1 + $0x588] sm:$0xff]
  %v326 = vld [vmem:[%s1 + $0x590] sm:$0xff]
  %v327 = vld [vmem:[%s1 + $0x598] sm:$0xff]
  %v328 = vld [vmem:[%s1 + $0x5a0] sm:$0xff]
  %v329 = vld [vmem:[%s1 + $0x5a8] sm:$0xff]
  %v330 = vld [vmem:[%s1 + $0x5b0] sm:$0xff]
  %v331 = vld [vmem:[%s1 + $0x5b8] sm:$0xff]
  %v332 = vld [vmem:[%s1 + $0x5c0] sm:$0xff]
  %v333 = vld [vmem:[%s1 + $0x5c8] sm:$0xff]
  %v334 = vld [vmem:[%s1 + $0x5d0] sm:$0xff]
  %v335 = vld [vmem:[%s1 + $0x5d8] sm:$0xff]
  %v336 = vld [vmem:[%s1 + $0x5e0] sm:$0xff]
  %v337 = vld [vmem:[%s1 + $0x5e8] sm:$0xff]
  %v338 = vld [vmem:[%s1 + $0x5f0] sm:$0xff]
  %v339 = vld [vmem:[%s1 + $0x5f8] sm:$0xff]
  %v340 = vld [vmem:[%s1 + $0x600] sm:$0xff]
  %v341 = vld [vmem:[%s1 + $0x608] sm:$0xff]
  %v342 = vld [vmem:[%s1 + $0x610] sm:$0xff]
  %v343 = vld [vmem:[%s1 + $0x618] sm:$0xff]
  %v344 = vld [vmem:[%s1 + $0x620] sm:$0xff]
  %v345 = vld [vmem:[%s1 + $0x628] sm:$0xff]
  %v346 = vld [vmem:[%s1 + $0x630] sm:$0xff]
  %v347 = vld [vmem:[%s1 + $0x638] sm:$0xff]
  %v348 = vld [vmem:[%s1 + $0x640] sm:$0xff]
  %v349 = vld [vmem:[%s1 + $0x648] sm:$0xff]
  %v350 = vld [vmem:[%s1 + $0x650] sm:$0xff]
  %v351 = vld [vmem:[%s1 + $0x658] sm:$0xff]
  %v352 = vld [vmem:[%s1 + $0x660] sm:$0xff]
  %v353 = vld [vmem:[%s1 + $0x668] sm:$0xff]
  %v354 = vld [vmem:[%s1 + $0x670] sm:$0xff]
  %v355 = vld [vmem:[%s1 + $0x678] sm:$0xff]
  %v356 = vld [vmem:[%s1 + $0x680] sm:$0xff]
  %v357 = vld [vmem:[%s1 + $0x688] sm:$0xff]
  %v358 = vld [vmem:[%s1 + $0x690] sm:$0xff]
  %v359 = vld [vmem:[%s1 + $0x698] sm:$0xff]
  %v360 = vld [vmem:[%s1 + $0x6a0] sm:$0xff]
  %v361 = vld [vmem:[%s1 + $0x6a8] sm:$0xff]
  %v362 = vld [vmem:[%s1 + $0x6b0] sm:$0xff]
  %v363 = vld [vmem:[%s1 + $0x6b8] sm:$0xff]
  %v364 = vld [vmem:[%s1 + $0x6c0] sm:$0xff]
  %v365 = vld [vmem:[%s1 + $0x6c8] sm:$0xff]
  %v366 = vld [vmem:[%s1 + $0x6d0] sm:$0xff]
  %v367 = vld [vmem:[%s1 + $0x6d8] sm:$0xff]
  %v368 = vld [vmem:[%s1 + $0x6e0] sm:$0xff]
  %v369 = vld [vmem:[%s1 + $0x6e8] sm:$0xff]
  %v370 = vld [vmem:[%s1 + $0x6f0] sm:$0xff]
  %v371 = vld [vmem:[%s1 + $0x6f8] sm:$0xff]
  %v372 = vld [vmem:[%s1 + $0x700] sm:$0xff]
  %v373 = vld [vmem:[%s1 + $0x708] sm:$0xff]
  %v374 = vld [vmem:[%s1 + $0x710] sm:$0xff]
  %v375 = vld [vmem:[%s1 + $0x718] sm:$0xff]
  %v376 = vld [vmem:[%s1 + $0x720] sm:$0xff]
  %v377 = vld [vmem:[%s1 + $0x728] sm:$0xff]
  %v378 = vld [vmem:[%s1 + $0x730] sm:$0xff]
  %v379 = vld [vmem:[%s1 + $0x738] sm:$0xff]
  %v380 = vld [vmem:[%s1 + $0x740] sm:$0xff]
  %v381 = vld [vmem:[%s1 + $0x748] sm:$0xff]
  %v382 = vld [vmem:[%s1 + $0x750] sm:$0xff]
  %v383 = vld [vmem:[%s1 + $0x758] sm:$0xff]
  %v384 = vld [vmem:[%s1 + $0x760] sm:$0xff]
  %v385 = vld [vmem:[%s1 + $0x768] sm:$0xff]
  %v386 = vld [vmem:[%s1 + $0x770] sm:$0xff]
  %v387 = vld [vmem:[%s1 + $0x778] sm:$0xff]
  %v388 = vld [vmem:[%s1 + $0x780] sm:$0xff]
  %v389 = vld [vmem:[%s1 + $0x788] sm:$0xff]
  %v390 = vld [vmem:[%s1 + $0x790] sm:$0xff]
  %v391 = vld [vmem:[%s1 + $0x798] sm:$0xff]
  %v392 = vld [vmem:[%s1 + $0x7a0] sm:$0xff]
  %v393 = vld [vmem:[%s1 + $0x7a8] sm:$0xff]
  %v394 = vld [vmem:[%s1 + $0x7b0] sm:$0xff]
  %v395 = vld [vmem:[%s1 + $0x7b8] sm:$0xff]
  %v396 = vld [vmem:[%s1 + $0x7c0] sm:$0xff]
  %v397 = vld [vmem:[%s1 + $0x7c8] sm:$0xff]
  %v398 = vld [vmem:[%s1 + $0x7d0] sm:$0xff]
  %v399 = vld [vmem:[%s1 + $0x7d8] sm:$0xff]
  %v400 = vld [vmem:[%s1 + $0x7e0] sm:$0xff]
  %v401 = vld [vmem:[%s1 + $0x7e8] sm:$0xff]
  %v402 = vld [vmem:[%s1 + $0x7f0] sm:$0xff]
  %v403 = vld [vmem:[%s1 + $0x7f8] sm:$0xff]
  %v404 = vld [vmem:[%s2] sm:$0x3]
  %v406 = vlaneseq
  %v407 = vshrl.u32 %v406, 7
  %v408 = vsub.s32 0, %v407
  %v409 = vrot.slane %v404, %v408
  %v410 = vlaneseq
  %v411 = vshrl.u32 %v410, 7
  %v412 = vsub.s32 1, %v411
  %v413 = vrot.slane %v404, %v412
  %v544 = vunpack.c.l.b16 %v20
  %v545 = vunpack.c.h.b16 %v20
  %v546 = vunpack.c.l.b16 %v21
  %v547 = vunpack.c.h.b16 %v21
  %v548 = vunpack.c.l.b16 %v22
  %v549 = vunpack.c.h.b16 %v22
  %v550 = vunpack.c.l.b16 %v23
  %v551 = vunpack.c.h.b16 %v23
  %v552 = vunpack.c.l.b16 %v24
  %v553 = vunpack.c.h.b16 %v24
  %v554 = vunpack.c.l.b16 %v25
  %v555 = vunpack.c.h.b16 %v25
  %v556 = vunpack.c.l.b16 %v26
  %v557 = vunpack.c.h.b16 %v26
  %v558 = vunpack.c.l.b16 %v27
  %v559 = vunpack.c.h.b16 %v27
  %v560 = vunpack.c.l.b16 %v28
  %v561 = vunpack.c.h.b16 %v28
  %v562 = vunpack.c.l.b16 %v29
  %v563 = vunpack.c.h.b16 %v29
  %v564 = vunpack.c.l.b16 %v30
  %v565 = vunpack.c.h.b16 %v30
  %v566 = vunpack.c.l.b16 %v31
  %v567 = vunpack.c.h.b16 %v31
  %v568 = vunpack.c.l.b16 %v32
  %v569 = vunpack.c.h.b16 %v32
  %v570 = vunpack.c.l.b16 %v33
  %v571 = vunpack.c.h.b16 %v33
  %v572 = vunpack.c.l.b16 %v34
  %v573 = vunpack.c.h.b16 %v34
  %v574 = vunpack.c.l.b16 %v35
  %v575 = vunpack.c.h.b16 %v35
  %v576 = vunpack.c.l.b16 %v36
  %v577 = vunpack.c.h.b16 %v36
  %v578 = vunpack.c.l.b16 %v37
  %v579 = vunpack.c.h.b16 %v37
  %v580 = vunpack.c.l.b16 %v38
  %v581 = vunpack.c.h.b16 %v38
  %v582 = vunpack.c.l.b16 %v39
  %v583 = vunpack.c.h.b16 %v39
  %v584 = vunpack.c.l.b16 %v40
  %v585 = vunpack.c.h.b16 %v40
  %v586 = vunpack.c.l.b16 %v41
  %v587 = vunpack.c.h.b16 %v41
  %v588 = vunpack.c.l.b16 %v42
  %v589 = vunpack.c.h.b16 %v42
  %v590 = vunpack.c.l.b16 %v43
  %v591 = vunpack.c.h.b16 %v43
  %v592 = vunpack.c.l.b16 %v44
  %v593 = vunpack.c.h.b16 %v44
  %v594 = vunpack.c.l.b16 %v45
  %v595 = vunpack.c.h.b16 %v45
  %v596 = vunpack.c.l.b16 %v46
  %v597 = vunpack.c.h.b16 %v46
  %v598 = vunpack.c.l.b16 %v47
  %v599 = vunpack.c.h.b16 %v47
  %v600 = vunpack.c.l.b16 %v48
  %v601 = vunpack.c.h.b16 %v48
  %v602 = vunpack.c.l.b16 %v49
  %v603 = vunpack.c.h.b16 %v49
  %v604 = vunpack.c.l.b16 %v50
  %v605 = vunpack.c.h.b16 %v50
  %v606 = vunpack.c.l.b16 %v51
  %v607 = vunpack.c.h.b16 %v51
  %v608 = vunpack.c.l.b16 %v52
  %v609 = vunpack.c.h.b16 %v52
  %v610 = vunpack.c.l.b16 %v53
  %v611 = vunpack.c.h.b16 %v53
  %v612 = vunpack.c.l.b16 %v54
  %v613 = vunpack.c.h.b16 %v54
  %v614 = vunpack.c.l.b16 %v55
  %v615 = vunpack.c.h.b16 %v55
  %v616 = vunpack.c.l.b16 %v56
  %v617 = vunpack.c.h.b16 %v56
  %v618 = vunpack.c.l.b16 %v57
  %v619 = vunpack.c.h.b16 %v57
  %v620 = vunpack.c.l.b16 %v58
  %v621 = vunpack.c.h.b16 %v58
  %v622 = vunpack.c.l.b16 %v59
  %v623 = vunpack.c.h.b16 %v59
  %v624 = vunpack.c.l.b16 %v60
  %v625 = vunpack.c.h.b16 %v60
  %v626 = vunpack.c.l.b16 %v61
  %v627 = vunpack.c.h.b16 %v61
  %v628 = vunpack.c.l.b16 %v62
  %v629 = vunpack.c.h.b16 %v62
  %v630 = vunpack.c.l.b16 %v63
  %v631 = vunpack.c.h.b16 %v63
  %v632 = vunpack.c.l.b16 %v64
  %v633 = vunpack.c.h.b16 %v64
  %v634 = vunpack.c.l.b16 %v65
  %v635 = vunpack.c.h.b16 %v65
  %v636 = vunpack.c.l.b16 %v66
  %v637 = vunpack.c.h.b16 %v66
  %v638 = vunpack.c.l.b16 %v67
  %v639 = vunpack.c.h.b16 %v67
  %v640 = vunpack.c.l.b16 %v68
  %v641 = vunpack.c.h.b16 %v68
  %v642 = vunpack.c.l.b16 %v69
  %v643 = vunpack.c.h.b16 %v69
  %v644 = vunpack.c.l.b16 %v70
  %v645 = vunpack.c.h.b16 %v70
  %v646 = vunpack.c.l.b16 %v71
  %v647 = vunpack.c.h.b16 %v71
  %v648 = vunpack.c.l.b16 %v72
  %v649 = vunpack.c.h.b16 %v72
  %v650 = vunpack.c.l.b16 %v73
  %v651 = vunpack.c.h.b16 %v73
  %v652 = vunpack.c.l.b16 %v74
  %v653 = vunpack.c.h.b16 %v74
  %v654 = vunpack.c.l.b16 %v75
  %v655 = vunpack.c.h.b16 %v75
  %v656 = vunpack.c.l.b16 %v76
  %v657 = vunpack.c.h.b16 %v76
  %v658 = vunpack.c.l.b16 %v77
  %v659 = vunpack.c.h.b16 %v77
  %v660 = vunpack.c.l.b16 %v78
  %v661 = vunpack.c.h.b16 %v78
  %v662 = vunpack.c.l.b16 %v79
  %v663 = vunpack.c.h.b16 %v79
  %v664 = vunpack.c.l.b16 %v80
  %v665 = vunpack.c.h.b16 %v80
  %v666 = vunpack.c.l.b16 %v81
  %v667 = vunpack.c.h.b16 %v81
  %v668 = vunpack.c.l.b16 %v82
  %v669 = vunpack.c.h.b16 %v82
  %v670 = vunpack.c.l.b16 %v83
  %v671 = vunpack.c.h.b16 %v83
  %v672 = vunpack.c.l.b16 %v84
  %v673 = vunpack.c.h.b16 %v84
  %v674 = vunpack.c.l.b16 %v85
  %v675 = vunpack.c.h.b16 %v85
  %v676 = vunpack.c.l.b16 %v86
  %v677 = vunpack.c.h.b16 %v86
  %v678 = vunpack.c.l.b16 %v87
  %v679 = vunpack.c.h.b16 %v87
  %v680 = vunpack.c.l.b16 %v88
  %v681 = vunpack.c.h.b16 %v88
  %v682 = vunpack.c.l.b16 %v89
  %v683 = vunpack.c.h.b16 %v89
  %v684 = vunpack.c.l.b16 %v90
  %v685 = vunpack.c.h.b16 %v90
  %v686 = vunpack.c.l.b16 %v91
  %v687 = vunpack.c.h.b16 %v91
  %v688 = vunpack.c.l.b16 %v92
  %v689 = vunpack.c.h.b16 %v92
  %v690 = vunpack.c.l.b16 %v93
  %v691 = vunpack.c.h.b16 %v93
  %v692 = vunpack.c.l.b16 %v94
  %v693 = vunpack.c.h.b16 %v94
  %v694 = vunpack.c.l.b16 %v95
  %v695 = vunpack.c.h.b16 %v95
  %v696 = vunpack.c.l.b16 %v96
  %v697 = vunpack.c.h.b16 %v96
  %v698 = vunpack.c.l.b16 %v97
  %v699 = vunpack.c.h.b16 %v97
  %v700 = vunpack.c.l.b16 %v98
  %v701 = vunpack.c.h.b16 %v98
  %v702 = vunpack.c.l.b16 %v99
  %v703 = vunpack.c.h.b16 %v99
  %v704 = vunpack.c.l.b16 %v100
  %v705 = vunpack.c.h.b16 %v100
  %v706 = vunpack.c.l.b16 %v101
  %v707 = vunpack.c.h.b16 %v101
  %v708 = vunpack.c.l.b16 %v102
  %v709 = vunpack.c.h.b16 %v102
  %v710 = vunpack.c.l.b16 %v103
  %v711 = vunpack.c.h.b16 %v103
  %v712 = vunpack.c.l.b16 %v104
  %v713 = vunpack.c.h.b16 %v104
  %v714 = vunpack.c.l.b16 %v105
  %v715 = vunpack.c.h.b16 %v105
  %v716 = vunpack.c.l.b16 %v106
  %v717 = vunpack.c.h.b16 %v106
  %v718 = vunpack.c.l.b16 %v107
  %v719 = vunpack.c.h.b16 %v107
  %v720 = vunpack.c.l.b16 %v108
  %v721 = vunpack.c.h.b16 %v108
  %v722 = vunpack.c.l.b16 %v109
  %v723 = vunpack.c.h.b16 %v109
  %v724 = vunpack.c.l.b16 %v110
  %v725 = vunpack.c.h.b16 %v110
  %v726 = vunpack.c.l.b16 %v111
  %v727 = vunpack.c.h.b16 %v111
  %v728 = vunpack.c.l.b16 %v112
  %v729 = vunpack.c.h.b16 %v112
  %v730 = vunpack.c.l.b16 %v113
  %v731 = vunpack.c.h.b16 %v113
  %v732 = vunpack.c.l.b16 %v114
  %v733 = vunpack.c.h.b16 %v114
  %v734 = vunpack.c.l.b16 %v115
  %v735 = vunpack.c.h.b16 %v115
  %v736 = vunpack.c.l.b16 %v116
  %v737 = vunpack.c.h.b16 %v116
  %v738 = vunpack.c.l.b16 %v117
  %v739 = vunpack.c.h.b16 %v117
  %v740 = vunpack.c.l.b16 %v118
  %v741 = vunpack.c.h.b16 %v118
  %v742 = vunpack.c.l.b16 %v119
  %v743 = vunpack.c.h.b16 %v119
  %v744 = vunpack.c.l.b16 %v120
  %v745 = vunpack.c.h.b16 %v120
  %v746 = vunpack.c.l.b16 %v121
  %v747 = vunpack.c.h.b16 %v121
  %v748 = vunpack.c.l.b16 %v122
  %v749 = vunpack.c.h.b16 %v122
  %v750 = vunpack.c.l.b16 %v123
  %v751 = vunpack.c.h.b16 %v123
  %v752 = vunpack.c.l.b16 %v124
  %v753 = vunpack.c.h.b16 %v124
  %v754 = vunpack.c.l.b16 %v125
  %v755 = vunpack.c.h.b16 %v125
  %v756 = vunpack.c.l.b16 %v126
  %v757 = vunpack.c.h.b16 %v126
  %v758 = vunpack.c.l.b16 %v127
  %v759 = vunpack.c.h.b16 %v127
  %v760 = vunpack.c.l.b16 %v128
  %v761 = vunpack.c.h.b16 %v128
  %v762 = vunpack.c.l.b16 %v129
  %v763 = vunpack.c.h.b16 %v129
  %v764 = vunpack.c.l.b16 %v130
  %v765 = vunpack.c.h.b16 %v130
  %v766 = vunpack.c.l.b16 %v131
  %v767 = vunpack.c.h.b16 %v131
  %v768 = vunpack.c.l.b16 %v132
  %v769 = vunpack.c.h.b16 %v132
  %v770 = vunpack.c.l.b16 %v133
  %v771 = vunpack.c.h.b16 %v133
  %v772 = vunpack.c.l.b16 %v134
  %v773 = vunpack.c.h.b16 %v134
  %v774 = vunpack.c.l.b16 %v135
  %v775 = vunpack.c.h.b16 %v135
  %v776 = vunpack.c.l.b16 %v136
  %v777 = vunpack.c.h.b16 %v136
  %v778 = vunpack.c.l.b16 %v137
  %v779 = vunpack.c.h.b16 %v137
  %v780 = vunpack.c.l.b16 %v138
  %v781 = vunpack.c.h.b16 %v138
  %v782 = vunpack.c.l.b16 %v139
  %v783 = vunpack.c.h.b16 %v139
  %v784 = vunpack.c.l.b16 %v140
  %v785 = vunpack.c.h.b16 %v140
  %v786 = vunpack.c.l.b16 %v141
  %v787 = vunpack.c.h.b16 %v141
  %v788 = vunpack.c.l.b16 %v142
  %v789 = vunpack.c.h.b16 %v142
  %v790 = vunpack.c.l.b16 %v143
  %v791 = vunpack.c.h.b16 %v143
  %v792 = vunpack.c.l.b16 %v144
  %v793 = vunpack.c.h.b16 %v144
  %v794 = vunpack.c.l.b16 %v145
  %v795 = vunpack.c.h.b16 %v145
  %v796 = vunpack.c.l.b16 %v146
  %v797 = vunpack.c.h.b16 %v146
  %v798 = vunpack.c.l.b16 %v147
  %v799 = vunpack.c.h.b16 %v147
  %v800 = vpack.c.b16 %v560, %v544
  %v801 = vpack.c.b16 %v561, %v545
  %v802 = vpack.c.b16 %v562, %v546
  %v803 = vpack.c.b16 %v563, %v547
  %v804 = vpack.c.b16 %v564, %v548
  %v805 = vpack.c.b16 %v565, %v549
  %v806 = vpack.c.b16 %v566, %v550
  %v807 = vpack.c.b16 %v567, %v551
  %v808 = vpack.c.b16 %v568, %v552
  %v809 = vpack.c.b16 %v569, %v553
  %v810 = vpack.c.b16 %v570, %v554
  %v811 = vpack.c.b16 %v571, %v555
  %v812 = vpack.c.b16 %v572, %v556
  %v813 = vpack.c.b16 %v573, %v557
  %v814 = vpack.c.b16 %v574, %v558
  %v815 = vpack.c.b16 %v575, %v559
  %v816 = vpack.c.b16 %v592, %v576
  %v817 = vpack.c.b16 %v593, %v577
  %v818 = vpack.c.b16 %v594, %v578
  %v819 = vpack.c.b16 %v595, %v579
  %v820 = vpack.c.b16 %v596, %v580
  %v821 = vpack.c.b16 %v597, %v581
  %v822 = vpack.c.b16 %v598, %v582
  %v823 = vpack.c.b16 %v599, %v583
  %v824 = vpack.c.b16 %v600, %v584
  %v825 = vpack.c.b16 %v601, %v585
  %v826 = vpack.c.b16 %v602, %v586
  %v827 = vpack.c.b16 %v603, %v587
  %v828 = vpack.c.b16 %v604, %v588
  %v829 = vpack.c.b16 %v605, %v589
  %v830 = vpack.c.b16 %v606, %v590
  %v831 = vpack.c.b16 %v607, %v591
  %v832 = vpack.c.b16 %v624, %v608
  %v833 = vpack.c.b16 %v625, %v609
  %v834 = vpack.c.b16 %v626, %v610
  %v835 = vpack.c.b16 %v627, %v611
  %v836 = vpack.c.b16 %v628, %v612
  %v837 = vpack.c.b16 %v629, %v613
  %v838 = vpack.c.b16 %v630, %v614
  %v839 = vpack.c.b16 %v631, %v615
  %v840 = vpack.c.b16 %v632, %v616
  %v841 = vpack.c.b16 %v633, %v617
  %v842 = vpack.c.b16 %v634, %v618
  %v843 = vpack.c.b16 %v635, %v619
  %v844 = vpack.c.b16 %v636, %v620
  %v845 = vpack.c.b16 %v637, %v621
  %v846 = vpack.c.b16 %v638, %v622
  %v847 = vpack.c.b16 %v639, %v623
  %v848 = vpack.c.b16 %v656, %v640
  %v849 = vpack.c.b16 %v657, %v641
  %v850 = vpack.c.b16 %v658, %v642
  %v851 = vpack.c.b16 %v659, %v643
  %v852 = vpack.c.b16 %v660, %v644
  %v853 = vpack.c.b16 %v661, %v645
  %v854 = vpack.c.b16 %v662, %v646
  %v855 = vpack.c.b16 %v663, %v647
  %v856 = vpack.c.b16 %v664, %v648
  %v857 = vpack.c.b16 %v665, %v649
  %v858 = vpack.c.b16 %v666, %v650
  %v859 = vpack.c.b16 %v667, %v651
  %v860 = vpack.c.b16 %v668, %v652
  %v861 = vpack.c.b16 %v669, %v653
  %v862 = vpack.c.b16 %v670, %v654
  %v863 = vpack.c.b16 %v671, %v655
  %v864 = vpack.c.b16 %v688, %v672
  %v865 = vpack.c.b16 %v689, %v673
  %v866 = vpack.c.b16 %v690, %v674
  %v867 = vpack.c.b16 %v691, %v675
  %v868 = vpack.c.b16 %v692, %v676
  %v869 = vpack.c.b16 %v693, %v677
  %v870 = vpack.c.b16 %v694, %v678
  %v871 = vpack.c.b16 %v695, %v679
  %v872 = vpack.c.b16 %v696, %v680
  %v873 = vpack.c.b16 %v697, %v681
  %v874 = vpack.c.b16 %v698, %v682
  %v875 = vpack.c.b16 %v699, %v683
  %v876 = vpack.c.b16 %v700, %v684
  %v877 = vpack.c.b16 %v701, %v685
  %v878 = vpack.c.b16 %v702, %v686
  %v879 = vpack.c.b16 %v703, %v687
  %v880 = vpack.c.b16 %v720, %v704
  %v881 = vpack.c.b16 %v721, %v705
  %v882 = vpack.c.b16 %v722, %v706
  %v883 = vpack.c.b16 %v723, %v707
  %v884 = vpack.c.b16 %v724, %v708
  %v885 = vpack.c.b16 %v725, %v709
  %v886 = vpack.c.b16 %v726, %v710
  %v887 = vpack.c.b16 %v727, %v711
  %v888 = vpack.c.b16 %v728, %v712
  %v889 = vpack.c.b16 %v729, %v713
  %v890 = vpack.c.b16 %v730, %v714
  %v891 = vpack.c.b16 %v731, %v715
  %v892 = vpack.c.b16 %v732, %v716
  %v893 = vpack.c.b16 %v733, %v717
  %v894 = vpack.c.b16 %v734, %v718
  %v895 = vpack.c.b16 %v735, %v719
  %v896 = vpack.c.b16 %v752, %v736
  %v897 = vpack.c.b16 %v753, %v737
  %v898 = vpack.c.b16 %v754, %v738
  %v899 = vpack.c.b16 %v755, %v739
  %v900 = vpack.c.b16 %v756, %v740
  %v901 = vpack.c.b16 %v757, %v741
  %v902 = vpack.c.b16 %v758, %v742
  %v903 = vpack.c.b16 %v759, %v743
  %v904 = vpack.c.b16 %v760, %v744
  %v905 = vpack.c.b16 %v761, %v745
  %v906 = vpack.c.b16 %v762, %v746
  %v907 = vpack.c.b16 %v763, %v747
  %v908 = vpack.c.b16 %v764, %v748
  %v909 = vpack.c.b16 %v765, %v749
  %v910 = vpack.c.b16 %v766, %v750
  %v911 = vpack.c.b16 %v767, %v751
  %v912 = vpack.c.b16 %v784, %v768
  %v913 = vpack.c.b16 %v785, %v769
  %v914 = vpack.c.b16 %v786, %v770
  %v915 = vpack.c.b16 %v787, %v771
  %v916 = vpack.c.b16 %v788, %v772
  %v917 = vpack.c.b16 %v789, %v773
  %v918 = vpack.c.b16 %v790, %v774
  %v919 = vpack.c.b16 %v791, %v775
  %v920 = vpack.c.b16 %v792, %v776
  %v921 = vpack.c.b16 %v793, %v777
  %v922 = vpack.c.b16 %v794, %v778
  %v923 = vpack.c.b16 %v795, %v779
  %v924 = vpack.c.b16 %v796, %v780
  %v925 = vpack.c.b16 %v797, %v781
  %v926 = vpack.c.b16 %v798, %v782
  %v927 = vpack.c.b16 %v799, %v783
  %v1312 = vunpack.c.l.b16 %v148
  %v1313 = vunpack.c.h.b16 %v148
  %v1314 = vunpack.c.l.b16 %v149
  %v1315 = vunpack.c.h.b16 %v149
  %v1316 = vunpack.c.l.b16 %v150
  %v1317 = vunpack.c.h.b16 %v150
  %v1318 = vunpack.c.l.b16 %v151
  %v1319 = vunpack.c.h.b16 %v151
  %v1320 = vunpack.c.l.b16 %v152
  %v1321 = vunpack.c.h.b16 %v152
  %v1322 = vunpack.c.l.b16 %v153
  %v1323 = vunpack.c.h.b16 %v153
  %v1324 = vunpack.c.l.b16 %v154
  %v1325 = vunpack.c.h.b16 %v154
  %v1326 = vunpack.c.l.b16 %v155
  %v1327 = vunpack.c.h.b16 %v155
  %v1328 = vunpack.c.l.b16 %v156
  %v1329 = vunpack.c.h.b16 %v156
  %v1330 = vunpack.c.l.b16 %v157
  %v1331 = vunpack.c.h.b16 %v157
  %v1332 = vunpack.c.l.b16 %v158
  %v1333 = vunpack.c.h.b16 %v158
  %v1334 = vunpack.c.l.b16 %v159
  %v1335 = vunpack.c.h.b16 %v159
  %v1336 = vunpack.c.l.b16 %v160
  %v1337 = vunpack.c.h.b16 %v160
  %v1338 = vunpack.c.l.b16 %v161
  %v1339 = vunpack.c.h.b16 %v161
  %v1340 = vunpack.c.l.b16 %v162
  %v1341 = vunpack.c.h.b16 %v162
  %v1342 = vunpack.c.l.b16 %v163
  %v1343 = vunpack.c.h.b16 %v163
  %v1344 = vunpack.c.l.b16 %v164
  %v1345 = vunpack.c.h.b16 %v164
  %v1346 = vunpack.c.l.b16 %v165
  %v1347 = vunpack.c.h.b16 %v165
  %v1348 = vunpack.c.l.b16 %v166
  %v1349 = vunpack.c.h.b16 %v166
  %v1350 = vunpack.c.l.b16 %v167
  %v1351 = vunpack.c.h.b16 %v167
  %v1352 = vunpack.c.l.b16 %v168
  %v1353 = vunpack.c.h.b16 %v168
  %v1354 = vunpack.c.l.b16 %v169
  %v1355 = vunpack.c.h.b16 %v169
  %v1356 = vunpack.c.l.b16 %v170
  %v1357 = vunpack.c.h.b16 %v170
  %v1358 = vunpack.c.l.b16 %v171
  %v1359 = vunpack.c.h.b16 %v171
  %v1360 = vunpack.c.l.b16 %v172
  %v1361 = vunpack.c.h.b16 %v172
  %v1362 = vunpack.c.l.b16 %v173
  %v1363 = vunpack.c.h.b16 %v173
  %v1364 = vunpack.c.l.b16 %v174
  %v1365 = vunpack.c.h.b16 %v174
  %v1366 = vunpack.c.l.b16 %v175
  %v1367 = vunpack.c.h.b16 %v175
  %v1368 = vunpack.c.l.b16 %v176
  %v1369 = vunpack.c.h.b16 %v176
  %v1370 = vunpack.c.l.b16 %v177
  %v1371 = vunpack.c.h.b16 %v177
  %v1372 = vunpack.c.l.b16 %v178
  %v1373 = vunpack.c.h.b16 %v178
  %v1374 = vunpack.c.l.b16 %v179
  %v1375 = vunpack.c.h.b16 %v179
  %v1376 = vunpack.c.l.b16 %v180
  %v1377 = vunpack.c.h.b16 %v180
  %v1378 = vunpack.c.l.b16 %v181
  %v1379 = vunpack.c.h.b16 %v181
  %v1380 = vunpack.c.l.b16 %v182
  %v1381 = vunpack.c.h.b16 %v182
  %v1382 = vunpack.c.l.b16 %v183
  %v1383 = vunpack.c.h.b16 %v183
  %v1384 = vunpack.c.l.b16 %v184
  %v1385 = vunpack.c.h.b16 %v184
  %v1386 = vunpack.c.l.b16 %v185
  %v1387 = vunpack.c.h.b16 %v185
  %v1388 = vunpack.c.l.b16 %v186
  %v1389 = vunpack.c.h.b16 %v186
  %v1390 = vunpack.c.l.b16 %v187
  %v1391 = vunpack.c.h.b16 %v187
  %v1392 = vunpack.c.l.b16 %v188
  %v1393 = vunpack.c.h.b16 %v188
  %v1394 = vunpack.c.l.b16 %v189
  %v1395 = vunpack.c.h.b16 %v189
  %v1396 = vunpack.c.l.b16 %v190
  %v1397 = vunpack.c.h.b16 %v190
  %v1398 = vunpack.c.l.b16 %v191
  %v1399 = vunpack.c.h.b16 %v191
  %v1400 = vunpack.c.l.b16 %v192
  %v1401 = vunpack.c.h.b16 %v192
  %v1402 = vunpack.c.l.b16 %v193
  %v1403 = vunpack.c.h.b16 %v193
  %v1404 = vunpack.c.l.b16 %v194
  %v1405 = vunpack.c.h.b16 %v194
  %v1406 = vunpack.c.l.b16 %v195
  %v1407 = vunpack.c.h.b16 %v195
  %v1408 = vunpack.c.l.b16 %v196
  %v1409 = vunpack.c.h.b16 %v196
  %v1410 = vunpack.c.l.b16 %v197
  %v1411 = vunpack.c.h.b16 %v197
  %v1412 = vunpack.c.l.b16 %v198
  %v1413 = vunpack.c.h.b16 %v198
  %v1414 = vunpack.c.l.b16 %v199
  %v1415 = vunpack.c.h.b16 %v199
  %v1416 = vunpack.c.l.b16 %v200
  %v1417 = vunpack.c.h.b16 %v200
  %v1418 = vunpack.c.l.b16 %v201
  %v1419 = vunpack.c.h.b16 %v201
  %v1420 = vunpack.c.l.b16 %v202
  %v1421 = vunpack.c.h.b16 %v202
  %v1422 = vunpack.c.l.b16 %v203
  %v1423 = vunpack.c.h.b16 %v203
  %v1424 = vunpack.c.l.b16 %v204
  %v1425 = vunpack.c.h.b16 %v204
  %v1426 = vunpack.c.l.b16 %v205
  %v1427 = vunpack.c.h.b16 %v205
  %v1428 = vunpack.c.l.b16 %v206
  %v1429 = vunpack.c.h.b16 %v206
  %v1430 = vunpack.c.l.b16 %v207
  %v1431 = vunpack.c.h.b16 %v207
  %v1432 = vunpack.c.l.b16 %v208
  %v1433 = vunpack.c.h.b16 %v208
  %v1434 = vunpack.c.l.b16 %v209
  %v1435 = vunpack.c.h.b16 %v209
  %v1436 = vunpack.c.l.b16 %v210
  %v1437 = vunpack.c.h.b16 %v210
  %v1438 = vunpack.c.l.b16 %v211
  %v1439 = vunpack.c.h.b16 %v211
  %v1440 = vunpack.c.l.b16 %v212
  %v1441 = vunpack.c.h.b16 %v212
  %v1442 = vunpack.c.l.b16 %v213
  %v1443 = vunpack.c.h.b16 %v213
  %v1444 = vunpack.c.l.b16 %v214
  %v1445 = vunpack.c.h.b16 %v214
  %v1446 = vunpack.c.l.b16 %v215
  %v1447 = vunpack.c.h.b16 %v215
  %v1448 = vunpack.c.l.b16 %v216
  %v1449 = vunpack.c.h.b16 %v216
  %v1450 = vunpack.c.l.b16 %v217
  %v1451 = vunpack.c.h.b16 %v217
  %v1452 = vunpack.c.l.b16 %v218
  %v1453 = vunpack.c.h.b16 %v218
  %v1454 = vunpack.c.l.b16 %v219
  %v1455 = vunpack.c.h.b16 %v219
  %v1456 = vunpack.c.l.b16 %v220
  %v1457 = vunpack.c.h.b16 %v220
  %v1458 = vunpack.c.l.b16 %v221
  %v1459 = vunpack.c.h.b16 %v221
  %v1460 = vunpack.c.l.b16 %v222
  %v1461 = vunpack.c.h.b16 %v222
  %v1462 = vunpack.c.l.b16 %v223
  %v1463 = vunpack.c.h.b16 %v223
  %v1464 = vunpack.c.l.b16 %v224
  %v1465 = vunpack.c.h.b16 %v224
  %v1466 = vunpack.c.l.b16 %v225
  %v1467 = vunpack.c.h.b16 %v225
  %v1468 = vunpack.c.l.b16 %v226
  %v1469 = vunpack.c.h.b16 %v226
  %v1470 = vunpack.c.l.b16 %v227
  %v1471 = vunpack.c.h.b16 %v227
  %v1472 = vunpack.c.l.b16 %v228
  %v1473 = vunpack.c.h.b16 %v228
  %v1474 = vunpack.c.l.b16 %v229
  %v1475 = vunpack.c.h.b16 %v229
  %v1476 = vunpack.c.l.b16 %v230
  %v1477 = vunpack.c.h.b16 %v230
  %v1478 = vunpack.c.l.b16 %v231
  %v1479 = vunpack.c.h.b16 %v231
  %v1480 = vunpack.c.l.b16 %v232
  %v1481 = vunpack.c.h.b16 %v232
  %v1482 = vunpack.c.l.b16 %v233
  %v1483 = vunpack.c.h.b16 %v233
  %v1484 = vunpack.c.l.b16 %v234
  %v1485 = vunpack.c.h.b16 %v234
  %v1486 = vunpack.c.l.b16 %v235
  %v1487 = vunpack.c.h.b16 %v235
  %v1488 = vunpack.c.l.b16 %v236
  %v1489 = vunpack.c.h.b16 %v236
  %v1490 = vunpack.c.l.b16 %v237
  %v1491 = vunpack.c.h.b16 %v237
  %v1492 = vunpack.c.l.b16 %v238
  %v1493 = vunpack.c.h.b16 %v238
  %v1494 = vunpack.c.l.b16 %v239
  %v1495 = vunpack.c.h.b16 %v239
  %v1496 = vunpack.c.l.b16 %v240
  %v1497 = vunpack.c.h.b16 %v240
  %v1498 = vunpack.c.l.b16 %v241
  %v1499 = vunpack.c.h.b16 %v241
  %v1500 = vunpack.c.l.b16 %v242
  %v1501 = vunpack.c.h.b16 %v242
  %v1502 = vunpack.c.l.b16 %v243
  %v1503 = vunpack.c.h.b16 %v243
  %v1504 = vunpack.c.l.b16 %v244
  %v1505 = vunpack.c.h.b16 %v244
  %v1506 = vunpack.c.l.b16 %v245
  %v1507 = vunpack.c.h.b16 %v245
  %v1508 = vunpack.c.l.b16 %v246
  %v1509 = vunpack.c.h.b16 %v246
  %v1510 = vunpack.c.l.b16 %v247
  %v1511 = vunpack.c.h.b16 %v247
  %v1512 = vunpack.c.l.b16 %v248
  %v1513 = vunpack.c.h.b16 %v248
  %v1514 = vunpack.c.l.b16 %v249
  %v1515 = vunpack.c.h.b16 %v249
  %v1516 = vunpack.c.l.b16 %v250
  %v1517 = vunpack.c.h.b16 %v250
  %v1518 = vunpack.c.l.b16 %v251
  %v1519 = vunpack.c.h.b16 %v251
  %v1520 = vunpack.c.l.b16 %v252
  %v1521 = vunpack.c.h.b16 %v252
  %v1522 = vunpack.c.l.b16 %v253
  %v1523 = vunpack.c.h.b16 %v253
  %v1524 = vunpack.c.l.b16 %v254
  %v1525 = vunpack.c.h.b16 %v254
  %v1526 = vunpack.c.l.b16 %v255
  %v1527 = vunpack.c.h.b16 %v255
  %v1528 = vunpack.c.l.b16 %v256
  %v1529 = vunpack.c.h.b16 %v256
  %v1530 = vunpack.c.l.b16 %v257
  %v1531 = vunpack.c.h.b16 %v257
  %v1532 = vunpack.c.l.b16 %v258
  %v1533 = vunpack.c.h.b16 %v258
  %v1534 = vunpack.c.l.b16 %v259
  %v1535 = vunpack.c.h.b16 %v259
  %v1536 = vunpack.c.l.b16 %v260
  %v1537 = vunpack.c.h.b16 %v260
  %v1538 = vunpack.c.l.b16 %v261
  %v1539 = vunpack.c.h.b16 %v261
  %v1540 = vunpack.c.l.b16 %v262
  %v1541 = vunpack.c.h.b16 %v262
  %v1542 = vunpack.c.l.b16 %v263
  %v1543 = vunpack.c.h.b16 %v263
  %v1544 = vunpack.c.l.b16 %v264
  %v1545 = vunpack.c.h.b16 %v264
  %v1546 = vunpack.c.l.b16 %v265
  %v1547 = vunpack.c.h.b16 %v265
  %v1548 = vunpack.c.l.b16 %v266
  %v1549 = vunpack.c.h.b16 %v266
  %v1550 = vunpack.c.l.b16 %v267
  %v1551 = vunpack.c.h.b16 %v267
  %v1552 = vunpack.c.l.b16 %v268
  %v1553 = vunpack.c.h.b16 %v268
  %v1554 = vunpack.c.l.b16 %v269
  %v1555 = vunpack.c.h.b16 %v269
  %v1556 = vunpack.c.l.b16 %v270
  %v1557 = vunpack.c.h.b16 %v270
  %v1558 = vunpack.c.l.b16 %v271
  %v1559 = vunpack.c.h.b16 %v271
  %v1560 = vunpack.c.l.b16 %v272
  %v1561 = vunpack.c.h.b16 %v272
  %v1562 = vunpack.c.l.b16 %v273
  %v1563 = vunpack.c.h.b16 %v273
  %v1564 = vunpack.c.l.b16 %v274
  %v1565 = vunpack.c.h.b16 %v274
  %v1566 = vunpack.c.l.b16 %v275
  %v1567 = vunpack.c.h.b16 %v275
  %v1568 = vunpack.c.l.b16 %v276
  %v1569 = vunpack.c.h.b16 %v276
  %v1570 = vunpack.c.l.b16 %v277
  %v1571 = vunpack.c.h.b16 %v277
  %v1572 = vunpack.c.l.b16 %v278
  %v1573 = vunpack.c.h.b16 %v278
  %v1574 = vunpack.c.l.b16 %v279
  %v1575 = vunpack.c.h.b16 %v279
  %v1576 = vunpack.c.l.b16 %v280
  %v1577 = vunpack.c.h.b16 %v280
  %v1578 = vunpack.c.l.b16 %v281
  %v1579 = vunpack.c.h.b16 %v281
  %v1580 = vunpack.c.l.b16 %v282
  %v1581 = vunpack.c.h.b16 %v282
  %v1582 = vunpack.c.l.b16 %v283
  %v1583 = vunpack.c.h.b16 %v283
  %v1584 = vunpack.c.l.b16 %v284
  %v1585 = vunpack.c.h.b16 %v284
  %v1586 = vunpack.c.l.b16 %v285
  %v1587 = vunpack.c.h.b16 %v285
  %v1588 = vunpack.c.l.b16 %v286
  %v1589 = vunpack.c.h.b16 %v286
  %v1590 = vunpack.c.l.b16 %v287
  %v1591 = vunpack.c.h.b16 %v287
  %v1592 = vunpack.c.l.b16 %v288
  %v1593 = vunpack.c.h.b16 %v288
  %v1594 = vunpack.c.l.b16 %v289
  %v1595 = vunpack.c.h.b16 %v289
  %v1596 = vunpack.c.l.b16 %v290
  %v1597 = vunpack.c.h.b16 %v290
  %v1598 = vunpack.c.l.b16 %v291
  %v1599 = vunpack.c.h.b16 %v291
  %v1600 = vunpack.c.l.b16 %v292
  %v1601 = vunpack.c.h.b16 %v292
  %v1602 = vunpack.c.l.b16 %v293
  %v1603 = vunpack.c.h.b16 %v293
  %v1604 = vunpack.c.l.b16 %v294
  %v1605 = vunpack.c.h.b16 %v294
  %v1606 = vunpack.c.l.b16 %v295
  %v1607 = vunpack.c.h.b16 %v295
  %v1608 = vunpack.c.l.b16 %v296
  %v1609 = vunpack.c.h.b16 %v296
  %v1610 = vunpack.c.l.b16 %v297
  %v1611 = vunpack.c.h.b16 %v297
  %v1612 = vunpack.c.l.b16 %v298
  %v1613 = vunpack.c.h.b16 %v298
  %v1614 = vunpack.c.l.b16 %v299
  %v1615 = vunpack.c.h.b16 %v299
  %v1616 = vunpack.c.l.b16 %v300
  %v1617 = vunpack.c.h.b16 %v300
  %v1618 = vunpack.c.l.b16 %v301
  %v1619 = vunpack.c.h.b16 %v301
  %v1620 = vunpack.c.l.b16 %v302
  %v1621 = vunpack.c.h.b16 %v302
  %v1622 = vunpack.c.l.b16 %v303
  %v1623 = vunpack.c.h.b16 %v303
  %v1624 = vunpack.c.l.b16 %v304
  %v1625 = vunpack.c.h.b16 %v304
  %v1626 = vunpack.c.l.b16 %v305
  %v1627 = vunpack.c.h.b16 %v305
  %v1628 = vunpack.c.l.b16 %v306
  %v1629 = vunpack.c.h.b16 %v306
  %v1630 = vunpack.c.l.b16 %v307
  %v1631 = vunpack.c.h.b16 %v307
  %v1632 = vunpack.c.l.b16 %v308
  %v1633 = vunpack.c.h.b16 %v308
  %v1634 = vunpack.c.l.b16 %v309
  %v1635 = vunpack.c.h.b16 %v309
  %v1636 = vunpack.c.l.b16 %v310
  %v1637 = vunpack.c.h.b16 %v310
  %v1638 = vunpack.c.l.b16 %v311
  %v1639 = vunpack.c.h.b16 %v311
  %v1640 = vunpack.c.l.b16 %v312
  %v1641 = vunpack.c.h.b16 %v312
  %v1642 = vunpack.c.l.b16 %v313
  %v1643 = vunpack.c.h.b16 %v313
  %v1644 = vunpack.c.l.b16 %v314
  %v1645 = vunpack.c.h.b16 %v314
  %v1646 = vunpack.c.l.b16 %v315
  %v1647 = vunpack.c.h.b16 %v315
  %v1648 = vunpack.c.l.b16 %v316
  %v1649 = vunpack.c.h.b16 %v316
  %v1650 = vunpack.c.l.b16 %v317
  %v1651 = vunpack.c.h.b16 %v317
  %v1652 = vunpack.c.l.b16 %v318
  %v1653 = vunpack.c.h.b16 %v318
  %v1654 = vunpack.c.l.b16 %v319
  %v1655 = vunpack.c.h.b16 %v319
  %v1656 = vunpack.c.l.b16 %v320
  %v1657 = vunpack.c.h.b16 %v320
  %v1658 = vunpack.c.l.b16 %v321
  %v1659 = vunpack.c.h.b16 %v321
  %v1660 = vunpack.c.l.b16 %v322
  %v1661 = vunpack.c.h.b16 %v322
  %v1662 = vunpack.c.l.b16 %v323
  %v1663 = vunpack.c.h.b16 %v323
  %v1664 = vunpack.c.l.b16 %v324
  %v1665 = vunpack.c.h.b16 %v324
  %v1666 = vunpack.c.l.b16 %v325
  %v1667 = vunpack.c.h.b16 %v325
  %v1668 = vunpack.c.l.b16 %v326
  %v1669 = vunpack.c.h.b16 %v326
  %v1670 = vunpack.c.l.b16 %v327
  %v1671 = vunpack.c.h.b16 %v327
  %v1672 = vunpack.c.l.b16 %v328
  %v1673 = vunpack.c.h.b16 %v328
  %v1674 = vunpack.c.l.b16 %v329
  %v1675 = vunpack.c.h.b16 %v329
  %v1676 = vunpack.c.l.b16 %v330
  %v1677 = vunpack.c.h.b16 %v330
  %v1678 = vunpack.c.l.b16 %v331
  %v1679 = vunpack.c.h.b16 %v331
  %v1680 = vunpack.c.l.b16 %v332
  %v1681 = vunpack.c.h.b16 %v332
  %v1682 = vunpack.c.l.b16 %v333
  %v1683 = vunpack.c.h.b16 %v333
  %v1684 = vunpack.c.l.b16 %v334
  %v1685 = vunpack.c.h.b16 %v334
  %v1686 = vunpack.c.l.b16 %v335
  %v1687 = vunpack.c.h.b16 %v335
  %v1688 = vunpack.c.l.b16 %v336
  %v1689 = vunpack.c.h.b16 %v336
  %v1690 = vunpack.c.l.b16 %v337
  %v1691 = vunpack.c.h.b16 %v337
  %v1692 = vunpack.c.l.b16 %v338
  %v1693 = vunpack.c.h.b16 %v338
  %v1694 = vunpack.c.l.b16 %v339
  %v1695 = vunpack.c.h.b16 %v339
  %v1696 = vunpack.c.l.b16 %v340
  %v1697 = vunpack.c.h.b16 %v340
  %v1698 = vunpack.c.l.b16 %v341
  %v1699 = vunpack.c.h.b16 %v341
  %v1700 = vunpack.c.l.b16 %v342
  %v1701 = vunpack.c.h.b16 %v342
  %v1702 = vunpack.c.l.b16 %v343
  %v1703 = vunpack.c.h.b16 %v343
  %v1704 = vunpack.c.l.b16 %v344
  %v1705 = vunpack.c.h.b16 %v344
  %v1706 = vunpack.c.l.b16 %v345
  %v1707 = vunpack.c.h.b16 %v345
  %v1708 = vunpack.c.l.b16 %v346
  %v1709 = vunpack.c.h.b16 %v346
  %v1710 = vunpack.c.l.b16 %v347
  %v1711 = vunpack.c.h.b16 %v347
  %v1712 = vunpack.c.l.b16 %v348
  %v1713 = vunpack.c.h.b16 %v348
  %v1714 = vunpack.c.l.b16 %v349
  %v1715 = vunpack.c.h.b16 %v349
  %v1716 = vunpack.c.l.b16 %v350
  %v1717 = vunpack.c.h.b16 %v350
  %v1718 = vunpack.c.l.b16 %v351
  %v1719 = vunpack.c.h.b16 %v351
  %v1720 = vunpack.c.l.b16 %v352
  %v1721 = vunpack.c.h.b16 %v352
  %v1722 = vunpack.c.l.b16 %v353
  %v1723 = vunpack.c.h.b16 %v353
  %v1724 = vunpack.c.l.b16 %v354
  %v1725 = vunpack.c.h.b16 %v354
  %v1726 = vunpack.c.l.b16 %v355
  %v1727 = vunpack.c.h.b16 %v355
  %v1728 = vunpack.c.l.b16 %v356
  %v1729 = vunpack.c.h.b16 %v356
  %v1730 = vunpack.c.l.b16 %v357
  %v1731 = vunpack.c.h.b16 %v357
  %v1732 = vunpack.c.l.b16 %v358
  %v1733 = vunpack.c.h.b16 %v358
  %v1734 = vunpack.c.l.b16 %v359
  %v1735 = vunpack.c.h.b16 %v359
  %v1736 = vunpack.c.l.b16 %v360
  %v1737 = vunpack.c.h.b16 %v360
  %v1738 = vunpack.c.l.b16 %v361
  %v1739 = vunpack.c.h.b16 %v361
  %v1740 = vunpack.c.l.b16 %v362
  %v1741 = vunpack.c.h.b16 %v362
  %v1742 = vunpack.c.l.b16 %v363
  %v1743 = vunpack.c.h.b16 %v363
  %v1744 = vunpack.c.l.b16 %v364
  %v1745 = vunpack.c.h.b16 %v364
  %v1746 = vunpack.c.l.b16 %v365
  %v1747 = vunpack.c.h.b16 %v365
  %v1748 = vunpack.c.l.b16 %v366
  %v1749 = vunpack.c.h.b16 %v366
  %v1750 = vunpack.c.l.b16 %v367
  %v1751 = vunpack.c.h.b16 %v367
  %v1752 = vunpack.c.l.b16 %v368
  %v1753 = vunpack.c.h.b16 %v368
  %v1754 = vunpack.c.l.b16 %v369
  %v1755 = vunpack.c.h.b16 %v369
  %v1756 = vunpack.c.l.b16 %v370
  %v1757 = vunpack.c.h.b16 %v370
  %v1758 = vunpack.c.l.b16 %v371
  %v1759 = vunpack.c.h.b16 %v371
  %v1760 = vunpack.c.l.b16 %v372
  %v1761 = vunpack.c.h.b16 %v372
  %v1762 = vunpack.c.l.b16 %v373
  %v1763 = vunpack.c.h.b16 %v373
  %v1764 = vunpack.c.l.b16 %v374
  %v1765 = vunpack.c.h.b16 %v374
  %v1766 = vunpack.c.l.b16 %v375
  %v1767 = vunpack.c.h.b16 %v375
  %v1768 = vunpack.c.l.b16 %v376
  %v1769 = vunpack.c.h.b16 %v376
  %v1770 = vunpack.c.l.b16 %v377
  %v1771 = vunpack.c.h.b16 %v377
  %v1772 = vunpack.c.l.b16 %v378
  %v1773 = vunpack.c.h.b16 %v378
  %v1774 = vunpack.c.l.b16 %v379
  %v1775 = vunpack.c.h.b16 %v379
  %v1776 = vunpack.c.l.b16 %v380
  %v1777 = vunpack.c.h.b16 %v380
  %v1778 = vunpack.c.l.b16 %v381
  %v1779 = vunpack.c.h.b16 %v381
  %v1780 = vunpack.c.l.b16 %v382
  %v1781 = vunpack.c.h.b16 %v382
  %v1782 = vunpack.c.l.b16 %v383
  %v1783 = vunpack.c.h.b16 %v383
  %v1784 = vunpack.c.l.b16 %v384
  %v1785 = vunpack.c.h.b16 %v384
  %v1786 = vunpack.c.l.b16 %v385
  %v1787 = vunpack.c.h.b16 %v385
  %v1788 = vunpack.c.l.b16 %v386
  %v1789 = vunpack.c.h.b16 %v386
  %v1790 = vunpack.c.l.b16 %v387
  %v1791 = vunpack.c.h.b16 %v387
  %v1792 = vunpack.c.l.b16 %v388
  %v1793 = vunpack.c.h.b16 %v388
  %v1794 = vunpack.c.l.b16 %v389
  %v1795 = vunpack.c.h.b16 %v389
  %v1796 = vunpack.c.l.b16 %v390
  %v1797 = vunpack.c.h.b16 %v390
  %v1798 = vunpack.c.l.b16 %v391
  %v1799 = vunpack.c.h.b16 %v391
  %v1800 = vunpack.c.l.b16 %v392
  %v1801 = vunpack.c.h.b16 %v392
  %v1802 = vunpack.c.l.b16 %v393
  %v1803 = vunpack.c.h.b16 %v393
  %v1804 = vunpack.c.l.b16 %v394
  %v1805 = vunpack.c.h.b16 %v394
  %v1806 = vunpack.c.l.b16 %v395
  %v1807 = vunpack.c.h.b16 %v395
  %v1808 = vunpack.c.l.b16 %v396
  %v1809 = vunpack.c.h.b16 %v396
  %v1810 = vunpack.c.l.b16 %v397
  %v1811 = vunpack.c.h.b16 %v397
  %v1812 = vunpack.c.l.b16 %v398
  %v1813 = vunpack.c.h.b16 %v398
  %v1814 = vunpack.c.l.b16 %v399
  %v1815 = vunpack.c.h.b16 %v399
  %v1816 = vunpack.c.l.b16 %v400
  %v1817 = vunpack.c.h.b16 %v400
  %v1818 = vunpack.c.l.b16 %v401
  %v1819 = vunpack.c.h.b16 %v401
  %v1820 = vunpack.c.l.b16 %v402
  %v1821 = vunpack.c.h.b16 %v402
  %v1822 = vunpack.c.l.b16 %v403
  %v1823 = vunpack.c.h.b16 %v403
  %v1824 = vpack.c.b16 %v1314, %v1312
  %v1825 = vpack.c.b16 %v1315, %v1313
  %v1826 = vpack.c.b16 %v1318, %v1316
  %v1827 = vpack.c.b16 %v1319, %v1317
  %v1828 = vpack.c.b16 %v1322, %v1320
  %v1829 = vpack.c.b16 %v1323, %v1321
  %v1830 = vpack.c.b16 %v1326, %v1324
  %v1831 = vpack.c.b16 %v1327, %v1325
  %v1832 = vpack.c.b16 %v1330, %v1328
  %v1833 = vpack.c.b16 %v1331, %v1329
  %v1834 = vpack.c.b16 %v1334, %v1332
  %v1835 = vpack.c.b16 %v1335, %v1333
  %v1836 = vpack.c.b16 %v1338, %v1336
  %v1837 = vpack.c.b16 %v1339, %v1337
  %v1838 = vpack.c.b16 %v1342, %v1340
  %v1839 = vpack.c.b16 %v1343, %v1341
  %v1840 = vpack.c.b16 %v1346, %v1344
  %v1841 = vpack.c.b16 %v1347, %v1345
  %v1842 = vpack.c.b16 %v1350, %v1348
  %v1843 = vpack.c.b16 %v1351, %v1349
  %v1844 = vpack.c.b16 %v1354, %v1352
  %v1845 = vpack.c.b16 %v1355, %v1353
  %v1846 = vpack.c.b16 %v1358, %v1356
  %v1847 = vpack.c.b16 %v1359, %v1357
  %v1848 = vpack.c.b16 %v1362, %v1360
  %v1849 = vpack.c.b16 %v1363, %v1361
  %v1850 = vpack.c.b16 %v1366, %v1364
  %v1851 = vpack.c.b16 %v1367, %v1365
  %v1852 = vpack.c.b16 %v1370, %v1368
  %v1853 = vpack.c.b16 %v1371, %v1369
  %v1854 = vpack.c.b16 %v1374, %v1372
  %v1855 = vpack.c.b16 %v1375, %v1373
  %v1856 = vpack.c.b16 %v1378, %v1376
  %v1857 = vpack.c.b16 %v1379, %v1377
  %v1858 = vpack.c.b16 %v1382, %v1380
  %v1859 = vpack.c.b16 %v1383, %v1381
  %v1860 = vpack.c.b16 %v1386, %v1384
  %v1861 = vpack.c.b16 %v1387, %v1385
  %v1862 = vpack.c.b16 %v1390, %v1388
  %v1863 = vpack.c.b16 %v1391, %v1389
  %v1864 = vpack.c.b16 %v1394, %v1392
  %v1865 = vpack.c.b16 %v1395, %v1393
  %v1866 = vpack.c.b16 %v1398, %v1396
  %v1867 = vpack.c.b16 %v1399, %v1397
  %v1868 = vpack.c.b16 %v1402, %v1400
  %v1869 = vpack.c.b16 %v1403, %v1401
  %v1870 = vpack.c.b16 %v1406, %v1404
  %v1871 = vpack.c.b16 %v1407, %v1405
  %v1872 = vpack.c.b16 %v1410, %v1408
  %v1873 = vpack.c.b16 %v1411, %v1409
  %v1874 = vpack.c.b16 %v1414, %v1412
  %v1875 = vpack.c.b16 %v1415, %v1413
  %v1876 = vpack.c.b16 %v1418, %v1416
  %v1877 = vpack.c.b16 %v1419, %v1417
  %v1878 = vpack.c.b16 %v1422, %v1420
  %v1879 = vpack.c.b16 %v1423, %v1421
  %v1880 = vpack.c.b16 %v1426, %v1424
  %v1881 = vpack.c.b16 %v1427, %v1425
  %v1882 = vpack.c.b16 %v1430, %v1428
  %v1883 = vpack.c.b16 %v1431, %v1429
  %v1884 = vpack.c.b16 %v1434, %v1432
  %v1885 = vpack.c.b16 %v1435, %v1433
  %v1886 = vpack.c.b16 %v1438, %v1436
  %v1887 = vpack.c.b16 %v1439, %v1437
  %v1888 = vpack.c.b16 %v1442, %v1440
  %v1889 = vpack.c.b16 %v1443, %v1441
  %v1890 = vpack.c.b16 %v1446, %v1444
  %v1891 = vpack.c.b16 %v1447, %v1445
  %v1892 = vpack.c.b16 %v1450, %v1448
  %v1893 = vpack.c.b16 %v1451, %v1449
  %v1894 = vpack.c.b16 %v1454, %v1452
  %v1895 = vpack.c.b16 %v1455, %v1453
  %v1896 = vpack.c.b16 %v1458, %v1456
  %v1897 = vpack.c.b16 %v1459, %v1457
  %v1898 = vpack.c.b16 %v1462, %v1460
  %v1899 = vpack.c.b16 %v1463, %v1461
  %v1900 = vpack.c.b16 %v1466, %v1464
  %v1901 = vpack.c.b16 %v1467, %v1465
  %v1902 = vpack.c.b16 %v1470, %v1468
  %v1903 = vpack.c.b16 %v1471, %v1469
  %v1904 = vpack.c.b16 %v1474, %v1472
  %v1905 = vpack.c.b16 %v1475, %v1473
  %v1906 = vpack.c.b16 %v1478, %v1476
  %v1907 = vpack.c.b16 %v1479, %v1477
  %v1908 = vpack.c.b16 %v1482, %v1480
  %v1909 = vpack.c.b16 %v1483, %v1481
  %v1910 = vpack.c.b16 %v1486, %v1484
  %v1911 = vpack.c.b16 %v1487, %v1485
  %v1912 = vpack.c.b16 %v1490, %v1488
  %v1913 = vpack.c.b16 %v1491, %v1489
  %v1914 = vpack.c.b16 %v1494, %v1492
  %v1915 = vpack.c.b16 %v1495, %v1493
  %v1916 = vpack.c.b16 %v1498, %v1496
  %v1917 = vpack.c.b16 %v1499, %v1497
  %v1918 = vpack.c.b16 %v1502, %v1500
  %v1919 = vpack.c.b16 %v1503, %v1501
  %v1920 = vpack.c.b16 %v1506, %v1504
  %v1921 = vpack.c.b16 %v1507, %v1505
  %v1922 = vpack.c.b16 %v1510, %v1508
  %v1923 = vpack.c.b16 %v1511, %v1509
  %v1924 = vpack.c.b16 %v1514, %v1512
  %v1925 = vpack.c.b16 %v1515, %v1513
  %v1926 = vpack.c.b16 %v1518, %v1516
  %v1927 = vpack.c.b16 %v1519, %v1517
  %v1928 = vpack.c.b16 %v1522, %v1520
  %v1929 = vpack.c.b16 %v1523, %v1521
  %v1930 = vpack.c.b16 %v1526, %v1524
  %v1931 = vpack.c.b16 %v1527, %v1525
  %v1932 = vpack.c.b16 %v1530, %v1528
  %v1933 = vpack.c.b16 %v1531, %v1529
  %v1934 = vpack.c.b16 %v1534, %v1532
  %v1935 = vpack.c.b16 %v1535, %v1533
  %v1936 = vpack.c.b16 %v1538, %v1536
  %v1937 = vpack.c.b16 %v1539, %v1537
  %v1938 = vpack.c.b16 %v1542, %v1540
  %v1939 = vpack.c.b16 %v1543, %v1541
  %v1940 = vpack.c.b16 %v1546, %v1544
  %v1941 = vpack.c.b16 %v1547, %v1545
  %v1942 = vpack.c.b16 %v1550, %v1548
  %v1943 = vpack.c.b16 %v1551, %v1549
  %v1944 = vpack.c.b16 %v1554, %v1552
  %v1945 = vpack.c.b16 %v1555, %v1553
  %v1946 = vpack.c.b16 %v1558, %v1556
  %v1947 = vpack.c.b16 %v1559, %v1557
  %v1948 = vpack.c.b16 %v1562, %v1560
  %v1949 = vpack.c.b16 %v1563, %v1561
  %v1950 = vpack.c.b16 %v1566, %v1564
  %v1951 = vpack.c.b16 %v1567, %v1565
  %v1952 = vpack.c.b16 %v1570, %v1568
  %v1953 = vpack.c.b16 %v1571, %v1569
  %v1954 = vpack.c.b16 %v1574, %v1572
  %v1955 = vpack.c.b16 %v1575, %v1573
  %v1956 = vpack.c.b16 %v1578, %v1576
  %v1957 = vpack.c.b16 %v1579, %v1577
  %v1958 = vpack.c.b16 %v1582, %v1580
  %v1959 = vpack.c.b16 %v1583, %v1581
  %v1960 = vpack.c.b16 %v1586, %v1584
  %v1961 = vpack.c.b16 %v1587, %v1585
  %v1962 = vpack.c.b16 %v1590, %v1588
  %v1963 = vpack.c.b16 %v1591, %v1589
  %v1964 = vpack.c.b16 %v1594, %v1592
  %v1965 = vpack.c.b16 %v1595, %v1593
  %v1966 = vpack.c.b16 %v1598, %v1596
  %v1967 = vpack.c.b16 %v1599, %v1597
  %v1968 = vpack.c.b16 %v1602, %v1600
  %v1969 = vpack.c.b16 %v1603, %v1601
  %v1970 = vpack.c.b16 %v1606, %v1604
  %v1971 = vpack.c.b16 %v1607, %v1605
  %v1972 = vpack.c.b16 %v1610, %v1608
  %v1973 = vpack.c.b16 %v1611, %v1609
  %v1974 = vpack.c.b16 %v1614, %v1612
  %v1975 = vpack.c.b16 %v1615, %v1613
  %v1976 = vpack.c.b16 %v1618, %v1616
  %v1977 = vpack.c.b16 %v1619, %v1617
  %v1978 = vpack.c.b16 %v1622, %v1620
  %v1979 = vpack.c.b16 %v1623, %v1621
  %v1980 = vpack.c.b16 %v1626, %v1624
  %v1981 = vpack.c.b16 %v1627, %v1625
  %v1982 = vpack.c.b16 %v1630, %v1628
  %v1983 = vpack.c.b16 %v1631, %v1629
  %v1984 = vpack.c.b16 %v1634, %v1632
  %v1985 = vpack.c.b16 %v1635, %v1633
  %v1986 = vpack.c.b16 %v1638, %v1636
  %v1987 = vpack.c.b16 %v1639, %v1637
  %v1988 = vpack.c.b16 %v1642, %v1640
  %v1989 = vpack.c.b16 %v1643, %v1641
  %v1990 = vpack.c.b16 %v1646, %v1644
  %v1991 = vpack.c.b16 %v1647, %v1645
  %v1992 = vpack.c.b16 %v1650, %v1648
  %v1993 = vpack.c.b16 %v1651, %v1649
  %v1994 = vpack.c.b16 %v1654, %v1652
  %v1995 = vpack.c.b16 %v1655, %v1653
  %v1996 = vpack.c.b16 %v1658, %v1656
  %v1997 = vpack.c.b16 %v1659, %v1657
  %v1998 = vpack.c.b16 %v1662, %v1660
  %v1999 = vpack.c.b16 %v1663, %v1661
  %v2000 = vpack.c.b16 %v1666, %v1664
  %v2001 = vpack.c.b16 %v1667, %v1665
  %v2002 = vpack.c.b16 %v1670, %v1668
  %v2003 = vpack.c.b16 %v1671, %v1669
  %v2004 = vpack.c.b16 %v1674, %v1672
  %v2005 = vpack.c.b16 %v1675, %v1673
  %v2006 = vpack.c.b16 %v1678, %v1676
  %v2007 = vpack.c.b16 %v1679, %v1677
  %v2008 = vpack.c.b16 %v1682, %v1680
  %v2009 = vpack.c.b16 %v1683, %v1681
  %v2010 = vpack.c.b16 %v1686, %v1684
  %v2011 = vpack.c.b16 %v1687, %v1685
  %v2012 = vpack.c.b16 %v1690, %v1688
  %v2013 = vpack.c.b16 %v1691, %v1689
  %v2014 = vpack.c.b16 %v1694, %v1692
  %v2015 = vpack.c.b16 %v1695, %v1693
  %v2016 = vpack.c.b16 %v1698, %v1696
  %v2017 = vpack.c.b16 %v1699, %v1697
  %v2018 = vpack.c.b16 %v1702, %v1700
  %v2019 = vpack.c.b16 %v1703, %v1701
  %v2020 = vpack.c.b16 %v1706, %v1704
  %v2021 = vpack.c.b16 %v1707, %v1705
  %v2022 = vpack.c.b16 %v1710, %v1708
  %v2023 = vpack.c.b16 %v1711, %v1709
  %v2024 = vpack.c.b16 %v1714, %v1712
  %v2025 = vpack.c.b16 %v1715, %v1713
  %v2026 = vpack.c.b16 %v1718, %v1716
  %v2027 = vpack.c.b16 %v1719, %v1717
  %v2028 = vpack.c.b16 %v1722, %v1720
  %v2029 = vpack.c.b16 %v1723, %v1721
  %v2030 = vpack.c.b16 %v1726, %v1724
  %v2031 = vpack.c.b16 %v1727, %v1725
  %v2032 = vpack.c.b16 %v1730, %v1728
  %v2033 = vpack.c.b16 %v1731, %v1729
  %v2034 = vpack.c.b16 %v1734, %v1732
  %v2035 = vpack.c.b16 %v1735, %v1733
  %v2036 = vpack.c.b16 %v1738, %v1736
  %v2037 = vpack.c.b16 %v1739, %v1737
  %v2038 = vpack.c.b16 %v1742, %v1740
  %v2039 = vpack.c.b16 %v1743, %v1741
  %v2040 = vpack.c.b16 %v1746, %v1744
  %v2041 = vpack.c.b16 %v1747, %v1745
  %v2042 = vpack.c.b16 %v1750, %v1748
  %v2043 = vpack.c.b16 %v1751, %v1749
  %v2044 = vpack.c.b16 %v1754, %v1752
  %v2045 = vpack.c.b16 %v1755, %v1753
  %v2046 = vpack.c.b16 %v1758, %v1756
  %v2047 = vpack.c.b16 %v1759, %v1757
  %v2048 = vpack.c.b16 %v1762, %v1760
  %v2049 = vpack.c.b16 %v1763, %v1761
  %v2050 = vpack.c.b16 %v1766, %v1764
  %v2051 = vpack.c.b16 %v1767, %v1765
  %v2052 = vpack.c.b16 %v1770, %v1768
  %v2053 = vpack.c.b16 %v1771, %v1769
  %v2054 = vpack.c.b16 %v1774, %v1772
  %v2055 = vpack.c.b16 %v1775, %v1773
  %v2056 = vpack.c.b16 %v1778, %v1776
  %v2057 = vpack.c.b16 %v1779, %v1777
  %v2058 = vpack.c.b16 %v1782, %v1780
  %v2059 = vpack.c.b16 %v1783, %v1781
  %v2060 = vpack.c.b16 %v1786, %v1784
  %v2061 = vpack.c.b16 %v1787, %v1785
  %v2062 = vpack.c.b16 %v1790, %v1788
  %v2063 = vpack.c.b16 %v1791, %v1789
  %v2064 = vpack.c.b16 %v1794, %v1792
  %v2065 = vpack.c.b16 %v1795, %v1793
  %v2066 = vpack.c.b16 %v1798, %v1796
  %v2067 = vpack.c.b16 %v1799, %v1797
  %v2068 = vpack.c.b16 %v1802, %v1800
  %v2069 = vpack.c.b16 %v1803, %v1801
  %v2070 = vpack.c.b16 %v1806, %v1804
  %v2071 = vpack.c.b16 %v1807, %v1805
  %v2072 = vpack.c.b16 %v1810, %v1808
  %v2073 = vpack.c.b16 %v1811, %v1809
  %v2074 = vpack.c.b16 %v1814, %v1812
  %v2075 = vpack.c.b16 %v1815, %v1813
  %v2076 = vpack.c.b16 %v1818, %v1816
  %v2077 = vpack.c.b16 %v1819, %v1817
  %v2078 = vpack.c.b16 %v1822, %v1820
  %v2079 = vpack.c.b16 %v1823, %v1821
  %2336 = vmatprep.subr.bf16.mxu0 %v1825
  %2337 = vmatpush1.bf16.msra.mxu0 %v1824
  %2338 = vmatprep.subr.bf16.mxu0 %v1827
  %2339 = vmatpush1.bf16.msra.mxu0 %v1826
  %2340 = vmatprep.subr.bf16.mxu0 %v1829
  %2341 = vmatpush1.bf16.msra.mxu0 %v1828
  %2342 = vmatprep.subr.bf16.mxu0 %v1831
  %2343 = vmatpush1.bf16.msra.mxu0 %v1830
  %2344 = vmatprep.subr.bf16.mxu0 %v1833
  %2345 = vmatpush1.bf16.msra.mxu0 %v1832
  %2346 = vmatprep.subr.bf16.mxu0 %v1835
  %2347 = vmatpush1.bf16.msra.mxu0 %v1834
  %2348 = vmatprep.subr.bf16.mxu0 %v1837
  %2349 = vmatpush1.bf16.msra.mxu0 %v1836
  %2350 = vmatprep.subr.bf16.mxu0 %v1839
  %2351 = vmatpush1.bf16.msra.mxu0 %v1838
  %2352 = vmatprep.subr.bf16.mxu0 %v1841
  %2353 = vmatpush1.bf16.msra.mxu0 %v1840
  %2354 = vmatprep.subr.bf16.mxu0 %v1843
  %2355 = vmatpush1.bf16.msra.mxu0 %v1842
  %2356 = vmatprep.subr.bf16.mxu0 %v1845
  %2357 = vmatpush1.bf16.msra.mxu0 %v1844
  %2358 = vmatprep.subr.bf16.mxu0 %v1847
  %2359 = vmatpush1.bf16.msra.mxu0 %v1846
  %2360 = vmatprep.subr.bf16.mxu0 %v1849
  %2361 = vmatpush1.bf16.msra.mxu0 %v1848
  %2362 = vmatprep.subr.bf16.mxu0 %v1851
  %2363 = vmatpush1.bf16.msra.mxu0 %v1850
  %2364 = vmatprep.subr.bf16.mxu0 %v1853
  %2365 = vmatpush1.bf16.msra.mxu0 %v1852
  %2366 = vmatprep.subr.bf16.mxu0 %v1855
  %2367 = vmatpush1.bf16.msra.mxu0 %v1854
  %2368 = vmatprep.mubr.bf16.mxu0 %v801
  %2369 = vmatmul.mubr.bf16.gmra.mrb[0].mxu0 %v800
  %v2370 = vpop.f32.mrb[0].mxu0
  %v2371 = vadd.f32 %v409, %v2370
  %v2372 = vpop.f32.mrb[0].mxu0
  %v2373 = vadd.f32 %v413, %v2372
  %v2374 = vpop.f32.mrb[0].mxu0
  %v2375 = vadd.f32 %v409, %v2374
  %v2376 = vpop.f32.mrb[0].mxu0
  %v2377 = vadd.f32 %v413, %v2376
  %2378 = vmatprep.mubr.bf16.mxu0 %v817
  %2379 = vmatmul.mubr.bf16.gmra.mrb[0].mxu0 %v816
  %v2380 = vpop.f32.mrb[0].mxu0
  %v2381 = vadd.f32 %v409, %v2380
  %v2382 = vpop.f32.mrb[0].mxu0
  %v2383 = vadd.f32 %v413, %v2382
  %v2384 = vpop.f32.mrb[0].mxu0
  %v2385 = vadd.f32 %v409, %v2384
  %v2386 = vpop.f32.mrb[0].mxu0
  %v2387 = vadd.f32 %v413, %v2386
  %2388 = vmatprep.mubr.bf16.mxu0 %v833
  %2389 = vmatmul.mubr.bf16.gmra.mrb[0].mxu0 %v832
  %v2390 = vpop.f32.mrb[0].mxu0
  %v2391 = vadd.f32 %v409, %v2390
  %v2392 = vpop.f32.mrb[0].mxu0
  %v2393 = vadd.f32 %v413, %v2392
  %v2394 = vpop.f32.mrb[0].mxu0
  %v2395 = vadd.f32 %v409, %v2394
  %v2396 = vpop.f32.mrb[0].mxu0
  %v2397 = vadd.f32 %v413, %v2396
  %2398 = vmatprep.mubr.bf16.mxu0 %v849
  %2399 = vmatmul.mubr.bf16.gmra.mrb[0].mxu0 %v848
  %v2400 = vpop.f32.mrb[0].mxu0
  %v2401 = vadd.f32 %v409, %v2400
  %v2402 = vpop.f32.mrb[0].mxu0
  %v2403 = vadd.f32 %v413, %v2402
  %v2404 = vpop.f32.mrb[0].mxu0
  %v2405 = vadd.f32 %v409, %v2404
  %v2406 = vpop.f32.mrb[0].mxu0
  %v2407 = vadd.f32 %v413, %v2406
  %2408 = vmatprep.mubr.bf16.mxu0 %v865
  %2409 = vmatmul.mubr.bf16.gmra.mrb[0].mxu0 %v864
  %v2410 = vpop.f32.mrb[0].mxu0
  %v2411 = vadd.f32 %v409, %v2410
  %v2412 = vpop.f32.mrb[0].mxu0
  %v2413 = vadd.f32 %v413, %v2412
  %v2414 = vpop.f32.mrb[0].mxu0
  %v2415 = vadd.f32 %v409, %v2414
  %v2416 = vpop.f32.mrb[0].mxu0
  %v2417 = vadd.f32 %v413, %v2416
  %2418 = vmatprep.mubr.bf16.mxu0 %v881
  %2419 = vmatmul.mubr.bf16.gmra.mrb[0].mxu0 %v880
  %v2420 = vpop.f32.mrb[0].mxu0
  %v2421 = vadd.f32 %v409, %v2420
  %v2422 = vpop.f32.mrb[0].mxu0
  %v2423 = vadd.f32 %v413, %v2422
  %v2424 = vpop.f32.mrb[0].mxu0
  %v2425 = vadd.f32 %v409, %v2424
  %v2426 = vpop.f32.mrb[0].mxu0
  %v2427 = vadd.f32 %v413, %v2426
  %2428 = vmatprep.mubr.bf16.mxu0 %v897
  %2429 = vmatmul.mubr.bf16.gmra.mrb[0].mxu0 %v896
  %v2430 = vpop.f32.mrb[0].mxu0
  %v2431 = vadd.f32 %v409, %v2430
  %v2432 = vpop.f32.mrb[0].mxu0
  %v2433 = vadd.f32 %v413, %v2432
  %v2434 = vpop.f32.mrb[0].mxu0
  %v2435 = vadd.f32 %v409, %v2434
  %v2436 = vpop.f32.mrb[0].mxu0
  %v2437 = vadd.f32 %v413, %v2436
  %2438 = vmatprep.mubr.bf16.mxu0 %v913
  %2439 = vmatmul.mubr.bf16.gmra.mrb[0].mxu0 %v912
  %v2440 = vpop.f32.mrb[0].mxu0
  %v2441 = vadd.f32 %v409, %v2440
  %v2442 = vpop.f32.mrb[0].mxu0
  %v2443 = vadd.f32 %v413, %v2442
  %v2444 = vpop.f32.mrb[0].mxu0
  %v2445 = vadd.f32 %v409, %v2444
  %v2446 = vpop.f32.mrb[0].mxu0
  %v2447 = vadd.f32 %v413, %v2446
  %2448 = vdwg.mxu0
  %2449 = vmatprep.subr.bf16.mxu0 %v1857
  %2450 = vmatpush1.bf16.msra.mxu0 %v1856
  %2451 = vmatprep.subr.bf16.mxu0 %v1859
  %2452 = vmatpush1.bf16.msra.mxu0 %v1858
  %2453 = vmatprep.subr.bf16.mxu0 %v1861
  %2454 = vmatpush1.bf16.msra.mxu0 %v1860
  %2455 = vmatprep.subr.bf16.mxu0 %v1863
  %2456 = vmatpush1.bf16.msra.mxu0 %v1862
  %2457 = vmatprep.subr.bf16.mxu0 %v1865
  %2458 = vmatpush1.bf16.msra.mxu0 %v1864
  %2459 = vmatprep.subr.bf16.mxu0 %v1867
  %2460 = vmatpush1.bf16.msra.mxu0 %v1866
  %2461 = vmatprep.subr.bf16.mxu0 %v1869
  %2462 = vmatpush1.bf16.msra.mxu0 %v1868
  %2463 = vmatprep.subr.bf16.mxu0 %v1871
  %2464 = vmatpush1.bf16.msra.mxu0 %v1870
  %2465 = vmatprep.subr.bf16.mxu0 %v1873
  %2466 = vmatpush1.bf16.msra.mxu0 %v1872
  %2467 = vmatprep.subr.bf16.mxu0 %v1875
  %2468 = vmatpush1.bf16.msra.mxu0 %v1874
  %2469 = vmatprep.subr.bf16.mxu0 %v1877
  %2470 = vmatpush1.bf16.msra.mxu0 %v1876
  %2471 = vmatprep.subr.bf16.mxu0 %v1879
  %2472 = vmatpush1.bf16.msra.mxu0 %v1878
  %2473 = vmatprep.subr.bf16.mxu0 %v1881
  %2474 = vmatpush1.bf16.msra.mxu0 %v1880
  %2475 = vmatprep.subr.bf16.mxu0 %v1883
  %2476 = vmatpush1.bf16.msra.mxu0 %v1882
  %2477 = vmatprep.subr.bf16.mxu0 %v1885
  %2478 = vmatpush1.bf16.msra.mxu0 %v1884
  %2479 = vmatprep.subr.bf16.mxu0 %v1887
  %2480 = vmatpush1.bf16.msra.mxu0 %v1886
  %2481 = vmatprep.mubr.bf16.mxu0 %v803
  %2482 = vmatmul.mubr.bf16.gmra.mrb[0].mxu0 %v802
  %v2483 = vpop.f32.mrb[0].mxu0
  %v2484 = vadd.f32 %v2371, %v2483
  %v2485 = vpop.f32.mrb[0].mxu0
  %v2486 = vadd.f32 %v2373, %v2485
  %v2487 = vpop.f32.mrb[0].mxu0
  %v2488 = vadd.f32 %v2375, %v2487
  %v2489 = vpop.f32.mrb[0].mxu0
  %v2490 = vadd.f32 %v2377, %v2489
  %2491 = vmatprep.mubr.bf16.mxu0 %v819
  %2492 = vmatmul.mubr.bf16.gmra.mrb[0].mxu0 %v818
  %v2493 = vpop.f32.mrb[0].mxu0
  %v2494 = vadd.f32 %v2381, %v2493
  %v2495 = vpop.f32.mrb[0].mxu0
  %v2496 = vadd.f32 %v2383, %v2495
  %v2497 = vpop.f32.mrb[0].mxu0
  %v2498 = vadd.f32 %v2385, %v2497
  %v2499 = vpop.f32.mrb[0].mxu0
  %v2500 = vadd.f32 %v2387, %v2499
  %2501 = vmatprep.mubr.bf16.mxu0 %v835
  %2502 = vmatmul.mubr.bf16.gmra.mrb[0].mxu0 %v834
  %v2503 = vpop.f32.mrb[0].mxu0
  %v2504 = vadd.f32 %v2391, %v2503
  %v2505 = vpop.f32.mrb[0].mxu0
  %v2506 = vadd.f32 %v2393, %v2505
  %v2507 = vpop.f32.mrb[0].mxu0
  %v2508 = vadd.f32 %v2395, %v2507
  %v2509 = vpop.f32.mrb[0].mxu0
  %v2510 = vadd.f32 %v2397, %v2509
  %2511 = vmatprep.mubr.bf16.mxu0 %v851
  %2512 = vmatmul.mubr.bf16.gmra.mrb[0].mxu0 %v850
  %v2513 = vpop.f32.mrb[0].mxu0
  %v2514 = vadd.f32 %v2401, %v2513
  %v2515 = vpop.f32.mrb[0].mxu0
  %v2516 = vadd.f32 %v2403, %v2515
  %v2517 = vpop.f32.mrb[0].mxu0
  %v2518 = vadd.f32 %v2405, %v2517
  %v2519 = vpop.f32.mrb[0].mxu0
  %v2520 = vadd.f32 %v2407, %v2519
  %2521 = vmatprep.mubr.bf16.mxu0 %v867
  %2522 = vmatmul.mubr.bf16.gmra.mrb[0].mxu0 %v866
  %v2523 = vpop.f32.mrb[0].mxu0
  %v2524 = vadd.f32 %v2411, %v2523
  %v2525 = vpop.f32.mrb[0].mxu0
  %v2526 = vadd.f32 %v2413, %v2525
  %v2527 = vpop.f32.mrb[0].mxu0
  %v2528 = vadd.f32 %v2415, %v2527
  %v2529 = vpop.f32.mrb[0].mxu0
  %v2530 = vadd.f32 %v2417, %v2529
  %2531 = vmatprep.mubr.bf16.mxu0 %v883
  %2532 = vmatmul.mubr.bf16.gmra.mrb[0].mxu0 %v882
  %v2533 = vpop.f32.mrb[0].mxu0
  %v2534 = vadd.f32 %v2421, %v2533
  %v2535 = vpop.f32.mrb[0].mxu0
  %v2536 = vadd.f32 %v2423, %v2535
  %v2537 = vpop.f32.mrb[0].mxu0
  %v2538 = vadd.f32 %v2425, %v2537
  %v2539 = vpop.f32.mrb[0].mxu0
  %v2540 = vadd.f32 %v2427, %v2539
  %2541 = vmatprep.mubr.bf16.mxu0 %v899
  %2542 = vmatmul.mubr.bf16.gmra.mrb[0].mxu0 %v898
  %v2543 = vpop.f32.mrb[0].mxu0
  %v2544 = vadd.f32 %v2431, %v2543
  %v2545 = vpop.f32.mrb[0].mxu0
  %v2546 = vadd.f32 %v2433, %v2545
  %v2547 = vpop.f32.mrb[0].mxu0
  %v2548 = vadd.f32 %v2435, %v2547
  %v2549 = vpop.f32.mrb[0].mxu0
  %v2550 = vadd.f32 %v2437, %v2549
  %2551 = vmatprep.mubr.bf16.mxu0 %v915
  %2552 = vmatmul.mubr.bf16.gmra.mrb[0].mxu0 %v914
  %v2553 = vpop.f32.mrb[0].mxu0
  %v2554 = vadd.f32 %v2441, %v2553
  %v2555 = vpop.f32.mrb[0].mxu0
  %v2556 = vadd.f32 %v2443, %v2555
  %v2557 = vpop.f32.mrb[0].mxu0
  %v2558 = vadd.f32 %v2445, %v2557
  %v2559 = vpop.f32.mrb[0].mxu0
  %v2560 = vadd.f32 %v2447, %v2559
  %2561 = vdwg.mxu0
  %2562 = vmatprep.subr.bf16.mxu0 %v1889
  %2563 = vmatpush1.bf16.msra.mxu0 %v1888
  %2564 = vmatprep.subr.bf16.mxu0 %v1891
  %2565 = vmatpush1.bf16.msra.mxu0 %v1890
  %2566 = vmatprep.subr.bf16.mxu0 %v1893
  %2567 = vmatpush1.bf16.msra.mxu0 %v1892
  %2568 = vmatprep.subr.bf16.mxu0 %v1895
  %2569 = vmatpush1.bf16.msra.mxu0 %v1894
  %2570 = vmatprep.subr.bf16.mxu0 %v1897
  %2571 = vmatpush1.bf16.msra.mxu0 %v1896
  %2572 = vmatprep.subr.bf16.mxu0 %v1899
  %2573 = vmatpush1.bf16.msra.mxu0 %v1898
  %2574 = vmatprep.subr.bf16.mxu0 %v1901
  %2575 = vmatpush1.bf16.msra.mxu0 %v1900
  %2576 = vmatprep.subr.bf16.mxu0 %v1903
  %2577 = vmatpush1.bf16.msra.mxu0 %v1902
  %2578 = vmatprep.subr.bf16.mxu0 %v1905
  %2579 = vmatpush1.bf16.msra.mxu0 %v1904
  %2580 = vmatprep.subr.bf16.mxu0 %v1907
  %2581 = vmatpush1.bf16.msra.mxu0 %v1906
  %2582 = vmatprep.subr.bf16.mxu0 %v1909
  %2583 = vmatpush1.bf16.msra.mxu0 %v1908
  %2584 = vmatprep.subr.bf16.mxu0 %v1911
  %2585 = vmatpush1.bf16.msra.mxu0 %v1910
  %2586 = vmatprep.subr.bf16.mxu0 %v1913
  %2587 = vmatpush1.bf16.msra.mxu0 %v1912
  %2588 = vmatprep.subr.bf16.mxu0 %v1915
  %2589 = vmatpush1.bf16.msra.mxu0 %v1914
  %2590 = vmatprep.subr.bf16.mxu0 %v1917
  %2591 = vmatpush1.bf16.msra.mxu0 %v1916
  %2592 = vmatprep.subr.bf16.mxu0 %v1919
  %2593 = vmatpush1.bf16.msra.mxu0 %v1918
  %2594 = vmatprep.mubr.bf16.mxu0 %v805
  %2595 = vmatmul.mubr.bf16.gmra.mrb[0].mxu0 %v804
  %v2596 = vpop.f32.mrb[0].mxu0
  %v2597 = vadd.f32 %v2484, %v2596
  %v2598 = vpop.f32.mrb[0].mxu0
  %v2599 = vadd.f32 %v2486, %v2598
  %v2600 = vpop.f32.mrb[0].mxu0
  %v2601 = vadd.f32 %v2488, %v2600
  %v2602 = vpop.f32.mrb[0].mxu0
  %v2603 = vadd.f32 %v2490, %v2602
  %2604 = vmatprep.mubr.bf16.mxu0 %v821
  %2605 = vmatmul.mubr.bf16.gmra.mrb[0].mxu0 %v820
  %v2606 = vpop.f32.mrb[0].mxu0
  %v2607 = vadd.f32 %v2494, %v2606
  %v2608 = vpop.f32.mrb[0].mxu0
  %v2609 = vadd.f32 %v2496, %v2608
  %v2610 = vpop.f32.mrb[0].mxu0
  %v2611 = vadd.f32 %v2498, %v2610
  %v2612 = vpop.f32.mrb[0].mxu0
  %v2613 = vadd.f32 %v2500, %v2612
  %2614 = vmatprep.mubr.bf16.mxu0 %v837
  %2615 = vmatmul.mubr.bf16.gmra.mrb[0].mxu0 %v836
  %v2616 = vpop.f32.mrb[0].mxu0
  %v2617 = vadd.f32 %v2504, %v2616
  %v2618 = vpop.f32.mrb[0].mxu0
  %v2619 = vadd.f32 %v2506, %v2618
  %v2620 = vpop.f32.mrb[0].mxu0
  %v2621 = vadd.f32 %v2508, %v2620
  %v2622 = vpop.f32.mrb[0].mxu0
  %v2623 = vadd.f32 %v2510, %v2622
  %2624 = vmatprep.mubr.bf16.mxu0 %v853
  %2625 = vmatmul.mubr.bf16.gmra.mrb[0].mxu0 %v852
  %v2626 = vpop.f32.mrb[0].mxu0
  %v2627 = vadd.f32 %v2514, %v2626
  %v2628 = vpop.f32.mrb[0].mxu0
  %v2629 = vadd.f32 %v2516, %v2628
  %v2630 = vpop.f32.mrb[0].mxu0
  %v2631 = vadd.f32 %v2518, %v2630
  %v2632 = vpop.f32.mrb[0].mxu0
  %v2633 = vadd.f32 %v2520, %v2632
  %2634 = vmatprep.mubr.bf16.mxu0 %v869
  %2635 = vmatmul.mubr.bf16.gmra.mrb[0].mxu0 %v868
  %v2636 = vpop.f32.mrb[0].mxu0
  %v2637 = vadd.f32 %v2524, %v2636
  %v2638 = vpop.f32.mrb[0].mxu0
  %v2639 = vadd.f32 %v2526, %v2638
  %v2640 = vpop.f32.mrb[0].mxu0
  %v2641 = vadd.f32 %v2528, %v2640
  %v2642 = vpop.f32.mrb[0].mxu0
  %v2643 = vadd.f32 %v2530, %v2642
  %2644 = vmatprep.mubr.bf16.mxu0 %v885
  %2645 = vmatmul.mubr.bf16.gmra.mrb[0].mxu0 %v884
  %v2646 = vpop.f32.mrb[0].mxu0
  %v2647 = vadd.f32 %v2534, %v2646
  %v2648 = vpop.f32.mrb[0].mxu0
  %v2649 = vadd.f32 %v2536, %v2648
  %v2650 = vpop.f32.mrb[0].mxu0
  %v2651 = vadd.f32 %v2538, %v2650
  %v2652 = vpop.f32.mrb[0].mxu0
  %v2653 = vadd.f32 %v2540, %v2652
  %2654 = vmatprep.mubr.bf16.mxu0 %v901
  %2655 = vmatmul.mubr.bf16.gmra.mrb[0].mxu0 %v900
  %v2656 = vpop.f32.mrb[0].mxu0
  %v2657 = vadd.f32 %v2544, %v2656
  %v2658 = vpop.f32.mrb[0].mxu0
  %v2659 = vadd.f32 %v2546, %v2658
  %v2660 = vpop.f32.mrb[0].mxu0
  %v2661 = vadd.f32 %v2548, %v2660
  %v2662 = vpop.f32.mrb[0].mxu0
  %v2663 = vadd.f32 %v2550, %v2662
  %2664 = vmatprep.mubr.bf16.mxu0 %v917
  %2665 = vmatmul.mubr.bf16.gmra.mrb[0].mxu0 %v916
  %v2666 = vpop.f32.mrb[0].mxu0
  %v2667 = vadd.f32 %v2554, %v2666
  %v2668 = vpop.f32.mrb[0].mxu0
  %v2669 = vadd.f32 %v2556, %v2668
  %v2670 = vpop.f32.mrb[0].mxu0
  %v2671 = vadd.f32 %v2558, %v2670
  %v2672 = vpop.f32.mrb[0].mxu0
  %v2673 = vadd.f32 %v2560, %v2672
  %2674 = vdwg.mxu0
  %2675 = vmatprep.subr.bf16.mxu0 %v1921
  %2676 = vmatpush1.bf16.msra.mxu0 %v1920
  %2677 = vmatprep.subr.bf16.mxu0 %v1923
  %2678 = vmatpush1.bf16.msra.mxu0 %v1922
  %2679 = vmatprep.subr.bf16.mxu0 %v1925
  %2680 = vmatpush1.bf16.msra.mxu0 %v1924
  %2681 = vmatprep.subr.bf16.mxu0 %v1927
  %2682 = vmatpush1.bf16.msra.mxu0 %v1926
  %2683 = vmatprep.subr.bf16.mxu0 %v1929
  %2684 = vmatpush1.bf16.msra.mxu0 %v1928
  %2685 = vmatprep.subr.bf16.mxu0 %v1931
  %2686 = vmatpush1.bf16.msra.mxu0 %v1930
  %2687 = vmatprep.subr.bf16.mxu0 %v1933
  %2688 = vmatpush1.bf16.msra.mxu0 %v1932
  %2689 = vmatprep.subr.bf16.mxu0 %v1935
  %2690 = vmatpush1.bf16.msra.mxu0 %v1934
  %2691 = vmatprep.subr.bf16.mxu0 %v1937
  %2692 = vmatpush1.bf16.msra.mxu0 %v1936
  %2693 = vmatprep.subr.bf16.mxu0 %v1939
  %2694 = vmatpush1.bf16.msra.mxu0 %v1938
  %2695 = vmatprep.subr.bf16.mxu0 %v1941
  %2696 = vmatpush1.bf16.msra.mxu0 %v1940
  %2697 = vmatprep.subr.bf16.mxu0 %v1943
  %2698 = vmatpush1.bf16.msra.mxu0 %v1942
  %2699 = vmatprep.subr.bf16.mxu0 %v1945
  %2700 = vmatpush1.bf16.msra.mxu0 %v1944
  %2701 = vmatprep.subr.bf16.mxu0 %v1947
  %2702 = vmatpush1.bf16.msra.mxu0 %v1946
  %2703 = vmatprep.subr.bf16.mxu0 %v1949
  %2704 = vmatpush1.bf16.msra.mxu0 %v1948
  %2705 = vmatprep.subr.bf16.mxu0 %v1951
  %2706 = vmatpush1.bf16.msra.mxu0 %v1950
  %2707 = vmatprep.mubr.bf16.mxu0 %v807
  %2708 = vmatmul.mubr.bf16.gmra.mrb[0].mxu0 %v806
  %v2709 = vpop.f32.mrb[0].mxu0
  %v2710 = vadd.f32 %v2597, %v2709
  %v2711 = vpop.f32.mrb[0].mxu0
  %v2712 = vadd.f32 %v2599, %v2711
  %v2713 = vpop.f32.mrb[0].mxu0
  %v2714 = vadd.f32 %v2601, %v2713
  %v2715 = vpop.f32.mrb[0].mxu0
  %v2716 = vadd.f32 %v2603, %v2715
  %2717 = vmatprep.mubr.bf16.mxu0 %v823
  %2718 = vmatmul.mubr.bf16.gmra.mrb[0].mxu0 %v822
  %v2719 = vpop.f32.mrb[0].mxu0
  %v2720 = vadd.f32 %v2607, %v2719
  %v2721 = vpop.f32.mrb[0].mxu0
  %v2722 = vadd.f32 %v2609, %v2721
  %v2723 = vpop.f32.mrb[0].mxu0
  %v2724 = vadd.f32 %v2611, %v2723
  %v2725 = vpop.f32.mrb[0].mxu0
  %v2726 = vadd.f32 %v2613, %v2725
  %2727 = vmatprep.mubr.bf16.mxu0 %v839
  %2728 = vmatmul.mubr.bf16.gmra.mrb[0].mxu0 %v838
  %v2729 = vpop.f32.mrb[0].mxu0
  %v2730 = vadd.f32 %v2617, %v2729
  %v2731 = vpop.f32.mrb[0].mxu0
  %v2732 = vadd.f32 %v2619, %v2731
  %v2733 = vpop.f32.mrb[0].mxu0
  %v2734 = vadd.f32 %v2621, %v2733
  %v2735 = vpop.f32.mrb[0].mxu0
  %v2736 = vadd.f32 %v2623, %v2735
  %2737 = vmatprep.mubr.bf16.mxu0 %v855
  %2738 = vmatmul.mubr.bf16.gmra.mrb[0].mxu0 %v854
  %v2739 = vpop.f32.mrb[0].mxu0
  %v2740 = vadd.f32 %v2627, %v2739
  %v2741 = vpop.f32.mrb[0].mxu0
  %v2742 = vadd.f32 %v2629, %v2741
  %v2743 = vpop.f32.mrb[0].mxu0
  %v2744 = vadd.f32 %v2631, %v2743
  %v2745 = vpop.f32.mrb[0].mxu0
  %v2746 = vadd.f32 %v2633, %v2745
  %2747 = vmatprep.mubr.bf16.mxu0 %v871
  %2748 = vmatmul.mubr.bf16.gmra.mrb[0].mxu0 %v870
  %v2749 = vpop.f32.mrb[0].mxu0
  %v2750 = vadd.f32 %v2637, %v2749
  %v2751 = vpop.f32.mrb[0].mxu0
  %v2752 = vadd.f32 %v2639, %v2751
  %v2753 = vpop.f32.mrb[0].mxu0
  %v2754 = vadd.f32 %v2641, %v2753
  %v2755 = vpop.f32.mrb[0].mxu0
  %v2756 = vadd.f32 %v2643, %v2755
  %2757 = vmatprep.mubr.bf16.mxu0 %v887
  %2758 = vmatmul.mubr.bf16.gmra.mrb[0].mxu0 %v886
  %v2759 = vpop.f32.mrb[0].mxu0
  %v2760 = vadd.f32 %v2647, %v2759
  %v2761 = vpop.f32.mrb[0].mxu0
  %v2762 = vadd.f32 %v2649, %v2761
  %v2763 = vpop.f32.mrb[0].mxu0
  %v2764 = vadd.f32 %v2651, %v2763
  %v2765 = vpop.f32.mrb[0].mxu0
  %v2766 = vadd.f32 %v2653, %v2765
  %2767 = vmatprep.mubr.bf16.mxu0 %v903
  %2768 = vmatmul.mubr.bf16.gmra.mrb[0].mxu0 %v902
  %v2769 = vpop.f32.mrb[0].mxu0
  %v2770 = vadd.f32 %v2657, %v2769
  %v2771 = vpop.f32.mrb[0].mxu0
  %v2772 = vadd.f32 %v2659, %v2771
  %v2773 = vpop.f32.mrb[0].mxu0
  %v2774 = vadd.f32 %v2661, %v2773
  %v2775 = vpop.f32.mrb[0].mxu0
  %v2776 = vadd.f32 %v2663, %v2775
  %2777 = vmatprep.mubr.bf16.mxu0 %v919
  %2778 = vmatmul.mubr.bf16.gmra.mrb[0].mxu0 %v918
  %v2779 = vpop.f32.mrb[0].mxu0
  %v2780 = vadd.f32 %v2667, %v2779
  %v2781 = vpop.f32.mrb[0].mxu0
  %v2782 = vadd.f32 %v2669, %v2781
  %v2783 = vpop.f32.mrb[0].mxu0
  %v2784 = vadd.f32 %v2671, %v2783
  %v2785 = vpop.f32.mrb[0].mxu0
  %v2786 = vadd.f32 %v2673, %v2785
  %2787 = vdwg.mxu0
  %2788 = vmatprep.subr.bf16.mxu0 %v1953
  %2789 = vmatpush1.bf16.msra.mxu0 %v1952
  %2790 = vmatprep.subr.bf16.mxu0 %v1955
  %2791 = vmatpush1.bf16.msra.mxu0 %v1954
  %2792 = vmatprep.subr.bf16.mxu0 %v1957
  %2793 = vmatpush1.bf16.msra.mxu0 %v1956
  %2794 = vmatprep.subr.bf16.mxu0 %v1959
  %2795 = vmatpush1.bf16.msra.mxu0 %v1958
  %2796 = vmatprep.subr.bf16.mxu0 %v1961
  %2797 = vmatpush1.bf16.msra.mxu0 %v1960
  %2798 = vmatprep.subr.bf16.mxu0 %v1963
  %2799 = vmatpush1.bf16.msra.mxu0 %v1962
  %2800 = vmatprep.subr.bf16.mxu0 %v1965
  %2801 = vmatpush1.bf16.msra.mxu0 %v1964
  %2802 = vmatprep.subr.bf16.mxu0 %v1967
  %2803 = vmatpush1.bf16.msra.mxu0 %v1966
  %2804 = vmatprep.subr.bf16.mxu0 %v1969
  %2805 = vmatpush1.bf16.msra.mxu0 %v1968
  %2806 = vmatprep.subr.bf16.mxu0 %v1971
  %2807 = vmatpush1.bf16.msra.mxu0 %v1970
  %2808 = vmatprep.subr.bf16.mxu0 %v1973
  %2809 = vmatpush1.bf16.msra.mxu0 %v1972
  %2810 = vmatprep.subr.bf16.mxu0 %v1975
  %2811 = vmatpush1.bf16.msra.mxu0 %v1974
  %2812 = vmatprep.subr.bf16.mxu0 %v1977
  %2813 = vmatpush1.bf16.msra.mxu0 %v1976
  %2814 = vmatprep.subr.bf16.mxu0 %v1979
  %2815 = vmatpush1.bf16.msra.mxu0 %v1978
  %2816 = vmatprep.subr.bf16.mxu0 %v1981
  %2817 = vmatpush1.bf16.msra.mxu0 %v1980
  %2818 = vmatprep.subr.bf16.mxu0 %v1983
  %2819 = vmatpush1.bf16.msra.mxu0 %v1982
  %2820 = vmatprep.mubr.bf16.mxu0 %v809
  %2821 = vmatmul.mubr.bf16.gmra.mrb[0].mxu0 %v808
  %v2822 = vpop.f32.mrb[0].mxu0
  %v2823 = vadd.f32 %v2710, %v2822
  %v2824 = vpop.f32.mrb[0].mxu0
  %v2825 = vadd.f32 %v2712, %v2824
  %v2826 = vpop.f32.mrb[0].mxu0
  %v2827 = vadd.f32 %v2714, %v2826
  %v2828 = vpop.f32.mrb[0].mxu0
  %v2829 = vadd.f32 %v2716, %v2828
  %2830 = vmatprep.mubr.bf16.mxu0 %v825
  %2831 = vmatmul.mubr.bf16.gmra.mrb[0].mxu0 %v824
  %v2832 = vpop.f32.mrb[0].mxu0
  %v2833 = vadd.f32 %v2720, %v2832
  %v2834 = vpop.f32.mrb[0].mxu0
  %v2835 = vadd.f32 %v2722, %v2834
  %v2836 = vpop.f32.mrb[0].mxu0
  %v2837 = vadd.f32 %v2724, %v2836
  %v2838 = vpop.f32.mrb[0].mxu0
  %v2839 = vadd.f32 %v2726, %v2838
  %2840 = vmatprep.mubr.bf16.mxu0 %v841
  %2841 = vmatmul.mubr.bf16.gmra.mrb[0].mxu0 %v840
  %v2842 = vpop.f32.mrb[0].mxu0
  %v2843 = vadd.f32 %v2730, %v2842
  %v2844 = vpop.f32.mrb[0].mxu0
  %v2845 = vadd.f32 %v2732, %v2844
  %v2846 = vpop.f32.mrb[0].mxu0
  %v2847 = vadd.f32 %v2734, %v2846
  %v2848 = vpop.f32.mrb[0].mxu0
  %v2849 = vadd.f32 %v2736, %v2848
  %2850 = vmatprep.mubr.bf16.mxu0 %v857
  %2851 = vmatmul.mubr.bf16.gmra.mrb[0].mxu0 %v856
  %v2852 = vpop.f32.mrb[0].mxu0
  %v2853 = vadd.f32 %v2740, %v2852
  %v2854 = vpop.f32.mrb[0].mxu0
  %v2855 = vadd.f32 %v2742, %v2854
  %v2856 = vpop.f32.mrb[0].mxu0
  %v2857 = vadd.f32 %v2744, %v2856
  %v2858 = vpop.f32.mrb[0].mxu0
  %v2859 = vadd.f32 %v2746, %v2858
  %2860 = vmatprep.mubr.bf16.mxu0 %v873
  %2861 = vmatmul.mubr.bf16.gmra.mrb[0].mxu0 %v872
  %v2862 = vpop.f32.mrb[0].mxu0
  %v2863 = vadd.f32 %v2750, %v2862
  %v2864 = vpop.f32.mrb[0].mxu0
  %v2865 = vadd.f32 %v2752, %v2864
  %v2866 = vpop.f32.mrb[0].mxu0
  %v2867 = vadd.f32 %v2754, %v2866
  %v2868 = vpop.f32.mrb[0].mxu0
  %v2869 = vadd.f32 %v2756, %v2868
  %2870 = vmatprep.mubr.bf16.mxu0 %v889
  %2871 = vmatmul.mubr.bf16.gmra.mrb[0].mxu0 %v888
  %v2872 = vpop.f32.mrb[0].mxu0
  %v2873 = vadd.f32 %v2760, %v2872
  %v2874 = vpop.f32.mrb[0].mxu0
  %v2875 = vadd.f32 %v2762, %v2874
  %v2876 = vpop.f32.mrb[0].mxu0
  %v2877 = vadd.f32 %v2764, %v2876
  %v2878 = vpop.f32.mrb[0].mxu0
  %v2879 = vadd.f32 %v2766, %v2878
  %2880 = vmatprep.mubr.bf16.mxu0 %v905
  %2881 = vmatmul.mubr.bf16.gmra.mrb[0].mxu0 %v904
  %v2882 = vpop.f32.mrb[0].mxu0
  %v2883 = vadd.f32 %v2770, %v2882
  %v2884 = vpop.f32.mrb[0].mxu0
  %v2885 = vadd.f32 %v2772, %v2884
  %v2886 = vpop.f32.mrb[0].mxu0
  %v2887 = vadd.f32 %v2774, %v2886
  %v2888 = vpop.f32.mrb[0].mxu0
  %v2889 = vadd.f32 %v2776, %v2888
  %2890 = vmatprep.mubr.bf16.mxu0 %v921
  %2891 = vmatmul.mubr.bf16.gmra.mrb[0].mxu0 %v920
  %v2892 = vpop.f32.mrb[0].mxu0
  %v2893 = vadd.f32 %v2780, %v2892
  %v2894 = vpop.f32.mrb[0].mxu0
  %v2895 = vadd.f32 %v2782, %v2894
  %v2896 = vpop.f32.mrb[0].mxu0
  %v2897 = vadd.f32 %v2784, %v2896
  %v2898 = vpop.f32.mrb[0].mxu0
  %v2899 = vadd.f32 %v2786, %v2898
  %2900 = vdwg.mxu0
  %2901 = vmatprep.subr.bf16.mxu0 %v1985
  %2902 = vmatpush1.bf16.msra.mxu0 %v1984
  %2903 = vmatprep.subr.bf16.mxu0 %v1987
  %2904 = vmatpush1.bf16.msra.mxu0 %v1986
  %2905 = vmatprep.subr.bf16.mxu0 %v1989
  %2906 = vmatpush1.bf16.msra.mxu0 %v1988
  %2907 = vmatprep.subr.bf16.mxu0 %v1991
  %2908 = vmatpush1.bf16.msra.mxu0 %v1990
  %2909 = vmatprep.subr.bf16.mxu0 %v1993
  %2910 = vmatpush1.bf16.msra.mxu0 %v1992
  %2911 = vmatprep.subr.bf16.mxu0 %v1995
  %2912 = vmatpush1.bf16.msra.mxu0 %v1994
  %2913 = vmatprep.subr.bf16.mxu0 %v1997
  %2914 = vmatpush1.bf16.msra.mxu0 %v1996
  %2915 = vmatprep.subr.bf16.mxu0 %v1999
  %2916 = vmatpush1.bf16.msra.mxu0 %v1998
  %2917 = vmatprep.subr.bf16.mxu0 %v2001
  %2918 = vmatpush1.bf16.msra.mxu0 %v2000
  %2919 = vmatprep.subr.bf16.mxu0 %v2003
  %2920 = vmatpush1.bf16.msra.mxu0 %v2002
  %2921 = vmatprep.subr.bf16.mxu0 %v2005
  %2922 = vmatpush1.bf16.msra.mxu0 %v2004
  %2923 = vmatprep.subr.bf16.mxu0 %v2007
  %2924 = vmatpush1.bf16.msra.mxu0 %v2006
  %2925 = vmatprep.subr.bf16.mxu0 %v2009
  %2926 = vmatpush1.bf16.msra.mxu0 %v2008
  %2927 = vmatprep.subr.bf16.mxu0 %v2011
  %2928 = vmatpush1.bf16.msra.mxu0 %v2010
  %2929 = vmatprep.subr.bf16.mxu0 %v2013
  %2930 = vmatpush1.bf16.msra.mxu0 %v2012
  %2931 = vmatprep.subr.bf16.mxu0 %v2015
  %2932 = vmatpush1.bf16.msra.mxu0 %v2014
  %2933 = vmatprep.mubr.bf16.mxu0 %v811
  %2934 = vmatmul.mubr.bf16.gmra.mrb[0].mxu0 %v810
  %v2935 = vpop.f32.mrb[0].mxu0
  %v2936 = vadd.f32 %v2823, %v2935
  %v2937 = vpop.f32.mrb[0].mxu0
  %v2938 = vadd.f32 %v2825, %v2937
  %v2939 = vpop.f32.mrb[0].mxu0
  %v2940 = vadd.f32 %v2827, %v2939
  %v2941 = vpop.f32.mrb[0].mxu0
  %v2942 = vadd.f32 %v2829, %v2941
  %2943 = vmatprep.mubr.bf16.mxu0 %v827
  %2944 = vmatmul.mubr.bf16.gmra.mrb[0].mxu0 %v826
  %v2945 = vpop.f32.mrb[0].mxu0
  %v2946 = vadd.f32 %v2833, %v2945
  %v2947 = vpop.f32.mrb[0].mxu0
  %v2948 = vadd.f32 %v2835, %v2947
  %v2949 = vpop.f32.mrb[0].mxu0
  %v2950 = vadd.f32 %v2837, %v2949
  %v2951 = vpop.f32.mrb[0].mxu0
  %v2952 = vadd.f32 %v2839, %v2951
  %2953 = vmatprep.mubr.bf16.mxu0 %v843
  %2954 = vmatmul.mubr.bf16.gmra.mrb[0].mxu0 %v842
  %v2955 = vpop.f32.mrb[0].mxu0
  %v2956 = vadd.f32 %v2843, %v2955
  %v2957 = vpop.f32.mrb[0].mxu0
  %v2958 = vadd.f32 %v2845, %v2957
  %v2959 = vpop.f32.mrb[0].mxu0
  %v2960 = vadd.f32 %v2847, %v2959
  %v2961 = vpop.f32.mrb[0].mxu0
  %v2962 = vadd.f32 %v2849, %v2961
  %2963 = vmatprep.mubr.bf16.mxu0 %v859
  %2964 = vmatmul.mubr.bf16.gmra.mrb[0].mxu0 %v858
  %v2965 = vpop.f32.mrb[0].mxu0
  %v2966 = vadd.f32 %v2853, %v2965
  %v2967 = vpop.f32.mrb[0].mxu0
  %v2968 = vadd.f32 %v2855, %v2967
  %v2969 = vpop.f32.mrb[0].mxu0
  %v2970 = vadd.f32 %v2857, %v2969
  %v2971 = vpop.f32.mrb[0].mxu0
  %v2972 = vadd.f32 %v2859, %v2971
  %2973 = vmatprep.mubr.bf16.mxu0 %v875
  %2974 = vmatmul.mubr.bf16.gmra.mrb[0].mxu0 %v874
  %v2975 = vpop.f32.mrb[0].mxu0
  %v2976 = vadd.f32 %v2863, %v2975
  %v2977 = vpop.f32.mrb[0].mxu0
  %v2978 = vadd.f32 %v2865, %v2977
  %v2979 = vpop.f32.mrb[0].mxu0
  %v2980 = vadd.f32 %v2867, %v2979
  %v2981 = vpop.f32.mrb[0].mxu0
  %v2982 = vadd.f32 %v2869, %v2981
  %2983 = vmatprep.mubr.bf16.mxu0 %v891
  %2984 = vmatmul.mubr.bf16.gmra.mrb[0].mxu0 %v890
  %v2985 = vpop.f32.mrb[0].mxu0
  %v2986 = vadd.f32 %v2873, %v2985
  %v2987 = vpop.f32.mrb[0].mxu0
  %v2988 = vadd.f32 %v2875, %v2987
  %v2989 = vpop.f32.mrb[0].mxu0
  %v2990 = vadd.f32 %v2877, %v2989
  %v2991 = vpop.f32.mrb[0].mxu0
  %v2992 = vadd.f32 %v2879, %v2991
  %2993 = vmatprep.mubr.bf16.mxu0 %v907
  %2994 = vmatmul.mubr.bf16.gmra.mrb[0].mxu0 %v906
  %v2995 = vpop.f32.mrb[0].mxu0
  %v2996 = vadd.f32 %v2883, %v2995
  %v2997 = vpop.f32.mrb[0].mxu0
  %v2998 = vadd.f32 %v2885, %v2997
  %v2999 = vpop.f32.mrb[0].mxu0
  %v3000 = vadd.f32 %v2887, %v2999
  %v3001 = vpop.f32.mrb[0].mxu0
  %v3002 = vadd.f32 %v2889, %v3001
  %3003 = vmatprep.mubr.bf16.mxu0 %v923
  %3004 = vmatmul.mubr.bf16.gmra.mrb[0].mxu0 %v922
  %v3005 = vpop.f32.mrb[0].mxu0
  %v3006 = vadd.f32 %v2893, %v3005
  %v3007 = vpop.f32.mrb[0].mxu0
  %v3008 = vadd.f32 %v2895, %v3007
  %v3009 = vpop.f32.mrb[0].mxu0
  %v3010 = vadd.f32 %v2897, %v3009
  %v3011 = vpop.f32.mrb[0].mxu0
  %v3012 = vadd.f32 %v2899, %v3011
  %3013 = vdwg.mxu0
  %3014 = vmatprep.subr.bf16.mxu0 %v2017
  %3015 = vmatpush1.bf16.msra.mxu0 %v2016
  %3016 = vmatprep.subr.bf16.mxu0 %v2019
  %3017 = vmatpush1.bf16.msra.mxu0 %v2018
  %3018 = vmatprep.subr.bf16.mxu0 %v2021
  %3019 = vmatpush1.bf16.msra.mxu0 %v2020
  %3020 = vmatprep.subr.bf16.mxu0 %v2023
  %3021 = vmatpush1.bf16.msra.mxu0 %v2022
  %3022 = vmatprep.subr.bf16.mxu0 %v2025
  %3023 = vmatpush1.bf16.msra.mxu0 %v2024
  %3024 = vmatprep.subr.bf16.mxu0 %v2027
  %3025 = vmatpush1.bf16.msra.mxu0 %v2026
  %3026 = vmatprep.subr.bf16.mxu0 %v2029
  %3027 = vmatpush1.bf16.msra.mxu0 %v2028
  %3028 = vmatprep.subr.bf16.mxu0 %v2031
  %3029 = vmatpush1.bf16.msra.mxu0 %v2030
  %3030 = vmatprep.subr.bf16.mxu0 %v2033
  %3031 = vmatpush1.bf16.msra.mxu0 %v2032
  %3032 = vmatprep.subr.bf16.mxu0 %v2035
  %3033 = vmatpush1.bf16.msra.mxu0 %v2034
  %3034 = vmatprep.subr.bf16.mxu0 %v2037
  %3035 = vmatpush1.bf16.msra.mxu0 %v2036
  %3036 = vmatprep.subr.bf16.mxu0 %v2039
  %3037 = vmatpush1.bf16.msra.mxu0 %v2038
  %3038 = vmatprep.subr.bf16.mxu0 %v2041
  %3039 = vmatpush1.bf16.msra.mxu0 %v2040
  %3040 = vmatprep.subr.bf16.mxu0 %v2043
  %3041 = vmatpush1.bf16.msra.mxu0 %v2042
  %3042 = vmatprep.subr.bf16.mxu0 %v2045
  %3043 = vmatpush1.bf16.msra.mxu0 %v2044
  %3044 = vmatprep.subr.bf16.mxu0 %v2047
  %3045 = vmatpush1.bf16.msra.mxu0 %v2046
  %3046 = vmatprep.mubr.bf16.mxu0 %v813
  %3047 = vmatmul.mubr.bf16.gmra.mrb[0].mxu0 %v812
  %v3048 = vpop.f32.mrb[0].mxu0
  %v3049 = vadd.f32 %v2936, %v3048
  %v3050 = vpop.f32.mrb[0].mxu0
  %v3051 = vadd.f32 %v2938, %v3050
  %v3052 = vpop.f32.mrb[0].mxu0
  %v3053 = vadd.f32 %v2940, %v3052
  %v3054 = vpop.f32.mrb[0].mxu0
  %v3055 = vadd.f32 %v2942, %v3054
  %3056 = vmatprep.mubr.bf16.mxu0 %v829
  %3057 = vmatmul.mubr.bf16.gmra.mrb[0].mxu0 %v828
  %v3058 = vpop.f32.mrb[0].mxu0
  %v3059 = vadd.f32 %v2946, %v3058
  %v3060 = vpop.f32.mrb[0].mxu0
  %v3061 = vadd.f32 %v2948, %v3060
  %v3062 = vpop.f32.mrb[0].mxu0
  %v3063 = vadd.f32 %v2950, %v3062
  %v3064 = vpop.f32.mrb[0].mxu0
  %v3065 = vadd.f32 %v2952, %v3064
  %3066 = vmatprep.mubr.bf16.mxu0 %v845
  %3067 = vmatmul.mubr.bf16.gmra.mrb[0].mxu0 %v844
  %v3068 = vpop.f32.mrb[0].mxu0
  %v3069 = vadd.f32 %v2956, %v3068
  %v3070 = vpop.f32.mrb[0].mxu0
  %v3071 = vadd.f32 %v2958, %v3070
  %v3072 = vpop.f32.mrb[0].mxu0
  %v3073 = vadd.f32 %v2960, %v3072
  %v3074 = vpop.f32.mrb[0].mxu0
  %v3075 = vadd.f32 %v2962, %v3074
  %3076 = vmatprep.mubr.bf16.mxu0 %v861
  %3077 = vmatmul.mubr.bf16.gmra.mrb[0].mxu0 %v860
  %v3078 = vpop.f32.mrb[0].mxu0
  %v3079 = vadd.f32 %v2966, %v3078
  %v3080 = vpop.f32.mrb[0].mxu0
  %v3081 = vadd.f32 %v2968, %v3080
  %v3082 = vpop.f32.mrb[0].mxu0
  %v3083 = vadd.f32 %v2970, %v3082
  %v3084 = vpop.f32.mrb[0].mxu0
  %v3085 = vadd.f32 %v2972, %v3084
  %3086 = vmatprep.mubr.bf16.mxu0 %v877
  %3087 = vmatmul.mubr.bf16.gmra.mrb[0].mxu0 %v876
  %v3088 = vpop.f32.mrb[0].mxu0
  %v3089 = vadd.f32 %v2976, %v3088
  %v3090 = vpop.f32.mrb[0].mxu0
  %v3091 = vadd.f32 %v2978, %v3090
  %v3092 = vpop.f32.mrb[0].mxu0
  %v3093 = vadd.f32 %v2980, %v3092
  %v3094 = vpop.f32.mrb[0].mxu0
  %v3095 = vadd.f32 %v2982, %v3094
  %3096 = vmatprep.mubr.bf16.mxu0 %v893
  %3097 = vmatmul.mubr.bf16.gmra.mrb[0].mxu0 %v892
  %v3098 = vpop.f32.mrb[0].mxu0
  %v3099 = vadd.f32 %v2986, %v3098
  %v3100 = vpop.f32.mrb[0].mxu0
  %v3101 = vadd.f32 %v2988, %v3100
  %v3102 = vpop.f32.mrb[0].mxu0
  %v3103 = vadd.f32 %v2990, %v3102
  %v3104 = vpop.f32.mrb[0].mxu0
  %v3105 = vadd.f32 %v2992, %v3104
  %3106 = vmatprep.mubr.bf16.mxu0 %v909
  %3107 = vmatmul.mubr.bf16.gmra.mrb[0].mxu0 %v908
  %v3108 = vpop.f32.mrb[0].mxu0
  %v3109 = vadd.f32 %v2996, %v3108
  %v3110 = vpop.f32.mrb[0].mxu0
  %v3111 = vadd.f32 %v2998, %v3110
  %v3112 = vpop.f32.mrb[0].mxu0
  %v3113 = vadd.f32 %v3000, %v3112
  %v3114 = vpop.f32.mrb[0].mxu0
  %v3115 = vadd.f32 %v3002, %v3114
  %3116 = vmatprep.mubr.bf16.mxu0 %v925
  %3117 = vmatmul.mubr.bf16.gmra.mrb[0].mxu0 %v924
  %v3118 = vpop.f32.mrb[0].mxu0
  %v3119 = vadd.f32 %v3006, %v3118
  %v3120 = vpop.f32.mrb[0].mxu0
  %v3121 = vadd.f32 %v3008, %v3120
  %v3122 = vpop.f32.mrb[0].mxu0
  %v3123 = vadd.f32 %v3010, %v3122
  %v3124 = vpop.f32.mrb[0].mxu0
  %v3125 = vadd.f32 %v3012, %v3124
  %3126 = vdwg.mxu0
  %3127 = vmatprep.subr.bf16.mxu0 %v2049
  %3128 = vmatpush1.bf16.msra.mxu0 %v2048
  %3129 = vmatprep.subr.bf16.mxu0 %v2051
  %3130 = vmatpush1.bf16.msra.mxu0 %v2050
  %3131 = vmatprep.subr.bf16.mxu0 %v2053
  %3132 = vmatpush1.bf16.msra.mxu0 %v2052
  %3133 = vmatprep.subr.bf16.mxu0 %v2055
  %3134 = vmatpush1.bf16.msra.mxu0 %v2054
  %3135 = vmatprep.subr.bf16.mxu0 %v2057
  %3136 = vmatpush1.bf16.msra.mxu0 %v2056
  %3137 = vmatprep.subr.bf16.mxu0 %v2059
  %3138 = vmatpush1.bf16.msra.mxu0 %v2058
  %3139 = vmatprep.subr.bf16.mxu0 %v2061
  %3140 = vmatpush1.bf16.msra.mxu0 %v2060
  %3141 = vmatprep.subr.bf16.mxu0 %v2063
  %3142 = vmatpush1.bf16.msra.mxu0 %v2062
  %3143 = vmatprep.subr.bf16.mxu0 %v2065
  %3144 = vmatpush1.bf16.msra.mxu0 %v2064
  %3145 = vmatprep.subr.bf16.mxu0 %v2067
  %3146 = vmatpush1.bf16.msra.mxu0 %v2066
  %3147 = vmatprep.subr.bf16.mxu0 %v2069
  %3148 = vmatpush1.bf16.msra.mxu0 %v2068
  %3149 = vmatprep.subr.bf16.mxu0 %v2071
  %3150 = vmatpush1.bf16.msra.mxu0 %v2070
  %3151 = vmatprep.subr.bf16.mxu0 %v2073
  %3152 = vmatpush1.bf16.msra.mxu0 %v2072
  %3153 = vmatprep.subr.bf16.mxu0 %v2075
  %3154 = vmatpush1.bf16.msra.mxu0 %v2074
  %3155 = vmatprep.subr.bf16.mxu0 %v2077
  %3156 = vmatpush1.bf16.msra.mxu0 %v2076
  %3157 = vmatprep.subr.bf16.mxu0 %v2079
  %3158 = vmatpush1.bf16.msra.mxu0 %v2078
  %3159 = vmatprep.mubr.bf16.mxu0 %v815
  %3160 = vmatmul.mubr.bf16.gmra.mrb[0].mxu0 %v814
  %v3161 = vpop.f32.mrb[0].mxu0
  %v3162 = vadd.f32 %v3049, %v3161
  %v3163 = vpop.f32.mrb[0].mxu0
  %v3164 = vadd.f32 %v3051, %v3163
  %v3165 = vpop.f32.mrb[0].mxu0
  %v3166 = vadd.f32 %v3053, %v3165
  %v3167 = vpop.f32.mrb[0].mxu0
  %v3168 = vadd.f32 %v3055, %v3167
  %3169 = vmatprep.mubr.bf16.mxu0 %v831
  %3170 = vmatmul.mubr.bf16.gmra.mrb[0].mxu0 %v830
  %v3171 = vpop.f32.mrb[0].mxu0
  %v3172 = vadd.f32 %v3059, %v3171
  %v3173 = vpop.f32.mrb[0].mxu0
  %v3174 = vadd.f32 %v3061, %v3173
  %v3175 = vpop.f32.mrb[0].mxu0
  %v3176 = vadd.f32 %v3063, %v3175
  %v3177 = vpop.f32.mrb[0].mxu0
  %v3178 = vadd.f32 %v3065, %v3177
  %3179 = vmatprep.mubr.bf16.mxu0 %v847
  %3180 = vmatmul.mubr.bf16.gmra.mrb[0].mxu0 %v846
  %v3181 = vpop.f32.mrb[0].mxu0
  %v3182 = vadd.f32 %v3069, %v3181
  %v3183 = vpop.f32.mrb[0].mxu0
  %v3184 = vadd.f32 %v3071, %v3183
  %v3185 = vpop.f32.mrb[0].mxu0
  %v3186 = vadd.f32 %v3073, %v3185
  %v3187 = vpop.f32.mrb[0].mxu0
  %v3188 = vadd.f32 %v3075, %v3187
  %3189 = vmatprep.mubr.bf16.mxu0 %v863
  %3190 = vmatmul.mubr.bf16.gmra.mrb[0].mxu0 %v862
  %v3191 = vpop.f32.mrb[0].mxu0
  %v3192 = vadd.f32 %v3079, %v3191
  %v3193 = vpop.f32.mrb[0].mxu0
  %v3194 = vadd.f32 %v3081, %v3193
  %v3195 = vpop.f32.mrb[0].mxu0
  %v3196 = vadd.f32 %v3083, %v3195
  %v3197 = vpop.f32.mrb[0].mxu0
  %v3198 = vadd.f32 %v3085, %v3197
  %3199 = vmatprep.mubr.bf16.mxu0 %v879
  %3200 = vmatmul.mubr.bf16.gmra.mrb[0].mxu0 %v878
  %v3201 = vpop.f32.mrb[0].mxu0
  %v3202 = vadd.f32 %v3089, %v3201
  %v3203 = vpop.f32.mrb[0].mxu0
  %v3204 = vadd.f32 %v3091, %v3203
  %v3205 = vpop.f32.mrb[0].mxu0
  %v3206 = vadd.f32 %v3093, %v3205
  %v3207 = vpop.f32.mrb[0].mxu0
  %v3208 = vadd.f32 %v3095, %v3207
  %3209 = vmatprep.mubr.bf16.mxu0 %v895
  %3210 = vmatmul.mubr.bf16.gmra.mrb[0].mxu0 %v894
  %v3211 = vpop.f32.mrb[0].mxu0
  %v3212 = vadd.f32 %v3099, %v3211
  %v3213 = vpop.f32.mrb[0].mxu0
  %v3214 = vadd.f32 %v3101, %v3213
  %v3215 = vpop.f32.mrb[0].mxu0
  %v3216 = vadd.f32 %v3103, %v3215
  %v3217 = vpop.f32.mrb[0].mxu0
  %v3218 = vadd.f32 %v3105, %v3217
  %3219 = vmatprep.mubr.bf16.mxu0 %v911
  %3220 = vmatmul.mubr.bf16.gmra.mrb[0].mxu0 %v910
  %v3221 = vpop.f32.mrb[0].mxu0
  %v3222 = vadd.f32 %v3109, %v3221
  %v3223 = vpop.f32.mrb[0].mxu0
  %v3224 = vadd.f32 %v3111, %v3223
  %v3225 = vpop.f32.mrb[0].mxu0
  %v3226 = vadd.f32 %v3113, %v3225
  %v3227 = vpop.f32.mrb[0].mxu0
  %v3228 = vadd.f32 %v3115, %v3227
  %3229 = vmatprep.mubr.bf16.mxu0 %v927
  %3230 = vmatmul.mubr.bf16.gmra.mrb[0].mxu0 %v926
  %v3231 = vpop.f32.mrb[0].mxu0
  %v3232 = vadd.f32 %v3119, %v3231
  %v3233 = vpop.f32.mrb[0].mxu0
  %v3234 = vadd.f32 %v3121, %v3233
  %v3235 = vpop.f32.mrb[0].mxu0
  %v3236 = vadd.f32 %v3123, %v3235
  %v3237 = vpop.f32.mrb[0].mxu0
  %v3238 = vadd.f32 %v3125, %v3237
  %3239 = vdwg.mxu0
  %v3240 = vmax.f32 %v3162, 0.0
  %v3241 = vmax.f32 %v3164, 0.0
  %v3242 = vmax.f32 %v3166, 0.0
  %v3243 = vmax.f32 %v3168, 0.0
  %v3244 = vmax.f32 %v3172, 0.0
  %v3245 = vmax.f32 %v3174, 0.0
  %v3246 = vmax.f32 %v3176, 0.0
  %v3247 = vmax.f32 %v3178, 0.0
  %v3248 = vmax.f32 %v3182, 0.0
  %v3249 = vmax.f32 %v3184, 0.0
  %v3250 = vmax.f32 %v3186, 0.0
  %v3251 = vmax.f32 %v3188, 0.0
  %v3252 = vmax.f32 %v3192, 0.0
  %v3253 = vmax.f32 %v3194, 0.0
  %v3254 = vmax.f32 %v3196, 0.0
  %v3255 = vmax.f32 %v3198, 0.0
  %v3256 = vmax.f32 %v3202, 0.0
  %v3257 = vmax.f32 %v3204, 0.0
  %v3258 = vmax.f32 %v3206, 0.0
  %v3259 = vmax.f32 %v3208, 0.0
  %v3260 = vmax.f32 %v3212, 0.0
  %v3261 = vmax.f32 %v3214, 0.0
  %v3262 = vmax.f32 %v3216, 0.0
  %v3263 = vmax.f32 %v3218, 0.0
  %v3264 = vmax.f32 %v3222, 0.0
  %v3265 = vmax.f32 %v3224, 0.0
  %v3266 = vmax.f32 %v3226, 0.0
  %v3267 = vmax.f32 %v3228, 0.0
  %v3268 = vmax.f32 %v3232, 0.0
  %v3269 = vmax.f32 %v3234, 0.0
  %v3270 = vmax.f32 %v3236, 0.0
  %v3271 = vmax.f32 %v3238, 0.0
  %v3272 = vadd.f32 %v3240, %v3242
  %v3273 = vadd.f32 %v3272, %v3244
  %v3274 = vadd.f32 %v3273, %v3246
  %v3275 = vadd.f32 %v3274, %v3248
  %v3276 = vadd.f32 %v3275, %v3250
  %v3277 = vadd.f32 %v3276, %v3252
  %v3278 = vadd.f32 %v3277, %v3254
  %v3279 = vadd.f32 %v3278, %v3256
  %v3280 = vadd.f32 %v3279, %v3258
  %v3281 = vadd.f32 %v3280, %v3260
  %v3282 = vadd.f32 %v3281, %v3262
  %v3283 = vadd.f32 %v3282, %v3264
  %v3284 = vadd.f32 %v3283, %v3266
  %v3285 = vadd.f32 %v3284, %v3268
  %v3286 = vadd.f32 %v3285, %v3270
  %v3287 = vrot.slane %v3286, 4
  %v3288 = vadd.f32 %v3286, %v3287
  %v3289 = vrot.slane %v3288, 2
  %v3290 = vadd.f32 %v3288, %v3289
  %v3291 = vrot.slane %v3290, 1
  %v3292 = vadd.f32 %v3290, %v3291
  %v3293 = vadd.f32 %v3241, %v3243
  %v3294 = vadd.f32 %v3293, %v3245
  %v3295 = vadd.f32 %v3294, %v3247
  %v3296 = vadd.f32 %v3295, %v3249
  %v3297 = vadd.f32 %v3296, %v3251
  %v3298 = vadd.f32 %v3297, %v3253
  %v3299 = vadd.f32 %v3298, %v3255
  %v3300 = vadd.f32 %v3299, %v3257
  %v3301 = vadd.f32 %v3300, %v3259
  %v3302 = vadd.f32 %v3301, %v3261
  %v3303 = vadd.f32 %v3302, %v3263
  %v3304 = vadd.f32 %v3303, %v3265
  %v3305 = vadd.f32 %v3304, %v3267
  %v3306 = vadd.f32 %v3305, %v3269
  %v3307 = vadd.f32 %v3306, %v3271
  %v3308 = vrot.slane %v3307, 4
  %v3309 = vadd.f32 %v3307, %v3308
  %v3310 = vrot.slane %v3309, 2
  %v3311 = vadd.f32 %v3309, %v3310
  %v3312 = vrot.slane %v3311, 1
  %v3313 = vadd.f32 %v3311, %v3312
  %v3314 = vmul.f32 %v3292, 0.0078125
  %v3315 = vmul.f32 %v3313, 0.0078125
  %v3316 = vsub.f32 %v3240, %v3314
  %v3317 = vsub.f32 %v3241, %v3315
  %v3318 = vsub.f32 %v3242, %v3314
  %v3319 = vsub.f32 %v3243, %v3315
  %v3320 = vsub.f32 %v3244, %v3314
  %v3321 = vsub.f32 %v3245, %v3315
  %v3322 = vsub.f32 %v3246, %v3314
  %v3323 = vsub.f32 %v3247, %v3315
  %v3324 = vsub.f32 %v3248, %v3314
  %v3325 = vsub.f32 %v3249, %v3315
  %v3326 = vsub.f32 %v3250, %v3314
  %v3327 = vsub.f32 %v3251, %v3315
  %v3328 = vsub.f32 %v3252, %v3314
  %v3329 = vsub.f32 %v3253, %v3315
  %v3330 = vsub.f32 %v3254, %v3314
  %v3331 = vsub.f32 %v3255, %v3315
  %v3332 = vsub.f32 %v3256, %v3314
  %v3333 = vsub.f32 %v3257, %v3315
  %v3334 = vsub.f32 %v3258, %v3314
  %v3335 = vsub.f32 %v3259, %v3315
  %v3336 = vsub.f32 %v3260, %v3314
  %v3337 = vsub.f32 %v3261, %v3315
  %v3338 = vsub.f32 %v3262, %v3314
  %v3339 = vsub.f32 %v3263, %v3315
  %v3340 = vsub.f32 %v3264, %v3314
  %v3341 = vsub.f32 %v3265, %v3315
  %v3342 = vsub.f32 %v3266, %v3314
  %v3343 = vsub.f32 %v3267, %v3315
  %v3344 = vsub.f32 %v3268, %v3314
  %v3345 = vsub.f32 %v3269, %v3315
  %v3346 = vsub.f32 %v3270, %v3314
  %v3347 = vsub.f32 %v3271, %v3315
  %v3348 = vmul.f32 %v3316, %v3316
  %v3349 = vmul.f32 %v3317, %v3317
  %v3350 = vmul.f32 %v3318, %v3318
  %v3351 = vmul.f32 %v3319, %v3319
  %v3352 = vmul.f32 %v3320, %v3320
  %v3353 = vmul.f32 %v3321, %v3321
  %v3354 = vmul.f32 %v3322, %v3322
  %v3355 = vmul.f32 %v3323, %v3323
  %v3356 = vmul.f32 %v3324, %v3324
  %v3357 = vmul.f32 %v3325, %v3325
  %v3358 = vmul.f32 %v3326, %v3326
  %v3359 = vmul.f32 %v3327, %v3327
  %v3360 = vmul.f32 %v3328, %v3328
  %v3361 = vmul.f32 %v3329, %v3329
  %v3362 = vmul.f32 %v3330, %v3330
  %v3363 = vmul.f32 %v3331, %v3331
  %v3364 = vmul.f32 %v3332, %v3332
  %v3365 = vmul.f32 %v3333, %v3333
  %v3366 = vmul.f32 %v3334, %v3334
  %v3367 = vmul.f32 %v3335, %v3335
  %v3368 = vmul.f32 %v3336, %v3336
  %v3369 = vmul.f32 %v3337, %v3337
  %v3370 = vmul.f32 %v3338, %v3338
  %v3371 = vmul.f32 %v3339, %v3339
  %v3372 = vmul.f32 %v3340, %v3340
  %v3373 = vmul.f32 %v3341, %v3341
  %v3374 = vmul.f32 %v3342, %v3342
  %v3375 = vmul.f32 %v3343, %v3343
  %v3376 = vmul.f32 %v3344, %v3344
  %v3377 = vmul.f32 %v3345, %v3345
  %v3378 = vmul.f32 %v3346, %v3346
  %v3379 = vmul.f32 %v3347, %v3347
  %v3380 = vadd.f32 %v3348, %v3350
  %v3381 = vadd.f32 %v3380, %v3352
  %v3382 = vadd.f32 %v3381, %v3354
  %v3383 = vadd.f32 %v3382, %v3356
  %v3384 = vadd.f32 %v3383, %v3358
  %v3385 = vadd.f32 %v3384, %v3360
  %v3386 = vadd.f32 %v3385, %v3362
  %v3387 = vadd.f32 %v3386, %v3364
  %v3388 = vadd.f32 %v3387, %v3366
  %v3389 = vadd.f32 %v3388, %v3368
  %v3390 = vadd.f32 %v3389, %v3370
  %v3391 = vadd.f32 %v3390, %v3372
  %v3392 = vadd.f32 %v3391, %v3374
  %v3393 = vadd.f32 %v3392, %v3376
  %v3394 = vadd.f32 %v3393, %v3378
  %v3395 = vrot.slane %v3394, 4
  %v3396 = vadd.f32 %v3394, %v3395
  %v3397 = vrot.slane %v3396, 2
  %v3398 = vadd.f32 %v3396, %v3397
  %v3399 = vrot.slane %v3398, 1
  %v3400 = vadd.f32 %v3398, %v3399
  %v3401 = vadd.f32 %v3349, %v3351
  %v3402 = vadd.f32 %v3401, %v3353
  %v3403 = vadd.f32 %v3402, %v3355
  %v3404 = vadd.f32 %v3403, %v3357
  %v3405 = vadd.f32 %v3404, %v3359
  %v3406 = vadd.f32 %v3405, %v3361
  %v3407 = vadd.f32 %v3406, %v3363
  %v3408 = vadd.f32 %v3407, %v3365
  %v3409 = vadd.f32 %v3408, %v3367
  %v3410 = vadd.f32 %v3409, %v3369
  %v3411 = vadd.f32 %v3410, %v3371
  %v3412 = vadd.f32 %v3411, %v3373
  %v3413 = vadd.f32 %v3412, %v3375
  %v3414 = vadd.f32 %v3413, %v3377
  %v3415 = vadd.f32 %v3414, %v3379
  %v3416 = vrot.slane %v3415, 4
  %v3417 = vadd.f32 %v3415, %v3416
  %v3418 = vrot.slane %v3417, 2
  %v3419 = vadd.f32 %v3417, %v3418
  %v3420 = vrot.slane %v3419, 1
  %v3421 = vadd.f32 %v3419, %v3420
  %v3422 = vmul.f32 %v3400, 0.0078125
  %v3423 = vmul.f32 %v3421, 0.0078125
  %v3424 = vadd.f32 %v3422, 1e-05
  %v3425 = vadd.f32 %v3423, 1e-05
  %v3426 = vrsqrt.pop %v3424
  %v3427 = vrsqrt.pop %v3425
  %v3428 = vmul.f32 %v3316, %v3426
  %v3429 = vmul.f32 %v3317, %v3427
  %v3430 = vmul.f32 %v3318, %v3426
  %v3431 = vmul.f32 %v3319, %v3427
  %v3432 = vmul.f32 %v3320, %v3426
  %v3433 = vmul.f32 %v3321, %v3427
  %v3434 = vmul.f32 %v3322, %v3426
  %v3435 = vmul.f32 %v3323, %v3427
  %v3436 = vmul.f32 %v3324, %v3426
  %v3437 = vmul.f32 %v3325, %v3427
  %v3438 = vmul.f32 %v3326, %v3426
  %v3439 = vmul.f32 %v3327, %v3427
  %v3440 = vmul.f32 %v3328, %v3426
  %v3441 = vmul.f32 %v3329, %v3427
  %v3442 = vmul.f32 %v3330, %v3426
  %v3443 = vmul.f32 %v3331, %v3427
  %v3444 = vmul.f32 %v3332, %v3426
  %v3445 = vmul.f32 %v3333, %v3427
  %v3446 = vmul.f32 %v3334, %v3426
  %v3447 = vmul.f32 %v3335, %v3427
  %v3448 = vmul.f32 %v3336, %v3426
  %v3449 = vmul.f32 %v3337, %v3427
  %v3450 = vmul.f32 %v3338, %v3426
  %v3451 = vmul.f32 %v3339, %v3427
  %v3452 = vmul.f32 %v3340, %v3426
  %v3453 = vmul.f32 %v3341, %v3427
  %v3454 = vmul.f32 %v3342, %v3426
  %v3455 = vmul.f32 %v3343, %v3427
  %v3456 = vmul.f32 %v3344, %v3426
  %v3457 = vmul.f32 %v3345, %v3427
  %v3458 = vmul.f32 %v3346, %v3426
  %v3459 = vmul.f32 %v3347, %v3427
  %v3460 = vld [vmem:[%s3] sm:$0x3]
  %v3462 = vlaneseq
  %v3463 = vshrl.u32 %v3462, 7
  %v3464 = vsub.s32 0, %v3463
  %v3465 = vrot.slane %v3460, %v3464
  %v3466 = vlaneseq
  %v3467 = vshrl.u32 %v3466, 7
  %v3468 = vsub.s32 1, %v3467
  %v3469 = vrot.slane %v3460, %v3468
  %v3472 = vmul.f32 %v3428, %v3465
  %v3473 = vmul.f32 %v3429, %v3469
  %v3474 = vmul.f32 %v3430, %v3465
  %v3475 = vmul.f32 %v3431, %v3469
  %v3476 = vmul.f32 %v3432, %v3465
  %v3477 = vmul.f32 %v3433, %v3469
  %v3478 = vmul.f32 %v3434, %v3465
  %v3479 = vmul.f32 %v3435, %v3469
  %v3480 = vmul.f32 %v3436, %v3465
  %v3481 = vmul.f32 %v3437, %v3469
  %v3482 = vmul.f32 %v3438, %v3465
  %v3483 = vmul.f32 %v3439, %v3469
  %v3484 = vmul.f32 %v3440, %v3465
  %v3485 = vmul.f32 %v3441, %v3469
  %v3486 = vmul.f32 %v3442, %v3465
  %v3487 = vmul.f32 %v3443, %v3469
  %v3488 = vmul.f32 %v3444, %v3465
  %v3489 = vmul.f32 %v3445, %v3469
  %v3490 = vmul.f32 %v3446, %v3465
  %v3491 = vmul.f32 %v3447, %v3469
  %v3492 = vmul.f32 %v3448, %v3465
  %v3493 = vmul.f32 %v3449, %v3469
  %v3494 = vmul.f32 %v3450, %v3465
  %v3495 = vmul.f32 %v3451, %v3469
  %v3496 = vmul.f32 %v3452, %v3465
  %v3497 = vmul.f32 %v3453, %v3469
  %v3498 = vmul.f32 %v3454, %v3465
  %v3499 = vmul.f32 %v3455, %v3469
  %v3500 = vmul.f32 %v3456, %v3465
  %v3501 = vmul.f32 %v3457, %v3469
  %v3502 = vmul.f32 %v3458, %v3465
  %v3503 = vmul.f32 %v3459, %v3469
  %v3504 = vld [vmem:[%s4] sm:$0x3]
  %v3506 = vlaneseq
  %v3507 = vshrl.u32 %v3506, 7
  %v3508 = vsub.s32 0, %v3507
  %v3509 = vrot.slane %v3504, %v3508
  %v3510 = vlaneseq
  %v3511 = vshrl.u32 %v3510, 7
  %v3512 = vsub.s32 1, %v3511
  %v3513 = vrot.slane %v3504, %v3512
  %v3516 = vadd.f32 %v3472, %v3509
  %v3517 = vadd.f32 %v3473, %v3513
  %v3518 = vadd.f32 %v3474, %v3509
  %v3519 = vadd.f32 %v3475, %v3513
  %v3520 = vadd.f32 %v3476, %v3509
  %v3521 = vadd.f32 %v3477, %v3513
  %v3522 = vadd.f32 %v3478, %v3509
  %v3523 = vadd.f32 %v3479, %v3513
  %v3524 = vadd.f32 %v3480, %v3509
  %v3525 = vadd.f32 %v3481, %v3513
  %v3526 = vadd.f32 %v3482, %v3509
  %v3527 = vadd.f32 %v3483, %v3513
  %v3528 = vadd.f32 %v3484, %v3509
  %v3529 = vadd.f32 %v3485, %v3513
  %v3530 = vadd.f32 %v3486, %v3509
  %v3531 = vadd.f32 %v3487, %v3513
  %v3532 = vadd.f32 %v3488, %v3509
  %v3533 = vadd.f32 %v3489, %v3513
  %v3534 = vadd.f32 %v3490, %v3509
  %v3535 = vadd.f32 %v3491, %v3513
  %v3536 = vadd.f32 %v3492, %v3509
  %v3537 = vadd.f32 %v3493, %v3513
  %v3538 = vadd.f32 %v3494, %v3509
  %v3539 = vadd.f32 %v3495, %v3513
  %v3540 = vadd.f32 %v3496, %v3509
  %v3541 = vadd.f32 %v3497, %v3513
  %v3542 = vadd.f32 %v3498, %v3509
  %v3543 = vadd.f32 %v3499, %v3513
  %v3544 = vadd.f32 %v3500, %v3509
  %v3545 = vadd.f32 %v3501, %v3513
  %v3546 = vadd.f32 %v3502, %v3509
  %v3547 = vadd.f32 %v3503, %v3513
  %v3548 = vpack.c.bf16 %v3518, %v3516
  %v3549 = vpack.c.bf16 %v3519, %v3517
  %v3550 = vpack.c.bf16 %v3522, %v3520
  %v3551 = vpack.c.bf16 %v3523, %v3521
  %v3552 = vpack.c.bf16 %v3526, %v3524
  %v3553 = vpack.c.bf16 %v3527, %v3525
  %v3554 = vpack.c.bf16 %v3530, %v3528
  %v3555 = vpack.c.bf16 %v3531, %v3529
  %v3556 = vpack.c.bf16 %v3534, %v3532
  %v3557 = vpack.c.bf16 %v3535, %v3533
  %v3558 = vpack.c.bf16 %v3538, %v3536
  %v3559 = vpack.c.bf16 %v3539, %v3537
  %v3560 = vpack.c.bf16 %v3542, %v3540
  %v3561 = vpack.c.bf16 %v3543, %v3541
  %v3562 = vpack.c.bf16 %v3546, %v3544
  %v3563 = vpack.c.bf16 %v3547, %v3545
  %v3580 = vunpack.c.l.b16 %v3548
  %v3581 = vunpack.c.l.b16 %v3549
  %v3582 = vunpack.c.h.b16 %v3548
  %v3583 = vunpack.c.h.b16 %v3549
  %v3584 = vunpack.c.l.b16 %v3550
  %v3585 = vunpack.c.l.b16 %v3551
  %v3586 = vunpack.c.h.b16 %v3550
  %v3587 = vunpack.c.h.b16 %v3551
  %v3588 = vunpack.c.l.b16 %v3552
  %v3589 = vunpack.c.l.b16 %v3553
  %v3590 = vunpack.c.h.b16 %v3552
  %v3591 = vunpack.c.h.b16 %v3553
  %v3592 = vunpack.c.l.b16 %v3554
  %v3593 = vunpack.c.l.b16 %v3555
  %v3594 = vunpack.c.h.b16 %v3554
  %v3595 = vunpack.c.h.b16 %v3555
  %v3596 = vunpack.c.l.b16 %v3556
  %v3597 = vunpack.c.l.b16 %v3557
  %v3598 = vunpack.c.h.b16 %v3556
  %v3599 = vunpack.c.h.b16 %v3557
  %v3600 = vunpack.c.l.b16 %v3558
  %v3601 = vunpack.c.l.b16 %v3559
  %v3602 = vunpack.c.h.b16 %v3558
  %v3603 = vunpack.c.h.b16 %v3559
  %v3604 = vunpack.c.l.b16 %v3560
  %v3605 = vunpack.c.l.b16 %v3561
  %v3606 = vunpack.c.h.b16 %v3560
  %v3607 = vunpack.c.h.b16 %v3561
  %v3608 = vunpack.c.l.b16 %v3562
  %v3609 = vunpack.c.l.b16 %v3563
  %v3610 = vunpack.c.h.b16 %v3562
  %v3611 = vunpack.c.h.b16 %v3563
  %v3612 = vpack.c.b16 %v3581, %v3580
  %v3613 = vpack.c.b16 %v3583, %v3582
  %v3614 = vpack.c.b16 %v3585, %v3584
  %v3615 = vpack.c.b16 %v3587, %v3586
  %v3616 = vpack.c.b16 %v3589, %v3588
  %v3617 = vpack.c.b16 %v3591, %v3590
  %v3618 = vpack.c.b16 %v3593, %v3592
  %v3619 = vpack.c.b16 %v3595, %v3594
  %v3620 = vpack.c.b16 %v3597, %v3596
  %v3621 = vpack.c.b16 %v3599, %v3598
  %v3622 = vpack.c.b16 %v3601, %v3600
  %v3623 = vpack.c.b16 %v3603, %v3602
  %v3624 = vpack.c.b16 %v3605, %v3604
  %v3625 = vpack.c.b16 %v3607, %v3606
  %v3626 = vpack.c.b16 %v3609, %v3608
  %v3627 = vpack.c.b16 %v3611, %v3610
  %3644 = vst [vmem:[%s5] sm:$0xff] %v3612
  %3645 = vst [vmem:[%s5 + $0x8] sm:$0xff] %v3613
  %3646 = vst [vmem:[%s5 + $0x10] sm:$0xff] %v3614
  %3647 = vst [vmem:[%s5 + $0x18] sm:$0xff] %v3615
  %3648 = vst [vmem:[%s5 + $0x20] sm:$0xff] %v3616
  %3649 = vst [vmem:[%s5 + $0x28] sm:$0xff] %v3617
  %3650 = vst [vmem:[%s5 + $0x30] sm:$0xff] %v3618
  %3651 = vst [vmem:[%s5 + $0x38] sm:$0xff] %v3619
  %3652 = vst [vmem:[%s5 + $0x40] sm:$0xff] %v3620
  %3653 = vst [vmem:[%s5 + $0x48] sm:$0xff] %v3621
  %3654 = vst [vmem:[%s5 + $0x50] sm:$0xff] %v3622
  %3655 = vst [vmem:[%s5 + $0x58] sm:$0xff] %v3623
  %3656 = vst [vmem:[%s5 + $0x60] sm:$0xff] %v3624
  %3657 = vst [vmem:[%s5 + $0x68] sm:$0xff] %v3625
  %3658 = vst [vmem:[%s5 + $0x70] sm:$0xff] %v3626
  %3659 = vst [vmem:[%s5 + $0x78] sm:$0xff] %v3627
  // Predicated region
  $region22: #{discriminator_forward.4} parent=0 // pred_check
    _
  $region23: #{discriminator_forward.4} parent=0 // pred_check_branch
    %3661 = sbr.rel (0) target = $region25
  $region24: #{discriminator_forward.4} parent=0 // pred_region
    _
  $region25: #{discriminator_forward.4} parent=0 // pred_fallthru
    _
  // Predicated region
  $region26: #{discriminator_forward.4} parent=0 // pred_check
    _
  $region27: #{discriminator_forward.4} parent=0 // pred_check_branch
    %3663 = sbr.rel (0) target = $region29
  $region28: #{discriminator_forward.4} parent=0 // pred_region
    _
  $region29: #{discriminator_forward.4} parent=0 // pred_fallthru
    _

// kernel: discriminator_forward.5
$region0: #{discriminator_forward.5}
  #allocation0 [shape = 'u32[]', space=smem, size = 0x4, offset = 0x4, fixed_abs, tag = 'smem constant byte address 0x4 - core index']
  #allocation1 [shape = 'u32[144,128]{1,0:T(1,128)}', space=vmem, size = 0x12000, scoped, tag = 'internal scratch']
  #allocation2 [shape = 'f32[1,1]{1,0:T(1,128)S(1)}', space=vmem, size = 0x200, scoped, tag = 'scoped memory for discriminator_forward.5']
  %s0 = inlined_call_operand.vmem [shape: bf16[18,2304], index: 0, kind: input, shape index: {}]
  %s1 = inlined_call_operand.vmem [shape: bf16[2304,512], index: 1, kind: input, shape index: {}]
  %s2 = inlined_call_operand.vmem [shape: f32[1,512], index: 2, kind: input, shape index: {}]
  %s3 = inlined_call_operand.vmem [shape: f32[1,512], index: 3, kind: input, shape index: {}]
  %s4 = inlined_call_operand.vmem [shape: f32[1,512], index: 4, kind: input, shape index: {}]
  %s5 = inlined_call_operand.vmem [shape: bf16[9,512], index: 5, kind: input, shape index: {}]
  %s6 = inlined_call_operand.<no memory space> [shape: f32[1,1], index: 6, kind: input, shape index: {}]
  %s7 = inlined_call_operand.vmem [shape: f32[2,1], index: 7, kind: output, shape index: {}]
  %s8 = sld [smem:[#allocation0]]
  $region38: #{discriminator_forward.5} parent=0
    _
  %s10 = ssub.s32 1, %s8
  %s11 = scalar_select 0, %s10, %s8
  %v12 = vstv %s6
  %13 = vst [vmem:[#allocation2] sm:$0x1] %v12
  // Predicated region
  $region2: #{discriminator_forward.5} parent=0 // pred_check
    _
  $region3: #{discriminator_forward.5} parent=0 // pred_check_branch
    %15 = sbr.rel (0) target = $region5
  $region4: #{discriminator_forward.5} parent=0 // pred_region
    _
  $region5: #{discriminator_forward.5} parent=0 // pred_fallthru
    _
  // Predicated region
  $region6: #{discriminator_forward.5} parent=0 // pred_check
    _
  $region7: #{discriminator_forward.5} parent=0 // pred_check_branch
    %17 = sbr.rel (0) target = $region9
  $region8: #{discriminator_forward.5} parent=0 // pred_region
    _
  $region9: #{discriminator_forward.5} parent=0 // pred_fallthru
    _
  // Predicated region
  $region10: #{discriminator_forward.5} parent=0 // pred_check
    _
  $region11: #{discriminator_forward.5} parent=0 // pred_check_branch
    %19 = sbr.rel (0) target = $region13
  $region12: #{discriminator_forward.5} parent=0 // pred_region
    _
  $region13: #{discriminator_forward.5} parent=0 // pred_fallthru
    _
  // Predicated region
  $region14: #{discriminator_forward.5} parent=0 // pred_check
    _
  $region15: #{discriminator_forward.5} parent=0 // pred_check_branch
    %21 = sbr.rel (0) target = $region17
  $region16: #{discriminator_forward.5} parent=0 // pred_region
    _
  $region17: #{discriminator_forward.5} parent=0 // pred_fallthru
    _
  // Predicated region
  $region18: #{discriminator_forward.5} parent=0 // pred_check
    _
  $region19: #{discriminator_forward.5} parent=0 // pred_check_branch
    %23 = sbr.rel (0) target = $region21
  $region20: #{discriminator_forward.5} parent=0 // pred_region
    _
  $region21: #{discriminator_forward.5} parent=0 // pred_fallthru
    _
  // Predicated region
  $region22: #{discriminator_forward.5} parent=0 // pred_check
    _
  $region23: #{discriminator_forward.5} parent=0 // pred_check_branch
    %25 = sbr.rel (0) target = $region25
  $region24: #{discriminator_forward.5} parent=0 // pred_region
    _
  $region25: #{discriminator_forward.5} parent=0 // pred_fallthru
    _
  // Predicated region
  $region26: #{discriminator_forward.5} parent=0 // pred_check
    _
  $region27: #{discriminator_forward.5} parent=0 // pred_check_branch
    %27 = sbr.rel (0) target = $region29
  $region28: #{discriminator_forward.5} parent=0 // pred_region
    _
  $region29: #{discriminator_forward.5} parent=0 // pred_fallthru
    _
  %v28 = vld [vmem:[%s0] sm:$0xff]
  %v29 = vld [vmem:[%s0 + $0x8] sm:$0xff]
  %v30 = vld [vmem:[%s0 + $0x10] sm:$0xff]
  %v31 = vld [vmem:[%s0 + $0x18] sm:$0xff]
  %v32 = vld [vmem:[%s0 + $0x20] sm:$0xff]
  %v33 = vld [vmem:[%s0 + $0x28] sm:$0xff]
  %v34 = vld [vmem:[%s0 + $0x30] sm:$0xff]
  %v35 = vld [vmem:[%s0 + $0x38] sm:$0xff]
  %v36 = vld [vmem:[%s0 + $0x40] sm:$0xff]
  %v37 = vld [vmem:[%s0 + $0x48] sm:$0xff]
  %v38 = vld [vmem:[%s0 + $0x50] sm:$0xff]
  %v39 = vld [vmem:[%s0 + $0x58] sm:$0xff]
  %v40 = vld [vmem:[%s0 + $0x60] sm:$0xff]
  %v41 = vld [vmem:[%s0 + $0x68] sm:$0xff]
  %v42 = vld [vmem:[%s0 + $0x70] sm:$0xff]
  %v43 = vld [vmem:[%s0 + $0x78] sm:$0xff]
  %v44 = vld [vmem:[%s0 + $0x80] sm:$0xff]
  %v45 = vld [vmem:[%s0 + $0x88] sm:$0xff]
  %v46 = vld [vmem:[%s0 + $0x90] sm:$0x11]
  %v47 = vld [vmem:[%s0 + $0x98] sm:$0x11]
  %v48 = vld [vmem:[%s0 + $0xa0] sm:$0x11]
  %v49 = vld [vmem:[%s0 + $0xa8] sm:$0x11]
  %v50 = vld [vmem:[%s0 + $0xb0] sm:$0x11]
  %v51 = vld [vmem:[%s0 + $0xb8] sm:$0x11]
  %v52 = vld [vmem:[%s0 + $0xc0] sm:$0x11]
  %v53 = vld [vmem:[%s0 + $0xc8] sm:$0x11]
  %v54 = vld [vmem:[%s0 + $0xd0] sm:$0x11]
  %v55 = vld [vmem:[%s1] sm:$0xff]
  %v56 = vld [vmem:[%s1 + $0x8] sm:$0xff]
  %v57 = vld [vmem:[%s1 + $0x10] sm:$0xff]
  %v58 = vld [vmem:[%s1 + $0x18] sm:$0xff]
  %v59 = vld [vmem:[%s1 + $0x20] sm:$0xff]
  %v60 = vld [vmem:[%s1 + $0x28] sm:$0xff]
  %v61 = vld [vmem:[%s1 + $0x30] sm:$0xff]
  %v62 = vld [vmem:[%s1 + $0x38] sm:$0xff]
  %v63 = vld [vmem:[%s1 + $0x40] sm:$0xff]
  %v64 = vld [vmem:[%s1 + $0x48] sm:$0xff]
  %v65 = vld [vmem:[%s1 + $0x50] sm:$0xff]
  %v66 = vld [vmem:[%s1 + $0x58] sm:$0xff]
  %v67 = vld [vmem:[%s1 + $0x60] sm:$0xff]
  %v68 = vld [vmem:[%s1 + $0x68] sm:$0xff]
  %v69 = vld [vmem:[%s1 + $0x70] sm:$0xff]
  %v70 = vld [vmem:[%s1 + $0x78] sm:$0xff]
  %v71 = vld [vmem:[%s1 + $0x80] sm:$0xff]
  %v72 = vld [vmem:[%s1 + $0x88] sm:$0xff]
  %v73 = vld [vmem:[%s1 + $0x90] sm:$0xff]
  %v74 = vld [vmem:[%s1 + $0x98] sm:$0xff]
  %v75 = vld [vmem:[%s1 + $0xa0] sm:$0xff]
  %v76 = vld [vmem:[%s1 + $0xa8] sm:$0xff]
  %v77 = vld [vmem:[%s1 + $0xb0] sm:$0xff]
  %v78 = vld [vmem:[%s1 + $0xb8] sm:$0xff]
  %v79 = vld [vmem:[%s1 + $0xc0] sm:$0xff]
  %v80 = vld [vmem:[%s1 + $0xc8] sm:$0xff]
  %v81 = vld [vmem:[%s1 + $0xd0] sm:$0xff]
  %v82 = vld [vmem:[%s1 + $0xd8] sm:$0xff]
  %v83 = vld [vmem:[%s1 + $0xe0] sm:$0xff]
  %v84 = vld [vmem:[%s1 + $0xe8] sm:$0xff]
  %v85 = vld [vmem:[%s1 + $0xf0] sm:$0xff]
  %v86 = vld [vmem:[%s1 + $0xf8] sm:$0xff]
  %v87 = vld [vmem:[%s1 + $0x100] sm:$0xff]
  %v88 = vld [vmem:[%s1 + $0x108] sm:$0xff]
  %v89 = vld [vmem:[%s1 + $0x110] sm:$0xff]
  %v90 = vld [vmem:[%s1 + $0x118] sm:$0xff]
  %v91 = vld [vmem:[%s1 + $0x120] sm:$0xff]
  %v92 = vld [vmem:[%s1 + $0x128] sm:$0xff]
  %v93 = vld [vmem:[%s1 + $0x130] sm:$0xff]
  %v94 = vld [vmem:[%s1 + $0x138] sm:$0xff]
  %v95 = vld [vmem:[%s1 + $0x140] sm:$0xff]
  %v96 = vld [vmem:[%s1 + $0x148] sm:$0xff]
  %v97 = vld [vmem:[%s1 + $0x150] sm:$0xff]
  %v98 = vld [vmem:[%s1 + $0x158] sm:$0xff]
  %v99 = vld [vmem:[%s1 + $0x160] sm:$0xff]
  %v100 = vld [vmem:[%s1 + $0x168] sm:$0xff]
  %v101 = vld [vmem:[%s1 + $0x170] sm:$0xff]
  %v102 = vld [vmem:[%s1 + $0x178] sm:$0xff]
  %v103 = vld [vmem:[%s1 + $0x180] sm:$0xff]
  %v104 = vld [vmem:[%s1 + $0x188] sm:$0xff]
  %v105 = vld [vmem:[%s1 + $0x190] sm:$0xff]
  %v106 = vld [vmem:[%s1 + $0x198] sm:$0xff]
  %v107 = vld [vmem:[%s1 + $0x1a0] sm:$0xff]
  %v108 = vld [vmem:[%s1 + $0x1a8] sm:$0xff]
  %v109 = vld [vmem:[%s1 + $0x1b0] sm:$0xff]
  %v110 = vld [vmem:[%s1 + $0x1b8] sm:$0xff]
  %v111 = vld [vmem:[%s1 + $0x1c0] sm:$0xff]
  %v112 = vld [vmem:[%s1 + $0x1c8] sm:$0xff]
  %v113 = vld [vmem:[%s1 + $0x1d0] sm:$0xff]
  %v114 = vld [vmem:[%s1 + $0x1d8] sm:$0xff]
  %v115 = vld [vmem:[%s1 + $0x1e0] sm:$0xff]
  %v116 = vld [vmem:[%s1 + $0x1e8] sm:$0xff]
  %v117 = vld [vmem:[%s1 + $0x1f0] sm:$0xff]
  %v118 = vld [vmem:[%s1 + $0x1f8] sm:$0xff]
  %v119 = vld [vmem:[%s1 + $0x200] sm:$0xff]
  %v120 = vld [vmem:[%s1 + $0x208] sm:$0xff]
  %v121 = vld [vmem:[%s1 + $0x210] sm:$0xff]
  %v122 = vld [vmem:[%s1 + $0x218] sm:$0xff]
  %v123 = vld [vmem:[%s1 + $0x220] sm:$0xff]
  %v124 = vld [vmem:[%s1 + $0x228] sm:$0xff]
  %v125 = vld [vmem:[%s1 + $0x230] sm:$0xff]
  %v126 = vld [vmem:[%s1 + $0x238] sm:$0xff]
  %v127 = vld [vmem:[%s1 + $0x240] sm:$0xff]
  %v128 = vld [vmem:[%s1 + $0x248] sm:$0xff]
  %v129 = vld [vmem:[%s1 + $0x250] sm:$0xff]
  %v130 = vld [vmem:[%s1 + $0x258] sm:$0xff]
  %v131 = vld [vmem:[%s1 + $0x260] sm:$0xff]
  %v132 = vld [vmem:[%s1 + $0x268] sm:$0xff]
  %v133 = vld [vmem:[%s1 + $0x270] sm:$0xff]
  %v134 = vld [vmem:[%s1 + $0x278] sm:$0xff]
  %v135 = vld [vmem:[%s1 + $0x280] sm:$0xff]
  %v136 = vld [vmem:[%s1 + $0x288] sm:$0xff]
  %v137 = vld [vmem:[%s1 + $0x290] sm:$0xff]
  %v138 = vld [vmem:[%s1 + $0x298] sm:$0xff]
  %v139 = vld [vmem:[%s1 + $0x2a0] sm:$0xff]
  %v140 = vld [vmem:[%s1 + $0x2a8] sm:$0xff]
  %v141 = vld [vmem:[%s1 + $0x2b0] sm:$0xff]
  %v142 = vld [vmem:[%s1 + $0x2b8] sm:$0xff]
  %v143 = vld [vmem:[%s1 + $0x2c0] sm:$0xff]
  %v144 = vld [vmem:[%s1 + $0x2c8] sm:$0xff]
  %v145 = vld [vmem:[%s1 + $0x2d0] sm:$0xff]
  %v146 = vld [vmem:[%s1 + $0x2d8] sm:$0xff]
  %v147 = vld [vmem:[%s1 + $0x2e0] sm:$0xff]
  %v148 = vld [vmem:[%s1 + $0x2e8] sm:$0xff]
  %v149 = vld [vmem:[%s1 + $0x2f0] sm:$0xff]
  %v150 = vld [vmem:[%s1 + $0x2f8] sm:$0xff]
  %v151 = vld [vmem:[%s1 + $0x300] sm:$0xff]
  %v152 = vld [vmem:[%s1 + $0x308] sm:$0xff]
  %v153 = vld [vmem:[%s1 + $0x310] sm:$0xff]
  %v154 = vld [vmem:[%s1 + $0x318] sm:$0xff]
  %v155 = vld [vmem:[%s1 + $0x320] sm:$0xff]
  %v156 = vld [vmem:[%s1 + $0x328] sm:$0xff]
  %v157 = vld [vmem:[%s1 + $0x330] sm:$0xff]
  %v158 = vld [vmem:[%s1 + $0x338] sm:$0xff]
  %v159 = vld [vmem:[%s1 + $0x340] sm:$0xff]
  %v160 = vld [vmem:[%s1 + $0x348] sm:$0xff]
  %v161 = vld [vmem:[%s1 + $0x350] sm:$0xff]
  %v162 = vld [vmem:[%s1 + $0x358] sm:$0xff]
  %v163 = vld [vmem:[%s1 + $0x360] sm:$0xff]
  %v164 = vld [vmem:[%s1 + $0x368] sm:$0xff]
  %v165 = vld [vmem:[%s1 + $0x370] sm:$0xff]
  %v166 = vld [vmem:[%s1 + $0x378] sm:$0xff]
  %v167 = vld [vmem:[%s1 + $0x380] sm:$0xff]
  %v168 = vld [vmem:[%s1 + $0x388] sm:$0xff]
  %v169 = vld [vmem:[%s1 + $0x390] sm:$0xff]
  %v170 = vld [vmem:[%s1 + $0x398] sm:$0xff]
  %v171 = vld [vmem:[%s1 + $0x3a0] sm:$0xff]
  %v172 = vld [vmem:[%s1 + $0x3a8] sm:$0xff]
  %v173 = vld [vmem:[%s1 + $0x3b0] sm:$0xff]
  %v174 = vld [vmem:[%s1 + $0x3b8] sm:$0xff]
  %v175 = vld [vmem:[%s1 + $0x3c0] sm:$0xff]
  %v176 = vld [vmem:[%s1 + $0x3c8] sm:$0xff]
  %v177 = vld [vmem:[%s1 + $0x3d0] sm:$0xff]
  %v178 = vld [vmem:[%s1 + $0x3d8] sm:$0xff]
  %v179 = vld [vmem:[%s1 + $0x3e0] sm:$0xff]
  %v180 = vld [vmem:[%s1 + $0x3e8] sm:$0xff]
  %v181 = vld [vmem:[%s1 + $0x3f0] sm:$0xff]
  %v182 = vld [vmem:[%s1 + $0x3f8] sm:$0xff]
  %v183 = vld [vmem:[%s1 + $0x400] sm:$0xff]
  %v184 = vld [vmem:[%s1 + $0x408] sm:$0xff]
  %v185 = vld [vmem:[%s1 + $0x410] sm:$0xff]
  %v186 = vld [vmem:[%s1 + $0x418] sm:$0xff]
  %v187 = vld [vmem:[%s1 + $0x420] sm:$0xff]
  %v188 = vld [vmem:[%s1 + $0x428] sm:$0xff]
  %v189 = vld [vmem:[%s1 + $0x430] sm:$0xff]
  %v190 = vld [vmem:[%s1 + $0x438] sm:$0xff]
  %v191 = vld [vmem:[%s1 + $0x440] sm:$0xff]
  %v192 = vld [vmem:[%s1 + $0x448] sm:$0xff]
  %v193 = vld [vmem:[%s1 + $0x450] sm:$0xff]
  %v194 = vld [vmem:[%s1 + $0x458] sm:$0xff]
  %v195 = vld [vmem:[%s1 + $0x460] sm:$0xff]
  %v196 = vld [vmem:[%s1 + $0x468] sm:$0xff]
  %v197 = vld [vmem:[%s1 + $0x470] sm:$0xff]
  %v198 = vld [vmem:[%s1 + $0x478] sm:$0xff]
  %v199 = vld [vmem:[%s1 + $0x480] sm:$0xff]
  %v200 = vld [vmem:[%s1 + $0x488] sm:$0xff]
  %v201 = vld [vmem:[%s1 + $0x490] sm:$0xff]
  %v202 = vld [vmem:[%s1 + $0x498] sm:$0xff]
  %v203 = vld [vmem:[%s1 + $0x4a0] sm:$0xff]
  %v204 = vld [vmem:[%s1 + $0x4a8] sm:$0xff]
  %v205 = vld [vmem:[%s1 + $0x4b0] sm:$0xff]
  %v206 = vld [vmem:[%s1 + $0x4b8] sm:$0xff]
  %v207 = vld [vmem:[%s1 + $0x4c0] sm:$0xff]
  %v208 = vld [vmem:[%s1 + $0x4c8] sm:$0xff]
  %v209 = vld [vmem:[%s1 + $0x4d0] sm:$0xff]
  %v210 = vld [vmem:[%s1 + $0x4d8] sm:$0xff]
  %v211 = vld [vmem:[%s1 + $0x4e0] sm:$0xff]
  %v212 = vld [vmem:[%s1 + $0x4e8] sm:$0xff]
  %v213 = vld [vmem:[%s1 + $0x4f0] sm:$0xff]
  %v214 = vld [vmem:[%s1 + $0x4f8] sm:$0xff]
  %v215 = vld [vmem:[%s1 + $0x500] sm:$0xff]
  %v216 = vld [vmem:[%s1 + $0x508] sm:$0xff]
  %v217 = vld [vmem:[%s1 + $0x510] sm:$0xff]
  %v218 = vld [vmem:[%s1 + $0x518] sm:$0xff]
  %v219 = vld [vmem:[%s1 + $0x520] sm:$0xff]
  %v220 = vld [vmem:[%s1 + $0x528] sm:$0xff]
  %v221 = vld [vmem:[%s1 + $0x530] sm:$0xff]
  %v222 = vld [vmem:[%s1 + $0x538] sm:$0xff]
  %v223 = vld [vmem:[%s1 + $0x540] sm:$0xff]
  %v224 = vld [vmem:[%s1 + $0x548] sm:$0xff]
  %v225 = vld [vmem:[%s1 + $0x550] sm:$0xff]
  %v226 = vld [vmem:[%s1 + $0x558] sm:$0xff]
  %v227 = vld [vmem:[%s1 + $0x560] sm:$0xff]
  %v228 = vld [vmem:[%s1 + $0x568] sm:$0xff]
  %v229 = vld [vmem:[%s1 + $0x570] sm:$0xff]
  %v230 = vld [vmem:[%s1 + $0x578] sm:$0xff]
  %v231 = vld [vmem:[%s1 + $0x580] sm:$0xff]
  %v232 = vld [vmem:[%s1 + $0x588] sm:$0xff]
  %v233 = vld [vmem:[%s1 + $0x590] sm:$0xff]
  %v234 = vld [vmem:[%s1 + $0x598] sm:$0xff]
  %v235 = vld [vmem:[%s1 + $0x5a0] sm:$0xff]
  %v236 = vld [vmem:[%s1 + $0x5a8] sm:$0xff]
  %v237 = vld [vmem:[%s1 + $0x5b0] sm:$0xff]
  %v238 = vld [vmem:[%s1 + $0x5b8] sm:$0xff]
  %v239 = vld [vmem:[%s1 + $0x5c0] sm:$0xff]
  %v240 = vld [vmem:[%s1 + $0x5c8] sm:$0xff]
  %v241 = vld [vmem:[%s1 + $0x5d0] sm:$0xff]
  %v242 = vld [vmem:[%s1 + $0x5d8] sm:$0xff]
  %v243 = vld [vmem:[%s1 + $0x5e0] sm:$0xff]
  %v244 = vld [vmem:[%s1 + $0x5e8] sm:$0xff]
  %v245 = vld [vmem:[%s1 + $0x5f0] sm:$0xff]
  %v246 = vld [vmem:[%s1 + $0x5f8] sm:$0xff]
  %v247 = vld [vmem:[%s1 + $0x600] sm:$0xff]
  %v248 = vld [vmem:[%s1 + $0x608] sm:$0xff]
  %v249 = vld [vmem:[%s1 + $0x610] sm:$0xff]
  %v250 = vld [vmem:[%s1 + $0x618] sm:$0xff]
  %v251 = vld [vmem:[%s1 + $0x620] sm:$0xff]
  %v252 = vld [vmem:[%s1 + $0x628] sm:$0xff]
  %v253 = vld [vmem:[%s1 + $0x630] sm:$0xff]
  %v254 = vld [vmem:[%s1 + $0x638] sm:$0xff]
  %v255 = vld [vmem:[%s1 + $0x640] sm:$0xff]
  %v256 = vld [vmem:[%s1 + $0x648] sm:$0xff]
  %v257 = vld [vmem:[%s1 + $0x650] sm:$0xff]
  %v258 = vld [vmem:[%s1 + $0x658] sm:$0xff]
  %v259 = vld [vmem:[%s1 + $0x660] sm:$0xff]
  %v260 = vld [vmem:[%s1 + $0x668] sm:$0xff]
  %v261 = vld [vmem:[%s1 + $0x670] sm:$0xff]
  %v262 = vld [vmem:[%s1 + $0x678] sm:$0xff]
  %v263 = vld [vmem:[%s1 + $0x680] sm:$0xff]
  %v264 = vld [vmem:[%s1 + $0x688] sm:$0xff]
  %v265 = vld [vmem:[%s1 + $0x690] sm:$0xff]
  %v266 = vld [vmem:[%s1 + $0x698] sm:$0xff]
  %v267 = vld [vmem:[%s1 + $0x6a0] sm:$0xff]
  %v268 = vld [vmem:[%s1 + $0x6a8] sm:$0xff]
  %v269 = vld [vmem:[%s1 + $0x6b0] sm:$0xff]
  %v270 = vld [vmem:[%s1 + $0x6b8] sm:$0xff]
  %v271 = vld [vmem:[%s1 + $0x6c0] sm:$0xff]
  %v272 = vld [vmem:[%s1 + $0x6c8] sm:$0xff]
  %v273 = vld [vmem:[%s1 + $0x6d0] sm:$0xff]
  %v274 = vld [vmem:[%s1 + $0x6d8] sm:$0xff]
  %v275 = vld [vmem:[%s1 + $0x6e0] sm:$0xff]
  %v276 = vld [vmem:[%s1 + $0x6e8] sm:$0xff]
  %v277 = vld [vmem:[%s1 + $0x6f0] sm:$0xff]
  %v278 = vld [vmem:[%s1 + $0x6f8] sm:$0xff]
  %v279 = vld [vmem:[%s1 + $0x700] sm:$0xff]
  %v280 = vld [vmem:[%s1 + $0x708] sm:$0xff]
  %v281 = vld [vmem:[%s1 + $0x710] sm:$0xff]
  %v282 = vld [vmem:[%s1 + $0x718] sm:$0xff]
  %v283 = vld [vmem:[%s1 + $0x720] sm:$0xff]
  %v284 = vld [vmem:[%s1 + $0x728] sm:$0xff]
  %v285 = vld [vmem:[%s1 + $0x730] sm:$0xff]
  %v286 = vld [vmem:[%s1 + $0x738] sm:$0xff]
  %v287 = vld [vmem:[%s1 + $0x740] sm:$0xff]
  %v288 = vld [vmem:[%s1 + $0x748] sm:$0xff]
  %v289 = vld [vmem:[%s1 + $0x750] sm:$0xff]
  %v290 = vld [vmem:[%s1 + $0x758] sm:$0xff]
  %v291 = vld [vmem:[%s1 + $0x760] sm:$0xff]
  %v292 = vld [vmem:[%s1 + $0x768] sm:$0xff]
  %v293 = vld [vmem:[%s1 + $0x770] sm:$0xff]
  %v294 = vld [vmem:[%s1 + $0x778] sm:$0xff]
  %v295 = vld [vmem:[%s1 + $0x780] sm:$0xff]
  %v296 = vld [vmem:[%s1 + $0x788] sm:$0xff]
  %v297 = vld [vmem:[%s1 + $0x790] sm:$0xff]
  %v298 = vld [vmem:[%s1 + $0x798] sm:$0xff]
  %v299 = vld [vmem:[%s1 + $0x7a0] sm:$0xff]
  %v300 = vld [vmem:[%s1 + $0x7a8] sm:$0xff]
  %v301 = vld [vmem:[%s1 + $0x7b0] sm:$0xff]
  %v302 = vld [vmem:[%s1 + $0x7b8] sm:$0xff]
  %v303 = vld [vmem:[%s1 + $0x7c0] sm:$0xff]
  %v304 = vld [vmem:[%s1 + $0x7c8] sm:$0xff]
  %v305 = vld [vmem:[%s1 + $0x7d0] sm:$0xff]
  %v306 = vld [vmem:[%s1 + $0x7d8] sm:$0xff]
  %v307 = vld [vmem:[%s1 + $0x7e0] sm:$0xff]
  %v308 = vld [vmem:[%s1 + $0x7e8] sm:$0xff]
  %v309 = vld [vmem:[%s1 + $0x7f0] sm:$0xff]
  %v310 = vld [vmem:[%s1 + $0x7f8] sm:$0xff]
  %v311 = vld [vmem:[%s1 + $0x800] sm:$0xff]
  %v312 = vld [vmem:[%s1 + $0x808] sm:$0xff]
  %v313 = vld [vmem:[%s1 + $0x810] sm:$0xff]
  %v314 = vld [vmem:[%s1 + $0x818] sm:$0xff]
  %v315 = vld [vmem:[%s1 + $0x820] sm:$0xff]
  %v316 = vld [vmem:[%s1 + $0x828] sm:$0xff]
  %v317 = vld [vmem:[%s1 + $0x830] sm:$0xff]
  %v318 = vld [vmem:[%s1 + $0x838] sm:$0xff]
  %v319 = vld [vmem:[%s1 + $0x840] sm:$0xff]
  %v320 = vld [vmem:[%s1 + $0x848] sm:$0xff]
  %v321 = vld [vmem:[%s1 + $0x850] sm:$0xff]
  %v322 = vld [vmem:[%s1 + $0x858] sm:$0xff]
  %v323 = vld [vmem:[%s1 + $0x860] sm:$0xff]
  %v324 = vld [vmem:[%s1 + $0x868] sm:$0xff]
  %v325 = vld [vmem:[%s1 + $0x870] sm:$0xff]
  %v326 = vld [vmem:[%s1 + $0x878] sm:$0xff]
  %v327 = vld [vmem:[%s1 + $0x880] sm:$0xff]
  %v328 = vld [vmem:[%s1 + $0x888] sm:$0xff]
  %v329 = vld [vmem:[%s1 + $0x890] sm:$0xff]
  %v330 = vld [vmem:[%s1 + $0x898] sm:$0xff]
  %v331 = vld [vmem:[%s1 + $0x8a0] sm:$0xff]
  %v332 = vld [vmem:[%s1 + $0x8a8] sm:$0xff]
  %v333 = vld [vmem:[%s1 + $0x8b0] sm:$0xff]
  %v334 = vld [vmem:[%s1 + $0x8b8] sm:$0xff]
  %v335 = vld [vmem:[%s1 + $0x8c0] sm:$0xff]
  %v336 = vld [vmem:[%s1 + $0x8c8] sm:$0xff]
  %v337 = vld [vmem:[%s1 + $0x8d0] sm:$0xff]
  %v338 = vld [vmem:[%s1 + $0x8d8] sm:$0xff]
  %v339 = vld [vmem:[%s1 + $0x8e0] sm:$0xff]
  %v340 = vld [vmem:[%s1 + $0x8e8] sm:$0xff]
  %v341 = vld [vmem:[%s1 + $0x8f0] sm:$0xff]
  %v342 = vld [vmem:[%s1 + $0x8f8] sm:$0xff]
  %v343 = vld [vmem:[%s1 + $0x900] sm:$0xff]
  %v344 = vld [vmem:[%s1 + $0x908] sm:$0xff]
  %v345 = vld [vmem:[%s1 + $0x910] sm:$0xff]
  %v346 = vld [vmem:[%s1 + $0x918] sm:$0xff]
  %v347 = vld [vmem:[%s1 + $0x920] sm:$0xff]
  %v348 = vld [vmem:[%s1 + $0x928] sm:$0xff]
  %v349 = vld [vmem:[%s1 + $0x930] sm:$0xff]
  %v350 = vld [vmem:[%s1 + $0x938] sm:$0xff]
  %v351 = vld [vmem:[%s1 + $0x940] sm:$0xff]
  %v352 = vld [vmem:[%s1 + $0x948] sm:$0xff]
  %v353 = vld [vmem:[%s1 + $0x950] sm:$0xff]
  %v354 = vld [vmem:[%s1 + $0x958] sm:$0xff]
  %v355 = vld [vmem:[%s1 + $0x960] sm:$0xff]
  %v356 = vld [vmem:[%s1 + $0x968] sm:$0xff]
  %v357 = vld [vmem:[%s1 + $0x970] sm:$0xff]
  %v358 = vld [vmem:[%s1 + $0x978] sm:$0xff]
  %v359 = vld [vmem:[%s1 + $0x980] sm:$0xff]
  %v360 = vld [vmem:[%s1 + $0x988] sm:$0xff]
  %v361 = vld [vmem:[%s1 + $0x990] sm:$0xff]
  %v362 = vld [vmem:[%s1 + $0x998] sm:$0xff]
  %v363 = vld [vmem:[%s1 + $0x9a0] sm:$0xff]
  %v364 = vld [vmem:[%s1 + $0x9a8] sm:$0xff]
  %v365 = vld [vmem:[%s1 + $0x9b0] sm:$0xff]
  %v366 = vld [vmem:[%s1 + $0x9b8] sm:$0xff]
  %v367 = vld [vmem:[%s1 + $0x9c0] sm:$0xff]
  %v368 = vld [vmem:[%s1 + $0x9c8] sm:$0xff]
  %v369 = vld [vmem:[%s1 + $0x9d0] sm:$0xff]
  %v370 = vld [vmem:[%s1 + $0x9d8] sm:$0xff]
  %v371 = vld [vmem:[%s1 + $0x9e0] sm:$0xff]
  %v372 = vld [vmem:[%s1 + $0x9e8] sm:$0xff]
  %v373 = vld [vmem:[%s1 + $0x9f0] sm:$0xff]
  %v374 = vld [vmem:[%s1 + $0x9f8] sm:$0xff]
  %v375 = vld [vmem:[%s1 + $0xa00] sm:$0xff]
  %v376 = vld [vmem:[%s1 + $0xa08] sm:$0xff]
  %v377 = vld [vmem:[%s1 + $0xa10] sm:$0xff]
  %v378 = vld [vmem:[%s1 + $0xa18] sm:$0xff]
  %v379 = vld [vmem:[%s1 + $0xa20] sm:$0xff]
  %v380 = vld [vmem:[%s1 + $0xa28] sm:$0xff]
  %v381 = vld [vmem:[%s1 + $0xa30] sm:$0xff]
  %v382 = vld [vmem:[%s1 + $0xa38] sm:$0xff]
  %v383 = vld [vmem:[%s1 + $0xa40] sm:$0xff]
  %v384 = vld [vmem:[%s1 + $0xa48] sm:$0xff]
  %v385 = vld [vmem:[%s1 + $0xa50] sm:$0xff]
  %v386 = vld [vmem:[%s1 + $0xa58] sm:$0xff]
  %v387 = vld [vmem:[%s1 + $0xa60] sm:$0xff]
  %v388 = vld [vmem:[%s1 + $0xa68] sm:$0xff]
  %v389 = vld [vmem:[%s1 + $0xa70] sm:$0xff]
  %v390 = vld [vmem:[%s1 + $0xa78] sm:$0xff]
  %v391 = vld [vmem:[%s1 + $0xa80] sm:$0xff]
  %v392 = vld [vmem:[%s1 + $0xa88] sm:$0xff]
  %v393 = vld [vmem:[%s1 + $0xa90] sm:$0xff]
  %v394 = vld [vmem:[%s1 + $0xa98] sm:$0xff]
  %v395 = vld [vmem:[%s1 + $0xaa0] sm:$0xff]
  %v396 = vld [vmem:[%s1 + $0xaa8] sm:$0xff]
  %v397 = vld [vmem:[%s1 + $0xab0] sm:$0xff]
  %v398 = vld [vmem:[%s1 + $0xab8] sm:$0xff]
  %v399 = vld [vmem:[%s1 + $0xac0] sm:$0xff]
  %v400 = vld [vmem:[%s1 + $0xac8] sm:$0xff]
  %v401 = vld [vmem:[%s1 + $0xad0] sm:$0xff]
  %v402 = vld [vmem:[%s1 + $0xad8] sm:$0xff]
  %v403 = vld [vmem:[%s1 + $0xae0] sm:$0xff]
  %v404 = vld [vmem:[%s1 + $0xae8] sm:$0xff]
  %v405 = vld [vmem:[%s1 + $0xaf0] sm:$0xff]
  %v406 = vld [vmem:[%s1 + $0xaf8] sm:$0xff]
  %v407 = vld [vmem:[%s1 + $0xb00] sm:$0xff]
  %v408 = vld [vmem:[%s1 + $0xb08] sm:$0xff]
  %v409 = vld [vmem:[%s1 + $0xb10] sm:$0xff]
  %v410 = vld [vmem:[%s1 + $0xb18] sm:$0xff]
  %v411 = vld [vmem:[%s1 + $0xb20] sm:$0xff]
  %v412 = vld [vmem:[%s1 + $0xb28] sm:$0xff]
  %v413 = vld [vmem:[%s1 + $0xb30] sm:$0xff]
  %v414 = vld [vmem:[%s1 + $0xb38] sm:$0xff]
  %v415 = vld [vmem:[%s1 + $0xb40] sm:$0xff]
  %v416 = vld [vmem:[%s1 + $0xb48] sm:$0xff]
  %v417 = vld [vmem:[%s1 + $0xb50] sm:$0xff]
  %v418 = vld [vmem:[%s1 + $0xb58] sm:$0xff]
  %v419 = vld [vmem:[%s1 + $0xb60] sm:$0xff]
  %v420 = vld [vmem:[%s1 + $0xb68] sm:$0xff]
  %v421 = vld [vmem:[%s1 + $0xb70] sm:$0xff]
  %v422 = vld [vmem:[%s1 + $0xb78] sm:$0xff]
  %v423 = vld [vmem:[%s1 + $0xb80] sm:$0xff]
  %v424 = vld [vmem:[%s1 + $0xb88] sm:$0xff]
  %v425 = vld [vmem:[%s1 + $0xb90] sm:$0xff]
  %v426 = vld [vmem:[%s1 + $0xb98] sm:$0xff]
  %v427 = vld [vmem:[%s1 + $0xba0] sm:$0xff]
  %v428 = vld [vmem:[%s1 + $0xba8] sm:$0xff]
  %v429 = vld [vmem:[%s1 + $0xbb0] sm:$0xff]
  %v430 = vld [vmem:[%s1 + $0xbb8] sm:$0xff]
  %v431 = vld [vmem:[%s1 + $0xbc0] sm:$0xff]
  %v432 = vld [vmem:[%s1 + $0xbc8] sm:$0xff]
  %v433 = vld [vmem:[%s1 + $0xbd0] sm:$0xff]
  %v434 = vld [vmem:[%s1 + $0xbd8] sm:$0xff]
  %v435 = vld [vmem:[%s1 + $0xbe0] sm:$0xff]
  %v436 = vld [vmem:[%s1 + $0xbe8] sm:$0xff]
  %v437 = vld [vmem:[%s1 + $0xbf0] sm:$0xff]
  %v438 = vld [vmem:[%s1 + $0xbf8] sm:$0xff]
  %v439 = vld [vmem:[%s1 + $0xc00] sm:$0xff]
  %v440 = vld [vmem:[%s1 + $0xc08] sm:$0xff]
  %v441 = vld [vmem:[%s1 + $0xc10] sm:$0xff]
  %v442 = vld [vmem:[%s1 + $0xc18] sm:$0xff]
  %v443 = vld [vmem:[%s1 + $0xc20] sm:$0xff]
  %v444 = vld [vmem:[%s1 + $0xc28] sm:$0xff]
  %v445 = vld [vmem:[%s1 + $0xc30] sm:$0xff]
  %v446 = vld [vmem:[%s1 + $0xc38] sm:$0xff]
  %v447 = vld [vmem:[%s1 + $0xc40] sm:$0xff]
  %v448 = vld [vmem:[%s1 + $0xc48] sm:$0xff]
  %v449 = vld [vmem:[%s1 + $0xc50] sm:$0xff]
  %v450 = vld [vmem:[%s1 + $0xc58] sm:$0xff]
  %v451 = vld [vmem:[%s1 + $0xc60] sm:$0xff]
  %v452 = vld [vmem:[%s1 + $0xc68] sm:$0xff]
  %v453 = vld [vmem:[%s1 + $0xc70] sm:$0xff]
  %v454 = vld [vmem:[%s1 + $0xc78] sm:$0xff]
  %v455 = vld [vmem:[%s1 + $0xc80] sm:$0xff]
  %v456 = vld [vmem:[%s1 + $0xc88] sm:$0xff]
  %v457 = vld [vmem:[%s1 + $0xc90] sm:$0xff]
  %v458 = vld [vmem:[%s1 + $0xc98] sm:$0xff]
  %v459 = vld [vmem:[%s1 + $0xca0] sm:$0xff]
  %v460 = vld [vmem:[%s1 + $0xca8] sm:$0xff]
  %v461 = vld [vmem:[%s1 + $0xcb0] sm:$0xff]
  %v462 = vld [vmem:[%s1 + $0xcb8] sm:$0xff]
  %v463 = vld [vmem:[%s1 + $0xcc0] sm:$0xff]
  %v464 = vld [vmem:[%s1 + $0xcc8] sm:$0xff]
  %v465 = vld [vmem:[%s1 + $0xcd0] sm:$0xff]
  %v466 = vld [vmem:[%s1 + $0xcd8] sm:$0xff]
  %v467 = vld [vmem:[%s1 + $0xce0] sm:$0xff]
  %v468 = vld [vmem:[%s1 + $0xce8] sm:$0xff]
  %v469 = vld [vmem:[%s1 + $0xcf0] sm:$0xff]
  %v470 = vld [vmem:[%s1 + $0xcf8] sm:$0xff]
  %v471 = vld [vmem:[%s1 + $0xd00] sm:$0xff]
  %v472 = vld [vmem:[%s1 + $0xd08] sm:$0xff]
  %v473 = vld [vmem:[%s1 + $0xd10] sm:$0xff]
  %v474 = vld [vmem:[%s1 + $0xd18] sm:$0xff]
  %v475 = vld [vmem:[%s1 + $0xd20] sm:$0xff]
  %v476 = vld [vmem:[%s1 + $0xd28] sm:$0xff]
  %v477 = vld [vmem:[%s1 + $0xd30] sm:$0xff]
  %v478 = vld [vmem:[%s1 + $0xd38] sm:$0xff]
  %v479 = vld [vmem:[%s1 + $0xd40] sm:$0xff]
  %v480 = vld [vmem:[%s1 + $0xd48] sm:$0xff]
  %v481 = vld [vmem:[%s1 + $0xd50] sm:$0xff]
  %v482 = vld [vmem:[%s1 + $0xd58] sm:$0xff]
  %v483 = vld [vmem:[%s1 + $0xd60] sm:$0xff]
  %v484 = vld [vmem:[%s1 + $0xd68] sm:$0xff]
  %v485 = vld [vmem:[%s1 + $0xd70] sm:$0xff]
  %v486 = vld [vmem:[%s1 + $0xd78] sm:$0xff]
  %v487 = vld [vmem:[%s1 + $0xd80] sm:$0xff]
  %v488 = vld [vmem:[%s1 + $0xd88] sm:$0xff]
  %v489 = vld [vmem:[%s1 + $0xd90] sm:$0xff]
  %v490 = vld [vmem:[%s1 + $0xd98] sm:$0xff]
  %v491 = vld [vmem:[%s1 + $0xda0] sm:$0xff]
  %v492 = vld [vmem:[%s1 + $0xda8] sm:$0xff]
  %v493 = vld [vmem:[%s1 + $0xdb0] sm:$0xff]
  %v494 = vld [vmem:[%s1 + $0xdb8] sm:$0xff]
  %v495 = vld [vmem:[%s1 + $0xdc0] sm:$0xff]
  %v496 = vld [vmem:[%s1 + $0xdc8] sm:$0xff]
  %v497 = vld [vmem:[%s1 + $0xdd0] sm:$0xff]
  %v498 = vld [vmem:[%s1 + $0xdd8] sm:$0xff]
  %v499 = vld [vmem:[%s1 + $0xde0] sm:$0xff]
  %v500 = vld [vmem:[%s1 + $0xde8] sm:$0xff]
  %v501 = vld [vmem:[%s1 + $0xdf0] sm:$0xff]
  %v502 = vld [vmem:[%s1 + $0xdf8] sm:$0xff]
  %v503 = vld [vmem:[%s1 + $0xe00] sm:$0xff]
  %v504 = vld [vmem:[%s1 + $0xe08] sm:$0xff]
  %v505 = vld [vmem:[%s1 + $0xe10] sm:$0xff]
  %v506 = vld [vmem:[%s1 + $0xe18] sm:$0xff]
  %v507 = vld [vmem:[%s1 + $0xe20] sm:$0xff]
  %v508 = vld [vmem:[%s1 + $0xe28] sm:$0xff]
  %v509 = vld [vmem:[%s1 + $0xe30] sm:$0xff]
  %v510 = vld [vmem:[%s1 + $0xe38] sm:$0xff]
  %v511 = vld [vmem:[%s1 + $0xe40] sm:$0xff]
  %v512 = vld [vmem:[%s1 + $0xe48] sm:$0xff]
  %v513 = vld [vmem:[%s1 + $0xe50] sm:$0xff]
  %v514 = vld [vmem:[%s1 + $0xe58] sm:$0xff]
  %v515 = vld [vmem:[%s1 + $0xe60] sm:$0xff]
  %v516 = vld [vmem:[%s1 + $0xe68] sm:$0xff]
  %v517 = vld [vmem:[%s1 + $0xe70] sm:$0xff]
  %v518 = vld [vmem:[%s1 + $0xe78] sm:$0xff]
  %v519 = vld [vmem:[%s1 + $0xe80] sm:$0xff]
  %v520 = vld [vmem:[%s1 + $0xe88] sm:$0xff]
  %v521 = vld [vmem:[%s1 + $0xe90] sm:$0xff]
  %v522 = vld [vmem:[%s1 + $0xe98] sm:$0xff]
  %v523 = vld [vmem:[%s1 + $0xea0] sm:$0xff]
  %v524 = vld [vmem:[%s1 + $0xea8] sm:$0xff]
  %v525 = vld [vmem:[%s1 + $0xeb0] sm:$0xff]
  %v526 = vld [vmem:[%s1 + $0xeb8] sm:$0xff]
  %v527 = vld [vmem:[%s1 + $0xec0] sm:$0xff]
  %v528 = vld [vmem:[%s1 + $0xec8] sm:$0xff]
  %v529 = vld [vmem:[%s1 + $0xed0] sm:$0xff]
  %v530 = vld [vmem:[%s1 + $0xed8] sm:$0xff]
  %v531 = vld [vmem:[%s1 + $0xee0] sm:$0xff]
  %v532 = vld [vmem:[%s1 + $0xee8] sm:$0xff]
  %v533 = vld [vmem:[%s1 + $0xef0] sm:$0xff]
  %v534 = vld [vmem:[%s1 + $0xef8] sm:$0xff]
  %v535 = vld [vmem:[%s1 + $0xf00] sm:$0xff]
  %v536 = vld [vmem:[%s1 + $0xf08] sm:$0xff]
  %v537 = vld [vmem:[%s1 + $0xf10] sm:$0xff]
  %v538 = vld [vmem:[%s1 + $0xf18] sm:$0xff]
  %v539 = vld [vmem:[%s1 + $0xf20] sm:$0xff]
  %v540 = vld [vmem:[%s1 + $0xf28] sm:$0xff]
  %v541 = vld [vmem:[%s1 + $0xf30] sm:$0xff]
  %v542 = vld [vmem:[%s1 + $0xf38] sm:$0xff]
  %v543 = vld [vmem:[%s1 + $0xf40] sm:$0xff]
  %v544 = vld [vmem:[%s1 + $0xf48] sm:$0xff]
  %v545 = vld [vmem:[%s1 + $0xf50] sm:$0xff]
  %v546 = vld [vmem:[%s1 + $0xf58] sm:$0xff]
  %v547 = vld [vmem:[%s1 + $0xf60] sm:$0xff]
  %v548 = vld [vmem:[%s1 + $0xf68] sm:$0xff]
  %v549 = vld [vmem:[%s1 + $0xf70] sm:$0xff]
  %v550 = vld [vmem:[%s1 + $0xf78] sm:$0xff]
  %v551 = vld [vmem:[%s1 + $0xf80] sm:$0xff]
  %v552 = vld [vmem:[%s1 + $0xf88] sm:$0xff]
  %v553 = vld [vmem:[%s1 + $0xf90] sm:$0xff]
  %v554 = vld [vmem:[%s1 + $0xf98] sm:$0xff]
  %v555 = vld [vmem:[%s1 + $0xfa0] sm:$0xff]
  %v556 = vld [vmem:[%s1 + $0xfa8] sm:$0xff]
  %v557 = vld [vmem:[%s1 + $0xfb0] sm:$0xff]
  %v558 = vld [vmem:[%s1 + $0xfb8] sm:$0xff]
  %v559 = vld [vmem:[%s1 + $0xfc0] sm:$0xff]
  %v560 = vld [vmem:[%s1 + $0xfc8] sm:$0xff]
  %v561 = vld [vmem:[%s1 + $0xfd0] sm:$0xff]
  %v562 = vld [vmem:[%s1 + $0xfd8] sm:$0xff]
  %v563 = vld [vmem:[%s1 + $0xfe0] sm:$0xff]
  %v564 = vld [vmem:[%s1 + $0xfe8] sm:$0xff]
  %v565 = vld [vmem:[%s1 + $0xff0] sm:$0xff]
  %v566 = vld [vmem:[%s1 + $0xff8] sm:$0xff]
  %v567 = vld [vmem:[%s1 + $0x1000] sm:$0xff]
  %v568 = vld [vmem:[%s1 + $0x1008] sm:$0xff]
  %v569 = vld [vmem:[%s1 + $0x1010] sm:$0xff]
  %v570 = vld [vmem:[%s1 + $0x1018] sm:$0xff]
  %v571 = vld [vmem:[%s1 + $0x1020] sm:$0xff]
  %v572 = vld [vmem:[%s1 + $0x1028] sm:$0xff]
  %v573 = vld [vmem:[%s1 + $0x1030] sm:$0xff]
  %v574 = vld [vmem:[%s1 + $0x1038] sm:$0xff]
  %v575 = vld [vmem:[%s1 + $0x1040] sm:$0xff]
  %v576 = vld [vmem:[%s1 + $0x1048] sm:$0xff]
  %v577 = vld [vmem:[%s1 + $0x1050] sm:$0xff]
  %v578 = vld [vmem:[%s1 + $0x1058] sm:$0xff]
  %v579 = vld [vmem:[%s1 + $0x1060] sm:$0xff]
  %v580 = vld [vmem:[%s1 + $0x1068] sm:$0xff]
  %v581 = vld [vmem:[%s1 + $0x1070] sm:$0xff]
  %v582 = vld [vmem:[%s1 + $0x1078] sm:$0xff]
  %v583 = vld [vmem:[%s1 + $0x1080] sm:$0xff]
  %v584 = vld [vmem:[%s1 + $0x1088] sm:$0xff]
  %v585 = vld [vmem:[%s1 + $0x1090] sm:$0xff]
  %v586 = vld [vmem:[%s1 + $0x1098] sm:$0xff]
  %v587 = vld [vmem:[%s1 + $0x10a0] sm:$0xff]
  %v588 = vld [vmem:[%s1 + $0x10a8] sm:$0xff]
  %v589 = vld [vmem:[%s1 + $0x10b0] sm:$0xff]
  %v590 = vld [vmem:[%s1 + $0x10b8] sm:$0xff]
  %v591 = vld [vmem:[%s1 + $0x10c0] sm:$0xff]
  %v592 = vld [vmem:[%s1 + $0x10c8] sm:$0xff]
  %v593 = vld [vmem:[%s1 + $0x10d0] sm:$0xff]
  %v594 = vld [vmem:[%s1 + $0x10d8] sm:$0xff]
  %v595 = vld [vmem:[%s1 + $0x10e0] sm:$0xff]
  %v596 = vld [vmem:[%s1 + $0x10e8] sm:$0xff]
  %v597 = vld [vmem:[%s1 + $0x10f0] sm:$0xff]
  %v598 = vld [vmem:[%s1 + $0x10f8] sm:$0xff]
  %v599 = vld [vmem:[%s1 + $0x1100] sm:$0xff]
  %v600 = vld [vmem:[%s1 + $0x1108] sm:$0xff]
  %v601 = vld [vmem:[%s1 + $0x1110] sm:$0xff]
  %v602 = vld [vmem:[%s1 + $0x1118] sm:$0xff]
  %v603 = vld [vmem:[%s1 + $0x1120] sm:$0xff]
  %v604 = vld [vmem:[%s1 + $0x1128] sm:$0xff]
  %v605 = vld [vmem:[%s1 + $0x1130] sm:$0xff]
  %v606 = vld [vmem:[%s1 + $0x1138] sm:$0xff]
  %v607 = vld [vmem:[%s1 + $0x1140] sm:$0xff]
  %v608 = vld [vmem:[%s1 + $0x1148] sm:$0xff]
  %v609 = vld [vmem:[%s1 + $0x1150] sm:$0xff]
  %v610 = vld [vmem:[%s1 + $0x1158] sm:$0xff]
  %v611 = vld [vmem:[%s1 + $0x1160] sm:$0xff]
  %v612 = vld [vmem:[%s1 + $0x1168] sm:$0xff]
  %v613 = vld [vmem:[%s1 + $0x1170] sm:$0xff]
  %v614 = vld [vmem:[%s1 + $0x1178] sm:$0xff]
  %v615 = vld [vmem:[%s1 + $0x1180] sm:$0xff]
  %v616 = vld [vmem:[%s1 + $0x1188] sm:$0xff]
  %v617 = vld [vmem:[%s1 + $0x1190] sm:$0xff]
  %v618 = vld [vmem:[%s1 + $0x1198] sm:$0xff]
  %v619 = vld [vmem:[%s1 + $0x11a0] sm:$0xff]
  %v620 = vld [vmem:[%s1 + $0x11a8] sm:$0xff]
  %v621 = vld [vmem:[%s1 + $0x11b0] sm:$0xff]
  %v622 = vld [vmem:[%s1 + $0x11b8] sm:$0xff]
  %v623 = vld [vmem:[%s1 + $0x11c0] sm:$0xff]
  %v624 = vld [vmem:[%s1 + $0x11c8] sm:$0xff]
  %v625 = vld [vmem:[%s1 + $0x11d0] sm:$0xff]
  %v626 = vld [vmem:[%s1 + $0x11d8] sm:$0xff]
  %v627 = vld [vmem:[%s1 + $0x11e0] sm:$0xff]
  %v628 = vld [vmem:[%s1 + $0x11e8] sm:$0xff]
  %v629 = vld [vmem:[%s1 + $0x11f0] sm:$0xff]
  %v630 = vld [vmem:[%s1 + $0x11f8] sm:$0xff]
  %v631 = vld [vmem:[%s2] sm:$0xf]
  %v633 = vlaneseq
  %v634 = vshrl.u32 %v633, 7
  %v635 = vsub.s32 0, %v634
  %v636 = vrot.slane %v631, %v635
  %v637 = vlaneseq
  %v638 = vshrl.u32 %v637, 7
  %v639 = vsub.s32 1, %v638
  %v640 = vrot.slane %v631, %v639
  %v641 = vlaneseq
  %v642 = vshrl.u32 %v641, 7
  %v643 = vsub.s32 2, %v642
  %v644 = vrot.slane %v631, %v643
  %v645 = vlaneseq
  %v646 = vshrl.u32 %v645, 7
  %v647 = vsub.s32 3, %v646
  %v648 = vrot.slane %v631, %v647
  %v680 = vunpack.c.l.b16 %v28
  %v681 = vunpack.c.h.b16 %v28
  %v682 = vunpack.c.l.b16 %v29
  %v683 = vunpack.c.h.b16 %v29
  %v684 = vunpack.c.l.b16 %v30
  %v685 = vunpack.c.h.b16 %v30
  %v686 = vunpack.c.l.b16 %v31
  %v687 = vunpack.c.h.b16 %v31
  %v688 = vunpack.c.l.b16 %v32
  %v689 = vunpack.c.h.b16 %v32
  %v690 = vunpack.c.l.b16 %v33
  %v691 = vunpack.c.h.b16 %v33
  %v692 = vunpack.c.l.b16 %v34
  %v693 = vunpack.c.h.b16 %v34
  %v694 = vunpack.c.l.b16 %v35
  %v695 = vunpack.c.h.b16 %v35
  %v696 = vunpack.c.l.b16 %v36
  %v697 = vunpack.c.h.b16 %v36
  %v698 = vunpack.c.l.b16 %v37
  %v699 = vunpack.c.h.b16 %v37
  %v700 = vunpack.c.l.b16 %v38
  %v701 = vunpack.c.h.b16 %v38
  %v702 = vunpack.c.l.b16 %v39
  %v703 = vunpack.c.h.b16 %v39
  %v704 = vunpack.c.l.b16 %v40
  %v705 = vunpack.c.h.b16 %v40
  %v706 = vunpack.c.l.b16 %v41
  %v707 = vunpack.c.h.b16 %v41
  %v708 = vunpack.c.l.b16 %v42
  %v709 = vunpack.c.h.b16 %v42
  %v710 = vunpack.c.l.b16 %v43
  %v711 = vunpack.c.h.b16 %v43
  %v712 = vunpack.c.l.b16 %v44
  %v713 = vunpack.c.h.b16 %v44
  %v714 = vunpack.c.l.b16 %v45
  %v715 = vunpack.c.h.b16 %v45
  %v716 = vunpack.c.l.b16 %v46
  %v717 = vunpack.c.h.b16 %v46
  %v718 = vunpack.c.l.b16 %v47
  %v719 = vunpack.c.h.b16 %v47
  %v720 = vunpack.c.l.b16 %v48
  %v721 = vunpack.c.h.b16 %v48
  %v722 = vunpack.c.l.b16 %v49
  %v723 = vunpack.c.h.b16 %v49
  %v724 = vunpack.c.l.b16 %v50
  %v725 = vunpack.c.h.b16 %v50
  %v726 = vunpack.c.l.b16 %v51
  %v727 = vunpack.c.h.b16 %v51
  %v728 = vunpack.c.l.b16 %v52
  %v729 = vunpack.c.h.b16 %v52
  %v730 = vunpack.c.l.b16 %v53
  %v731 = vunpack.c.h.b16 %v53
  %v732 = vunpack.c.l.b16 %v54
  %v733 = vunpack.c.h.b16 %v54
  %v734 = vpack.c.b16 %v698, %v680
  %v735 = vpack.c.b16 %v699, %v681
  %v736 = vpack.c.b16 %v700, %v682
  %v737 = vpack.c.b16 %v701, %v683
  %v738 = vpack.c.b16 %v702, %v684
  %v739 = vpack.c.b16 %v703, %v685
  %v740 = vpack.c.b16 %v704, %v686
  %v741 = vpack.c.b16 %v705, %v687
  %v742 = vpack.c.b16 %v706, %v688
  %v743 = vpack.c.b16 %v707, %v689
  %v744 = vpack.c.b16 %v708, %v690
  %v745 = vpack.c.b16 %v709, %v691
  %v746 = vpack.c.b16 %v710, %v692
  %v747 = vpack.c.b16 %v711, %v693
  %v748 = vpack.c.b16 %v712, %v694
  %v749 = vpack.c.b16 %v713, %v695
  %v750 = vpack.c.b16 %v714, %v696
  %v751 = vpack.c.b16 %v715, %v697
  %v752 = vpack.c.b16 %v716, %v716
  %v753 = vpack.c.b16 %v717, %v717
  %v754 = vpack.c.b16 %v718, %v718
  %v755 = vpack.c.b16 %v719, %v719
  %v756 = vpack.c.b16 %v720, %v720
  %v757 = vpack.c.b16 %v721, %v721
  %v758 = vpack.c.b16 %v722, %v722
  %v759 = vpack.c.b16 %v723, %v723
  %v760 = vpack.c.b16 %v724, %v724
  %v761 = vpack.c.b16 %v725, %v725
  %v762 = vpack.c.b16 %v726, %v726
  %v763 = vpack.c.b16 %v727, %v727
  %v764 = vpack.c.b16 %v728, %v728
  %v765 = vpack.c.b16 %v729, %v729
  %v766 = vpack.c.b16 %v730, %v730
  %v767 = vpack.c.b16 %v731, %v731
  %v768 = vpack.c.b16 %v732, %v732
  %v769 = vpack.c.b16 %v733, %v733
  %v1382 = vunpack.c.l.b16 %v55
  %v1383 = vunpack.c.h.b16 %v55
  %v1384 = vunpack.c.l.b16 %v56
  %v1385 = vunpack.c.h.b16 %v56
  %v1386 = vunpack.c.l.b16 %v57
  %v1387 = vunpack.c.h.b16 %v57
  %v1388 = vunpack.c.l.b16 %v58
  %v1389 = vunpack.c.h.b16 %v58
  %v1390 = vunpack.c.l.b16 %v59
  %v1391 = vunpack.c.h.b16 %v59
  %v1392 = vunpack.c.l.b16 %v60
  %v1393 = vunpack.c.h.b16 %v60
  %v1394 = vunpack.c.l.b16 %v61
  %v1395 = vunpack.c.h.b16 %v61
  %v1396 = vunpack.c.l.b16 %v62
  %v1397 = vunpack.c.h.b16 %v62
  %v1398 = vunpack.c.l.b16 %v63
  %v1399 = vunpack.c.h.b16 %v63
  %v1400 = vunpack.c.l.b16 %v64
  %v1401 = vunpack.c.h.b16 %v64
  %v1402 = vunpack.c.l.b16 %v65
  %v1403 = vunpack.c.h.b16 %v65
  %v1404 = vunpack.c.l.b16 %v66
  %v1405 = vunpack.c.h.b16 %v66
  %v1406 = vunpack.c.l.b16 %v67
  %v1407 = vunpack.c.h.b16 %v67
  %v1408 = vunpack.c.l.b16 %v68
  %v1409 = vunpack.c.h.b16 %v68
  %v1410 = vunpack.c.l.b16 %v69
  %v1411 = vunpack.c.h.b16 %v69
  %v1412 = vunpack.c.l.b16 %v70
  %v1413 = vunpack.c.h.b16 %v70
  %v1414 = vunpack.c.l.b16 %v71
  %v1415 = vunpack.c.h.b16 %v71
  %v1416 = vunpack.c.l.b16 %v72
  %v1417 = vunpack.c.h.b16 %v72
  %v1418 = vunpack.c.l.b16 %v73
  %v1419 = vunpack.c.h.b16 %v73
  %v1420 = vunpack.c.l.b16 %v74
  %v1421 = vunpack.c.h.b16 %v74
  %v1422 = vunpack.c.l.b16 %v75
  %v1423 = vunpack.c.h.b16 %v75
  %v1424 = vunpack.c.l.b16 %v76
  %v1425 = vunpack.c.h.b16 %v76
  %v1426 = vunpack.c.l.b16 %v77
  %v1427 = vunpack.c.h.b16 %v77
  %v1428 = vunpack.c.l.b16 %v78
  %v1429 = vunpack.c.h.b16 %v78
  %v1430 = vunpack.c.l.b16 %v79
  %v1431 = vunpack.c.h.b16 %v79
  %v1432 = vunpack.c.l.b16 %v80
  %v1433 = vunpack.c.h.b16 %v80
  %v1434 = vunpack.c.l.b16 %v81
  %v1435 = vunpack.c.h.b16 %v81
  %v1436 = vunpack.c.l.b16 %v82
  %v1437 = vunpack.c.h.b16 %v82
  %v1438 = vunpack.c.l.b16 %v83
  %v1439 = vunpack.c.h.b16 %v83
  %v1440 = vunpack.c.l.b16 %v84
  %v1441 = vunpack.c.h.b16 %v84
  %v1442 = vunpack.c.l.b16 %v85
  %v1443 = vunpack.c.h.b16 %v85
  %v1444 = vunpack.c.l.b16 %v86
  %v1445 = vunpack.c.h.b16 %v86
  %v1446 = vunpack.c.l.b16 %v87
  %v1447 = vunpack.c.h.b16 %v87
  %v1448 = vunpack.c.l.b16 %v88
  %v1449 = vunpack.c.h.b16 %v88
  %v1450 = vunpack.c.l.b16 %v89
  %v1451 = vunpack.c.h.b16 %v89
  %v1452 = vunpack.c.l.b16 %v90
  %v1453 = vunpack.c.h.b16 %v90
  %v1454 = vunpack.c.l.b16 %v91
  %v1455 = vunpack.c.h.b16 %v91
  %v1456 = vunpack.c.l.b16 %v92
  %v1457 = vunpack.c.h.b16 %v92
  %v1458 = vunpack.c.l.b16 %v93
  %v1459 = vunpack.c.h.b16 %v93
  %v1460 = vunpack.c.l.b16 %v94
  %v1461 = vunpack.c.h.b16 %v94
  %v1462 = vunpack.c.l.b16 %v95
  %v1463 = vunpack.c.h.b16 %v95
  %v1464 = vunpack.c.l.b16 %v96
  %v1465 = vunpack.c.h.b16 %v96
  %v1466 = vunpack.c.l.b16 %v97
  %v1467 = vunpack.c.h.b16 %v97
  %v1468 = vunpack.c.l.b16 %v98
  %v1469 = vunpack.c.h.b16 %v98
  %v1470 = vunpack.c.l.b16 %v99
  %v1471 = vunpack.c.h.b16 %v99
  %v1472 = vunpack.c.l.b16 %v100
  %v1473 = vunpack.c.h.b16 %v100
  %v1474 = vunpack.c.l.b16 %v101
  %v1475 = vunpack.c.h.b16 %v101
  %v1476 = vunpack.c.l.b16 %v102
  %v1477 = vunpack.c.h.b16 %v102
  %v1478 = vunpack.c.l.b16 %v103
  %v1479 = vunpack.c.h.b16 %v103
  %v1480 = vunpack.c.l.b16 %v104
  %v1481 = vunpack.c.h.b16 %v104
  %v1482 = vunpack.c.l.b16 %v105
  %v1483 = vunpack.c.h.b16 %v105
  %v1484 = vunpack.c.l.b16 %v106
  %v1485 = vunpack.c.h.b16 %v106
  %v1486 = vunpack.c.l.b16 %v107
  %v1487 = vunpack.c.h.b16 %v107
  %v1488 = vunpack.c.l.b16 %v108
  %v1489 = vunpack.c.h.b16 %v108
  %v1490 = vunpack.c.l.b16 %v109
  %v1491 = vunpack.c.h.b16 %v109
  %v1492 = vunpack.c.l.b16 %v110
  %v1493 = vunpack.c.h.b16 %v110
  %v1494 = vunpack.c.l.b16 %v111
  %v1495 = vunpack.c.h.b16 %v111
  %v1496 = vunpack.c.l.b16 %v112
  %v1497 = vunpack.c.h.b16 %v112
  %v1498 = vunpack.c.l.b16 %v113
  %v1499 = vunpack.c.h.b16 %v113
  %v1500 = vunpack.c.l.b16 %v114
  %v1501 = vunpack.c.h.b16 %v114
  %v1502 = vunpack.c.l.b16 %v115
  %v1503 = vunpack.c.h.b16 %v115
  %v1504 = vunpack.c.l.b16 %v116
  %v1505 = vunpack.c.h.b16 %v116
  %v1506 = vunpack.c.l.b16 %v117
  %v1507 = vunpack.c.h.b16 %v117
  %v1508 = vunpack.c.l.b16 %v118
  %v1509 = vunpack.c.h.b16 %v118
  %v1510 = vunpack.c.l.b16 %v119
  %v1511 = vunpack.c.h.b16 %v119
  %v1512 = vunpack.c.l.b16 %v120
  %v1513 = vunpack.c.h.b16 %v120
  %v1514 = vunpack.c.l.b16 %v121
  %v1515 = vunpack.c.h.b16 %v121
  %v1516 = vunpack.c.l.b16 %v122
  %v1517 = vunpack.c.h.b16 %v122
  %v1518 = vunpack.c.l.b16 %v123
  %v1519 = vunpack.c.h.b16 %v123
  %v1520 = vunpack.c.l.b16 %v124
  %v1521 = vunpack.c.h.b16 %v124
  %v1522 = vunpack.c.l.b16 %v125
  %v1523 = vunpack.c.h.b16 %v125
  %v1524 = vunpack.c.l.b16 %v126
  %v1525 = vunpack.c.h.b16 %v126
  %v1526 = vunpack.c.l.b16 %v127
  %v1527 = vunpack.c.h.b16 %v127
  %v1528 = vunpack.c.l.b16 %v128
  %v1529 = vunpack.c.h.b16 %v128
  %v1530 = vunpack.c.l.b16 %v129
  %v1531 = vunpack.c.h.b16 %v129
  %v1532 = vunpack.c.l.b16 %v130
  %v1533 = vunpack.c.h.b16 %v130
  %v1534 = vunpack.c.l.b16 %v131
  %v1535 = vunpack.c.h.b16 %v131
  %v1536 = vunpack.c.l.b16 %v132
  %v1537 = vunpack.c.h.b16 %v132
  %v1538 = vunpack.c.l.b16 %v133
  %v1539 = vunpack.c.h.b16 %v133
  %v1540 = vunpack.c.l.b16 %v134
  %v1541 = vunpack.c.h.b16 %v134
  %v1542 = vunpack.c.l.b16 %v135
  %v1543 = vunpack.c.h.b16 %v135
  %v1544 = vunpack.c.l.b16 %v136
  %v1545 = vunpack.c.h.b16 %v136
  %v1546 = vunpack.c.l.b16 %v137
  %v1547 = vunpack.c.h.b16 %v137
  %v1548 = vunpack.c.l.b16 %v138
  %v1549 = vunpack.c.h.b16 %v138
  %v1550 = vunpack.c.l.b16 %v139
  %v1551 = vunpack.c.h.b16 %v139
  %v1552 = vunpack.c.l.b16 %v140
  %v1553 = vunpack.c.h.b16 %v140
  %v1554 = vunpack.c.l.b16 %v141
  %v1555 = vunpack.c.h.b16 %v141
  %v1556 = vunpack.c.l.b16 %v142
  %v1557 = vunpack.c.h.b16 %v142
  %v1558 = vunpack.c.l.b16 %v143
  %v1559 = vunpack.c.h.b16 %v143
  %v1560 = vunpack.c.l.b16 %v144
  %v1561 = vunpack.c.h.b16 %v144
  %v1562 = vunpack.c.l.b16 %v145
  %v1563 = vunpack.c.h.b16 %v145
  %v1564 = vunpack.c.l.b16 %v146
  %v1565 = vunpack.c.h.b16 %v146
  %v1566 = vunpack.c.l.b16 %v147
  %v1567 = vunpack.c.h.b16 %v147
  %v1568 = vunpack.c.l.b16 %v148
  %v1569 = vunpack.c.h.b16 %v148
  %v1570 = vunpack.c.l.b16 %v149
  %v1571 = vunpack.c.h.b16 %v149
  %v1572 = vunpack.c.l.b16 %v150
  %v1573 = vunpack.c.h.b16 %v150
  %v1574 = vunpack.c.l.b16 %v151
  %v1575 = vunpack.c.h.b16 %v151
  %v1576 = vunpack.c.l.b16 %v152
  %v1577 = vunpack.c.h.b16 %v152
  %v1578 = vunpack.c.l.b16 %v153
  %v1579 = vunpack.c.h.b16 %v153
  %v1580 = vunpack.c.l.b16 %v154
  %v1581 = vunpack.c.h.b16 %v154
  %v1582 = vunpack.c.l.b16 %v155
  %v1583 = vunpack.c.h.b16 %v155
  %v1584 = vunpack.c.l.b16 %v156
  %v1585 = vunpack.c.h.b16 %v156
  %v1586 = vunpack.c.l.b16 %v157
  %v1587 = vunpack.c.h.b16 %v157
  %v1588 = vunpack.c.l.b16 %v158
  %v1589 = vunpack.c.h.b16 %v158
  %v1590 = vunpack.c.l.b16 %v159
  %v1591 = vunpack.c.h.b16 %v159
  %v1592 = vunpack.c.l.b16 %v160
  %v1593 = vunpack.c.h.b16 %v160
  %v1594 = vunpack.c.l.b16 %v161
  %v1595 = vunpack.c.h.b16 %v161
  %v1596 = vunpack.c.l.b16 %v162
  %v1597 = vunpack.c.h.b16 %v162
  %v1598 = vunpack.c.l.b16 %v163
  %v1599 = vunpack.c.h.b16 %v163
  %v1600 = vunpack.c.l.b16 %v164
  %v1601 = vunpack.c.h.b16 %v164
  %v1602 = vunpack.c.l.b16 %v165
  %v1603 = vunpack.c.h.b16 %v165
  %v1604 = vunpack.c.l.b16 %v166
  %v1605 = vunpack.c.h.b16 %v166
  %v1606 = vunpack.c.l.b16 %v167
  %v1607 = vunpack.c.h.b16 %v167
  %v1608 = vunpack.c.l.b16 %v168
  %v1609 = vunpack.c.h.b16 %v168
  %v1610 = vunpack.c.l.b16 %v169
  %v1611 = vunpack.c.h.b16 %v169
  %v1612 = vunpack.c.l.b16 %v170
  %v1613 = vunpack.c.h.b16 %v170
  %v1614 = vunpack.c.l.b16 %v171
  %v1615 = vunpack.c.h.b16 %v171
  %v1616 = vunpack.c.l.b16 %v172
  %v1617 = vunpack.c.h.b16 %v172
  %v1618 = vunpack.c.l.b16 %v173
  %v1619 = vunpack.c.h.b16 %v173
  %v1620 = vunpack.c.l.b16 %v174
  %v1621 = vunpack.c.h.b16 %v174
  %v1622 = vunpack.c.l.b16 %v175
  %v1623 = vunpack.c.h.b16 %v175
  %v1624 = vunpack.c.l.b16 %v176
  %v1625 = vunpack.c.h.b16 %v176
  %v1626 = vunpack.c.l.b16 %v177
  %v1627 = vunpack.c.h.b16 %v177
  %v1628 = vunpack.c.l.b16 %v178
  %v1629 = vunpack.c.h.b16 %v178
  %v1630 = vunpack.c.l.b16 %v179
  %v1631 = vunpack.c.h.b16 %v179
  %v1632 = vunpack.c.l.b16 %v180
  %v1633 = vunpack.c.h.b16 %v180
  %v1634 = vunpack.c.l.b16 %v181
  %v1635 = vunpack.c.h.b16 %v181
  %v1636 = vunpack.c.l.b16 %v182
  %v1637 = vunpack.c.h.b16 %v182
  %v1638 = vunpack.c.l.b16 %v183
  %v1639 = vunpack.c.h.b16 %v183
  %v1640 = vunpack.c.l.b16 %v184
  %v1641 = vunpack.c.h.b16 %v184
  %v1642 = vunpack.c.l.b16 %v185
  %v1643 = vunpack.c.h.b16 %v185
  %v1644 = vunpack.c.l.b16 %v186
  %v1645 = vunpack.c.h.b16 %v186
  %v1646 = vunpack.c.l.b16 %v187
  %v1647 = vunpack.c.h.b16 %v187
  %v1648 = vunpack.c.l.b16 %v188
  %v1649 = vunpack.c.h.b16 %v188
  %v1650 = vunpack.c.l.b16 %v189
  %v1651 = vunpack.c.h.b16 %v189
  %v1652 = vunpack.c.l.b16 %v190
  %v1653 = vunpack.c.h.b16 %v190
  %v1654 = vunpack.c.l.b16 %v191
  %v1655 = vunpack.c.h.b16 %v191
  %v1656 = vunpack.c.l.b16 %v192
  %v1657 = vunpack.c.h.b16 %v192
  %v1658 = vunpack.c.l.b16 %v193
  %v1659 = vunpack.c.h.b16 %v193
  %v1660 = vunpack.c.l.b16 %v194
  %v1661 = vunpack.c.h.b16 %v194
  %v1662 = vunpack.c.l.b16 %v195
  %v1663 = vunpack.c.h.b16 %v195
  %v1664 = vunpack.c.l.b16 %v196
  %v1665 = vunpack.c.h.b16 %v196
  %v1666 = vunpack.c.l.b16 %v197
  %v1667 = vunpack.c.h.b16 %v197
  %v1668 = vunpack.c.l.b16 %v198
  %v1669 = vunpack.c.h.b16 %v198
  %v1670 = vunpack.c.l.b16 %v199
  %v1671 = vunpack.c.h.b16 %v199
  %v1672 = vunpack.c.l.b16 %v200
  %v1673 = vunpack.c.h.b16 %v200
  %v1674 = vunpack.c.l.b16 %v201
  %v1675 = vunpack.c.h.b16 %v201
  %v1676 = vunpack.c.l.b16 %v202
  %v1677 = vunpack.c.h.b16 %v202
  %v1678 = vunpack.c.l.b16 %v203
  %v1679 = vunpack.c.h.b16 %v203
  %v1680 = vunpack.c.l.b16 %v204
  %v1681 = vunpack.c.h.b16 %v204
  %v1682 = vunpack.c.l.b16 %v205
  %v1683 = vunpack.c.h.b16 %v205
  %v1684 = vunpack.c.l.b16 %v206
  %v1685 = vunpack.c.h.b16 %v206
  %v1686 = vunpack.c.l.b16 %v207
  %v1687 = vunpack.c.h.b16 %v207
  %v1688 = vunpack.c.l.b16 %v208
  %v1689 = vunpack.c.h.b16 %v208
  %v1690 = vunpack.c.l.b16 %v209
  %v1691 = vunpack.c.h.b16 %v209
  %v1692 = vunpack.c.l.b16 %v210
  %v1693 = vunpack.c.h.b16 %v210
  %v1694 = vunpack.c.l.b16 %v211
  %v1695 = vunpack.c.h.b16 %v211
  %v1696 = vunpack.c.l.b16 %v212
  %v1697 = vunpack.c.h.b16 %v212
  %v1698 = vunpack.c.l.b16 %v213
  %v1699 = vunpack.c.h.b16 %v213
  %v1700 = vunpack.c.l.b16 %v214
  %v1701 = vunpack.c.h.b16 %v214
  %v1702 = vunpack.c.l.b16 %v215
  %v1703 = vunpack.c.h.b16 %v215
  %v1704 = vunpack.c.l.b16 %v216
  %v1705 = vunpack.c.h.b16 %v216
  %v1706 = vunpack.c.l.b16 %v217
  %v1707 = vunpack.c.h.b16 %v217
  %v1708 = vunpack.c.l.b16 %v218
  %v1709 = vunpack.c.h.b16 %v218
  %v1710 = vunpack.c.l.b16 %v219
  %v1711 = vunpack.c.h.b16 %v219
  %v1712 = vunpack.c.l.b16 %v220
  %v1713 = vunpack.c.h.b16 %v220
  %v1714 = vunpack.c.l.b16 %v221
  %v1715 = vunpack.c.h.b16 %v221
  %v1716 = vunpack.c.l.b16 %v222
  %v1717 = vunpack.c.h.b16 %v222
  %v1718 = vunpack.c.l.b16 %v223
  %v1719 = vunpack.c.h.b16 %v223
  %v1720 = vunpack.c.l.b16 %v224
  %v1721 = vunpack.c.h.b16 %v224
  %v1722 = vunpack.c.l.b16 %v225
  %v1723 = vunpack.c.h.b16 %v225
  %v1724 = vunpack.c.l.b16 %v226
  %v1725 = vunpack.c.h.b16 %v226
  %v1726 = vunpack.c.l.b16 %v227
  %v1727 = vunpack.c.h.b16 %v227
  %v1728 = vunpack.c.l.b16 %v228
  %v1729 = vunpack.c.h.b16 %v228
  %v1730 = vunpack.c.l.b16 %v229
  %v1731 = vunpack.c.h.b16 %v229
  %v1732 = vunpack.c.l.b16 %v230
  %v1733 = vunpack.c.h.b16 %v230
  %v1734 = vunpack.c.l.b16 %v231
  %v1735 = vunpack.c.h.b16 %v231
  %v1736 = vunpack.c.l.b16 %v232
  %v1737 = vunpack.c.h.b16 %v232
  %v1738 = vunpack.c.l.b16 %v233
  %v1739 = vunpack.c.h.b16 %v233
  %v1740 = vunpack.c.l.b16 %v234
  %v1741 = vunpack.c.h.b16 %v234
  %v1742 = vunpack.c.l.b16 %v235
  %v1743 = vunpack.c.h.b16 %v235
  %v1744 = vunpack.c.l.b16 %v236
  %v1745 = vunpack.c.h.b16 %v236
  %v1746 = vunpack.c.l.b16 %v237
  %v1747 = vunpack.c.h.b16 %v237
  %v1748 = vunpack.c.l.b16 %v238
  %v1749 = vunpack.c.h.b16 %v238
  %v1750 = vunpack.c.l.b16 %v239
  %v1751 = vunpack.c.h.b16 %v239
  %v1752 = vunpack.c.l.b16 %v240
  %v1753 = vunpack.c.h.b16 %v240
  %v1754 = vunpack.c.l.b16 %v241
  %v1755 = vunpack.c.h.b16 %v241
  %v1756 = vunpack.c.l.b16 %v242
  %v1757 = vunpack.c.h.b16 %v242
  %v1758 = vunpack.c.l.b16 %v243
  %v1759 = vunpack.c.h.b16 %v243
  %v1760 = vunpack.c.l.b16 %v244
  %v1761 = vunpack.c.h.b16 %v244
  %v1762 = vunpack.c.l.b16 %v245
  %v1763 = vunpack.c.h.b16 %v245
  %v1764 = vunpack.c.l.b16 %v246
  %v1765 = vunpack.c.h.b16 %v246
  %v1766 = vunpack.c.l.b16 %v247
  %v1767 = vunpack.c.h.b16 %v247
  %v1768 = vunpack.c.l.b16 %v248
  %v1769 = vunpack.c.h.b16 %v248
  %v1770 = vunpack.c.l.b16 %v249
  %v1771 = vunpack.c.h.b16 %v249
  %v1772 = vunpack.c.l.b16 %v250
  %v1773 = vunpack.c.h.b16 %v250
  %v1774 = vunpack.c.l.b16 %v251
  %v1775 = vunpack.c.h.b16 %v251
  %v1776 = vunpack.c.l.b16 %v252
  %v1777 = vunpack.c.h.b16 %v252
  %v1778 = vunpack.c.l.b16 %v253
  %v1779 = vunpack.c.h.b16 %v253
  %v1780 = vunpack.c.l.b16 %v254
  %v1781 = vunpack.c.h.b16 %v254
  %v1782 = vunpack.c.l.b16 %v255
  %v1783 = vunpack.c.h.b16 %v255
  %v1784 = vunpack.c.l.b16 %v256
  %v1785 = vunpack.c.h.b16 %v256
  %v1786 = vunpack.c.l.b16 %v257
  %v1787 = vunpack.c.h.b16 %v257
  %v1788 = vunpack.c.l.b16 %v258
  %v1789 = vunpack.c.h.b16 %v258
  %v1790 = vunpack.c.l.b16 %v259
  %v1791 = vunpack.c.h.b16 %v259
  %v1792 = vunpack.c.l.b16 %v260
  %v1793 = vunpack.c.h.b16 %v260
  %v1794 = vunpack.c.l.b16 %v261
  %v1795 = vunpack.c.h.b16 %v261
  %v1796 = vunpack.c.l.b16 %v262
  %v1797 = vunpack.c.h.b16 %v262
  %v1798 = vunpack.c.l.b16 %v263
  %v1799 = vunpack.c.h.b16 %v263
  %v1800 = vunpack.c.l.b16 %v264
  %v1801 = vunpack.c.h.b16 %v264
  %v1802 = vunpack.c.l.b16 %v265
  %v1803 = vunpack.c.h.b16 %v265
  %v1804 = vunpack.c.l.b16 %v266
  %v1805 = vunpack.c.h.b16 %v266
  %v1806 = vunpack.c.l.b16 %v267
  %v1807 = vunpack.c.h.b16 %v267
  %v1808 = vunpack.c.l.b16 %v268
  %v1809 = vunpack.c.h.b16 %v268
  %v1810 = vunpack.c.l.b16 %v269
  %v1811 = vunpack.c.h.b16 %v269
  %v1812 = vunpack.c.l.b16 %v270
  %v1813 = vunpack.c.h.b16 %v270
  %v1814 = vunpack.c.l.b16 %v271
  %v1815 = vunpack.c.h.b16 %v271
  %v1816 = vunpack.c.l.b16 %v272
  %v1817 = vunpack.c.h.b16 %v272
  %v1818 = vunpack.c.l.b16 %v273
  %v1819 = vunpack.c.h.b16 %v273
  %v1820 = vunpack.c.l.b16 %v274
  %v1821 = vunpack.c.h.b16 %v274
  %v1822 = vunpack.c.l.b16 %v275
  %v1823 = vunpack.c.h.b16 %v275
  %v1824 = vunpack.c.l.b16 %v276
  %v1825 = vunpack.c.h.b16 %v276
  %v1826 = vunpack.c.l.b16 %v277
  %v1827 = vunpack.c.h.b16 %v277
  %v1828 = vunpack.c.l.b16 %v278
  %v1829 = vunpack.c.h.b16 %v278
  %v1830 = vunpack.c.l.b16 %v279
  %v1831 = vunpack.c.h.b16 %v279
  %v1832 = vunpack.c.l.b16 %v280
  %v1833 = vunpack.c.h.b16 %v280
  %v1834 = vunpack.c.l.b16 %v281
  %v1835 = vunpack.c.h.b16 %v281
  %v1836 = vunpack.c.l.b16 %v282
  %v1837 = vunpack.c.h.b16 %v282
  %v1838 = vunpack.c.l.b16 %v283
  %v1839 = vunpack.c.h.b16 %v283
  %v1840 = vunpack.c.l.b16 %v284
  %v1841 = vunpack.c.h.b16 %v284
  %v1842 = vunpack.c.l.b16 %v285
  %v1843 = vunpack.c.h.b16 %v285
  %v1844 = vunpack.c.l.b16 %v286
  %v1845 = vunpack.c.h.b16 %v286
  %v1846 = vunpack.c.l.b16 %v287
  %v1847 = vunpack.c.h.b16 %v287
  %v1848 = vunpack.c.l.b16 %v288
  %v1849 = vunpack.c.h.b16 %v288
  %v1850 = vunpack.c.l.b16 %v289
  %v1851 = vunpack.c.h.b16 %v289
  %v1852 = vunpack.c.l.b16 %v290
  %v1853 = vunpack.c.h.b16 %v290
  %v1854 = vunpack.c.l.b16 %v291
  %v1855 = vunpack.c.h.b16 %v291
  %v1856 = vunpack.c.l.b16 %v292
  %v1857 = vunpack.c.h.b16 %v292
  %v1858 = vunpack.c.l.b16 %v293
  %v1859 = vunpack.c.h.b16 %v293
  %v1860 = vunpack.c.l.b16 %v294
  %v1861 = vunpack.c.h.b16 %v294
  %v1862 = vunpack.c.l.b16 %v295
  %v1863 = vunpack.c.h.b16 %v295
  %v1864 = vunpack.c.l.b16 %v296
  %v1865 = vunpack.c.h.b16 %v296
  %v1866 = vunpack.c.l.b16 %v297
  %v1867 = vunpack.c.h.b16 %v297
  %v1868 = vunpack.c.l.b16 %v298
  %v1869 = vunpack.c.h.b16 %v298
  %v1870 = vunpack.c.l.b16 %v299
  %v1871 = vunpack.c.h.b16 %v299
  %v1872 = vunpack.c.l.b16 %v300
  %v1873 = vunpack.c.h.b16 %v300
  %v1874 = vunpack.c.l.b16 %v301
  %v1875 = vunpack.c.h.b16 %v301
  %v1876 = vunpack.c.l.b16 %v302
  %v1877 = vunpack.c.h.b16 %v302
  %v1878 = vunpack.c.l.b16 %v303
  %v1879 = vunpack.c.h.b16 %v303
  %v1880 = vunpack.c.l.b16 %v304
  %v1881 = vunpack.c.h.b16 %v304
  %v1882 = vunpack.c.l.b16 %v305
  %v1883 = vunpack.c.h.b16 %v305
  %v1884 = vunpack.c.l.b16 %v306
  %v1885 = vunpack.c.h.b16 %v306
  %v1886 = vunpack.c.l.b16 %v307
  %v1887 = vunpack.c.h.b16 %v307
  %v1888 = vunpack.c.l.b16 %v308
  %v1889 = vunpack.c.h.b16 %v308
  %v1890 = vunpack.c.l.b16 %v309
  %v1891 = vunpack.c.h.b16 %v309
  %v1892 = vunpack.c.l.b16 %v310
  %v1893 = vunpack.c.h.b16 %v310
  %v1894 = vunpack.c.l.b16 %v311
  %v1895 = vunpack.c.h.b16 %v311
  %v1896 = vunpack.c.l.b16 %v312
  %v1897 = vunpack.c.h.b16 %v312
  %v1898 = vunpack.c.l.b16 %v313
  %v1899 = vunpack.c.h.b16 %v313
  %v1900 = vunpack.c.l.b16 %v314
  %v1901 = vunpack.c.h.b16 %v314
  %v1902 = vunpack.c.l.b16 %v315
  %v1903 = vunpack.c.h.b16 %v315
  %v1904 = vunpack.c.l.b16 %v316
  %v1905 = vunpack.c.h.b16 %v316
  %v1906 = vunpack.c.l.b16 %v317
  %v1907 = vunpack.c.h.b16 %v317
  %v1908 = vunpack.c.l.b16 %v318
  %v1909 = vunpack.c.h.b16 %v318
  %v1910 = vunpack.c.l.b16 %v319
  %v1911 = vunpack.c.h.b16 %v319
  %v1912 = vunpack.c.l.b16 %v320
  %v1913 = vunpack.c.h.b16 %v320
  %v1914 = vunpack.c.l.b16 %v321
  %v1915 = vunpack.c.h.b16 %v321
  %v1916 = vunpack.c.l.b16 %v322
  %v1917 = vunpack.c.h.b16 %v322
  %v1918 = vunpack.c.l.b16 %v323
  %v1919 = vunpack.c.h.b16 %v323
  %v1920 = vunpack.c.l.b16 %v324
  %v1921 = vunpack.c.h.b16 %v324
  %v1922 = vunpack.c.l.b16 %v325
  %v1923 = vunpack.c.h.b16 %v325
  %v1924 = vunpack.c.l.b16 %v326
  %v1925 = vunpack.c.h.b16 %v326
  %v1926 = vunpack.c.l.b16 %v327
  %v1927 = vunpack.c.h.b16 %v327
  %v1928 = vunpack.c.l.b16 %v328
  %v1929 = vunpack.c.h.b16 %v328
  %v1930 = vunpack.c.l.b16 %v329
  %v1931 = vunpack.c.h.b16 %v329
  %v1932 = vunpack.c.l.b16 %v330
  %v1933 = vunpack.c.h.b16 %v330
  %v1934 = vunpack.c.l.b16 %v331
  %v1935 = vunpack.c.h.b16 %v331
  %v1936 = vunpack.c.l.b16 %v332
  %v1937 = vunpack.c.h.b16 %v332
  %v1938 = vunpack.c.l.b16 %v333
  %v1939 = vunpack.c.h.b16 %v333
  %v1940 = vunpack.c.l.b16 %v334
  %v1941 = vunpack.c.h.b16 %v334
  %v1942 = vunpack.c.l.b16 %v335
  %v1943 = vunpack.c.h.b16 %v335
  %v1944 = vunpack.c.l.b16 %v336
  %v1945 = vunpack.c.h.b16 %v336
  %v1946 = vunpack.c.l.b16 %v337
  %v1947 = vunpack.c.h.b16 %v337
  %v1948 = vunpack.c.l.b16 %v338
  %v1949 = vunpack.c.h.b16 %v338
  %v1950 = vunpack.c.l.b16 %v339
  %v1951 = vunpack.c.h.b16 %v339
  %v1952 = vunpack.c.l.b16 %v340
  %v1953 = vunpack.c.h.b16 %v340
  %v1954 = vunpack.c.l.b16 %v341
  %v1955 = vunpack.c.h.b16 %v341
  %v1956 = vunpack.c.l.b16 %v342
  %v1957 = vunpack.c.h.b16 %v342
  %v1958 = vunpack.c.l.b16 %v343
  %v1959 = vunpack.c.h.b16 %v343
  %v1960 = vunpack.c.l.b16 %v344
  %v1961 = vunpack.c.h.b16 %v344
  %v1962 = vunpack.c.l.b16 %v345
  %v1963 = vunpack.c.h.b16 %v345
  %v1964 = vunpack.c.l.b16 %v346
  %v1965 = vunpack.c.h.b16 %v346
  %v1966 = vunpack.c.l.b16 %v347
  %v1967 = vunpack.c.h.b16 %v347
  %v1968 = vunpack.c.l.b16 %v348
  %v1969 = vunpack.c.h.b16 %v348
  %v1970 = vunpack.c.l.b16 %v349
  %v1971 = vunpack.c.h.b16 %v349
  %v1972 = vunpack.c.l.b16 %v350
  %v1973 = vunpack.c.h.b16 %v350
  %v1974 = vunpack.c.l.b16 %v351
  %v1975 = vunpack.c.h.b16 %v351
  %v1976 = vunpack.c.l.b16 %v352
  %v1977 = vunpack.c.h.b16 %v352
  %v1978 = vunpack.c.l.b16 %v353
  %v1979 = vunpack.c.h.b16 %v353
  %v1980 = vunpack.c.l.b16 %v354
  %v1981 = vunpack.c.h.b16 %v354
  %v1982 = vunpack.c.l.b16 %v355
  %v1983 = vunpack.c.h.b16 %v355
  %v1984 = vunpack.c.l.b16 %v356
  %v1985 = vunpack.c.h.b16 %v356
  %v1986 = vunpack.c.l.b16 %v357
  %v1987 = vunpack.c.h.b16 %v357
  %v1988 = vunpack.c.l.b16 %v358
  %v1989 = vunpack.c.h.b16 %v358
  %v1990 = vunpack.c.l.b16 %v359
  %v1991 = vunpack.c.h.b16 %v359
  %v1992 = vunpack.c.l.b16 %v360
  %v1993 = vunpack.c.h.b16 %v360
  %v1994 = vunpack.c.l.b16 %v361
  %v1995 = vunpack.c.h.b16 %v361
  %v1996 = vunpack.c.l.b16 %v362
  %v1997 = vunpack.c.h.b16 %v362
  %v1998 = vunpack.c.l.b16 %v363
  %v1999 = vunpack.c.h.b16 %v363
  %v2000 = vunpack.c.l.b16 %v364
  %v2001 = vunpack.c.h.b16 %v364
  %v2002 = vunpack.c.l.b16 %v365
  %v2003 = vunpack.c.h.b16 %v365
  %v2004 = vunpack.c.l.b16 %v366
  %v2005 = vunpack.c.h.b16 %v366
  %v2006 = vunpack.c.l.b16 %v367
  %v2007 = vunpack.c.h.b16 %v367
  %v2008 = vunpack.c.l.b16 %v368
  %v2009 = vunpack.c.h.b16 %v368
  %v2010 = vunpack.c.l.b16 %v369
  %v2011 = vunpack.c.h.b16 %v369
  %v2012 = vunpack.c.l.b16 %v370
  %v2013 = vunpack.c.h.b16 %v370
  %v2014 = vunpack.c.l.b16 %v371
  %v2015 = vunpack.c.h.b16 %v371
  %v2016 = vunpack.c.l.b16 %v372
  %v2017 = vunpack.c.h.b16 %v372
  %v2018 = vunpack.c.l.b16 %v373
  %v2019 = vunpack.c.h.b16 %v373
  %v2020 = vunpack.c.l.b16 %v374
  %v2021 = vunpack.c.h.b16 %v374
  %v2022 = vunpack.c.l.b16 %v375
  %v2023 = vunpack.c.h.b16 %v375
  %v2024 = vunpack.c.l.b16 %v376
  %v2025 = vunpack.c.h.b16 %v376
  %v2026 = vunpack.c.l.b16 %v377
  %v2027 = vunpack.c.h.b16 %v377
  %v2028 = vunpack.c.l.b16 %v378
  %v2029 = vunpack.c.h.b16 %v378
  %v2030 = vunpack.c.l.b16 %v379
  %v2031 = vunpack.c.h.b16 %v379
  %v2032 = vunpack.c.l.b16 %v380
  %v2033 = vunpack.c.h.b16 %v380
  %v2034 = vunpack.c.l.b16 %v381
  %v2035 = vunpack.c.h.b16 %v381
  %v2036 = vunpack.c.l.b16 %v382
  %v2037 = vunpack.c.h.b16 %v382
  %v2038 = vunpack.c.l.b16 %v383
  %v2039 = vunpack.c.h.b16 %v383
  %v2040 = vunpack.c.l.b16 %v384
  %v2041 = vunpack.c.h.b16 %v384
  %v2042 = vunpack.c.l.b16 %v385
  %v2043 = vunpack.c.h.b16 %v385
  %v2044 = vunpack.c.l.b16 %v386
  %v2045 = vunpack.c.h.b16 %v386
  %v2046 = vunpack.c.l.b16 %v387
  %v2047 = vunpack.c.h.b16 %v387
  %v2048 = vunpack.c.l.b16 %v388
  %v2049 = vunpack.c.h.b16 %v388
  %v2050 = vunpack.c.l.b16 %v389
  %v2051 = vunpack.c.h.b16 %v389
  %v2052 = vunpack.c.l.b16 %v390
  %v2053 = vunpack.c.h.b16 %v390
  %v2054 = vunpack.c.l.b16 %v391
  %v2055 = vunpack.c.h.b16 %v391
  %v2056 = vunpack.c.l.b16 %v392
  %v2057 = vunpack.c.h.b16 %v392
  %v2058 = vunpack.c.l.b16 %v393
  %v2059 = vunpack.c.h.b16 %v393
  %v2060 = vunpack.c.l.b16 %v394
  %v2061 = vunpack.c.h.b16 %v394
  %v2062 = vunpack.c.l.b16 %v395
  %v2063 = vunpack.c.h.b16 %v395
  %v2064 = vunpack.c.l.b16 %v396
  %v2065 = vunpack.c.h.b16 %v396
  %v2066 = vunpack.c.l.b16 %v397
  %v2067 = vunpack.c.h.b16 %v397
  %v2068 = vunpack.c.l.b16 %v398
  %v2069 = vunpack.c.h.b16 %v398
  %v2070 = vunpack.c.l.b16 %v399
  %v2071 = vunpack.c.h.b16 %v399
  %v2072 = vunpack.c.l.b16 %v400
  %v2073 = vunpack.c.h.b16 %v400
  %v2074 = vunpack.c.l.b16 %v401
  %v2075 = vunpack.c.h.b16 %v401
  %v2076 = vunpack.c.l.b16 %v402
  %v2077 = vunpack.c.h.b16 %v402
  %v2078 = vunpack.c.l.b16 %v403
  %v2079 = vunpack.c.h.b16 %v403
  %v2080 = vunpack.c.l.b16 %v404
  %v2081 = vunpack.c.h.b16 %v404
  %v2082 = vunpack.c.l.b16 %v405
  %v2083 = vunpack.c.h.b16 %v405
  %v2084 = vunpack.c.l.b16 %v406
  %v2085 = vunpack.c.h.b16 %v406
  %v2086 = vunpack.c.l.b16 %v407
  %v2087 = vunpack.c.h.b16 %v407
  %v2088 = vunpack.c.l.b16 %v408
  %v2089 = vunpack.c.h.b16 %v408
  %v2090 = vunpack.c.l.b16 %v409
  %v2091 = vunpack.c.h.b16 %v409
  %v2092 = vunpack.c.l.b16 %v410
  %v2093 = vunpack.c.h.b16 %v410
  %v2094 = vunpack.c.l.b16 %v411
  %v2095 = vunpack.c.h.b16 %v411
  %v2096 = vunpack.c.l.b16 %v412
  %v2097 = vunpack.c.h.b16 %v412
  %v2098 = vunpack.c.l.b16 %v413
  %v2099 = vunpack.c.h.b16 %v413
  %v2100 = vunpack.c.l.b16 %v414
  %v2101 = vunpack.c.h.b16 %v414
  %v2102 = vunpack.c.l.b16 %v415
  %v2103 = vunpack.c.h.b16 %v415
  %v2104 = vunpack.c.l.b16 %v416
  %v2105 = vunpack.c.h.b16 %v416
  %v2106 = vunpack.c.l.b16 %v417
  %v2107 = vunpack.c.h.b16 %v417
  %v2108 = vunpack.c.l.b16 %v418
  %v2109 = vunpack.c.h.b16 %v418
  %v2110 = vunpack.c.l.b16 %v419
  %v2111 = vunpack.c.h.b16 %v419
  %v2112 = vunpack.c.l.b16 %v420
  %v2113 = vunpack.c.h.b16 %v420
  %v2114 = vunpack.c.l.b16 %v421
  %v2115 = vunpack.c.h.b16 %v421
  %v2116 = vunpack.c.l.b16 %v422
  %v2117 = vunpack.c.h.b16 %v422
  %v2118 = vunpack.c.l.b16 %v423
  %v2119 = vunpack.c.h.b16 %v423
  %v2120 = vunpack.c.l.b16 %v424
  %v2121 = vunpack.c.h.b16 %v424
  %v2122 = vunpack.c.l.b16 %v425
  %v2123 = vunpack.c.h.b16 %v425
  %v2124 = vunpack.c.l.b16 %v426
  %v2125 = vunpack.c.h.b16 %v426
  %v2126 = vunpack.c.l.b16 %v427
  %v2127 = vunpack.c.h.b16 %v427
  %v2128 = vunpack.c.l.b16 %v428
  %v2129 = vunpack.c.h.b16 %v428
  %v2130 = vunpack.c.l.b16 %v429
  %v2131 = vunpack.c.h.b16 %v429
  %v2132 = vunpack.c.l.b16 %v430
  %v2133 = vunpack.c.h.b16 %v430
  %v2134 = vunpack.c.l.b16 %v431
  %v2135 = vunpack.c.h.b16 %v431
  %v2136 = vunpack.c.l.b16 %v432
  %v2137 = vunpack.c.h.b16 %v432
  %v2138 = vunpack.c.l.b16 %v433
  %v2139 = vunpack.c.h.b16 %v433
  %v2140 = vunpack.c.l.b16 %v434
  %v2141 = vunpack.c.h.b16 %v434
  %v2142 = vunpack.c.l.b16 %v435
  %v2143 = vunpack.c.h.b16 %v435
  %v2144 = vunpack.c.l.b16 %v436
  %v2145 = vunpack.c.h.b16 %v436
  %v2146 = vunpack.c.l.b16 %v437
  %v2147 = vunpack.c.h.b16 %v437
  %v2148 = vunpack.c.l.b16 %v438
  %v2149 = vunpack.c.h.b16 %v438
  %v2150 = vunpack.c.l.b16 %v439
  %v2151 = vunpack.c.h.b16 %v439
  %v2152 = vunpack.c.l.b16 %v440
  %v2153 = vunpack.c.h.b16 %v440
  %v2154 = vunpack.c.l.b16 %v441
  %v2155 = vunpack.c.h.b16 %v441
  %v2156 = vunpack.c.l.b16 %v442
  %v2157 = vunpack.c.h.b16 %v442
  %v2158 = vunpack.c.l.b16 %v443
  %v2159 = vunpack.c.h.b16 %v443
  %v2160 = vunpack.c.l.b16 %v444
  %v2161 = vunpack.c.h.b16 %v444
  %v2162 = vunpack.c.l.b16 %v445
  %v2163 = vunpack.c.h.b16 %v445
  %v2164 = vunpack.c.l.b16 %v446
  %v2165 = vunpack.c.h.b16 %v446
  %v2166 = vunpack.c.l.b16 %v447
  %v2167 = vunpack.c.h.b16 %v447
  %v2168 = vunpack.c.l.b16 %v448
  %v2169 = vunpack.c.h.b16 %v448
  %v2170 = vunpack.c.l.b16 %v449
  %v2171 = vunpack.c.h.b16 %v449
  %v2172 = vunpack.c.l.b16 %v450
  %v2173 = vunpack.c.h.b16 %v450
  %v2174 = vunpack.c.l.b16 %v451
  %v2175 = vunpack.c.h.b16 %v451
  %v2176 = vunpack.c.l.b16 %v452
  %v2177 = vunpack.c.h.b16 %v452
  %v2178 = vunpack.c.l.b16 %v453
  %v2179 = vunpack.c.h.b16 %v453
  %v2180 = vunpack.c.l.b16 %v454
  %v2181 = vunpack.c.h.b16 %v454
  %v2182 = vunpack.c.l.b16 %v455
  %v2183 = vunpack.c.h.b16 %v455
  %v2184 = vunpack.c.l.b16 %v456
  %v2185 = vunpack.c.h.b16 %v456
  %v2186 = vunpack.c.l.b16 %v457
  %v2187 = vunpack.c.h.b16 %v457
  %v2188 = vunpack.c.l.b16 %v458
  %v2189 = vunpack.c.h.b16 %v458
  %v2190 = vunpack.c.l.b16 %v459
  %v2191 = vunpack.c.h.b16 %v459
  %v2192 = vunpack.c.l.b16 %v460
  %v2193 = vunpack.c.h.b16 %v460
  %v2194 = vunpack.c.l.b16 %v461
  %v2195 = vunpack.c.h.b16 %v461
  %v2196 = vunpack.c.l.b16 %v462
  %v2197 = vunpack.c.h.b16 %v462
  %v2198 = vunpack.c.l.b16 %v463
  %v2199 = vunpack.c.h.b16 %v463
  %v2200 = vunpack.c.l.b16 %v464
  %v2201 = vunpack.c.h.b16 %v464
  %v2202 = vunpack.c.l.b16 %v465
  %v2203 = vunpack.c.h.b16 %v465
  %v2204 = vunpack.c.l.b16 %v466
  %v2205 = vunpack.c.h.b16 %v466
  %v2206 = vunpack.c.l.b16 %v467
  %v2207 = vunpack.c.h.b16 %v467
  %v2208 = vunpack.c.l.b16 %v468
  %v2209 = vunpack.c.h.b16 %v468
  %v2210 = vunpack.c.l.b16 %v469
  %v2211 = vunpack.c.h.b16 %v469
  %v2212 = vunpack.c.l.b16 %v470
  %v2213 = vunpack.c.h.b16 %v470
  %v2214 = vunpack.c.l.b16 %v471
  %v2215 = vunpack.c.h.b16 %v471
  %v2216 = vunpack.c.l.b16 %v472
  %v2217 = vunpack.c.h.b16 %v472
  %v2218 = vunpack.c.l.b16 %v473
  %v2219 = vunpack.c.h.b16 %v473
  %v2220 = vunpack.c.l.b16 %v474
  %v2221 = vunpack.c.h.b16 %v474
  %v2222 = vunpack.c.l.b16 %v475
  %v2223 = vunpack.c.h.b16 %v475
  %v2224 = vunpack.c.l.b16 %v476
  %v2225 = vunpack.c.h.b16 %v476
  %v2226 = vunpack.c.l.b16 %v477
  %v2227 = vunpack.c.h.b16 %v477
  %v2228 = vunpack.c.l.b16 %v478
  %v2229 = vunpack.c.h.b16 %v478
  %v2230 = vunpack.c.l.b16 %v479
  %v2231 = vunpack.c.h.b16 %v479
  %v2232 = vunpack.c.l.b16 %v480
  %v2233 = vunpack.c.h.b16 %v480
  %v2234 = vunpack.c.l.b16 %v481
  %v2235 = vunpack.c.h.b16 %v481
  %v2236 = vunpack.c.l.b16 %v482
  %v2237 = vunpack.c.h.b16 %v482
  %v2238 = vunpack.c.l.b16 %v483
  %v2239 = vunpack.c.h.b16 %v483
  %v2240 = vunpack.c.l.b16 %v484
  %v2241 = vunpack.c.h.b16 %v484
  %v2242 = vunpack.c.l.b16 %v485
  %v2243 = vunpack.c.h.b16 %v485
  %v2244 = vunpack.c.l.b16 %v486
  %v2245 = vunpack.c.h.b16 %v486
  %v2246 = vunpack.c.l.b16 %v487
  %v2247 = vunpack.c.h.b16 %v487
  %v2248 = vunpack.c.l.b16 %v488
  %v2249 = vunpack.c.h.b16 %v488
  %v2250 = vunpack.c.l.b16 %v489
  %v2251 = vunpack.c.h.b16 %v489
  %v2252 = vunpack.c.l.b16 %v490
  %v2253 = vunpack.c.h.b16 %v490
  %v2254 = vunpack.c.l.b16 %v491
  %v2255 = vunpack.c.h.b16 %v491
  %v2256 = vunpack.c.l.b16 %v492
  %v2257 = vunpack.c.h.b16 %v492
  %v2258 = vunpack.c.l.b16 %v493
  %v2259 = vunpack.c.h.b16 %v493
  %v2260 = vunpack.c.l.b16 %v494
  %v2261 = vunpack.c.h.b16 %v494
  %v2262 = vunpack.c.l.b16 %v495
  %v2263 = vunpack.c.h.b16 %v495
  %v2264 = vunpack.c.l.b16 %v496
  %v2265 = vunpack.c.h.b16 %v496
  %v2266 = vunpack.c.l.b16 %v497
  %v2267 = vunpack.c.h.b16 %v497
  %v2268 = vunpack.c.l.b16 %v498
  %v2269 = vunpack.c.h.b16 %v498
  %v2270 = vunpack.c.l.b16 %v499
  %v2271 = vunpack.c.h.b16 %v499
  %v2272 = vunpack.c.l.b16 %v500
  %v2273 = vunpack.c.h.b16 %v500
  %v2274 = vunpack.c.l.b16 %v501
  %v2275 = vunpack.c.h.b16 %v501
  %v2276 = vunpack.c.l.b16 %v502
  %v2277 = vunpack.c.h.b16 %v502
  %v2278 = vunpack.c.l.b16 %v503
  %v2279 = vunpack.c.h.b16 %v503
  %v2280 = vunpack.c.l.b16 %v504
  %v2281 = vunpack.c.h.b16 %v504
  %v2282 = vunpack.c.l.b16 %v505
  %v2283 = vunpack.c.h.b16 %v505
  %v2284 = vunpack.c.l.b16 %v506
  %v2285 = vunpack.c.h.b16 %v506
  %v2286 = vunpack.c.l.b16 %v507
  %v2287 = vunpack.c.h.b16 %v507
  %v2288 = vunpack.c.l.b16 %v508
  %v2289 = vunpack.c.h.b16 %v508
  %v2290 = vunpack.c.l.b16 %v509
  %v2291 = vunpack.c.h.b16 %v509
  %v2292 = vunpack.c.l.b16 %v510
  %v2293 = vunpack.c.h.b16 %v510
  %v2294 = vunpack.c.l.b16 %v511
  %v2295 = vunpack.c.h.b16 %v511
  %v2296 = vunpack.c.l.b16 %v512
  %v2297 = vunpack.c.h.b16 %v512
  %v2298 = vunpack.c.l.b16 %v513
  %v2299 = vunpack.c.h.b16 %v513
  %v2300 = vunpack.c.l.b16 %v514
  %v2301 = vunpack.c.h.b16 %v514
  %v2302 = vunpack.c.l.b16 %v515
  %v2303 = vunpack.c.h.b16 %v515
  %v2304 = vunpack.c.l.b16 %v516
  %v2305 = vunpack.c.h.b16 %v516
  %v2306 = vunpack.c.l.b16 %v517
  %v2307 = vunpack.c.h.b16 %v517
  %v2308 = vunpack.c.l.b16 %v518
  %v2309 = vunpack.c.h.b16 %v518
  %v2310 = vunpack.c.l.b16 %v519
  %v2311 = vunpack.c.h.b16 %v519
  %v2312 = vunpack.c.l.b16 %v520
  %v2313 = vunpack.c.h.b16 %v520
  %v2314 = vunpack.c.l.b16 %v521
  %v2315 = vunpack.c.h.b16 %v521
  %v2316 = vunpack.c.l.b16 %v522
  %v2317 = vunpack.c.h.b16 %v522
  %v2318 = vunpack.c.l.b16 %v523
  %v2319 = vunpack.c.h.b16 %v523
  %v2320 = vunpack.c.l.b16 %v524
  %v2321 = vunpack.c.h.b16 %v524
  %v2322 = vunpack.c.l.b16 %v525
  %v2323 = vunpack.c.h.b16 %v525
  %v2324 = vunpack.c.l.b16 %v526
  %v2325 = vunpack.c.h.b16 %v526
  %v2326 = vunpack.c.l.b16 %v527
  %v2327 = vunpack.c.h.b16 %v527
  %v2328 = vunpack.c.l.b16 %v528
  %v2329 = vunpack.c.h.b16 %v528
  %v2330 = vunpack.c.l.b16 %v529
  %v2331 = vunpack.c.h.b16 %v529
  %v2332 = vunpack.c.l.b16 %v530
  %v2333 = vunpack.c.h.b16 %v530
  %v2334 = vunpack.c.l.b16 %v531
  %v2335 = vunpack.c.h.b16 %v531
  %v2336 = vunpack.c.l.b16 %v532
  %v2337 = vunpack.c.h.b16 %v532
  %v2338 = vunpack.c.l.b16 %v533
  %v2339 = vunpack.c.h.b16 %v533
  %v2340 = vunpack.c.l.b16 %v534
  %v2341 = vunpack.c.h.b16 %v534
  %v2342 = vunpack.c.l.b16 %v535
  %v2343 = vunpack.c.h.b16 %v535
  %v2344 = vunpack.c.l.b16 %v536
  %v2345 = vunpack.c.h.b16 %v536
  %v2346 = vunpack.c.l.b16 %v537
  %v2347 = vunpack.c.h.b16 %v537
  %v2348 = vunpack.c.l.b16 %v538
  %v2349 = vunpack.c.h.b16 %v538
  %v2350 = vunpack.c.l.b16 %v539
  %v2351 = vunpack.c.h.b16 %v539
  %v2352 = vunpack.c.l.b16 %v540
  %v2353 = vunpack.c.h.b16 %v540
  %v2354 = vunpack.c.l.b16 %v541
  %v2355 = vunpack.c.h.b16 %v541
  %v2356 = vunpack.c.l.b16 %v542
  %v2357 = vunpack.c.h.b16 %v542
  %v2358 = vunpack.c.l.b16 %v543
  %v2359 = vunpack.c.h.b16 %v543
  %v2360 = vunpack.c.l.b16 %v544
  %v2361 = vunpack.c.h.b16 %v544
  %v2362 = vunpack.c.l.b16 %v545
  %v2363 = vunpack.c.h.b16 %v545
  %v2364 = vunpack.c.l.b16 %v546
  %v2365 = vunpack.c.h.b16 %v546
  %v2366 = vunpack.c.l.b16 %v547
  %v2367 = vunpack.c.h.b16 %v547
  %v2368 = vunpack.c.l.b16 %v548
  %v2369 = vunpack.c.h.b16 %v548
  %v2370 = vunpack.c.l.b16 %v549
  %v2371 = vunpack.c.h.b16 %v549
  %v2372 = vunpack.c.l.b16 %v550
  %v2373 = vunpack.c.h.b16 %v550
  %v2374 = vunpack.c.l.b16 %v551
  %v2375 = vunpack.c.h.b16 %v551
  %v2376 = vunpack.c.l.b16 %v552
  %v2377 = vunpack.c.h.b16 %v552
  %v2378 = vunpack.c.l.b16 %v553
  %v2379 = vunpack.c.h.b16 %v553
  %v2380 = vunpack.c.l.b16 %v554
  %v2381 = vunpack.c.h.b16 %v554
  %v2382 = vunpack.c.l.b16 %v555
  %v2383 = vunpack.c.h.b16 %v555
  %v2384 = vunpack.c.l.b16 %v556
  %v2385 = vunpack.c.h.b16 %v556
  %v2386 = vunpack.c.l.b16 %v557
  %v2387 = vunpack.c.h.b16 %v557
  %v2388 = vunpack.c.l.b16 %v558
  %v2389 = vunpack.c.h.b16 %v558
  %v2390 = vunpack.c.l.b16 %v559
  %v2391 = vunpack.c.h.b16 %v559
  %v2392 = vunpack.c.l.b16 %v560
  %v2393 = vunpack.c.h.b16 %v560
  %v2394 = vunpack.c.l.b16 %v561
  %v2395 = vunpack.c.h.b16 %v561
  %v2396 = vunpack.c.l.b16 %v562
  %v2397 = vunpack.c.h.b16 %v562
  %v2398 = vunpack.c.l.b16 %v563
  %v2399 = vunpack.c.h.b16 %v563
  %v2400 = vunpack.c.l.b16 %v564
  %v2401 = vunpack.c.h.b16 %v564
  %v2402 = vunpack.c.l.b16 %v565
  %v2403 = vunpack.c.h.b16 %v565
  %v2404 = vunpack.c.l.b16 %v566
  %v2405 = vunpack.c.h.b16 %v566
  %v2406 = vunpack.c.l.b16 %v567
  %v2407 = vunpack.c.h.b16 %v567
  %v2408 = vunpack.c.l.b16 %v568
  %v2409 = vunpack.c.h.b16 %v568
  %v2410 = vunpack.c.l.b16 %v569
  %v2411 = vunpack.c.h.b16 %v569
  %v2412 = vunpack.c.l.b16 %v570
  %v2413 = vunpack.c.h.b16 %v570
  %v2414 = vunpack.c.l.b16 %v571
  %v2415 = vunpack.c.h.b16 %v571
  %v2416 = vunpack.c.l.b16 %v572
  %v2417 = vunpack.c.h.b16 %v572
  %v2418 = vunpack.c.l.b16 %v573
  %v2419 = vunpack.c.h.b16 %v573
  %v2420 = vunpack.c.l.b16 %v574
  %v2421 = vunpack.c.h.b16 %v574
  %v2422 = vunpack.c.l.b16 %v575
  %v2423 = vunpack.c.h.b16 %v575
  %v2424 = vunpack.c.l.b16 %v576
  %v2425 = vunpack.c.h.b16 %v576
  %v2426 = vunpack.c.l.b16 %v577
  %v2427 = vunpack.c.h.b16 %v577
  %v2428 = vunpack.c.l.b16 %v578
  %v2429 = vunpack.c.h.b16 %v578
  %v2430 = vunpack.c.l.b16 %v579
  %v2431 = vunpack.c.h.b16 %v579
  %v2432 = vunpack.c.l.b16 %v580
  %v2433 = vunpack.c.h.b16 %v580
  %v2434 = vunpack.c.l.b16 %v581
  %v2435 = vunpack.c.h.b16 %v581
  %v2436 = vunpack.c.l.b16 %v582
  %v2437 = vunpack.c.h.b16 %v582
  %v2438 = vunpack.c.l.b16 %v583
  %v2439 = vunpack.c.h.b16 %v583
  %v2440 = vunpack.c.l.b16 %v584
  %v2441 = vunpack.c.h.b16 %v584
  %v2442 = vunpack.c.l.b16 %v585
  %v2443 = vunpack.c.h.b16 %v585
  %v2444 = vunpack.c.l.b16 %v586
  %v2445 = vunpack.c.h.b16 %v586
  %v2446 = vunpack.c.l.b16 %v587
  %v2447 = vunpack.c.h.b16 %v587
  %v2448 = vunpack.c.l.b16 %v588
  %v2449 = vunpack.c.h.b16 %v588
  %v2450 = vunpack.c.l.b16 %v589
  %v2451 = vunpack.c.h.b16 %v589
  %v2452 = vunpack.c.l.b16 %v590
  %v2453 = vunpack.c.h.b16 %v590
  %v2454 = vunpack.c.l.b16 %v591
  %v2455 = vunpack.c.h.b16 %v591
  %v2456 = vunpack.c.l.b16 %v592
  %v2457 = vunpack.c.h.b16 %v592
  %v2458 = vunpack.c.l.b16 %v593
  %v2459 = vunpack.c.h.b16 %v593
  %v2460 = vunpack.c.l.b16 %v594
  %v2461 = vunpack.c.h.b16 %v594
  %v2462 = vunpack.c.l.b16 %v595
  %v2463 = vunpack.c.h.b16 %v595
  %v2464 = vunpack.c.l.b16 %v596
  %v2465 = vunpack.c.h.b16 %v596
  %v2466 = vunpack.c.l.b16 %v597
  %v2467 = vunpack.c.h.b16 %v597
  %v2468 = vunpack.c.l.b16 %v598
  %v2469 = vunpack.c.h.b16 %v598
  %v2470 = vunpack.c.l.b16 %v599
  %v2471 = vunpack.c.h.b16 %v599
  %v2472 = vunpack.c.l.b16 %v600
  %v2473 = vunpack.c.h.b16 %v600
  %v2474 = vunpack.c.l.b16 %v601
  %v2475 = vunpack.c.h.b16 %v601
  %v2476 = vunpack.c.l.b16 %v602
  %v2477 = vunpack.c.h.b16 %v602
  %v2478 = vunpack.c.l.b16 %v603
  %v2479 = vunpack.c.h.b16 %v603
  %v2480 = vunpack.c.l.b16 %v604
  %v2481 = vunpack.c.h.b16 %v604
  %v2482 = vunpack.c.l.b16 %v605
  %v2483 = vunpack.c.h.b16 %v605
  %v2484 = vunpack.c.l.b16 %v606
  %v2485 = vunpack.c.h.b16 %v606
  %v2486 = vunpack.c.l.b16 %v607
  %v2487 = vunpack.c.h.b16 %v607
  %v2488 = vunpack.c.l.b16 %v608
  %v2489 = vunpack.c.h.b16 %v608
  %v2490 = vunpack.c.l.b16 %v609
  %v2491 = vunpack.c.h.b16 %v609
  %v2492 = vunpack.c.l.b16 %v610
  %v2493 = vunpack.c.h.b16 %v610
  %v2494 = vunpack.c.l.b16 %v611
  %v2495 = vunpack.c.h.b16 %v611
  %v2496 = vunpack.c.l.b16 %v612
  %v2497 = vunpack.c.h.b16 %v612
  %v2498 = vunpack.c.l.b16 %v613
  %v2499 = vunpack.c.h.b16 %v613
  %v2500 = vunpack.c.l.b16 %v614
  %v2501 = vunpack.c.h.b16 %v614
  %v2502 = vunpack.c.l.b16 %v615
  %v2503 = vunpack.c.h.b16 %v615
  %v2504 = vunpack.c.l.b16 %v616
  %v2505 = vunpack.c.h.b16 %v616
  %v2506 = vunpack.c.l.b16 %v617
  %v2507 = vunpack.c.h.b16 %v617
  %v2508 = vunpack.c.l.b16 %v618
  %v2509 = vunpack.c.h.b16 %v618
  %v2510 = vunpack.c.l.b16 %v619
  %v2511 = vunpack.c.h.b16 %v619
  %v2512 = vunpack.c.l.b16 %v620
  %v2513 = vunpack.c.h.b16 %v620
  %v2514 = vunpack.c.l.b16 %v621
  %v2515 = vunpack.c.h.b16 %v621
  %v2516 = vunpack.c.l.b16 %v622
  %v2517 = vunpack.c.h.b16 %v622
  %v2518 = vunpack.c.l.b16 %v623
  %v2519 = vunpack.c.h.b16 %v623
  %v2520 = vunpack.c.l.b16 %v624
  %v2521 = vunpack.c.h.b16 %v624
  %v2522 = vunpack.c.l.b16 %v625
  %v2523 = vunpack.c.h.b16 %v625
  %v2524 = vunpack.c.l.b16 %v626
  %v2525 = vunpack.c.h.b16 %v626
  %v2526 = vunpack.c.l.b16 %v627
  %v2527 = vunpack.c.h.b16 %v627
  %v2528 = vunpack.c.l.b16 %v628
  %v2529 = vunpack.c.h.b16 %v628
  %v2530 = vunpack.c.l.b16 %v629
  %v2531 = vunpack.c.h.b16 %v629
  %v2532 = vunpack.c.l.b16 %v630
  %v2533 = vunpack.c.h.b16 %v630
  %v2534 = vpack.c.b16 %v1386, %v1382
  %v2535 = vpack.c.b16 %v1387, %v1383
  %v2536 = vpack.c.b16 %v1388, %v1384
  %v2537 = vpack.c.b16 %v1389, %v1385
  %v2538 = vpack.c.b16 %v1394, %v1390
  %v2539 = vpack.c.b16 %v1395, %v1391
  %v2540 = vpack.c.b16 %v1396, %v1392
  %v2541 = vpack.c.b16 %v1397, %v1393
  %v2542 = vpack.c.b16 %v1402, %v1398
  %v2543 = vpack.c.b16 %v1403, %v1399
  %v2544 = vpack.c.b16 %v1404, %v1400
  %v2545 = vpack.c.b16 %v1405, %v1401
  %v2546 = vpack.c.b16 %v1410, %v1406
  %v2547 = vpack.c.b16 %v1411, %v1407
  %v2548 = vpack.c.b16 %v1412, %v1408
  %v2549 = vpack.c.b16 %v1413, %v1409
  %v2550 = vpack.c.b16 %v1418, %v1414
  %v2551 = vpack.c.b16 %v1419, %v1415
  %v2552 = vpack.c.b16 %v1420, %v1416
  %v2553 = vpack.c.b16 %v1421, %v1417
  %v2554 = vpack.c.b16 %v1426, %v1422
  %v2555 = vpack.c.b16 %v1427, %v1423
  %v2556 = vpack.c.b16 %v1428, %v1424
  %v2557 = vpack.c.b16 %v1429, %v1425
  %v2558 = vpack.c.b16 %v1434, %v1430
  %v2559 = vpack.c.b16 %v1435, %v1431
  %v2560 = vpack.c.b16 %v1436, %v1432
  %v2561 = vpack.c.b16 %v1437, %v1433
  %v2562 = vpack.c.b16 %v1442, %v1438
  %v2563 = vpack.c.b16 %v1443, %v1439
  %v2564 = vpack.c.b16 %v1444, %v1440
  %v2565 = vpack.c.b16 %v1445, %v1441
  %v2566 = vpack.c.b16 %v1450, %v1446
  %v2567 = vpack.c.b16 %v1451, %v1447
  %v2568 = vpack.c.b16 %v1452, %v1448
  %v2569 = vpack.c.b16 %v1453, %v1449
  %v2570 = vpack.c.b16 %v1458, %v1454
  %v2571 = vpack.c.b16 %v1459, %v1455
  %v2572 = vpack.c.b16 %v1460, %v1456
  %v2573 = vpack.c.b16 %v1461, %v1457
  %v2574 = vpack.c.b16 %v1466, %v1462
  %v2575 = vpack.c.b16 %v1467, %v1463
  %v2576 = vpack.c.b16 %v1468, %v1464
  %v2577 = vpack.c.b16 %v1469, %v1465
  %v2578 = vpack.c.b16 %v1474, %v1470
  %v2579 = vpack.c.b16 %v1475, %v1471
  %v2580 = vpack.c.b16 %v1476, %v1472
  %v2581 = vpack.c.b16 %v1477, %v1473
  %v2582 = vpack.c.b16 %v1482, %v1478
  %v2583 = vpack.c.b16 %v1483, %v1479
  %v2584 = vpack.c.b16 %v1484, %v1480
  %v2585 = vpack.c.b16 %v1485, %v1481
  %v2586 = vpack.c.b16 %v1490, %v1486
  %v2587 = vpack.c.b16 %v1491, %v1487
  %v2588 = vpack.c.b16 %v1492, %v1488
  %v2589 = vpack.c.b16 %v1493, %v1489
  %v2590 = vpack.c.b16 %v1498, %v1494
  %v2591 = vpack.c.b16 %v1499, %v1495
  %v2592 = vpack.c.b16 %v1500, %v1496
  %v2593 = vpack.c.b16 %v1501, %v1497
  %v2594 = vpack.c.b16 %v1506, %v1502
  %v2595 = vpack.c.b16 %v1507, %v1503
  %v2596 = vpack.c.b16 %v1508, %v1504
  %v2597 = vpack.c.b16 %v1509, %v1505
  %v2598 = vpack.c.b16 %v1514, %v1510
  %v2599 = vpack.c.b16 %v1515, %v1511
  %v2600 = vpack.c.b16 %v1516, %v1512
  %v2601 = vpack.c.b16 %v1517, %v1513
  %v2602 = vpack.c.b16 %v1522, %v1518
  %v2603 = vpack.c.b16 %v1523, %v1519
  %v2604 = vpack.c.b16 %v1524, %v1520
  %v2605 = vpack.c.b16 %v1525, %v1521
  %v2606 = vpack.c.b16 %v1530, %v1526
  %v2607 = vpack.c.b16 %v1531, %v1527
  %v2608 = vpack.c.b16 %v1532, %v1528
  %v2609 = vpack.c.b16 %v1533, %v1529
  %v2610 = vpack.c.b16 %v1538, %v1534
  %v2611 = vpack.c.b16 %v1539, %v1535
  %v2612 = vpack.c.b16 %v1540, %v1536
  %v2613 = vpack.c.b16 %v1541, %v1537
  %v2614 = vpack.c.b16 %v1546, %v1542
  %v2615 = vpack.c.b16 %v1547, %v1543
  %v2616 = vpack.c.b16 %v1548, %v1544
  %v2617 = vpack.c.b16 %v1549, %v1545
  %v2618 = vpack.c.b16 %v1554, %v1550
  %v2619 = vpack.c.b16 %v1555, %v1551
  %v2620 = vpack.c.b16 %v1556, %v1552
  %v2621 = vpack.c.b16 %v1557, %v1553
  %v2622 = vpack.c.b16 %v1562, %v1558
  %v2623 = vpack.c.b16 %v1563, %v1559
  %v2624 = vpack.c.b16 %v1564, %v1560
  %v2625 = vpack.c.b16 %v1565, %v1561
  %v2626 = vpack.c.b16 %v1570, %v1566
  %v2627 = vpack.c.b16 %v1571, %v1567
  %v2628 = vpack.c.b16 %v1572, %v1568
  %v2629 = vpack.c.b16 %v1573, %v1569
  %v2630 = vpack.c.b16 %v1578, %v1574
  %v2631 = vpack.c.b16 %v1579, %v1575
  %v2632 = vpack.c.b16 %v1580, %v1576
  %v2633 = vpack.c.b16 %v1581, %v1577
  %v2634 = vpack.c.b16 %v1586, %v1582
  %v2635 = vpack.c.b16 %v1587, %v1583
  %v2636 = vpack.c.b16 %v1588, %v1584
  %v2637 = vpack.c.b16 %v1589, %v1585
  %v2638 = vpack.c.b16 %v1594, %v1590
  %v2639 = vpack.c.b16 %v1595, %v1591
  %v2640 = vpack.c.b16 %v1596, %v1592
  %v2641 = vpack.c.b16 %v1597, %v1593
  %v2642 = vpack.c.b16 %v1602, %v1598
  %v2643 = vpack.c.b16 %v1603, %v1599
  %v2644 = vpack.c.b16 %v1604, %v1600
  %v2645 = vpack.c.b16 %v1605, %v1601
  %v2646 = vpack.c.b16 %v1610, %v1606
  %v2647 = vpack.c.b16 %v1611, %v1607
  %v2648 = vpack.c.b16 %v1612, %v1608
  %v2649 = vpack.c.b16 %v1613, %v1609
  %v2650 = vpack.c.b16 %v1618, %v1614
  %v2651 = vpack.c.b16 %v1619, %v1615
  %v2652 = vpack.c.b16 %v1620, %v1616
  %v2653 = vpack.c.b16 %v1621, %v1617
  %v2654 = vpack.c.b16 %v1626, %v1622
  %v2655 = vpack.c.b16 %v1627, %v1623
  %v2656 = vpack.c.b16 %v1628, %v1624
  %v2657 = vpack.c.b16 %v1629, %v1625
  %v2658 = vpack.c.b16 %v1634, %v1630
  %v2659 = vpack.c.b16 %v1635, %v1631
  %v2660 = vpack.c.b16 %v1636, %v1632
  %v2661 = vpack.c.b16 %v1637, %v1633
  %v2662 = vpack.c.b16 %v1642, %v1638
  %v2663 = vpack.c.b16 %v1643, %v1639
  %v2664 = vpack.c.b16 %v1644, %v1640
  %v2665 = vpack.c.b16 %v1645, %v1641
  %v2666 = vpack.c.b16 %v1650, %v1646
  %v2667 = vpack.c.b16 %v1651, %v1647
  %v2668 = vpack.c.b16 %v1652, %v1648
  %v2669 = vpack.c.b16 %v1653, %v1649
  %v2670 = vpack.c.b16 %v1658, %v1654
  %v2671 = vpack.c.b16 %v1659, %v1655
  %v2672 = vpack.c.b16 %v1660, %v1656
  %v2673 = vpack.c.b16 %v1661, %v1657
  %v2674 = vpack.c.b16 %v1666, %v1662
  %v2675 = vpack.c.b16 %v1667, %v1663
  %v2676 = vpack.c.b16 %v1668, %v1664
  %v2677 = vpack.c.b16 %v1669, %v1665
  %v2678 = vpack.c.b16 %v1674, %v1670
  %v2679 = vpack.c.b16 %v1675, %v1671
  %v2680 = vpack.c.b16 %v1676, %v1672
  %v2681 = vpack.c.b16 %v1677, %v1673
  %v2682 = vpack.c.b16 %v1682, %v1678
  %v2683 = vpack.c.b16 %v1683, %v1679
  %v2684 = vpack.c.b16 %v1684, %v1680
  %v2685 = vpack.c.b16 %v1685, %v1681
  %v2686 = vpack.c.b16 %v1690, %v1686
  %v2687 = vpack.c.b16 %v1691, %v1687
  %v2688 = vpack.c.b16 %v1692, %v1688
  %v2689 = vpack.c.b16 %v1693, %v1689
  %v2690 = vpack.c.b16 %v1698, %v1694
  %v2691 = vpack.c.b16 %v1699, %v1695
  %v2692 = vpack.c.b16 %v1700, %v1696
  %v2693 = vpack.c.b16 %v1701, %v1697
  %v2694 = vpack.c.b16 %v1706, %v1702
  %v2695 = vpack.c.b16 %v1707, %v1703
  %v2696 = vpack.c.b16 %v1708, %v1704
  %v2697 = vpack.c.b16 %v1709, %v1705
  %v2698 = vpack.c.b16 %v1714, %v1710
  %v2699 = vpack.c.b16 %v1715, %v1711
  %v2700 = vpack.c.b16 %v1716, %v1712
  %v2701 = vpack.c.b16 %v1717, %v1713
  %v2702 = vpack.c.b16 %v1722, %v1718
  %v2703 = vpack.c.b16 %v1723, %v1719
  %v2704 = vpack.c.b16 %v1724, %v1720
  %v2705 = vpack.c.b16 %v1725, %v1721
  %v2706 = vpack.c.b16 %v1730, %v1726
  %v2707 = vpack.c.b16 %v1731, %v1727
  %v2708 = vpack.c.b16 %v1732, %v1728
  %v2709 = vpack.c.b16 %v1733, %v1729
  %v2710 = vpack.c.b16 %v1738, %v1734
  %v2711 = vpack.c.b16 %v1739, %v1735
  %v2712 = vpack.c.b16 %v1740, %v1736
  %v2713 = vpack.c.b16 %v1741, %v1737
  %v2714 = vpack.c.b16 %v1746, %v1742
  %v2715 = vpack.c.b16 %v1747, %v1743
  %v2716 = vpack.c.b16 %v1748, %v1744
  %v2717 = vpack.c.b16 %v1749, %v1745
  %v2718 = vpack.c.b16 %v1754, %v1750
  %v2719 = vpack.c.b16 %v1755, %v1751
  %v2720 = vpack.c.b16 %v1756, %v1752
  %v2721 = vpack.c.b16 %v1757, %v1753
  %v2722 = vpack.c.b16 %v1762, %v1758
  %v2723 = vpack.c.b16 %v1763, %v1759
  %v2724 = vpack.c.b16 %v1764, %v1760
  %v2725 = vpack.c.b16 %v1765, %v1761
  %v2726 = vpack.c.b16 %v1770, %v1766
  %v2727 = vpack.c.b16 %v1771, %v1767
  %v2728 = vpack.c.b16 %v1772, %v1768
  %v2729 = vpack.c.b16 %v1773, %v1769
  %v2730 = vpack.c.b16 %v1778, %v1774
  %v2731 = vpack.c.b16 %v1779, %v1775
  %v2732 = vpack.c.b16 %v1780, %v1776
  %v2733 = vpack.c.b16 %v1781, %v1777
  %v2734 = vpack.c.b16 %v1786, %v1782
  %v2735 = vpack.c.b16 %v1787, %v1783
  %v2736 = vpack.c.b16 %v1788, %v1784
  %v2737 = vpack.c.b16 %v1789, %v1785
  %v2738 = vpack.c.b16 %v1794, %v1790
  %v2739 = vpack.c.b16 %v1795, %v1791
  %v2740 = vpack.c.b16 %v1796, %v1792
  %v2741 = vpack.c.b16 %v1797, %v1793
  %v2742 = vpack.c.b16 %v1802, %v1798
  %v2743 = vpack.c.b16 %v1803, %v1799
  %v2744 = vpack.c.b16 %v1804, %v1800
  %v2745 = vpack.c.b16 %v1805, %v1801
  %v2746 = vpack.c.b16 %v1810, %v1806
  %v2747 = vpack.c.b16 %v1811, %v1807
  %v2748 = vpack.c.b16 %v1812, %v1808
  %v2749 = vpack.c.b16 %v1813, %v1809
  %v2750 = vpack.c.b16 %v1818, %v1814
  %v2751 = vpack.c.b16 %v1819, %v1815
  %v2752 = vpack.c.b16 %v1820, %v1816
  %v2753 = vpack.c.b16 %v1821, %v1817
  %v2754 = vpack.c.b16 %v1826, %v1822
  %v2755 = vpack.c.b16 %v1827, %v1823
  %v2756 = vpack.c.b16 %v1828, %v1824
  %v2757 = vpack.c.b16 %v1829, %v1825
  %v2758 = vpack.c.b16 %v1834, %v1830
  %v2759 = vpack.c.b16 %v1835, %v1831
  %v2760 = vpack.c.b16 %v1836, %v1832
  %v2761 = vpack.c.b16 %v1837, %v1833
  %v2762 = vpack.c.b16 %v1842, %v1838
  %v2763 = vpack.c.b16 %v1843, %v1839
  %v2764 = vpack.c.b16 %v1844, %v1840
  %v2765 = vpack.c.b16 %v1845, %v1841
  %v2766 = vpack.c.b16 %v1850, %v1846
  %v2767 = vpack.c.b16 %v1851, %v1847
  %v2768 = vpack.c.b16 %v1852, %v1848
  %v2769 = vpack.c.b16 %v1853, %v1849
  %v2770 = vpack.c.b16 %v1858, %v1854
  %v2771 = vpack.c.b16 %v1859, %v1855
  %v2772 = vpack.c.b16 %v1860, %v1856
  %v2773 = vpack.c.b16 %v1861, %v1857
  %v2774 = vpack.c.b16 %v1866, %v1862
  %v2775 = vpack.c.b16 %v1867, %v1863
  %v2776 = vpack.c.b16 %v1868, %v1864
  %v2777 = vpack.c.b16 %v1869, %v1865
  %v2778 = vpack.c.b16 %v1874, %v1870
  %v2779 = vpack.c.b16 %v1875, %v1871
  %v2780 = vpack.c.b16 %v1876, %v1872
  %v2781 = vpack.c.b16 %v1877, %v1873
  %v2782 = vpack.c.b16 %v1882, %v1878
  %v2783 = vpack.c.b16 %v1883, %v1879
  %v2784 = vpack.c.b16 %v1884, %v1880
  %v2785 = vpack.c.b16 %v1885, %v1881
  %v2786 = vpack.c.b16 %v1890, %v1886
  %v2787 = vpack.c.b16 %v1891, %v1887
  %v2788 = vpack.c.b16 %v1892, %v1888
  %v2789 = vpack.c.b16 %v1893, %v1889
  %v2790 = vpack.c.b16 %v1898, %v1894
  %v2791 = vpack.c.b16 %v1899, %v1895
  %v2792 = vpack.c.b16 %v1900, %v1896
  %v2793 = vpack.c.b16 %v1901, %v1897
  %v2794 = vpack.c.b16 %v1906, %v1902
  %v2795 = vpack.c.b16 %v1907, %v1903
  %v2796 = vpack.c.b16 %v1908, %v1904
  %v2797 = vpack.c.b16 %v1909, %v1905
  %v2798 = vpack.c.b16 %v1914, %v1910
  %v2799 = vpack.c.b16 %v1915, %v1911
  %v2800 = vpack.c.b16 %v1916, %v1912
  %v2801 = vpack.c.b16 %v1917, %v1913
  %v2802 = vpack.c.b16 %v1922, %v1918
  %v2803 = vpack.c.b16 %v1923, %v1919
  %v2804 = vpack.c.b16 %v1924, %v1920
  %v2805 = vpack.c.b16 %v1925, %v1921
  %v2806 = vpack.c.b16 %v1930, %v1926
  %v2807 = vpack.c.b16 %v1931, %v1927
  %v2808 = vpack.c.b16 %v1932, %v1928
  %v2809 = vpack.c.b16 %v1933, %v1929
  %v2810 = vpack.c.b16 %v1938, %v1934
  %v2811 = vpack.c.b16 %v1939, %v1935
  %v2812 = vpack.c.b16 %v1940, %v1936
  %v2813 = vpack.c.b16 %v1941, %v1937
  %v2814 = vpack.c.b16 %v1946, %v1942
  %v2815 = vpack.c.b16 %v1947, %v1943
  %v2816 = vpack.c.b16 %v1948, %v1944
  %v2817 = vpack.c.b16 %v1949, %v1945
  %v2818 = vpack.c.b16 %v1954, %v1950
  %v2819 = vpack.c.b16 %v1955, %v1951
  %v2820 = vpack.c.b16 %v1956, %v1952
  %v2821 = vpack.c.b16 %v1957, %v1953
  %v2822 = vpack.c.b16 %v1962, %v1958
  %v2823 = vpack.c.b16 %v1963, %v1959
  %v2824 = vpack.c.b16 %v1964, %v1960
  %v2825 = vpack.c.b16 %v1965, %v1961
  %v2826 = vpack.c.b16 %v1970, %v1966
  %v2827 = vpack.c.b16 %v1971, %v1967
  %v2828 = vpack.c.b16 %v1972, %v1968
  %v2829 = vpack.c.b16 %v1973, %v1969
  %v2830 = vpack.c.b16 %v1978, %v1974
  %v2831 = vpack.c.b16 %v1979, %v1975
  %v2832 = vpack.c.b16 %v1980, %v1976
  %v2833 = vpack.c.b16 %v1981, %v1977
  %v2834 = vpack.c.b16 %v1986, %v1982
  %v2835 = vpack.c.b16 %v1987, %v1983
  %v2836 = vpack.c.b16 %v1988, %v1984
  %v2837 = vpack.c.b16 %v1989, %v1985
  %v2838 = vpack.c.b16 %v1994, %v1990
  %v2839 = vpack.c.b16 %v1995, %v1991
  %v2840 = vpack.c.b16 %v1996, %v1992
  %v2841 = vpack.c.b16 %v1997, %v1993
  %v2842 = vpack.c.b16 %v2002, %v1998
  %v2843 = vpack.c.b16 %v2003, %v1999
  %v2844 = vpack.c.b16 %v2004, %v2000
  %v2845 = vpack.c.b16 %v2005, %v2001
  %v2846 = vpack.c.b16 %v2010, %v2006
  %v2847 = vpack.c.b16 %v2011, %v2007
  %v2848 = vpack.c.b16 %v2012, %v2008
  %v2849 = vpack.c.b16 %v2013, %v2009
  %v2850 = vpack.c.b16 %v2018, %v2014
  %v2851 = vpack.c.b16 %v2019, %v2015
  %v2852 = vpack.c.b16 %v2020, %v2016
  %v2853 = vpack.c.b16 %v2021, %v2017
  %v2854 = vpack.c.b16 %v2026, %v2022
  %v2855 = vpack.c.b16 %v2027, %v2023
  %v2856 = vpack.c.b16 %v2028, %v2024
  %v2857 = vpack.c.b16 %v2029, %v2025
  %v2858 = vpack.c.b16 %v2034, %v2030
  %v2859 = vpack.c.b16 %v2035, %v2031
  %v2860 = vpack.c.b16 %v2036, %v2032
  %v2861 = vpack.c.b16 %v2037, %v2033
  %v2862 = vpack.c.b16 %v2042, %v2038
  %v2863 = vpack.c.b16 %v2043, %v2039
  %v2864 = vpack.c.b16 %v2044, %v2040
  %v2865 = vpack.c.b16 %v2045, %v2041
  %v2866 = vpack.c.b16 %v2050, %v2046
  %v2867 = vpack.c.b16 %v2051, %v2047
  %v2868 = vpack.c.b16 %v2052, %v2048
  %v2869 = vpack.c.b16 %v2053, %v2049
  %v2870 = vpack.c.b16 %v2058, %v2054
  %v2871 = vpack.c.b16 %v2059, %v2055
  %v2872 = vpack.c.b16 %v2060, %v2056
  %v2873 = vpack.c.b16 %v2061, %v2057
  %v2874 = vpack.c.b16 %v2066, %v2062
  %v2875 = vpack.c.b16 %v2067, %v2063
  %v2876 = vpack.c.b16 %v2068, %v2064
  %v2877 = vpack.c.b16 %v2069, %v2065
  %v2878 = vpack.c.b16 %v2074, %v2070
  %v2879 = vpack.c.b16 %v2075, %v2071
  %v2880 = vpack.c.b16 %v2076, %v2072
  %v2881 = vpack.c.b16 %v2077, %v2073
  %v2882 = vpack.c.b16 %v2082, %v2078
  %v2883 = vpack.c.b16 %v2083, %v2079
  %v2884 = vpack.c.b16 %v2084, %v2080
  %v2885 = vpack.c.b16 %v2085, %v2081
  %v2886 = vpack.c.b16 %v2090, %v2086
  %v2887 = vpack.c.b16 %v2091, %v2087
  %v2888 = vpack.c.b16 %v2092, %v2088
  %v2889 = vpack.c.b16 %v2093, %v2089
  %v2890 = vpack.c.b16 %v2098, %v2094
  %v2891 = vpack.c.b16 %v2099, %v2095
  %v2892 = vpack.c.b16 %v2100, %v2096
  %v2893 = vpack.c.b16 %v2101, %v2097
  %v2894 = vpack.c.b16 %v2106, %v2102
  %v2895 = vpack.c.b16 %v2107, %v2103
  %v2896 = vpack.c.b16 %v2108, %v2104
  %v2897 = vpack.c.b16 %v2109, %v2105
  %v2898 = vpack.c.b16 %v2114, %v2110
  %v2899 = vpack.c.b16 %v2115, %v2111
  %v2900 = vpack.c.b16 %v2116, %v2112
  %v2901 = vpack.c.b16 %v2117, %v2113
  %v2902 = vpack.c.b16 %v2122, %v2118
  %v2903 = vpack.c.b16 %v2123, %v2119
  %v2904 = vpack.c.b16 %v2124, %v2120
  %v2905 = vpack.c.b16 %v2125, %v2121
  %v2906 = vpack.c.b16 %v2130, %v2126
  %v2907 = vpack.c.b16 %v2131, %v2127
  %v2908 = vpack.c.b16 %v2132, %v2128
  %v2909 = vpack.c.b16 %v2133, %v2129
  %v2910 = vpack.c.b16 %v2138, %v2134
  %v2911 = vpack.c.b16 %v2139, %v2135
  %v2912 = vpack.c.b16 %v2140, %v2136
  %v2913 = vpack.c.b16 %v2141, %v2137
  %v2914 = vpack.c.b16 %v2146, %v2142
  %v2915 = vpack.c.b16 %v2147, %v2143
  %v2916 = vpack.c.b16 %v2148, %v2144
  %v2917 = vpack.c.b16 %v2149, %v2145
  %v2918 = vpack.c.b16 %v2154, %v2150
  %v2919 = vpack.c.b16 %v2155, %v2151
  %v2920 = vpack.c.b16 %v2156, %v2152
  %v2921 = vpack.c.b16 %v2157, %v2153
  %v2922 = vpack.c.b16 %v2162, %v2158
  %v2923 = vpack.c.b16 %v2163, %v2159
  %v2924 = vpack.c.b16 %v2164, %v2160
  %v2925 = vpack.c.b16 %v2165, %v2161
  %v2926 = vpack.c.b16 %v2170, %v2166
  %v2927 = vpack.c.b16 %v2171, %v2167
  %v2928 = vpack.c.b16 %v2172, %v2168
  %v2929 = vpack.c.b16 %v2173, %v2169
  %v2930 = vpack.c.b16 %v2178, %v2174
  %v2931 = vpack.c.b16 %v2179, %v2175
  %v2932 = vpack.c.b16 %v2180, %v2176
  %v2933 = vpack.c.b16 %v2181, %v2177
  %v2934 = vpack.c.b16 %v2186, %v2182
  %v2935 = vpack.c.b16 %v2187, %v2183
  %v2936 = vpack.c.b16 %v2188, %v2184
  %v2937 = vpack.c.b16 %v2189, %v2185
  %v2938 = vpack.c.b16 %v2194, %v2190
  %v2939 = vpack.c.b16 %v2195, %v2191
  %v2940 = vpack.c.b16 %v2196, %v2192
  %v2941 = vpack.c.b16 %v2197, %v2193
  %v2942 = vpack.c.b16 %v2202, %v2198
  %v2943 = vpack.c.b16 %v2203, %v2199
  %v2944 = vpack.c.b16 %v2204, %v2200
  %v2945 = vpack.c.b16 %v2205, %v2201
  %v2946 = vpack.c.b16 %v2210, %v2206
  %v2947 = vpack.c.b16 %v2211, %v2207
  %v2948 = vpack.c.b16 %v2212, %v2208
  %v2949 = vpack.c.b16 %v2213, %v2209
  %v2950 = vpack.c.b16 %v2218, %v2214
  %v2951 = vpack.c.b16 %v2219, %v2215
  %v2952 = vpack.c.b16 %v2220, %v2216
  %v2953 = vpack.c.b16 %v2221, %v2217
  %v2954 = vpack.c.b16 %v2226, %v2222
  %v2955 = vpack.c.b16 %v2227, %v2223
  %v2956 = vpack.c.b16 %v2228, %v2224
  %v2957 = vpack.c.b16 %v2229, %v2225
  %v2958 = vpack.c.b16 %v2234, %v2230
  %v2959 = vpack.c.b16 %v2235, %v2231
  %v2960 = vpack.c.b16 %v2236, %v2232
  %v2961 = vpack.c.b16 %v2237, %v2233
  %v2962 = vpack.c.b16 %v2242, %v2238
  %v2963 = vpack.c.b16 %v2243, %v2239
  %v2964 = vpack.c.b16 %v2244, %v2240
  %v2965 = vpack.c.b16 %v2245, %v2241
  %v2966 = vpack.c.b16 %v2250, %v2246
  %v2967 = vpack.c.b16 %v2251, %v2247
  %v2968 = vpack.c.b16 %v2252, %v2248
  %v2969 = vpack.c.b16 %v2253, %v2249
  %v2970 = vpack.c.b16 %v2258, %v2254
  %v2971 = vpack.c.b16 %v2259, %v2255
  %v2972 = vpack.c.b16 %v2260, %v2256
  %v2973 = vpack.c.b16 %v2261, %v2257
  %v2974 = vpack.c.b16 %v2266, %v2262
  %v2975 = vpack.c.b16 %v2267, %v2263
  %v2976 = vpack.c.b16 %v2268, %v2264
  %v2977 = vpack.c.b16 %v2269, %v2265
  %v2978 = vpack.c.b16 %v2274, %v2270
  %v2979 = vpack.c.b16 %v2275, %v2271
  %v2980 = vpack.c.b16 %v2276, %v2272
  %v2981 = vpack.c.b16 %v2277, %v2273
  %v2982 = vpack.c.b16 %v2282, %v2278
  %v2983 = vpack.c.b16 %v2283, %v2279
  %v2984 = vpack.c.b16 %v2284, %v2280
  %v2985 = vpack.c.b16 %v2285, %v2281
  %v2986 = vpack.c.b16 %v2290, %v2286
  %v2987 = vpack.c.b16 %v2291, %v2287
  %v2988 = vpack.c.b16 %v2292, %v2288
  %v2989 = vpack.c.b16 %v2293, %v2289
  %v2990 = vpack.c.b16 %v2298, %v2294
  %v2991 = vpack.c.b16 %v2299, %v2295
  %v2992 = vpack.c.b16 %v2300, %v2296
  %v2993 = vpack.c.b16 %v2301, %v2297
  %v2994 = vpack.c.b16 %v2306, %v2302
  %v2995 = vpack.c.b16 %v2307, %v2303
  %v2996 = vpack.c.b16 %v2308, %v2304
  %v2997 = vpack.c.b16 %v2309, %v2305
  %v2998 = vpack.c.b16 %v2314, %v2310
  %v2999 = vpack.c.b16 %v2315, %v2311
  %v3000 = vpack.c.b16 %v2316, %v2312
  %v3001 = vpack.c.b16 %v2317, %v2313
  %v3002 = vpack.c.b16 %v2322, %v2318
  %v3003 = vpack.c.b16 %v2323, %v2319
  %v3004 = vpack.c.b16 %v2324, %v2320
  %v3005 = vpack.c.b16 %v2325, %v2321
  %v3006 = vpack.c.b16 %v2330, %v2326
  %v3007 = vpack.c.b16 %v2331, %v2327
  %v3008 = vpack.c.b16 %v2332, %v2328
  %v3009 = vpack.c.b16 %v2333, %v2329
  %v3010 = vpack.c.b16 %v2338, %v2334
  %v3011 = vpack.c.b16 %v2339, %v2335
  %v3012 = vpack.c.b16 %v2340, %v2336
  %v3013 = vpack.c.b16 %v2341, %v2337
  %v3014 = vpack.c.b16 %v2346, %v2342
  %v3015 = vpack.c.b16 %v2347, %v2343
  %v3016 = vpack.c.b16 %v2348, %v2344
  %v3017 = vpack.c.b16 %v2349, %v2345
  %v3018 = vpack.c.b16 %v2354, %v2350
  %v3019 = vpack.c.b16 %v2355, %v2351
  %v3020 = vpack.c.b16 %v2356, %v2352
  %v3021 = vpack.c.b16 %v2357, %v2353
  %v3022 = vpack.c.b16 %v2362, %v2358
  %v3023 = vpack.c.b16 %v2363, %v2359
  %v3024 = vpack.c.b16 %v2364, %v2360
  %v3025 = vpack.c.b16 %v2365, %v2361
  %v3026 = vpack.c.b16 %v2370, %v2366
  %v3027 = vpack.c.b16 %v2371, %v2367
  %v3028 = vpack.c.b16 %v2372, %v2368
  %v3029 = vpack.c.b16 %v2373, %v2369
  %v3030 = vpack.c.b16 %v2378, %v2374
  %v3031 = vpack.c.b16 %v2379, %v2375
  %v3032 = vpack.c.b16 %v2380, %v2376
  %v3033 = vpack.c.b16 %v2381, %v2377
  %v3034 = vpack.c.b16 %v2386, %v2382
  %v3035 = vpack.c.b16 %v2387, %v2383
  %v3036 = vpack.c.b16 %v2388, %v2384
  %v3037 = vpack.c.b16 %v2389, %v2385
  %v3038 = vpack.c.b16 %v2394, %v2390
  %v3039 = vpack.c.b16 %v2395, %v2391
  %v3040 = vpack.c.b16 %v2396, %v2392
  %v3041 = vpack.c.b16 %v2397, %v2393
  %v3042 = vpack.c.b16 %v2402, %v2398
  %v3043 = vpack.c.b16 %v2403, %v2399
  %v3044 = vpack.c.b16 %v2404, %v2400
  %v3045 = vpack.c.b16 %v2405, %v2401
  %v3046 = vpack.c.b16 %v2410, %v2406
  %v3047 = vpack.c.b16 %v2411, %v2407
  %v3048 = vpack.c.b16 %v2412, %v2408
  %v3049 = vpack.c.b16 %v2413, %v2409
  %v3050 = vpack.c.b16 %v2418, %v2414
  %v3051 = vpack.c.b16 %v2419, %v2415
  %v3052 = vpack.c.b16 %v2420, %v2416
  %v3053 = vpack.c.b16 %v2421, %v2417
  %v3054 = vpack.c.b16 %v2426, %v2422
  %v3055 = vpack.c.b16 %v2427, %v2423
  %v3056 = vpack.c.b16 %v2428, %v2424
  %v3057 = vpack.c.b16 %v2429, %v2425
  %v3058 = vpack.c.b16 %v2434, %v2430
  %v3059 = vpack.c.b16 %v2435, %v2431
  %v3060 = vpack.c.b16 %v2436, %v2432
  %v3061 = vpack.c.b16 %v2437, %v2433
  %v3062 = vpack.c.b16 %v2442, %v2438
  %v3063 = vpack.c.b16 %v2443, %v2439
  %v3064 = vpack.c.b16 %v2444, %v2440
  %v3065 = vpack.c.b16 %v2445, %v2441
  %v3066 = vpack.c.b16 %v2450, %v2446
  %v3067 = vpack.c.b16 %v2451, %v2447
  %v3068 = vpack.c.b16 %v2452, %v2448
  %v3069 = vpack.c.b16 %v2453, %v2449
  %v3070 = vpack.c.b16 %v2458, %v2454
  %v3071 = vpack.c.b16 %v2459, %v2455
  %v3072 = vpack.c.b16 %v2460, %v2456
  %v3073 = vpack.c.b16 %v2461, %v2457
  %v3074 = vpack.c.b16 %v2466, %v2462
  %v3075 = vpack.c.b16 %v2467, %v2463
  %v3076 = vpack.c.b16 %v2468, %v2464
  %v3077 = vpack.c.b16 %v2469, %v2465
  %v3078 = vpack.c.b16 %v2474, %v2470
  %v3079 = vpack.c.b16 %v2475, %v2471
  %v3080 = vpack.c.b16 %v2476, %v2472
  %v3081 = vpack.c.b16 %v2477, %v2473
  %v3082 = vpack.c.b16 %v2482, %v2478
  %v3083 = vpack.c.b16 %v2483, %v2479
  %v3084 = vpack.c.b16 %v2484, %v2480
  %v3085 = vpack.c.b16 %v2485, %v2481
  %v3086 = vpack.c.b16 %v2490, %v2486
  %v3087 = vpack.c.b16 %v2491, %v2487
  %v3088 = vpack.c.b16 %v2492, %v2488
  %v3089 = vpack.c.b16 %v2493, %v2489
  %v3090 = vpack.c.b16 %v2498, %v2494
  %v3091 = vpack.c.b16 %v2499, %v2495
  %v3092 = vpack.c.b16 %v2500, %v2496
  %v3093 = vpack.c.b16 %v2501, %v2497
  %v3094 = vpack.c.b16 %v2506, %v2502
  %v3095 = vpack.c.b16 %v2507, %v2503
  %v3096 = vpack.c.b16 %v2508, %v2504
  %v3097 = vpack.c.b16 %v2509, %v2505
  %v3098 = vpack.c.b16 %v2514, %v2510
  %v3099 = vpack.c.b16 %v2515, %v2511
  %v3100 = vpack.c.b16 %v2516, %v2512
  %v3101 = vpack.c.b16 %v2517, %v2513
  %v3102 = vpack.c.b16 %v2522, %v2518
  %v3103 = vpack.c.b16 %v2523, %v2519
  %v3104 = vpack.c.b16 %v2524, %v2520
  %v3105 = vpack.c.b16 %v2525, %v2521
  %v3106 = vpack.c.b16 %v2530, %v2526
  %v3107 = vpack.c.b16 %v2531, %v2527
  %v3108 = vpack.c.b16 %v2532, %v2528
  %v3109 = vpack.c.b16 %v2533, %v2529
  %3686 = vmatprep.subr.bf16.mxu0 %v2535
  %3687 = vmatpush1.bf16.msra.mxu0 %v2534
  %3688 = vmatprep.subr.bf16.mxu0 %v2539
  %3689 = vmatpush1.bf16.msra.mxu0 %v2538
  %3690 = vmatprep.subr.bf16.mxu0 %v2543
  %3691 = vmatpush1.bf16.msra.mxu0 %v2542
  %3692 = vmatprep.subr.bf16.mxu0 %v2547
  %3693 = vmatpush1.bf16.msra.mxu0 %v2546
  %3694 = vmatprep.subr.bf16.mxu0 %v2551
  %3695 = vmatpush1.bf16.msra.mxu0 %v2550
  %3696 = vmatprep.subr.bf16.mxu0 %v2555
  %3697 = vmatpush1.bf16.msra.mxu0 %v2554
  %3698 = vmatprep.subr.bf16.mxu0 %v2559
  %3699 = vmatpush1.bf16.msra.mxu0 %v2558
  %3700 = vmatprep.subr.bf16.mxu0 %v2563
  %3701 = vmatpush1.bf16.msra.mxu0 %v2562
  %3702 = vmatprep.subr.bf16.mxu0 %v2567
  %3703 = vmatpush1.bf16.msra.mxu0 %v2566
  %3704 = vmatprep.subr.bf16.mxu0 %v2571
  %3705 = vmatpush1.bf16.msra.mxu0 %v2570
  %3706 = vmatprep.subr.bf16.mxu0 %v2575
  %3707 = vmatpush1.bf16.msra.mxu0 %v2574
  %3708 = vmatprep.subr.bf16.mxu0 %v2579
  %3709 = vmatpush1.bf16.msra.mxu0 %v2578
  %3710 = vmatprep.subr.bf16.mxu0 %v2583
  %3711 = vmatpush1.bf16.msra.mxu0 %v2582
  %3712 = vmatprep.subr.bf16.mxu0 %v2587
  %3713 = vmatpush1.bf16.msra.mxu0 %v2586
  %3714 = vmatprep.subr.bf16.mxu0 %v2591
  %3715 = vmatpush1.bf16.msra.mxu0 %v2590
  %3716 = vmatprep.subr.bf16.mxu0 %v2595
  %3717 = vmatpush1.bf16.msra.mxu0 %v2594
  %3718 = vmatprep.mubr.bf16.mxu0 %v735
  %3719 = vmatmul.mubr.bf16.gmra.mrb[0].mxu0 %v734
  %v3720 = vpop.f32.mrb[0].mxu0
  %v3721 = vadd.f32 %v636, %v3720
  %v3722 = vpop.f32.mrb[0].mxu0
  %v3723 = vadd.f32 %v640, %v3722
  %v3724 = vpop.f32.mrb[0].mxu0
  %v3725 = vadd.f32 %v636, %v3724
  %v3726 = vpop.f32.mrb[0].mxu0
  %v3727 = vadd.f32 %v640, %v3726
  %3728 = vmatprep.mubr.bf16.mxu0 %v753
  %3729 = vmatmul.mubr.bf16.gmra.mrb[0].mxu0 %v752
  %v3730 = vpop.f32.mrb[0].mxu0
  %v3731 = vadd.f32 %v636, %v3730
  %v3732 = vpop.f32.mrb[0].mxu0
  %v3733 = vadd.f32 %v640, %v3732
  %v3734 = vpop.f32.mrb[0].mxu0
  %v3735 = vpop.f32.mrb[0].mxu0
  %3736 = vdwg.mxu0
  %3737 = vmatprep.subr.bf16.mxu0 %v2599
  %3738 = vmatpush1.bf16.msra.mxu0 %v2598
  %3739 = vmatprep.subr.bf16.mxu0 %v2603
  %3740 = vmatpush1.bf16.msra.mxu0 %v2602
  %3741 = vmatprep.subr.bf16.mxu0 %v2607
  %3742 = vmatpush1.bf16.msra.mxu0 %v2606
  %3743 = vmatprep.subr.bf16.mxu0 %v2611
  %3744 = vmatpush1.bf16.msra.mxu0 %v2610
  %3745 = vmatprep.subr.bf16.mxu0 %v2615
  %3746 = vmatpush1.bf16.msra.mxu0 %v2614
  %3747 = vmatprep.subr.bf16.mxu0 %v2619
  %3748 = vmatpush1.bf16.msra.mxu0 %v2618
  %3749 = vmatprep.subr.bf16.mxu0 %v2623
  %3750 = vmatpush1.bf16.msra.mxu0 %v2622
  %3751 = vmatprep.subr.bf16.mxu0 %v2627
  %3752 = vmatpush1.bf16.msra.mxu0 %v2626
  %3753 = vmatprep.subr.bf16.mxu0 %v2631
  %3754 = vmatpush1.bf16.msra.mxu0 %v2630
  %3755 = vmatprep.subr.bf16.mxu0 %v2635
  %3756 = vmatpush1.bf16.msra.mxu0 %v2634
  %3757 = vmatprep.subr.bf16.mxu0 %v2639
  %3758 = vmatpush1.bf16.msra.mxu0 %v2638
  %3759 = vmatprep.subr.bf16.mxu0 %v2643
  %3760 = vmatpush1.bf16.msra.mxu0 %v2642
  %3761 = vmatprep.subr.bf16.mxu0 %v2647
  %3762 = vmatpush1.bf16.msra.mxu0 %v2646
  %3763 = vmatprep.subr.bf16.mxu0 %v2651
  %3764 = vmatpush1.bf16.msra.mxu0 %v2650
  %3765 = vmatprep.subr.bf16.mxu0 %v2655
  %3766 = vmatpush1.bf16.msra.mxu0 %v2654
  %3767 = vmatprep.subr.bf16.mxu0 %v2659
  %3768 = vmatpush1.bf16.msra.mxu0 %v2658
  %3769 = vmatprep.mubr.bf16.mxu0 %v737
  %3770 = vmatmul.mubr.bf16.gmra.mrb[0].mxu0 %v736
  %v3771 = vpop.f32.mrb[0].mxu0
  %v3772 = vadd.f32 %v3721, %v3771
  %v3773 = vpop.f32.mrb[0].mxu0
  %v3774 = vadd.f32 %v3723, %v3773
  %v3775 = vpop.f32.mrb[0].mxu0
  %v3776 = vadd.f32 %v3725, %v3775
  %v3777 = vpop.f32.mrb[0].mxu0
  %v3778 = vadd.f32 %v3727, %v3777
  %3779 = vmatprep.mubr.bf16.mxu0 %v755
  %3780 = vmatmul.mubr.bf16.gmra.mrb[0].mxu0 %v754
  %v3781 = vpop.f32.mrb[0].mxu0
  %v3782 = vadd.f32 %v3731, %v3781
  %v3783 = vpop.f32.mrb[0].mxu0
  %v3784 = vadd.f32 %v3733, %v3783
  %v3785 = vpop.f32.mrb[0].mxu0
  %v3786 = vpop.f32.mrb[0].mxu0
  %3787 = vdwg.mxu0
  %3788 = vmatprep.subr.bf16.mxu0 %v2663
  %3789 = vmatpush1.bf16.msra.mxu0 %v2662
  %3790 = vmatprep.subr.bf16.mxu0 %v2667
  %3791 = vmatpush1.bf16.msra.mxu0 %v2666
  %3792 = vmatprep.subr.bf16.mxu0 %v2671
  %3793 = vmatpush1.bf16.msra.mxu0 %v2670
  %3794 = vmatprep.subr.bf16.mxu0 %v2675
  %3795 = vmatpush1.bf16.msra.mxu0 %v2674
  %3796 = vmatprep.subr.bf16.mxu0 %v2679
  %3797 = vmatpush1.bf16.msra.mxu0 %v2678
  %3798 = vmatprep.subr.bf16.mxu0 %v2683
  %3799 = vmatpush1.bf16.msra.mxu0 %v2682
  %3800 = vmatprep.subr.bf16.mxu0 %v2687
  %3801 = vmatpush1.bf16.msra.mxu0 %v2686
  %3802 = vmatprep.subr.bf16.mxu0 %v2691
  %3803 = vmatpush1.bf16.msra.mxu0 %v2690
  %3804 = vmatprep.subr.bf16.mxu0 %v2695
  %3805 = vmatpush1.bf16.msra.mxu0 %v2694
  %3806 = vmatprep.subr.bf16.mxu0 %v2699
  %3807 = vmatpush1.bf16.msra.mxu0 %v2698
  %3808 = vmatprep.subr.bf16.mxu0 %v2703
  %3809 = vmatpush1.bf16.msra.mxu0 %v2702
  %3810 = vmatprep.subr.bf16.mxu0 %v2707
  %3811 = vmatpush1.bf16.msra.mxu0 %v2706
  %3812 = vmatprep.subr.bf16.mxu0 %v2711
  %3813 = vmatpush1.bf16.msra.mxu0 %v2710
  %3814 = vmatprep.subr.bf16.mxu0 %v2715
  %3815 = vmatpush1.bf16.msra.mxu0 %v2714
  %3816 = vmatprep.subr.bf16.mxu0 %v2719
  %3817 = vmatpush1.bf16.msra.mxu0 %v2718
  %3818 = vmatprep.subr.bf16.mxu0 %v2723
  %3819 = vmatpush1.bf16.msra.mxu0 %v2722
  %3820 = vmatprep.mubr.bf16.mxu0 %v739
  %3821 = vmatmul.mubr.bf16.gmra.mrb[0].mxu0 %v738
  %v3822 = vpop.f32.mrb[0].mxu0
  %v3823 = vadd.f32 %v3772, %v3822
  %v3824 = vpop.f32.mrb[0].mxu0
  %v3825 = vadd.f32 %v3774, %v3824
  %v3826 = vpop.f32.mrb[0].mxu0
  %v3827 = vadd.f32 %v3776, %v3826
  %v3828 = vpop.f32.mrb[0].mxu0
  %v3829 = vadd.f32 %v3778, %v3828
  %3830 = vmatprep.mubr.bf16.mxu0 %v757
  %3831 = vmatmul.mubr.bf16.gmra.mrb[0].mxu0 %v756
  %v3832 = vpop.f32.mrb[0].mxu0
  %v3833 = vadd.f32 %v3782, %v3832
  %v3834 = vpop.f32.mrb[0].mxu0
  %v3835 = vadd.f32 %v3784, %v3834
  %v3836 = vpop.f32.mrb[0].mxu0
  %v3837 = vpop.f32.mrb[0].mxu0
  %3838 = vdwg.mxu0
  %3839 = vmatprep.subr.bf16.mxu0 %v2727
  %3840 = vmatpush1.bf16.msra.mxu0 %v2726
  %3841 = vmatprep.subr.bf16.mxu0 %v2731
  %3842 = vmatpush1.bf16.msra.mxu0 %v2730
  %3843 = vmatprep.subr.bf16.mxu0 %v2735
  %3844 = vmatpush1.bf16.msra.mxu0 %v2734
  %3845 = vmatprep.subr.bf16.mxu0 %v2739
  %3846 = vmatpush1.bf16.msra.mxu0 %v2738
  %3847 = vmatprep.subr.bf16.mxu0 %v2743
  %3848 = vmatpush1.bf16.msra.mxu0 %v2742
  %3849 = vmatprep.subr.bf16.mxu0 %v2747
  %3850 = vmatpush1.bf16.msra.mxu0 %v2746
  %3851 = vmatprep.subr.bf16.mxu0 %v2751
  %3852 = vmatpush1.bf16.msra.mxu0 %v2750
  %3853 = vmatprep.subr.bf16.mxu0 %v2755
  %3854 = vmatpush1.bf16.msra.mxu0 %v2754
  %3855 = vmatprep.subr.bf16.mxu0 %v2759
  %3856 = vmatpush1.bf16.msra.mxu0 %v2758
  %3857 = vmatprep.subr.bf16.mxu0 %v2763
  %3858 = vmatpush1.bf16.msra.mxu0 %v2762
  %3859 = vmatprep.subr.bf16.mxu0 %v2767
  %3860 = vmatpush1.bf16.msra.mxu0 %v2766
  %3861 = vmatprep.subr.bf16.mxu0 %v2771
  %3862 = vmatpush1.bf16.msra.mxu0 %v2770
  %3863 = vmatprep.subr.bf16.mxu0 %v2775
  %3864 = vmatpush1.bf16.msra.mxu0 %v2774
  %3865 = vmatprep.subr.bf16.mxu0 %v2779
  %3866 = vmatpush1.bf16.msra.mxu0 %v2778
  %3867 = vmatprep.subr.bf16.mxu0 %v2783
  %3868 = vmatpush1.bf16.msra.mxu0 %v2782
  %3869 = vmatprep.subr.bf16.mxu0 %v2787
  %3870 = vmatpush1.bf16.msra.mxu0 %v2786
  %3871 = vmatprep.mubr.bf16.mxu0 %v741
  %3872 = vmatmul.mubr.bf16.gmra.mrb[0].mxu0 %v740
  %v3873 = vpop.f32.mrb[0].mxu0
  %v3874 = vadd.f32 %v3823, %v3873
  %v3875 = vpop.f32.mrb[0].mxu0
  %v3876 = vadd.f32 %v3825, %v3875
  %v3877 = vpop.f32.mrb[0].mxu0
  %v3878 = vadd.f32 %v3827, %v3877
  %v3879 = vpop.f32.mrb[0].mxu0
  %v3880 = vadd.f32 %v3829, %v3879
  %3881 = vmatprep.mubr.bf16.mxu0 %v759
  %3882 = vmatmul.mubr.bf16.gmra.mrb[0].mxu0 %v758
  %v3883 = vpop.f32.mrb[0].mxu0
  %v3884 = vadd.f32 %v3833, %v3883
  %v3885 = vpop.f32.mrb[0].mxu0
  %v3886 = vadd.f32 %v3835, %v3885
  %v3887 = vpop.f32.mrb[0].mxu0
  %v3888 = vpop.f32.mrb[0].mxu0
  %3889 = vdwg.mxu0
  %3890 = vmatprep.subr.bf16.mxu0 %v2791
  %3891 = vmatpush1.bf16.msra.mxu0 %v2790
  %3892 = vmatprep.subr.bf16.mxu0 %v2795
  %3893 = vmatpush1.bf16.msra.mxu0 %v2794
  %3894 = vmatprep.subr.bf16.mxu0 %v2799
  %3895 = vmatpush1.bf16.msra.mxu0 %v2798
  %3896 = vmatprep.subr.bf16.mxu0 %v2803
  %3897 = vmatpush1.bf16.msra.mxu0 %v2802
  %3898 = vmatprep.subr.bf16.mxu0 %v2807
  %3899 = vmatpush1.bf16.msra.mxu0 %v2806
  %3900 = vmatprep.subr.bf16.mxu0 %v2811
  %3901 = vmatpush1.bf16.msra.mxu0 %v2810
  %3902 = vmatprep.subr.bf16.mxu0 %v2815
  %3903 = vmatpush1.bf16.msra.mxu0 %v2814
  %3904 = vmatprep.subr.bf16.mxu0 %v2819
  %3905 = vmatpush1.bf16.msra.mxu0 %v2818
  %3906 = vmatprep.subr.bf16.mxu0 %v2823
  %3907 = vmatpush1.bf16.msra.mxu0 %v2822
  %3908 = vmatprep.subr.bf16.mxu0 %v2827
  %3909 = vmatpush1.bf16.msra.mxu0 %v2826
  %3910 = vmatprep.subr.bf16.mxu0 %v2831
  %3911 = vmatpush1.bf16.msra.mxu0 %v2830
  %3912 = vmatprep.subr.bf16.mxu0 %v2835
  %3913 = vmatpush1.bf16.msra.mxu0 %v2834
  %3914 = vmatprep.subr.bf16.mxu0 %v2839
  %3915 = vmatpush1.bf16.msra.mxu0 %v2838
  %3916 = vmatprep.subr.bf16.mxu0 %v2843
  %3917 = vmatpush1.bf16.msra.mxu0 %v2842
  %3918 = vmatprep.subr.bf16.mxu0 %v2847
  %3919 = vmatpush1.bf16.msra.mxu0 %v2846
  %3920 = vmatprep.subr.bf16.mxu0 %v2851
  %3921 = vmatpush1.bf16.msra.mxu0 %v2850
  %3922 = vmatprep.mubr.bf16.mxu0 %v743
  %3923 = vmatmul.mubr.bf16.gmra.mrb[0].mxu0 %v742
  %v3924 = vpop.f32.mrb[0].mxu0
  %v3925 = vadd.f32 %v3874, %v3924
  %v3926 = vpop.f32.mrb[0].mxu0
  %v3927 = vadd.f32 %v3876, %v3926
  %v3928 = vpop.f32.mrb[0].mxu0
  %v3929 = vadd.f32 %v3878, %v3928
  %v3930 = vpop.f32.mrb[0].mxu0
  %v3931 = vadd.f32 %v3880, %v3930
  %3932 = vmatprep.mubr.bf16.mxu0 %v761
  %3933 = vmatmul.mubr.bf16.gmra.mrb[0].mxu0 %v760
  %v3934 = vpop.f32.mrb[0].mxu0
  %v3935 = vadd.f32 %v3884, %v3934
  %v3936 = vpop.f32.mrb[0].mxu0
  %v3937 = vadd.f32 %v3886, %v3936
  %v3938 = vpop.f32.mrb[0].mxu0
  %v3939 = vpop.f32.mrb[0].mxu0
  %3940 = vdwg.mxu0
  %3941 = vmatprep.subr.bf16.mxu0 %v2855
  %3942 = vmatpush1.bf16.msra.mxu0 %v2854
  %3943 = vmatprep.subr.bf16.mxu0 %v2859
  %3944 = vmatpush1.bf16.msra.mxu0 %v2858
  %3945 = vmatprep.subr.bf16.mxu0 %v2863
  %3946 = vmatpush1.bf16.msra.mxu0 %v2862
  %3947 = vmatprep.subr.bf16.mxu0 %v2867
  %3948 = vmatpush1.bf16.msra.mxu0 %v2866
  %3949 = vmatprep.subr.bf16.mxu0 %v2871
  %3950 = vmatpush1.bf16.msra.mxu0 %v2870
  %3951 = vmatprep.subr.bf16.mxu0 %v2875
  %3952 = vmatpush1.bf16.msra.mxu0 %v2874
  %3953 = vmatprep.subr.bf16.mxu0 %v2879
  %3954 = vmatpush1.bf16.msra.mxu0 %v2878
  %3955 = vmatprep.subr.bf16.mxu0 %v2883
  %3956 = vmatpush1.bf16.msra.mxu0 %v2882
  %3957 = vmatprep.subr.bf16.mxu0 %v2887
  %3958 = vmatpush1.bf16.msra.mxu0 %v2886
  %3959 = vmatprep.subr.bf16.mxu0 %v2891
  %3960 = vmatpush1.bf16.msra.mxu0 %v2890
  %3961 = vmatprep.subr.bf16.mxu0 %v2895
  %3962 = vmatpush1.bf16.msra.mxu0 %v2894
  %3963 = vmatprep.subr.bf16.mxu0 %v2899
  %3964 = vmatpush1.bf16.msra.mxu0 %v2898
  %3965 = vmatprep.subr.bf16.mxu0 %v2903
  %3966 = vmatpush1.bf16.msra.mxu0 %v2902
  %3967 = vmatprep.subr.bf16.mxu0 %v2907
  %3968 = vmatpush1.bf16.msra.mxu0 %v2906
  %3969 = vmatprep.subr.bf16.mxu0 %v2911
  %3970 = vmatpush1.bf16.msra.mxu0 %v2910
  %3971 = vmatprep.subr.bf16.mxu0 %v2915
  %3972 = vmatpush1.bf16.msra.mxu0 %v2914
  %3973 = vmatprep.mubr.bf16.mxu0 %v745
  %3974 = vmatmul.mubr.bf16.gmra.mrb[0].mxu0 %v744
  %v3975 = vpop.f32.mrb[0].mxu0
  %v3976 = vadd.f32 %v3925, %v3975
  %v3977 = vpop.f32.mrb[0].mxu0
  %v3978 = vadd.f32 %v3927, %v3977
  %v3979 = vpop.f32.mrb[0].mxu0
  %v3980 = vadd.f32 %v3929, %v3979
  %v3981 = vpop.f32.mrb[0].mxu0
  %v3982 = vadd.f32 %v3931, %v3981
  %3983 = vmatprep.mubr.bf16.mxu0 %v763
  %3984 = vmatmul.mubr.bf16.gmra.mrb[0].mxu0 %v762
  %v3985 = vpop.f32.mrb[0].mxu0
  %v3986 = vadd.f32 %v3935, %v3985
  %v3987 = vpop.f32.mrb[0].mxu0
  %v3988 = vadd.f32 %v3937, %v3987
  %v3989 = vpop.f32.mrb[0].mxu0
  %v3990 = vpop.f32.mrb[0].mxu0
  %3991 = vdwg.mxu0
  %3992 = vmatprep.subr.bf16.mxu0 %v2919
  %3993 = vmatpush1.bf16.msra.mxu0 %v2918
  %3994 = vmatprep.subr.bf16.mxu0 %v2923
  %3995 = vmatpush1.bf16.msra.mxu0 %v2922
  %3996 = vmatprep.subr.bf16.mxu0 %v2927
  %3997 = vmatpush1.bf16.msra.mxu0 %v2926
  %3998 = vmatprep.subr.bf16.mxu0 %v2931
  %3999 = vmatpush1.bf16.msra.mxu0 %v2930
  %4000 = vmatprep.subr.bf16.mxu0 %v2935
  %4001 = vmatpush1.bf16.msra.mxu0 %v2934
  %4002 = vmatprep.subr.bf16.mxu0 %v2939
  %4003 = vmatpush1.bf16.msra.mxu0 %v2938
  %4004 = vmatprep.subr.bf16.mxu0 %v2943
  %4005 = vmatpush1.bf16.msra.mxu0 %v2942
  %4006 = vmatprep.subr.bf16.mxu0 %v2947
  %4007 = vmatpush1.bf16.msra.mxu0 %v2946
  %4008 = vmatprep.subr.bf16.mxu0 %v2951
  %4009 = vmatpush1.bf16.msra.mxu0 %v2950
  %4010 = vmatprep.subr.bf16.mxu0 %v2955
  %4011 = vmatpush1.bf16.msra.mxu0 %v2954
  %4012 = vmatprep.subr.bf16.mxu0 %v2959
  %4013 = vmatpush1.bf16.msra.mxu0 %v2958
  %4014 = vmatprep.subr.bf16.mxu0 %v2963
  %4015 = vmatpush1.bf16.msra.mxu0 %v2962
  %4016 = vmatprep.subr.bf16.mxu0 %v2967
  %4017 = vmatpush1.bf16.msra.mxu0 %v2966
  %4018 = vmatprep.subr.bf16.mxu0 %v2971
  %4019 = vmatpush1.bf16.msra.mxu0 %v2970
  %4020 = vmatprep.subr.bf16.mxu0 %v2975
  %4021 = vmatpush1.bf16.msra.mxu0 %v2974
  %4022 = vmatprep.subr.bf16.mxu0 %v2979
  %4023 = vmatpush1.bf16.msra.mxu0 %v2978
  %4024 = vmatprep.mubr.bf16.mxu0 %v747
  %4025 = vmatmul.mubr.bf16.gmra.mrb[0].mxu0 %v746
  %v4026 = vpop.f32.mrb[0].mxu0
  %v4027 = vadd.f32 %v3976, %v4026
  %v4028 = vpop.f32.mrb[0].mxu0
  %v4029 = vadd.f32 %v3978, %v4028
  %v4030 = vpop.f32.mrb[0].mxu0
  %v4031 = vadd.f32 %v3980, %v4030
  %v4032 = vpop.f32.mrb[0].mxu0
  %v4033 = vadd.f32 %v3982, %v4032
  %4034 = vmatprep.mubr.bf16.mxu0 %v765
  %4035 = vmatmul.mubr.bf16.gmra.mrb[0].mxu0 %v764
  %v4036 = vpop.f32.mrb[0].mxu0
  %v4037 = vadd.f32 %v3986, %v4036
  %v4038 = vpop.f32.mrb[0].mxu0
  %v4039 = vadd.f32 %v3988, %v4038
  %v4040 = vpop.f32.mrb[0].mxu0
  %v4041 = vpop.f32.mrb[0].mxu0
  %4042 = vdwg.mxu0
  %4043 = vmatprep.subr.bf16.mxu0 %v2983
  %4044 = vmatpush1.bf16.msra.mxu0 %v2982
  %4045 = vmatprep.subr.bf16.mxu0 %v2987
  %4046 = vmatpush1.bf16.msra.mxu0 %v2986
  %4047 = vmatprep.subr.bf16.mxu0 %v2991
  %4048 = vmatpush1.bf16.msra.mxu0 %v2990
  %4049 = vmatprep.subr.bf16.mxu0 %v2995
  %4050 = vmatpush1.bf16.msra.mxu0 %v2994
  %4051 = vmatprep.subr.bf16.mxu0 %v2999
  %4052 = vmatpush1.bf16.msra.mxu0 %v2998
  %4053 = vmatprep.subr.bf16.mxu0 %v3003
  %4054 = vmatpush1.bf16.msra.mxu0 %v3002
  %4055 = vmatprep.subr.bf16.mxu0 %v3007
  %4056 = vmatpush1.bf16.msra.mxu0 %v3006
  %4057 = vmatprep.subr.bf16.mxu0 %v3011
  %4058 = vmatpush1.bf16.msra.mxu0 %v3010
  %4059 = vmatprep.subr.bf16.mxu0 %v3015
  %4060 = vmatpush1.bf16.msra.mxu0 %v3014
  %4061 = vmatprep.subr.bf16.mxu0 %v3019
  %4062 = vmatpush1.bf16.msra.mxu0 %v3018
  %4063 = vmatprep.subr.bf16.mxu0 %v3023
  %4064 = vmatpush1.bf16.msra.mxu0 %v3022
  %4065 = vmatprep.subr.bf16.mxu0 %v3027
  %4066 = vmatpush1.bf16.msra.mxu0 %v3026
  %4067 = vmatprep.subr.bf16.mxu0 %v3031
  %4068 = vmatpush1.bf16.msra.mxu0 %v3030
  %4069 = vmatprep.subr.bf16.mxu0 %v3035
  %4070 = vmatpush1.bf16.msra.mxu0 %v3034
  %4071 = vmatprep.subr.bf16.mxu0 %v3039
  %4072 = vmatpush1.bf16.msra.mxu0 %v3038
  %4073 = vmatprep.subr.bf16.mxu0 %v3043
  %4074 = vmatpush1.bf16.msra.mxu0 %v3042
  %4075 = vmatprep.mubr.bf16.mxu0 %v749
  %4076 = vmatmul.mubr.bf16.gmra.mrb[0].mxu0 %v748
  %v4077 = vpop.f32.mrb[0].mxu0
  %v4078 = vadd.f32 %v4027, %v4077
  %v4079 = vpop.f32.mrb[0].mxu0
  %v4080 = vadd.f32 %v4029, %v4079
  %v4081 = vpop.f32.mrb[0].mxu0
  %v4082 = vadd.f32 %v4031, %v4081
  %v4083 = vpop.f32.mrb[0].mxu0
  %v4084 = vadd.f32 %v4033, %v4083
  %4085 = vmatprep.mubr.bf16.mxu0 %v767
  %4086 = vmatmul.mubr.bf16.gmra.mrb[0].mxu0 %v766
  %v4087 = vpop.f32.mrb[0].mxu0
  %v4088 = vadd.f32 %v4037, %v4087
  %v4089 = vpop.f32.mrb[0].mxu0
  %v4090 = vadd.f32 %v4039, %v4089
  %v4091 = vpop.f32.mrb[0].mxu0
  %v4092 = vpop.f32.mrb[0].mxu0
  %4093 = vdwg.mxu0
  %4094 = vmatprep.subr.bf16.mxu0 %v3047
  %4095 = vmatpush1.bf16.msra.mxu0 %v3046
  %4096 = vmatprep.subr.bf16.mxu0 %v3051
  %4097 = vmatpush1.bf16.msra.mxu0 %v3050
  %4098 = vmatprep.subr.bf16.mxu0 %v3055
  %4099 = vmatpush1.bf16.msra.mxu0 %v3054
  %4100 = vmatprep.subr.bf16.mxu0 %v3059
  %4101 = vmatpush1.bf16.msra.mxu0 %v3058
  %4102 = vmatprep.subr.bf16.mxu0 %v3063
  %4103 = vmatpush1.bf16.msra.mxu0 %v3062
  %4104 = vmatprep.subr.bf16.mxu0 %v3067
  %4105 = vmatpush1.bf16.msra.mxu0 %v3066
  %4106 = vmatprep.subr.bf16.mxu0 %v3071
  %4107 = vmatpush1.bf16.msra.mxu0 %v3070
  %4108 = vmatprep.subr.bf16.mxu0 %v3075
  %4109 = vmatpush1.bf16.msra.mxu0 %v3074
  %4110 = vmatprep.subr.bf16.mxu0 %v3079
  %4111 = vmatpush1.bf16.msra.mxu0 %v3078
  %4112 = vmatprep.subr.bf16.mxu0 %v3083
  %4113 = vmatpush1.bf16.msra.mxu0 %v3082
  %4114 = vmatprep.subr.bf16.mxu0 %v3087
  %4115 = vmatpush1.bf16.msra.mxu0 %v3086
  %4116 = vmatprep.subr.bf16.mxu0 %v3091
  %4117 = vmatpush1.bf16.msra.mxu0 %v3090
  %4118 = vmatprep.subr.bf16.mxu0 %v3095
  %4119 = vmatpush1.bf16.msra.mxu0 %v3094
  %4120 = vmatprep.subr.bf16.mxu0 %v3099
  %4121 = vmatpush1.bf16.msra.mxu0 %v3098
  %4122 = vmatprep.subr.bf16.mxu0 %v3103
  %4123 = vmatpush1.bf16.msra.mxu0 %v3102
  %4124 = vmatprep.subr.bf16.mxu0 %v3107
  %4125 = vmatpush1.bf16.msra.mxu0 %v3106
  %4126 = vmatprep.mubr.bf16.mxu0 %v751
  %4127 = vmatmul.mubr.bf16.gmra.mrb[0].mxu0 %v750
  %v4128 = vpop.f32.mrb[0].mxu0
  %v4129 = vadd.f32 %v4078, %v4128
  %v4130 = vpop.f32.mrb[0].mxu0
  %v4131 = vadd.f32 %v4080, %v4130
  %v4132 = vpop.f32.mrb[0].mxu0
  %v4133 = vadd.f32 %v4082, %v4132
  %v4134 = vpop.f32.mrb[0].mxu0
  %v4135 = vadd.f32 %v4084, %v4134
  %4136 = vmatprep.mubr.bf16.mxu0 %v769
  %4137 = vmatmul.mubr.bf16.gmra.mrb[0].mxu0 %v768
  %v4138 = vpop.f32.mrb[0].mxu0
  %v4139 = vadd.f32 %v4088, %v4138
  %v4140 = vpop.f32.mrb[0].mxu0
  %v4141 = vadd.f32 %v4090, %v4140
  %v4142 = vpop.f32.mrb[0].mxu0
  %v4143 = vpop.f32.mrb[0].mxu0
  %4144 = vdwg.mxu0
  %4145 = vmatprep.subr.bf16.mxu0 %v2537
  %4146 = vmatpush1.bf16.msra.mxu0 %v2536
  %4147 = vmatprep.subr.bf16.mxu0 %v2541
  %4148 = vmatpush1.bf16.msra.mxu0 %v2540
  %4149 = vmatprep.subr.bf16.mxu0 %v2545
  %4150 = vmatpush1.bf16.msra.mxu0 %v2544
  %4151 = vmatprep.subr.bf16.mxu0 %v2549
  %4152 = vmatpush1.bf16.msra.mxu0 %v2548
  %4153 = vmatprep.subr.bf16.mxu0 %v2553
  %4154 = vmatpush1.bf16.msra.mxu0 %v2552
  %4155 = vmatprep.subr.bf16.mxu0 %v2557
  %4156 = vmatpush1.bf16.msra.mxu0 %v2556
  %4157 = vmatprep.subr.bf16.mxu0 %v2561
  %4158 = vmatpush1.bf16.msra.mxu0 %v2560
  %4159 = vmatprep.subr.bf16.mxu0 %v2565
  %4160 = vmatpush1.bf16.msra.mxu0 %v2564
  %4161 = vmatprep.subr.bf16.mxu0 %v2569
  %4162 = vmatpush1.bf16.msra.mxu0 %v2568
  %4163 = vmatprep.subr.bf16.mxu0 %v2573
  %4164 = vmatpush1.bf16.msra.mxu0 %v2572
  %4165 = vmatprep.subr.bf16.mxu0 %v2577
  %4166 = vmatpush1.bf16.msra.mxu0 %v2576
  %4167 = vmatprep.subr.bf16.mxu0 %v2581
  %4168 = vmatpush1.bf16.msra.mxu0 %v2580
  %4169 = vmatprep.subr.bf16.mxu0 %v2585
  %4170 = vmatpush1.bf16.msra.mxu0 %v2584
  %4171 = vmatprep.subr.bf16.mxu0 %v2589
  %4172 = vmatpush1.bf16.msra.mxu0 %v2588
  %4173 = vmatprep.subr.bf16.mxu0 %v2593
  %4174 = vmatpush1.bf16.msra.mxu0 %v2592
  %4175 = vmatprep.subr.bf16.mxu0 %v2597
  %4176 = vmatpush1.bf16.msra.mxu0 %v2596
  %4177 = vmatprep.mubr.bf16.mxu0 %v735
  %4178 = vmatmul.mubr.bf16.gmra.mrb[0].mxu0 %v734
  %v4179 = vpop.f32.mrb[0].mxu0
  %v4180 = vadd.f32 %v644, %v4179
  %v4181 = vpop.f32.mrb[0].mxu0
  %v4182 = vadd.f32 %v648, %v4181
  %v4183 = vpop.f32.mrb[0].mxu0
  %v4184 = vadd.f32 %v644, %v4183
  %v4185 = vpop.f32.mrb[0].mxu0
  %v4186 = vadd.f32 %v648, %v4185
  %4187 = vmatprep.mubr.bf16.mxu0 %v753
  %4188 = vmatmul.mubr.bf16.gmra.mrb[0].mxu0 %v752
  %v4189 = vpop.f32.mrb[0].mxu0
  %v4190 = vadd.f32 %v644, %v4189
  %v4191 = vpop.f32.mrb[0].mxu0
  %v4192 = vadd.f32 %v648, %v4191
  %v4193 = vpop.f32.mrb[0].mxu0
  %v4194 = vpop.f32.mrb[0].mxu0
  %4195 = vdwg.mxu0
  %4196 = vmatprep.subr.bf16.mxu0 %v2601
  %4197 = vmatpush1.bf16.msra.mxu0 %v2600
  %4198 = vmatprep.subr.bf16.mxu0 %v2605
  %4199 = vmatpush1.bf16.msra.mxu0 %v2604
  %4200 = vmatprep.subr.bf16.mxu0 %v2609
  %4201 = vmatpush1.bf16.msra.mxu0 %v2608
  %4202 = vmatprep.subr.bf16.mxu0 %v2613
  %4203 = vmatpush1.bf16.msra.mxu0 %v2612
  %4204 = vmatprep.subr.bf16.mxu0 %v2617
  %4205 = vmatpush1.bf16.msra.mxu0 %v2616
  %4206 = vmatprep.subr.bf16.mxu0 %v2621
  %4207 = vmatpush1.bf16.msra.mxu0 %v2620
  %4208 = vmatprep.subr.bf16.mxu0 %v2625
  %4209 = vmatpush1.bf16.msra.mxu0 %v2624
  %4210 = vmatprep.subr.bf16.mxu0 %v2629
  %4211 = vmatpush1.bf16.msra.mxu0 %v2628
  %4212 = vmatprep.subr.bf16.mxu0 %v2633
  %4213 = vmatpush1.bf16.msra.mxu0 %v2632
  %4214 = vmatprep.subr.bf16.mxu0 %v2637
  %4215 = vmatpush1.bf16.msra.mxu0 %v2636
  %4216 = vmatprep.subr.bf16.mxu0 %v2641
  %4217 = vmatpush1.bf16.msra.mxu0 %v2640
  %4218 = vmatprep.subr.bf16.mxu0 %v2645
  %4219 = vmatpush1.bf16.msra.mxu0 %v2644
  %4220 = vmatprep.subr.bf16.mxu0 %v2649
  %4221 = vmatpush1.bf16.msra.mxu0 %v2648
  %4222 = vmatprep.subr.bf16.mxu0 %v2653
  %4223 = vmatpush1.bf16.msra.mxu0 %v2652
  %4224 = vmatprep.subr.bf16.mxu0 %v2657
  %4225 = vmatpush1.bf16.msra.mxu0 %v2656
  %4226 = vmatprep.subr.bf16.mxu0 %v2661
  %4227 = vmatpush1.bf16.msra.mxu0 %v2660
  %4228 = vmatprep.mubr.bf16.mxu0 %v737
  %4229 = vmatmul.mubr.bf16.gmra.mrb[0].mxu0 %v736
  %v4230 = vpop.f32.mrb[0].mxu0
  %v4231 = vadd.f32 %v4180, %v4230
  %v4232 = vpop.f32.mrb[0].mxu0
  %v4233 = vadd.f32 %v4182, %v4232
  %v4234 = vpop.f32.mrb[0].mxu0
  %v4235 = vadd.f32 %v4184, %v4234
  %v4236 = vpop.f32.mrb[0].mxu0
  %v4237 = vadd.f32 %v4186, %v4236
  %4238 = vmatprep.mubr.bf16.mxu0 %v755
  %4239 = vmatmul.mubr.bf16.gmra.mrb[0].mxu0 %v754
  %v4240 = vpop.f32.mrb[0].mxu0
  %v4241 = vadd.f32 %v4190, %v4240
  %v4242 = vpop.f32.mrb[0].mxu0
  %v4243 = vadd.f32 %v4192, %v4242
  %v4244 = vpop.f32.mrb[0].mxu0
  %v4245 = vpop.f32.mrb[0].mxu0
  %4246 = vdwg.mxu0
  %4247 = vmatprep.subr.bf16.mxu0 %v2665
  %4248 = vmatpush1.bf16.msra.mxu0 %v2664
  %4249 = vmatprep.subr.bf16.mxu0 %v2669
  %4250 = vmatpush1.bf16.msra.mxu0 %v2668
  %4251 = vmatprep.subr.bf16.mxu0 %v2673
  %4252 = vmatpush1.bf16.msra.mxu0 %v2672
  %4253 = vmatprep.subr.bf16.mxu0 %v2677
  %4254 = vmatpush1.bf16.msra.mxu0 %v2676
  %4255 = vmatprep.subr.bf16.mxu0 %v2681
  %4256 = vmatpush1.bf16.msra.mxu0 %v2680
  %4257 = vmatprep.subr.bf16.mxu0 %v2685
  %4258 = vmatpush1.bf16.msra.mxu0 %v2684
  %4259 = vmatprep.subr.bf16.mxu0 %v2689
  %4260 = vmatpush1.bf16.msra.mxu0 %v2688
  %4261 = vmatprep.subr.bf16.mxu0 %v2693
  %4262 = vmatpush1.bf16.msra.mxu0 %v2692
  %4263 = vmatprep.subr.bf16.mxu0 %v2697
  %4264 = vmatpush1.bf16.msra.mxu0 %v2696
  %4265 = vmatprep.subr.bf16.mxu0 %v2701
  %4266 = vmatpush1.bf16.msra.mxu0 %v2700
  %4267 = vmatprep.subr.bf16.mxu0 %v2705
  %4268 = vmatpush1.bf16.msra.mxu0 %v2704
  %4269 = vmatprep.subr.bf16.mxu0 %v2709
  %4270 = vmatpush1.bf16.msra.mxu0 %v2708
  %4271 = vmatprep.subr.bf16.mxu0 %v2713
  %4272 = vmatpush1.bf16.msra.mxu0 %v2712
  %4273 = vmatprep.subr.bf16.mxu0 %v2717
  %4274 = vmatpush1.bf16.msra.mxu0 %v2716
  %4275 = vmatprep.subr.bf16.mxu0 %v2721
  %4276 = vmatpush1.bf16.msra.mxu0 %v2720
  %4277 = vmatprep.subr.bf16.mxu0 %v2725
  %4278 = vmatpush1.bf16.msra.mxu0 %v2724
  %4279 = vmatprep.mubr.bf16.mxu0 %v739
  %4280 = vmatmul.mubr.bf16.gmra.mrb[0].mxu0 %v738
  %v4281 = vpop.f32.mrb[0].mxu0
  %v4282 = vadd.f32 %v4231, %v4281
  %v4283 = vpop.f32.mrb[0].mxu0
  %v4284 = vadd.f32 %v4233, %v4283
  %v4285 = vpop.f32.mrb[0].mxu0
  %v4286 = vadd.f32 %v4235, %v4285
  %v4287 = vpop.f32.mrb[0].mxu0
  %v4288 = vadd.f32 %v4237, %v4287
  %4289 = vmatprep.mubr.bf16.mxu0 %v757
  %4290 = vmatmul.mubr.bf16.gmra.mrb[0].mxu0 %v756
  %v4291 = vpop.f32.mrb[0].mxu0
  %v4292 = vadd.f32 %v4241, %v4291
  %v4293 = vpop.f32.mrb[0].mxu0
  %v4294 = vadd.f32 %v4243, %v4293
  %v4295 = vpop.f32.mrb[0].mxu0
  %v4296 = vpop.f32.mrb[0].mxu0
  %4297 = vdwg.mxu0
  %4298 = vmatprep.subr.bf16.mxu0 %v2729
  %4299 = vmatpush1.bf16.msra.mxu0 %v2728
  %4300 = vmatprep.subr.bf16.mxu0 %v2733
  %4301 = vmatpush1.bf16.msra.mxu0 %v2732
  %4302 = vmatprep.subr.bf16.mxu0 %v2737
  %4303 = vmatpush1.bf16.msra.mxu0 %v2736
  %4304 = vmatprep.subr.bf16.mxu0 %v2741
  %4305 = vmatpush1.bf16.msra.mxu0 %v2740
  %4306 = vmatprep.subr.bf16.mxu0 %v2745
  %4307 = vmatpush1.bf16.msra.mxu0 %v2744
  %4308 = vmatprep.subr.bf16.mxu0 %v2749
  %4309 = vmatpush1.bf16.msra.mxu0 %v2748
  %4310 = vmatprep.subr.bf16.mxu0 %v2753
  %4311 = vmatpush1.bf16.msra.mxu0 %v2752
  %4312 = vmatprep.subr.bf16.mxu0 %v2757
  %4313 = vmatpush1.bf16.msra.mxu0 %v2756
  %4314 = vmatprep.subr.bf16.mxu0 %v2761
  %4315 = vmatpush1.bf16.msra.mxu0 %v2760
  %4316 = vmatprep.subr.bf16.mxu0 %v2765
  %4317 = vmatpush1.bf16.msra.mxu0 %v2764
  %4318 = vmatprep.subr.bf16.mxu0 %v2769
  %4319 = vmatpush1.bf16.msra.mxu0 %v2768
  %4320 = vmatprep.subr.bf16.mxu0 %v2773
  %4321 = vmatpush1.bf16.msra.mxu0 %v2772
  %4322 = vmatprep.subr.bf16.mxu0 %v2777
  %4323 = vmatpush1.bf16.msra.mxu0 %v2776
  %4324 = vmatprep.subr.bf16.mxu0 %v2781
  %4325 = vmatpush1.bf16.msra.mxu0 %v2780
  %4326 = vmatprep.subr.bf16.mxu0 %v2785
  %4327 = vmatpush1.bf16.msra.mxu0 %v2784
  %4328 = vmatprep.subr.bf16.mxu0 %v2789
  %4329 = vmatpush1.bf16.msra.mxu0 %v2788
  %4330 = vmatprep.mubr.bf16.mxu0 %v741
  %4331 = vmatmul.mubr.bf16.gmra.mrb[0].mxu0 %v740
  %v4332 = vpop.f32.mrb[0].mxu0
  %v4333 = vadd.f32 %v4282, %v4332
  %v4334 = vpop.f32.mrb[0].mxu0
  %v4335 = vadd.f32 %v4284, %v4334
  %v4336 = vpop.f32.mrb[0].mxu0
  %v4337 = vadd.f32 %v4286, %v4336
  %v4338 = vpop.f32.mrb[0].mxu0
  %v4339 = vadd.f32 %v4288, %v4338
  %4340 = vmatprep.mubr.bf16.mxu0 %v759
  %4341 = vmatmul.mubr.bf16.gmra.mrb[0].mxu0 %v758
  %v4342 = vpop.f32.mrb[0].mxu0
  %v4343 = vadd.f32 %v4292, %v4342
  %v4344 = vpop.f32.mrb[0].mxu0
  %v4345 = vadd.f32 %v4294, %v4344
  %v4346 = vpop.f32.mrb[0].mxu0
  %v4347 = vpop.f32.mrb[0].mxu0
  %4348 = vdwg.mxu0
  %4349 = vmatprep.subr.bf16.mxu0 %v2793
  %4350 = vmatpush1.bf16.msra.mxu0 %v2792
  %4351 = vmatprep.subr.bf16.mxu0 %v2797
  %4352 = vmatpush1.bf16.msra.mxu0 %v2796
  %4353 = vmatprep.subr.bf16.mxu0 %v2801
  %4354 = vmatpush1.bf16.msra.mxu0 %v2800
  %4355 = vmatprep.subr.bf16.mxu0 %v2805
  %4356 = vmatpush1.bf16.msra.mxu0 %v2804
  %4357 = vmatprep.subr.bf16.mxu0 %v2809
  %4358 = vmatpush1.bf16.msra.mxu0 %v2808
  %4359 = vmatprep.subr.bf16.mxu0 %v2813
  %4360 = vmatpush1.bf16.msra.mxu0 %v2812
  %4361 = vmatprep.subr.bf16.mxu0 %v2817
  %4362 = vmatpush1.bf16.msra.mxu0 %v2816
  %4363 = vmatprep.subr.bf16.mxu0 %v2821
  %4364 = vmatpush1.bf16.msra.mxu0 %v2820
  %4365 = vmatprep.subr.bf16.mxu0 %v2825
  %4366 = vmatpush1.bf16.msra.mxu0 %v2824
  %4367 = vmatprep.subr.bf16.mxu0 %v2829
  %4368 = vmatpush1.bf16.msra.mxu0 %v2828
  %4369 = vmatprep.subr.bf16.mxu0 %v2833
  %4370 = vmatpush1.bf16.msra.mxu0 %v2832
  %4371 = vmatprep.subr.bf16.mxu0 %v2837
  %4372 = vmatpush1.bf16.msra.mxu0 %v2836
  %4373 = vmatprep.subr.bf16.mxu0 %v2841
  %4374 = vmatpush1.bf16.msra.mxu0 %v2840
  %4375 = vmatprep.subr.bf16.mxu0 %v2845
  %4376 = vmatpush1.bf16.msra.mxu0 %v2844
  %4377 = vmatprep.subr.bf16.mxu0 %v2849
  %4378 = vmatpush1.bf16.msra.mxu0 %v2848
  %4379 = vmatprep.subr.bf16.mxu0 %v2853
  %4380 = vmatpush1.bf16.msra.mxu0 %v2852
  %4381 = vmatprep.mubr.bf16.mxu0 %v743
  %4382 = vmatmul.mubr.bf16.gmra.mrb[0].mxu0 %v742
  %v4383 = vpop.f32.mrb[0].mxu0
  %v4384 = vadd.f32 %v4333, %v4383
  %v4385 = vpop.f32.mrb[0].mxu0
  %v4386 = vadd.f32 %v4335, %v4385
  %v4387 = vpop.f32.mrb[0].mxu0
  %v4388 = vadd.f32 %v4337, %v4387
  %v4389 = vpop.f32.mrb[0].mxu0
  %v4390 = vadd.f32 %v4339, %v4389
  %4391 = vmatprep.mubr.bf16.mxu0 %v761
  %4392 = vmatmul.mubr.bf16.gmra.mrb[0].mxu0 %v760
  %v4393 = vpop.f32.mrb[0].mxu0
  %v4394 = vadd.f32 %v4343, %v4393
  %v4395 = vpop.f32.mrb[0].mxu0
  %v4396 = vadd.f32 %v4345, %v4395
  %v4397 = vpop.f32.mrb[0].mxu0
  %v4398 = vpop.f32.mrb[0].mxu0
  %4399 = vdwg.mxu0
  %4400 = vmatprep.subr.bf16.mxu0 %v2857
  %4401 = vmatpush1.bf16.msra.mxu0 %v2856
  %4402 = vmatprep.subr.bf16.mxu0 %v2861
  %4403 = vmatpush1.bf16.msra.mxu0 %v2860
  %4404 = vmatprep.subr.bf16.mxu0 %v2865
  %4405 = vmatpush1.bf16.msra.mxu0 %v2864
  %4406 = vmatprep.subr.bf16.mxu0 %v2869
  %4407 = vmatpush1.bf16.msra.mxu0 %v2868
  %4408 = vmatprep.subr.bf16.mxu0 %v2873
  %4409 = vmatpush1.bf16.msra.mxu0 %v2872
  %4410 = vmatprep.subr.bf16.mxu0 %v2877
  %4411 = vmatpush1.bf16.msra.mxu0 %v2876
  %4412 = vmatprep.subr.bf16.mxu0 %v2881
  %4413 = vmatpush1.bf16.msra.mxu0 %v2880
  %4414 = vmatprep.subr.bf16.mxu0 %v2885
  %4415 = vmatpush1.bf16.msra.mxu0 %v2884
  %4416 = vmatprep.subr.bf16.mxu0 %v2889
  %4417 = vmatpush1.bf16.msra.mxu0 %v2888
  %4418 = vmatprep.subr.bf16.mxu0 %v2893
  %4419 = vmatpush1.bf16.msra.mxu0 %v2892
  %4420 = vmatprep.subr.bf16.mxu0 %v2897
  %4421 = vmatpush1.bf16.msra.mxu0 %v2896
  %4422 = vmatprep.subr.bf16.mxu0 %v2901
  %4423 = vmatpush1.bf16.msra.mxu0 %v2900
  %4424 = vmatprep.subr.bf16.mxu0 %v2905
  %4425 = vmatpush1.bf16.msra.mxu0 %v2904
  %4426 = vmatprep.subr.bf16.mxu0 %v2909
  %4427 = vmatpush1.bf16.msra.mxu0 %v2908
  %4428 = vmatprep.subr.bf16.mxu0 %v2913
  %4429 = vmatpush1.bf16.msra.mxu0 %v2912
  %4430 = vmatprep.subr.bf16.mxu0 %v2917
  %4431 = vmatpush1.bf16.msra.mxu0 %v2916
  %4432 = vmatprep.mubr.bf16.mxu0 %v745
  %4433 = vmatmul.mubr.bf16.gmra.mrb[0].mxu0 %v744
  %v4434 = vpop.f32.mrb[0].mxu0
  %v4435 = vadd.f32 %v4384, %v4434
  %v4436 = vpop.f32.mrb[0].mxu0
  %v4437 = vadd.f32 %v4386, %v4436
  %v4438 = vpop.f32.mrb[0].mxu0
  %v4439 = vadd.f32 %v4388, %v4438
  %v4440 = vpop.f32.mrb[0].mxu0
  %v4441 = vadd.f32 %v4390, %v4440
  %4442 = vmatprep.mubr.bf16.mxu0 %v763
  %4443 = vmatmul.mubr.bf16.gmra.mrb[0].mxu0 %v762
  %v4444 = vpop.f32.mrb[0].mxu0
  %v4445 = vadd.f32 %v4394, %v4444
  %v4446 = vpop.f32.mrb[0].mxu0
  %v4447 = vadd.f32 %v4396, %v4446
  %v4448 = vpop.f32.mrb[0].mxu0
  %v4449 = vpop.f32.mrb[0].mxu0
  %4450 = vdwg.mxu0
  %4451 = vmatprep.subr.bf16.mxu0 %v2921
  %4452 = vmatpush1.bf16.msra.mxu0 %v2920
  %4453 = vmatprep.subr.bf16.mxu0 %v2925
  %4454 = vmatpush1.bf16.msra.mxu0 %v2924
  %4455 = vmatprep.subr.bf16.mxu0 %v2929
  %4456 = vmatpush1.bf16.msra.mxu0 %v2928
  %4457 = vmatprep.subr.bf16.mxu0 %v2933
  %4458 = vmatpush1.bf16.msra.mxu0 %v2932
  %4459 = vmatprep.subr.bf16.mxu0 %v2937
  %4460 = vmatpush1.bf16.msra.mxu0 %v2936
  %4461 = vmatprep.subr.bf16.mxu0 %v2941
  %4462 = vmatpush1.bf16.msra.mxu0 %v2940
  %4463 = vmatprep.subr.bf16.mxu0 %v2945
  %4464 = vmatpush1.bf16.msra.mxu0 %v2944
  %4465 = vmatprep.subr.bf16.mxu0 %v2949
  %4466 = vmatpush1.bf16.msra.mxu0 %v2948
  %4467 = vmatprep.subr.bf16.mxu0 %v2953
  %4468 = vmatpush1.bf16.msra.mxu0 %v2952
  %4469 = vmatprep.subr.bf16.mxu0 %v2957
  %4470 = vmatpush1.bf16.msra.mxu0 %v2956
  %4471 = vmatprep.subr.bf16.mxu0 %v2961
  %4472 = vmatpush1.bf16.msra.mxu0 %v2960
  %4473 = vmatprep.subr.bf16.mxu0 %v2965
  %4474 = vmatpush1.bf16.msra.mxu0 %v2964
  %4475 = vmatprep.subr.bf16.mxu0 %v2969
  %4476 = vmatpush1.bf16.msra.mxu0 %v2968
  %4477 = vmatprep.subr.bf16.mxu0 %v2973
  %4478 = vmatpush1.bf16.msra.mxu0 %v2972
  %4479 = vmatprep.subr.bf16.mxu0 %v2977
  %4480 = vmatpush1.bf16.msra.mxu0 %v2976
  %4481 = vmatprep.subr.bf16.mxu0 %v2981
  %4482 = vmatpush1.bf16.msra.mxu0 %v2980
  %4483 = vmatprep.mubr.bf16.mxu0 %v747
  %4484 = vmatmul.mubr.bf16.gmra.mrb[0].mxu0 %v746
  %v4485 = vpop.f32.mrb[0].mxu0
  %v4486 = vadd.f32 %v4435, %v4485
  %v4487 = vpop.f32.mrb[0].mxu0
  %v4488 = vadd.f32 %v4437, %v4487
  %v4489 = vpop.f32.mrb[0].mxu0
  %v4490 = vadd.f32 %v4439, %v4489
  %v4491 = vpop.f32.mrb[0].mxu0
  %v4492 = vadd.f32 %v4441, %v4491
  %4493 = vmatprep.mubr.bf16.mxu0 %v765
  %4494 = vmatmul.mubr.bf16.gmra.mrb[0].mxu0 %v764
  %v4495 = vpop.f32.mrb[0].mxu0
  %v4496 = vadd.f32 %v4445, %v4495
  %v4497 = vpop.f32.mrb[0].mxu0
  %v4498 = vadd.f32 %v4447, %v4497
  %v4499 = vpop.f32.mrb[0].mxu0
  %v4500 = vpop.f32.mrb[0].mxu0
  %4501 = vdwg.mxu0
  %4502 = vmatprep.subr.bf16.mxu0 %v2985
  %4503 = vmatpush1.bf16.msra.mxu0 %v2984
  %4504 = vmatprep.subr.bf16.mxu0 %v2989
  %4505 = vmatpush1.bf16.msra.mxu0 %v2988
  %4506 = vmatprep.subr.bf16.mxu0 %v2993
  %4507 = vmatpush1.bf16.msra.mxu0 %v2992
  %4508 = vmatprep.subr.bf16.mxu0 %v2997
  %4509 = vmatpush1.bf16.msra.mxu0 %v2996
  %4510 = vmatprep.subr.bf16.mxu0 %v3001
  %4511 = vmatpush1.bf16.msra.mxu0 %v3000
  %4512 = vmatprep.subr.bf16.mxu0 %v3005
  %4513 = vmatpush1.bf16.msra.mxu0 %v3004
  %4514 = vmatprep.subr.bf16.mxu0 %v3009
  %4515 = vmatpush1.bf16.msra.mxu0 %v3008
  %4516 = vmatprep.subr.bf16.mxu0 %v3013
  %4517 = vmatpush1.bf16.msra.mxu0 %v3012
  %4518 = vmatprep.subr.bf16.mxu0 %v3017
  %4519 = vmatpush1.bf16.msra.mxu0 %v3016
  %4520 = vmatprep.subr.bf16.mxu0 %v3021
  %4521 = vmatpush1.bf16.msra.mxu0 %v3020
  %4522 = vmatprep.subr.bf16.mxu0 %v3025
  %4523 = vmatpush1.bf16.msra.mxu0 %v3024
  %4524 = vmatprep.subr.bf16.mxu0 %v3029
  %4525 = vmatpush1.bf16.msra.mxu0 %v3028
  %4526 = vmatprep.subr.bf16.mxu0 %v3033
  %4527 = vmatpush1.bf16.msra.mxu0 %v3032
  %4528 = vmatprep.subr.bf16.mxu0 %v3037
  %4529 = vmatpush1.bf16.msra.mxu0 %v3036
  %4530 = vmatprep.subr.bf16.mxu0 %v3041
  %4531 = vmatpush1.bf16.msra.mxu0 %v3040
  %4532 = vmatprep.subr.bf16.mxu0 %v3045
  %4533 = vmatpush1.bf16.msra.mxu0 %v3044
  %4534 = vmatprep.mubr.bf16.mxu0 %v749
  %4535 = vmatmul.mubr.bf16.gmra.mrb[0].mxu0 %v748
  %v4536 = vpop.f32.mrb[0].mxu0
  %v4537 = vadd.f32 %v4486, %v4536
  %v4538 = vpop.f32.mrb[0].mxu0
  %v4539 = vadd.f32 %v4488, %v4538
  %v4540 = vpop.f32.mrb[0].mxu0
  %v4541 = vadd.f32 %v4490, %v4540
  %v4542 = vpop.f32.mrb[0].mxu0
  %v4543 = vadd.f32 %v4492, %v4542
  %4544 = vmatprep.mubr.bf16.mxu0 %v767
  %4545 = vmatmul.mubr.bf16.gmra.mrb[0].mxu0 %v766
  %v4546 = vpop.f32.mrb[0].mxu0
  %v4547 = vadd.f32 %v4496, %v4546
  %v4548 = vpop.f32.mrb[0].mxu0
  %v4549 = vadd.f32 %v4498, %v4548
  %v4550 = vpop.f32.mrb[0].mxu0
  %v4551 = vpop.f32.mrb[0].mxu0
  %4552 = vdwg.mxu0
  %4553 = vmatprep.subr.bf16.mxu0 %v3049
  %4554 = vmatpush1.bf16.msra.mxu0 %v3048
  %4555 = vmatprep.subr.bf16.mxu0 %v3053
  %4556 = vmatpush1.bf16.msra.mxu0 %v3052
  %4557 = vmatprep.subr.bf16.mxu0 %v3057
  %4558 = vmatpush1.bf16.msra.mxu0 %v3056
  %4559 = vmatprep.subr.bf16.mxu0 %v3061
  %4560 = vmatpush1.bf16.msra.mxu0 %v3060
  %4561 = vmatprep.subr.bf16.mxu0 %v3065
  %4562 = vmatpush1.bf16.msra.mxu0 %v3064
  %4563 = vmatprep.subr.bf16.mxu0 %v3069
  %4564 = vmatpush1.bf16.msra.mxu0 %v3068
  %4565 = vmatprep.subr.bf16.mxu0 %v3073
  %4566 = vmatpush1.bf16.msra.mxu0 %v3072
  %4567 = vmatprep.subr.bf16.mxu0 %v3077
  %4568 = vmatpush1.bf16.msra.mxu0 %v3076
  %4569 = vmatprep.subr.bf16.mxu0 %v3081
  %4570 = vmatpush1.bf16.msra.mxu0 %v3080
  %4571 = vmatprep.subr.bf16.mxu0 %v3085
  %4572 = vmatpush1.bf16.msra.mxu0 %v3084
  %4573 = vmatprep.subr.bf16.mxu0 %v3089
  %4574 = vmatpush1.bf16.msra.mxu0 %v3088
  %4575 = vmatprep.subr.bf16.mxu0 %v3093
  %4576 = vmatpush1.bf16.msra.mxu0 %v3092
  %4577 = vmatprep.subr.bf16.mxu0 %v3097
  %4578 = vmatpush1.bf16.msra.mxu0 %v3096
  %4579 = vmatprep.subr.bf16.mxu0 %v3101
  %4580 = vmatpush1.bf16.msra.mxu0 %v3100
  %4581 = vmatprep.subr.bf16.mxu0 %v3105
  %4582 = vmatpush1.bf16.msra.mxu0 %v3104
  %4583 = vmatprep.subr.bf16.mxu0 %v3109
  %4584 = vmatpush1.bf16.msra.mxu0 %v3108
  %4585 = vmatprep.mubr.bf16.mxu0 %v751
  %4586 = vmatmul.mubr.bf16.gmra.mrb[0].mxu0 %v750
  %v4587 = vpop.f32.mrb[0].mxu0
  %v4588 = vadd.f32 %v4537, %v4587
  %v4589 = vpop.f32.mrb[0].mxu0
  %v4590 = vadd.f32 %v4539, %v4589
  %v4591 = vpop.f32.mrb[0].mxu0
  %v4592 = vadd.f32 %v4541, %v4591
  %v4593 = vpop.f32.mrb[0].mxu0
  %v4594 = vadd.f32 %v4543, %v4593
  %4595 = vmatprep.mubr.bf16.mxu0 %v769
  %4596 = vmatmul.mubr.bf16.gmra.mrb[0].mxu0 %v768
  %v4597 = vpop.f32.mrb[0].mxu0
  %v4598 = vadd.f32 %v4547, %v4597
  %v4599 = vpop.f32.mrb[0].mxu0
  %v4600 = vadd.f32 %v4549, %v4599
  %v4601 = vpop.f32.mrb[0].mxu0
  %v4602 = vpop.f32.mrb[0].mxu0
  %4603 = vdwg.mxu0
  %v4604 = vmax.f32 %v4129, 0.0
  %v4605 = vmax.f32 %v4131, 0.0
  %v4606 = vmax.f32 %v4588, 0.0
  %v4607 = vmax.f32 %v4590, 0.0
  %v4608 = vmax.f32 %v4133, 0.0
  %v4609 = vmax.f32 %v4135, 0.0
  %v4610 = vmax.f32 %v4592, 0.0
  %v4611 = vmax.f32 %v4594, 0.0
  %v4612 = vmax.f32 %v4139, 0.0
  %v4613 = vmax.f32 %v4141, 0.0
  %v4614 = vmax.f32 %v4598, 0.0
  %v4615 = vmax.f32 %v4600, 0.0
  %v4616 = vadd.f32 %v4604, %v4608
  %vm4617 = vcmask 1041408
  %v4618 = vsel %vm4617, %v4612, 0.0
  %v4619 = vadd.f32 %v4616, %v4618
  %v4620 = vrot.slane %v4619, 4
  %v4621 = vadd.f32 %v4619, %v4620
  %v4622 = vrot.slane %v4621, 2
  %v4623 = vadd.f32 %v4621, %v4622
  %v4624 = vrot.slane %v4623, 1
  %v4625 = vadd.f32 %v4623, %v4624
  %v4626 = vadd.f32 %v4605, %v4609
  %v4627 = vsel %vm4617, %v4613, 0.0
  %v4628 = vadd.f32 %v4626, %v4627
  %v4629 = vrot.slane %v4628, 4
  %v4630 = vadd.f32 %v4628, %v4629
  %v4631 = vrot.slane %v4630, 2
  %v4632 = vadd.f32 %v4630, %v4631
  %v4633 = vrot.slane %v4632, 1
  %v4634 = vadd.f32 %v4632, %v4633
  %v4635 = vadd.f32 %v4606, %v4610
  %v4636 = vsel %vm4617, %v4614, 0.0
  %v4637 = vadd.f32 %v4635, %v4636
  %v4638 = vrot.slane %v4637, 4
  %v4639 = vadd.f32 %v4637, %v4638
  %v4640 = vrot.slane %v4639, 2
  %v4641 = vadd.f32 %v4639, %v4640
  %v4642 = vrot.slane %v4641, 1
  %v4643 = vadd.f32 %v4641, %v4642
  %v4644 = vadd.f32 %v4607, %v4611
  %v4645 = vsel %vm4617, %v4615, 0.0
  %v4646 = vadd.f32 %v4644, %v4645
  %v4647 = vrot.slane %v4646, 4
  %v4648 = vadd.f32 %v4646, %v4647
  %v4649 = vrot.slane %v4648, 2
  %v4650 = vadd.f32 %v4648, %v4649
  %v4651 = vrot.slane %v4650, 1
  %v4652 = vadd.f32 %v4650, %v4651
  %v4653 = vmul.f32 %v4625, 0.055555556
  %v4654 = vmul.f32 %v4634, 0.055555556
  %v4655 = vmul.f32 %v4643, 0.055555556
  %v4656 = vmul.f32 %v4652, 0.055555556
  %v4657 = vsub.f32 %v4604, %v4653
  %v4658 = vsub.f32 %v4605, %v4654
  %v4659 = vsub.f32 %v4606, %v4655
  %v4660 = vsub.f32 %v4607, %v4656
  %v4661 = vsub.f32 %v4608, %v4653
  %v4662 = vsub.f32 %v4609, %v4654
  %v4663 = vsub.f32 %v4610, %v4655
  %v4664 = vsub.f32 %v4611, %v4656
  %v4665 = vsub.f32 %v4612, %v4653
  %v4666 = vsub.f32 %v4613, %v4654
  %v4667 = vsub.f32 %v4614, %v4655
  %v4668 = vsub.f32 %v4615, %v4656
  %v4669 = vmul.f32 %v4657, %v4657
  %v4670 = vmul.f32 %v4658, %v4658
  %v4671 = vmul.f32 %v4659, %v4659
  %v4672 = vmul.f32 %v4660, %v4660
  %v4673 = vmul.f32 %v4661, %v4661
  %v4674 = vmul.f32 %v4662, %v4662
  %v4675 = vmul.f32 %v4663, %v4663
  %v4676 = vmul.f32 %v4664, %v4664
  %v4677 = vmul.f32 %v4665, %v4665
  %v4678 = vmul.f32 %v4666, %v4666
  %v4679 = vmul.f32 %v4667, %v4667
  %v4680 = vmul.f32 %v4668, %v4668
  %v4681 = vadd.f32 %v4669, %v4673
  %v4682 = vsel %vm4617, %v4677, 0.0
  %v4683 = vadd.f32 %v4681, %v4682
  %v4684 = vrot.slane %v4683, 4
  %v4685 = vadd.f32 %v4683, %v4684
  %v4686 = vrot.slane %v4685, 2
  %v4687 = vadd.f32 %v4685, %v4686
  %v4688 = vrot.slane %v4687, 1
  %v4689 = vadd.f32 %v4687, %v4688
  %v4690 = vadd.f32 %v4670, %v4674
  %v4691 = vsel %vm4617, %v4678, 0.0
  %v4692 = vadd.f32 %v4690, %v4691
  %v4693 = vrot.slane %v4692, 4
  %v4694 = vadd.f32 %v4692, %v4693
  %v4695 = vrot.slane %v4694, 2
  %v4696 = vadd.f32 %v4694, %v4695
  %v4697 = vrot.slane %v4696, 1
  %v4698 = vadd.f32 %v4696, %v4697
  %v4699 = vadd.f32 %v4671, %v4675
  %v4700 = vsel %vm4617, %v4679, 0.0
  %v4701 = vadd.f32 %v4699, %v4700
  %v4702 = vrot.slane %v4701, 4
  %v4703 = vadd.f32 %v4701, %v4702
  %v4704 = vrot.slane %v4703, 2
  %v4705 = vadd.f32 %v4703, %v4704
  %v4706 = vrot.slane %v4705, 1
  %v4707 = vadd.f32 %v4705, %v4706
  %v4708 = vadd.f32 %v4672, %v4676
  %v4709 = vsel %vm4617, %v4680, 0.0
  %v4710 = vadd.f32 %v4708, %v4709
  %v4711 = vrot.slane %v4710, 4
  %v4712 = vadd.f32 %v4710, %v4711
  %v4713 = vrot.slane %v4712, 2
  %v4714 = vadd.f32 %v4712, %v4713
  %v4715 = vrot.slane %v4714, 1
  %v4716 = vadd.f32 %v4714, %v4715
  %v4717 = vmul.f32 %v4689, 0.055555556
  %v4718 = vmul.f32 %v4698, 0.055555556
  %v4719 = vmul.f32 %v4707, 0.055555556
  %v4720 = vmul.f32 %v4716, 0.055555556
  %v4721 = vadd.f32 %v4717, 1e-05
  %v4722 = vadd.f32 %v4718, 1e-05
  %v4723 = vadd.f32 %v4719, 1e-05
  %v4724 = vadd.f32 %v4720, 1e-05
  %v4725 = vrsqrt.pop %v4721
  %v4726 = vrsqrt.pop %v4722
  %v4727 = vrsqrt.pop %v4723
  %v4728 = vrsqrt.pop %v4724
  %v4729 = vmul.f32 %v4657, %v4725
  %v4730 = vmul.f32 %v4658, %v4726
  %v4731 = vmul.f32 %v4659, %v4727
  %v4732 = vmul.f32 %v4660, %v4728
  %v4733 = vmul.f32 %v4661, %v4725
  %v4734 = vmul.f32 %v4662, %v4726
  %v4735 = vmul.f32 %v4663, %v4727
  %v4736 = vmul.f32 %v4664, %v4728
  %v4737 = vmul.f32 %v4665, %v4725
  %v4738 = vmul.f32 %v4666, %v4726
  %v4739 = vmul.f32 %v4667, %v4727
  %v4740 = vmul.f32 %v4668, %v4728
  %v4741 = vld [vmem:[%s3] sm:$0xf]
  %v4743 = vlaneseq
  %v4744 = vshrl.u32 %v4743, 7
  %v4745 = vsub.s32 0, %v4744
  %v4746 = vrot.slane %v4741, %v4745
  %v4747 = vlaneseq
  %v4748 = vshrl.u32 %v4747, 7
  %v4749 = vsub.s32 1, %v4748
  %v4750 = vrot.slane %v4741, %v4749
  %v4751 = vlaneseq
  %v4752 = vshrl.u32 %v4751, 7
  %v4753 = vsub.s32 2, %v4752
  %v4754 = vrot.slane %v4741, %v4753
  %v4755 = vlaneseq
  %v4756 = vshrl.u32 %v4755, 7
  %v4757 = vsub.s32 3, %v4756
  %v4758 = vrot.slane %v4741, %v4757
  %v4763 = vmul.f32 %v4729, %v4746
  %v4764 = vmul.f32 %v4730, %v4750
  %v4765 = vmul.f32 %v4731, %v4754
  %v4766 = vmul.f32 %v4732, %v4758
  %v4767 = vmul.f32 %v4733, %v4746
  %v4768 = vmul.f32 %v4734, %v4750
  %v4769 = vmul.f32 %v4735, %v4754
  %v4770 = vmul.f32 %v4736, %v4758
  %v4771 = vmul.f32 %v4737, %v4746
  %v4772 = vmul.f32 %v4738, %v4750
  %v4773 = vmul.f32 %v4739, %v4754
  %v4774 = vmul.f32 %v4740, %v4758
  %v4775 = vld [vmem:[%s4] sm:$0xf]
  %v4777 = vlaneseq
  %v4778 = vshrl.u32 %v4777, 7
  %v4779 = vsub.s32 0, %v4778
  %v4780 = vrot.slane %v4775, %v4779
  %v4781 = vlaneseq
  %v4782 = vshrl.u32 %v4781, 7
  %v4783 = vsub.s32 1, %v4782
  %v4784 = vrot.slane %v4775, %v4783
  %v4785 = vlaneseq
  %v4786 = vshrl.u32 %v4785, 7
  %v4787 = vsub.s32 2, %v4786
  %v4788 = vrot.slane %v4775, %v4787
  %v4789 = vlaneseq
  %v4790 = vshrl.u32 %v4789, 7
  %v4791 = vsub.s32 3, %v4790
  %v4792 = vrot.slane %v4775, %v4791
  %v4797 = vadd.f32 %v4763, %v4780
  %v4798 = vadd.f32 %v4764, %v4784
  %v4799 = vadd.f32 %v4765, %v4788
  %v4800 = vadd.f32 %v4766, %v4792
  %v4801 = vadd.f32 %v4767, %v4780
  %v4802 = vadd.f32 %v4768, %v4784
  %v4803 = vadd.f32 %v4769, %v4788
  %v4804 = vadd.f32 %v4770, %v4792
  %v4805 = vadd.f32 %v4771, %v4780
  %v4806 = vadd.f32 %v4772, %v4784
  %v4807 = vadd.f32 %v4773, %v4788
  %v4808 = vadd.f32 %v4774, %v4792
  %v4809 = vld [vmem:[%s5] sm:$0xff]
  %v4810 = vld [vmem:[%s5 + $0x8] sm:$0xff]
  %v4811 = vld [vmem:[%s5 + $0x10] sm:$0x11]
  %v4812 = vld [vmem:[%s5 + $0x18] sm:$0x11]
  %v4813 = vunpack.c.l.bf16 %v4809
  %v4814 = vunpack.c.h.bf16 %v4809
  %v4815 = vunpack.c.l.bf16 %v4810
  %v4816 = vunpack.c.h.bf16 %v4810
  %v4817 = vunpack.c.l.bf16 %v4811
  %v4818 = vunpack.c.h.bf16 %v4811
  %v4819 = vunpack.c.l.bf16 %v4812
  %v4820 = vunpack.c.h.bf16 %v4812
  %v4821 = vmul.f32 %v4797, %v4813
  %v4822 = vmul.f32 %v4798, %v4814
  %v4823 = vmul.f32 %v4799, %v4815
  %v4824 = vmul.f32 %v4800, %v4816
  %v4825 = vmul.f32 %v4801, %v4817
  %v4826 = vmul.f32 %v4802, %v4818
  %v4827 = vmul.f32 %v4803, %v4819
  %v4828 = vmul.f32 %v4804, %v4820
  %vm4829 = vcmask 1040384
  %v4830 = vsel %vm4829, %v4825, 0.0
  %v4831 = vadd.f32 %v4821, %v4830
  %v4832 = vrot.slane %v4831, 4
  %v4833 = vadd.f32 %v4831, %v4832
  %v4834 = vrot.slane %v4833, 2
  %v4835 = vadd.f32 %v4833, %v4834
  %v4836 = vrot.slane %v4835, 1
  %v4837 = vadd.f32 %v4835, %v4836
  %v4838 = vsel %vm4829, %v4826, 0.0
  %v4839 = vadd.f32 %v4822, %v4838
  %v4840 = vrot.slane %v4839, 4
  %v4841 = vadd.f32 %v4839, %v4840
  %v4842 = vrot.slane %v4841, 2
  %v4843 = vadd.f32 %v4841, %v4842
  %v4844 = vrot.slane %v4843, 1
  %v4845 = vadd.f32 %v4843, %v4844
  %v4846 = vsel %vm4829, %v4827, 0.0
  %v4847 = vadd.f32 %v4823, %v4846
  %v4848 = vrot.slane %v4847, 4
  %v4849 = vadd.f32 %v4847, %v4848
  %v4850 = vrot.slane %v4849, 2
  %v4851 = vadd.f32 %v4849, %v4850
  %v4852 = vrot.slane %v4851, 1
  %v4853 = vadd.f32 %v4851, %v4852
  %v4854 = vsel %vm4829, %v4828, 0.0
  %v4855 = vadd.f32 %v4824, %v4854
  %v4856 = vrot.slane %v4855, 4
  %v4857 = vadd.f32 %v4855, %v4856
  %v4858 = vrot.slane %v4857, 2
  %v4859 = vadd.f32 %v4857, %v4858
  %v4860 = vrot.slane %v4859, 1
  %v4861 = vadd.f32 %v4859, %v4860
  %v4862 = vadd.f32 %v4837, %v4845
  %v4863 = vadd.f32 %v4862, %v4853
  %v4864 = vadd.f32 %v4863, %v4861
  %4865 = vadd.xlane.f32.xlu0 %v4864
  %v4866 = vpop.xlane.xlu0 %4865
  %v4875 = vrot.slane %v4813, 7
  %v4876 = vrot.slane %v4814, 7
  %v4877 = vrot.slane %v4815, 7
  %v4878 = vrot.slane %v4816, 7
  %v4879 = vrot.slane %v4817, 7
  %v4880 = vsel %vm4829, %v4875, %v4879
  %v4881 = vrot.slane %v4818, 7
  %v4882 = vsel %vm4829, %v4876, %v4881
  %v4883 = vrot.slane %v4819, 7
  %v4884 = vsel %vm4829, %v4877, %v4883
  %v4885 = vrot.slane %v4820, 7
  %v4886 = vsel %vm4829, %v4878, %v4885
  %v4895 = vmul.f32 %v4801, %v4875
  %v4896 = vmul.f32 %v4802, %v4876
  %v4897 = vmul.f32 %v4803, %v4877
  %v4898 = vmul.f32 %v4804, %v4878
  %v4899 = vmul.f32 %v4805, %v4880
  %v4900 = vmul.f32 %v4806, %v4882
  %v4901 = vmul.f32 %v4807, %v4884
  %v4902 = vmul.f32 %v4808, %v4886
  %vm4911 = vcmask 1046528
  %v4912 = vrot.slane %v4895, 1
  %v4913 = vrot.slane %v4899, 1
  %v4914 = vsel %vm4911, %v4912, %v4913
  %v4915 = vrot.slane %v4896, 1
  %v4916 = vrot.slane %v4900, 1
  %v4917 = vsel %vm4911, %v4915, %v4916
  %v4918 = vrot.slane %v4897, 1
  %v4919 = vrot.slane %v4901, 1
  %v4920 = vsel %vm4911, %v4918, %v4919
  %v4921 = vrot.slane %v4898, 1
  %v4922 = vrot.slane %v4902, 1
  %v4923 = vsel %vm4911, %v4921, %v4922
  %v4932 = vsel %vm4829, %v4913, 0.0
  %v4933 = vadd.f32 %v4914, %v4932
  %v4934 = vrot.slane %v4933, 4
  %v4935 = vadd.f32 %v4933, %v4934
  %v4936 = vrot.slane %v4935, 2
  %v4937 = vadd.f32 %v4935, %v4936
  %v4938 = vrot.slane %v4937, 1
  %v4939 = vadd.f32 %v4937, %v4938
  %v4940 = vsel %vm4829, %v4916, 0.0
  %v4941 = vadd.f32 %v4917, %v4940
  %v4942 = vrot.slane %v4941, 4
  %v4943 = vadd.f32 %v4941, %v4942
  %v4944 = vrot.slane %v4943, 2
  %v4945 = vadd.f32 %v4943, %v4944
  %v4946 = vrot.slane %v4945, 1
  %v4947 = vadd.f32 %v4945, %v4946
  %v4948 = vsel %vm4829, %v4919, 0.0
  %v4949 = vadd.f32 %v4920, %v4948
  %v4950 = vrot.slane %v4949, 4
  %v4951 = vadd.f32 %v4949, %v4950
  %v4952 = vrot.slane %v4951, 2
  %v4953 = vadd.f32 %v4951, %v4952
  %v4954 = vrot.slane %v4953, 1
  %v4955 = vadd.f32 %v4953, %v4954
  %v4956 = vsel %vm4829, %v4922, 0.0
  %v4957 = vadd.f32 %v4923, %v4956
  %v4958 = vrot.slane %v4957, 4
  %v4959 = vadd.f32 %v4957, %v4958
  %v4960 = vrot.slane %v4959, 2
  %v4961 = vadd.f32 %v4959, %v4960
  %v4962 = vrot.slane %v4961, 1
  %v4963 = vadd.f32 %v4961, %v4962
  %v4964 = vadd.f32 %v4939, %v4947
  %v4965 = vadd.f32 %v4964, %v4955
  %v4966 = vadd.f32 %v4965, %v4963
  %4967 = vadd.xlane.f32.xlu0 %v4966
  %v4968 = vpop.xlane.xlu0 %4967
  %v4969 = vsel %vm4829, %v4866, %v4968
  %v4970 = vld [vmem:[#allocation2] sm:$0x1]
  %v4972 = vlaneseq
  %v4973 = vshrl.u32 %v4972, 7
  %v4974 = vsub.s32 0, %v4973
  %v4975 = vrot.slane %v4970, %v4974
  %v4977 = vadd.f32 %v4969, %v4975
  %v4978 = vxor.u32 %v4977, 2147483648
  %v4979 = vmul.f32 %v4978, 1.442695
  %v4980 = vpow.pop %v4979
  %v4981 = vadd.f32 %v4980, 1.0
  %v4982 = vrcp.pop %v4981
  %v4983 = vmul.f32 1.0, %v4982
  %vm4984 = vcmask 1024
  %4985 = vst.msk [vmem:[%s7] sm:$0x3] %vm4984, %v4983
  // Predicated region
  $region30: #{discriminator_forward.5} parent=0 // pred_check
    _
  $region31: #{discriminator_forward.5} parent=0 // pred_check_branch
    %4987 = sbr.rel (0) target = $region33
  $region32: #{discriminator_forward.5} parent=0 // pred_region
    _
  $region33: #{discriminator_forward.5} parent=0 // pred_fallthru
    _
  // Predicated region
  $region34: #{discriminator_forward.5} parent=0 // pred_check
    _
  $region35: #{discriminator_forward.5} parent=0 // pred_check_branch
    %4989 = sbr.rel (0) target = $region37
  $region36: #{discriminator_forward.5} parent=0 // pred_region
    _
  $region37: #{discriminator_forward.5} parent=0 // pred_fallthru
    _

</llo_original>
